<compile_context>
chip_gen: v7x
topology: tpu7x:2x2x1
jax: 0.10.0
libtpu: 0.0.40
codegen_flags: <defaults>
</compile_context>

<pallas_src>
import jax
import jax.numpy as jnp
import numpy as np
from jax.experimental import pallas as pl
from jax.experimental.pallas import tpu as pltpu


# -----------------------------------------------------------------------------
# Tap validity masks: mask[t, j] == 1 iff spatial position j has an in-bounds
# neighbour for tap t (t enumerates (dd, dh, dw) in kernel order kd, kh, kw).
# -----------------------------------------------------------------------------
def _make_tap_masks(D, H, W):
    d = np.arange(D)[:, None, None]
    h = np.arange(H)[None, :, None]
    w = np.arange(W)[None, None, :]
    masks = np.zeros((27, D * H * W), np.float32)
    t = 0
    for dd in (-1, 0, 1):
        for dh in (-1, 0, 1):
            for dw in (-1, 0, 1):
                valid = ((d + dd >= 0) & (d + dd < D) &
                         (h + dh >= 0) & (h + dh < H) &
                         (w + dw >= 0) & (w + dw < W))
                masks[t] = valid.reshape(-1).astype(np.float32)
                t += 1
    return jnp.asarray(masks)


# -----------------------------------------------------------------------------
# Channels-major 3x3x3 conv (padding=1) + bias + ReLU via one big-K matmul.
# -----------------------------------------------------------------------------
def _conv3x3_cm(x, w_ref, b_ref, mask_ref, slab_ref, D, H, W):
    """x: (cin, DHW) value; w_ref: (cout, 27*cin) with columns ordered
    (kd, kh, kw, c); b_ref: (cout, 1); mask_ref: (27, DHW) 0/1 masks;
    slab_ref: (>=27*cin, DHW) VMEM scratch.  Returns (cout, DHW) f32."""
    cin = x.shape[0]
    DHW = D * H * W
    smax = H * W + W + 1                      # max |tap shift|
    zpad = jnp.zeros((cin, smax), x.dtype)
    xpad = jnp.concatenate([zpad, x, zpad], axis=1)   # (cin, DHW + 2*smax)

    t = 0
    for dd in (-1, 0, 1):
        for dh in (-1, 0, 1):
            for dw in (-1, 0, 1):
                s = dd * H * W + dh * W + dw
                # Lane-shifted copy of x; out-of-bounds neighbours are either
                # explicit zero padding or get zeroed by the mask below.
                tap = xpad[:, smax + s: smax + s + DHW]
                if not (dd == 0 and dh == 0 and dw == 0):
                    tap = tap * mask_ref[t:t + 1, :]
                slab_ref[t * cin:(t + 1) * cin, :] = tap   # sublane-aligned
                t += 1

    slab = slab_ref[0:27 * cin, :]                        # (27*cin, DHW)
    y = jnp.dot(w_ref[...], slab, preferred_element_type=jnp.float32)
    return jnp.maximum(y + b_ref[...], 0.0)


# -----------------------------------------------------------------------------
# Fused forward pass
# -----------------------------------------------------------------------------
def vnet_forward(x_ncdhw, params):
    """x_ncdhw: (N, Cin, D, H, W) float32 -> (N, num_classes, D, H, W)."""
    N, CIN, D, H, W = x_ncdhw.shape
    num_classes = params["w4"].shape[1]
    DHW = D * H * W
    C1, C2, C3 = 16, 32, 16
    CIN_P = max(8, ((CIN + 7) // 8) * 8)         # sublane-aligned input chans
    CPAD = max(8, ((num_classes + 7) // 8) * 8)  # sublane-aligned classes

    # Channels-major, lane-dense input (free reshape of NCDHW; no transpose).
    x_cm = jnp.zeros((N, CIN_P, DHW), jnp.float32)
    x_cm = x_cm.at[:, :CIN, :].set(
        x_ncdhw.reshape(N, CIN, DHW).astype(jnp.float32))

    masks = _make_tap_masks(D, H, W)

    def pack_w(w, cin, cin_pad, cout):
        # (3,3,3,cin,cout) -> (cout, 27*cin_pad), cols ordered (kd,kh,kw,c).
        wp = jnp.zeros((3, 3, 3, cin_pad, cout), jnp.float32)
        wp = wp.at[:, :, :, :cin, :].set(w.astype(jnp.float32))
        return wp.reshape(27 * cin_pad, cout).T

    w1t = pack_w(params["w1"], CIN, CIN_P, C1)           # (16, 27*CIN_P)
    w2t = pack_w(params["w2"], C1, C1, C2)               # (32, 432)
    w3t = pack_w(params["w3"], C2, C2, C3)               # (16, 864)
    b1 = params["b1"].reshape(C1, 1).astype(jnp.float32)
    b2 = params["b2"].reshape(C2, 1).astype(jnp.float32)
    b3 = params["b3"].reshape(C3, 1).astype(jnp.float32)
    # Final 1x1 conv, transposed + channel-padded.  Padded rows of w4t stay
    # exactly zero and get bias -1e30 so exp() underflows to 0 in the softmax.
    w4t = jnp.zeros((CPAD, C3), jnp.float32).at[:num_classes].set(
        params["w4"].T.astype(jnp.float32))
    b4 = jnp.full((CPAD, 1), -1e30, jnp.float32).at[:num_classes, 0].set(
        params["b4"].astype(jnp.float32))

    slab_rows = 27 * max(CIN_P, C1, C2)                  # 864 rows, reused

    def kernel(mask_ref, x_ref, w1_ref, b1_ref, w2_ref, b2_ref,
               w3_ref, b3_ref, w4_ref, b4_ref, o_ref, slab_ref):
        x = x_ref[0]                                              # (CIN_P, DHW)
        h1 = _conv3x3_cm(x, w1_ref, b1_ref, mask_ref, slab_ref, D, H, W)
        h2 = _conv3x3_cm(h1, w2_ref, b2_ref, mask_ref, slab_ref, D, H, W)
        h3 = _conv3x3_cm(h2, w3_ref, b3_ref, mask_ref, slab_ref, D, H, W)
        # 1x1 conv + softmax over channels (axis 0), lane-dense output.
        logits = jnp.dot(w4_ref[...], h3,
                         preferred_element_type=jnp.float32)     # (CPAD, DHW)
        logits = logits + b4_ref[...]
        m = jnp.max(logits, axis=0, keepdims=True)
        e = jnp.exp(logits - m)
        s = jnp.sum(e, axis=0, keepdims=True)
        p = e * pl.reciprocal(s, approx=False)
        o_ref[...] = p.reshape(o_ref.shape)

    flops = int(2 * DHW * (27 * CIN_P * C1 + 27 * C1 * C2 + 27 * C2 * C3
                           + C3 * CPAD) * N)
    bytes_accessed = int(4 * (x_cm.size + masks.size + w1t.size + w2t.size +
                              w3t.size + w4t.size + b1.size + b2.size +
                              b3.size + b4.size + N * CPAD * DHW))

    out = pl.pallas_call(
        kernel,
        out_shape=jax.ShapeDtypeStruct((N, CPAD, DHW), jnp.float32),
        grid=(N,),
        in_specs=[
            pl.BlockSpec((27, DHW), lambda n: (0, 0)),            # masks
            pl.BlockSpec((1, CIN_P, DHW), lambda n: (n, 0, 0)),   # x
            pl.BlockSpec((C1, 27 * CIN_P), lambda n: (0, 0)),     # w1t
            pl.BlockSpec((C1, 1), lambda n: (0, 0)),              # b1
            pl.BlockSpec((C2, 27 * C1), lambda n: (0, 0)),        # w2t
            pl.BlockSpec((C2, 1), lambda n: (0, 0)),              # b2
            pl.BlockSpec((C3, 27 * C2), lambda n: (0, 0)),        # w3t
            pl.BlockSpec((C3, 1), lambda n: (0, 0)),              # b3
            pl.BlockSpec((CPAD, C3), lambda n: (0, 0)),           # w4t
            pl.BlockSpec((CPAD, 1), lambda n: (0, 0)),            # b4
        ],
        out_specs=pl.BlockSpec((1, CPAD, DHW), lambda n: (n, 0, 0)),
        scratch_shapes=[pltpu.VMEM((slab_rows, DHW), jnp.float32)],
        compiler_params=pltpu.CompilerParams(
            dimension_semantics=("parallel",)),
        cost_estimate=pl.CostEstimate(
            flops=flops, transcendentals=int(N * CPAD * DHW),
            bytes_accessed=bytes_accessed),
    )(masks, x_cm, w1t, b1, w2t, b2, w3t, b3, w4t, b4)

    return out[:, :num_classes, :].reshape(N, num_classes, D, H, W)


# -----------------------------------------------------------------------------
# Parameter init (matches torch Conv3d default init ranges)
# -----------------------------------------------------------------------------
def init_params(key, input_channels, num_classes):
    ks = jax.random.split(key, 8)

    def conv_w(k, cin, cout, ksz):
        fan_in = cin * ksz ** 3
        scale = 1.0 / np.sqrt(fan_in)
        shape = (cin, cout) if ksz == 1 else (ksz, ksz, ksz, cin, cout)
        return jax.random.uniform(k, shape, jnp.float32, -scale, scale)

    def conv_b(k, cin, cout, ksz):
        scale = 1.0 / np.sqrt(cin * ksz ** 3)
        return jax.random.uniform(k, (cout,), jnp.float32, -scale, scale)

    return {
        "w1": conv_w(ks[0], input_channels, 16, 3),
        "b1": conv_b(ks[1], input_channels, 16, 3),
        "w2": conv_w(ks[2], 16, 32, 3),
        "b2": conv_b(ks[3], 16, 32, 3),
        "w3": conv_w(ks[4], 32, 16, 3),
        "b3": conv_b(ks[5], 32, 16, 3),
        "w4": conv_w(ks[6], 16, num_classes, 1),
        "b4": conv_b(ks[7], 16, num_classes, 1),
    }


# -----------------------------------------------------------------------------
# Pure-JAX reference (for correctness check)
# -----------------------------------------------------------------------------
def conv3d_ref(x_ncdhw, w_5d, b):
    w_oidhw = jnp.transpose(w_5d, (4, 3, 0, 1, 2))  # (Cout, Cin, 3,3,3)
    y = jax.lax.conv_general_dilated(
        x_ncdhw, w_oidhw, window_strides=(1, 1, 1),
        padding=((1, 1), (1, 1), (1, 1)),
        dimension_numbers=("NCDHW", "OIDHW", "NCDHW"))
    return y + b.reshape(1, -1, 1, 1, 1)


def vnet_ref(x_ncdhw, params):
    h = jax.nn.relu(conv3d_ref(x_ncdhw, params["w1"], params["b1"]))
    h = jax.nn.relu(conv3d_ref(h, params["w2"], params["b2"]))
    h = jax.nn.relu(conv3d_ref(h, params["w3"], params["b3"]))
    logits = jnp.einsum("ncdhw,co->nodhw", h, params["w4"])
    logits = logits + params["b4"].reshape(1, -1, 1, 1, 1)
    return jax.nn.softmax(logits, axis=1)


if __name__ == "__main__":
    key = jax.random.PRNGKey(0)
    k_x, k_p = jax.random.split(key)

    N, C_IN, D, H, W = 2, 3, 8, 8, 8
    NUM_CLASSES = 3

    x = jax.random.normal(k_x, (N, C_IN, D, H, W), jnp.float32)
    params = init_params(k_p, C_IN, NUM_CLASSES)

    vnet_fwd = jax.jit(vnet_forward)
    out = jax.block_until_ready(vnet_fwd(x, params))
    ref = jax.block_until_ready(vnet_ref(x, params))

    assert out.shape == (N, NUM_CLASSES, D, H, W), out.shape
    # All math is f32 with exact softmax reciprocal -> ~1e-5 agreement.
    np.testing.assert_allclose(np.asarray(out), np.asarray(ref),
                               rtol=1e-3, atol=1e-5)
    print("KERNEL_OK")
</pallas_src>

<mosaic_0001>
module attributes {stable_mosaic.version = 11 : i64} {
  func.func @kernel(%arg0: i32, %arg1: memref<27x512xf32, #tpu.memory_space<vmem>>, %arg2: memref<1x8x512xf32, #tpu.memory_space<vmem>>, %arg3: memref<16x216xf32, #tpu.memory_space<vmem>>, %arg4: memref<16x1xf32, #tpu.memory_space<vmem>>, %arg5: memref<32x432xf32, #tpu.memory_space<vmem>>, %arg6: memref<32x1xf32, #tpu.memory_space<vmem>>, %arg7: memref<16x864xf32, #tpu.memory_space<vmem>>, %arg8: memref<16x1xf32, #tpu.memory_space<vmem>>, %arg9: memref<8x16xf32, #tpu.memory_space<vmem>>, %arg10: memref<8x1xf32, #tpu.memory_space<vmem>>, %arg11: memref<1x8x512xf32, #tpu.memory_space<vmem>>, %arg12: memref<864x512xf32, #tpu.memory_space<vmem>>) attributes {dimension_semantics = [#tpu.dimension_semantics<parallel>], iteration_bounds = array<i64: 2>, scalar_prefetch = 0 : i64, scratch_operands = 1 : i64, tpu.core_type = #tpu.core_type<tc>, window_params = [{pipeline_mode = #tpu.pipeline_mode<synchronous>, transform_indices = @transform_0, window_bounds = array<i64: 27, 512>}, {transform_indices = @transform_1, window_bounds = array<i64: 1, 8, 512>}, {pipeline_mode = #tpu.pipeline_mode<synchronous>, transform_indices = @transform_2, window_bounds = array<i64: 16, 216>}, {pipeline_mode = #tpu.pipeline_mode<synchronous>, transform_indices = @transform_3, window_bounds = array<i64: 16, 1>}, {pipeline_mode = #tpu.pipeline_mode<synchronous>, transform_indices = @transform_4, window_bounds = array<i64: 32, 432>}, {pipeline_mode = #tpu.pipeline_mode<synchronous>, transform_indices = @transform_5, window_bounds = array<i64: 32, 1>}, {pipeline_mode = #tpu.pipeline_mode<synchronous>, transform_indices = @transform_6, window_bounds = array<i64: 16, 864>}, {pipeline_mode = #tpu.pipeline_mode<synchronous>, transform_indices = @transform_7, window_bounds = array<i64: 16, 1>}, {pipeline_mode = #tpu.pipeline_mode<synchronous>, transform_indices = @transform_8, window_bounds = array<i64: 8, 16>}, {pipeline_mode = #tpu.pipeline_mode<synchronous>, transform_indices = @transform_9, window_bounds = array<i64: 8, 1>}, {transform_indices = @transform_10, window_bounds = array<i64: 1, 8, 512>}]} {
    %c0 = arith.constant 0 : index
    %c0_0 = arith.constant 0 : index
    %c0_1 = arith.constant 0 : index
    %0 = vector.load %arg2[%c0, %c0_0, %c0_1] : memref<1x8x512xf32, #tpu.memory_space<vmem>>, vector<1x8x512xf32>
    %1 = vector.shape_cast %0 : vector<1x8x512xf32> to vector<8x512xf32>
    %cst = arith.constant 0.000000e+00 : f32
    %2 = vector.broadcast %cst : f32 to vector<8x73xf32>
    %3 = tpu.concatenate %2, %1, %2 in 1 : vector<8x73xf32>, vector<8x512xf32>, vector<8x73xf32> -> vector<8x658xf32>
    %4 = vector.extract_strided_slice %3 {offsets = [0, 0], sizes = [8, 512], strides = [1, 1]} : vector<8x658xf32> to vector<8x512xf32>
    %c0_2 = arith.constant 0 : index
    %c0_3 = arith.constant 0 : index
    %5 = vector.load %arg1[%c0_2, %c0_3] : memref<27x512xf32, #tpu.memory_space<vmem>>, vector<1x512xf32>
    %6 = vector.broadcast %5 : vector<1x512xf32> to vector<8x512xf32>
    %7 = arith.mulf %4, %6 : vector<8x512xf32>
    %c0_4 = arith.constant 0 : index
    %c0_5 = arith.constant 0 : index
    %8 = vector.load %arg12[%c0_4, %c0_5] : memref<864x512xf32, #tpu.memory_space<vmem>>, vector<8x512xf32>
    tpu.vector_store %arg12[%c0_4, %c0_5], %7 {strides = array<i32>} : memref<864x512xf32, #tpu.memory_space<vmem>>, vector<8x512xf32>,
    %9 = vector.extract_strided_slice %3 {offsets = [0, 1], sizes = [8, 512], strides = [1, 1]} : vector<8x658xf32> to vector<8x512xf32>
    %c1 = arith.constant 1 : index
    %c0_6 = arith.constant 0 : index
    %10 = vector.load %arg1[%c1, %c0_6] : memref<27x512xf32, #tpu.memory_space<vmem>>, vector<1x512xf32>
    %11 = vector.broadcast %10 : vector<1x512xf32> to vector<8x512xf32>
    %12 = arith.mulf %9, %11 : vector<8x512xf32>
    %c8 = arith.constant 8 : index
    %c0_7 = arith.constant 0 : index
    %13 = vector.load %arg12[%c8, %c0_7] : memref<864x512xf32, #tpu.memory_space<vmem>>, vector<8x512xf32>
    tpu.vector_store %arg12[%c8, %c0_7], %12 {strides = array<i32>} : memref<864x512xf32, #tpu.memory_space<vmem>>, vector<8x512xf32>,
    %14 = vector.extract_strided_slice %3 {offsets = [0, 2], sizes = [8, 512], strides = [1, 1]} : vector<8x658xf32> to vector<8x512xf32>
    %c2 = arith.constant 2 : index
    %c0_8 = arith.constant 0 : index
    %15 = vector.load %arg1[%c2, %c0_8] : memref<27x512xf32, #tpu.memory_space<vmem>>, vector<1x512xf32>
    %16 = vector.broadcast %15 : vector<1x512xf32> to vector<8x512xf32>
    %17 = arith.mulf %14, %16 : vector<8x512xf32>
    %c16 = arith.constant 16 : index
    %c0_9 = arith.constant 0 : index
    %18 = vector.load %arg12[%c16, %c0_9] : memref<864x512xf32, #tpu.memory_space<vmem>>, vector<8x512xf32>
    tpu.vector_store %arg12[%c16, %c0_9], %17 {strides = array<i32>} : memref<864x512xf32, #tpu.memory_space<vmem>>, vector<8x512xf32>,
    %19 = vector.extract_strided_slice %3 {offsets = [0, 8], sizes = [8, 512], strides = [1, 1]} : vector<8x658xf32> to vector<8x512xf32>
    %c3 = arith.constant 3 : index
    %c0_10 = arith.constant 0 : index
    %20 = vector.load %arg1[%c3, %c0_10] : memref<27x512xf32, #tpu.memory_space<vmem>>, vector<1x512xf32>
    %21 = vector.broadcast %20 : vector<1x512xf32> to vector<8x512xf32>
    %22 = arith.mulf %19, %21 : vector<8x512xf32>
    %c24 = arith.constant 24 : index
    %c0_11 = arith.constant 0 : index
    %23 = vector.load %arg12[%c24, %c0_11] : memref<864x512xf32, #tpu.memory_space<vmem>>, vector<8x512xf32>
    tpu.vector_store %arg12[%c24, %c0_11], %22 {strides = array<i32>} : memref<864x512xf32, #tpu.memory_space<vmem>>, vector<8x512xf32>,
    %24 = vector.extract_strided_slice %3 {offsets = [0, 9], sizes = [8, 512], strides = [1, 1]} : vector<8x658xf32> to vector<8x512xf32>
    %c4 = arith.constant 4 : index
    %c0_12 = arith.constant 0 : index
    %25 = vector.load %arg1[%c4, %c0_12] : memref<27x512xf32, #tpu.memory_space<vmem>>, vector<1x512xf32>
    %26 = vector.broadcast %25 : vector<1x512xf32> to vector<8x512xf32>
    %27 = arith.mulf %24, %26 : vector<8x512xf32>
    %c32 = arith.constant 32 : index
    %c0_13 = arith.constant 0 : index
    %28 = vector.load %arg12[%c32, %c0_13] : memref<864x512xf32, #tpu.memory_space<vmem>>, vector<8x512xf32>
    tpu.vector_store %arg12[%c32, %c0_13], %27 {strides = array<i32>} : memref<864x512xf32, #tpu.memory_space<vmem>>, vector<8x512xf32>,
    %29 = vector.extract_strided_slice %3 {offsets = [0, 10], sizes = [8, 512], strides = [1, 1]} : vector<8x658xf32> to vector<8x512xf32>
    %c5 = arith.constant 5 : index
    %c0_14 = arith.constant 0 : index
    %30 = vector.load %arg1[%c5, %c0_14] : memref<27x512xf32, #tpu.memory_space<vmem>>, vector<1x512xf32>
    %31 = vector.broadcast %30 : vector<1x512xf32> to vector<8x512xf32>
    %32 = arith.mulf %29, %31 : vector<8x512xf32>
    %c40 = arith.constant 40 : index
    %c0_15 = arith.constant 0 : index
    %33 = vector.load %arg12[%c40, %c0_15] : memref<864x512xf32, #tpu.memory_space<vmem>>, vector<8x512xf32>
    tpu.vector_store %arg12[%c40, %c0_15], %32 {strides = array<i32>} : memref<864x512xf32, #tpu.memory_space<vmem>>, vector<8x512xf32>,
    %34 = vector.extract_strided_slice %3 {offsets = [0, 16], sizes = [8, 512], strides = [1, 1]} : vector<8x658xf32> to vector<8x512xf32>
    %c6 = arith.constant 6 : index
    %c0_16 = arith.constant 0 : index
    %35 = vector.load %arg1[%c6, %c0_16] : memref<27x512xf32, #tpu.memory_space<vmem>>, vector<1x512xf32>
    %36 = vector.broadcast %35 : vector<1x512xf32> to vector<8x512xf32>
    %37 = arith.mulf %34, %36 : vector<8x512xf32>
    %c48 = arith.constant 48 : index
    %c0_17 = arith.constant 0 : index
    %38 = vector.load %arg12[%c48, %c0_17] : memref<864x512xf32, #tpu.memory_space<vmem>>, vector<8x512xf32>
    tpu.vector_store %arg12[%c48, %c0_17], %37 {strides = array<i32>} : memref<864x512xf32, #tpu.memory_space<vmem>>, vector<8x512xf32>,
    %39 = vector.extract_strided_slice %3 {offsets = [0, 17], sizes = [8, 512], strides = [1, 1]} : vector<8x658xf32> to vector<8x512xf32>
    %c7 = arith.constant 7 : index
    %c0_18 = arith.constant 0 : index
    %40 = vector.load %arg1[%c7, %c0_18] : memref<27x512xf32, #tpu.memory_space<vmem>>, vector<1x512xf32>
    %41 = vector.broadcast %40 : vector<1x512xf32> to vector<8x512xf32>
    %42 = arith.mulf %39, %41 : vector<8x512xf32>
    %c56 = arith.constant 56 : index
    %c0_19 = arith.constant 0 : index
    %43 = vector.load %arg12[%c56, %c0_19] : memref<864x512xf32, #tpu.memory_space<vmem>>, vector<8x512xf32>
    tpu.vector_store %arg12[%c56, %c0_19], %42 {strides = array<i32>} : memref<864x512xf32, #tpu.memory_space<vmem>>, vector<8x512xf32>,
    %44 = vector.extract_strided_slice %3 {offsets = [0, 18], sizes = [8, 512], strides = [1, 1]} : vector<8x658xf32> to vector<8x512xf32>
    %c8_20 = arith.constant 8 : index
    %c0_21 = arith.constant 0 : index
    %45 = vector.load %arg1[%c8_20, %c0_21] : memref<27x512xf32, #tpu.memory_space<vmem>>, vector<1x512xf32>
    %46 = vector.broadcast %45 : vector<1x512xf32> to vector<8x512xf32>
    %47 = arith.mulf %44, %46 : vector<8x512xf32>
    %c64 = arith.constant 64 : index
    %c0_22 = arith.constant 0 : index
    %48 = vector.load %arg12[%c64, %c0_22] : memref<864x512xf32, #tpu.memory_space<vmem>>, vector<8x512xf32>
    tpu.vector_store %arg12[%c64, %c0_22], %47 {strides = array<i32>} : memref<864x512xf32, #tpu.memory_space<vmem>>, vector<8x512xf32>,
    %49 = vector.extract_strided_slice %3 {offsets = [0, 64], sizes = [8, 512], strides = [1, 1]} : vector<8x658xf32> to vector<8x512xf32>
    %c9 = arith.constant 9 : index
    %c0_23 = arith.constant 0 : index
    %50 = vector.load %arg1[%c9, %c0_23] : memref<27x512xf32, #tpu.memory_space<vmem>>, vector<1x512xf32>
    %51 = vector.broadcast %50 : vector<1x512xf32> to vector<8x512xf32>
    %52 = arith.mulf %49, %51 : vector<8x512xf32>
    %c72 = arith.constant 72 : index
    %c0_24 = arith.constant 0 : index
    %53 = vector.load %arg12[%c72, %c0_24] : memref<864x512xf32, #tpu.memory_space<vmem>>, vector<8x512xf32>
    tpu.vector_store %arg12[%c72, %c0_24], %52 {strides = array<i32>} : memref<864x512xf32, #tpu.memory_space<vmem>>, vector<8x512xf32>,
    %54 = vector.extract_strided_slice %3 {offsets = [0, 65], sizes = [8, 512], strides = [1, 1]} : vector<8x658xf32> to vector<8x512xf32>
    %c10 = arith.constant 10 : index
    %c0_25 = arith.constant 0 : index
    %55 = vector.load %arg1[%c10, %c0_25] : memref<27x512xf32, #tpu.memory_space<vmem>>, vector<1x512xf32>
    %56 = vector.broadcast %55 : vector<1x512xf32> to vector<8x512xf32>
    %57 = arith.mulf %54, %56 : vector<8x512xf32>
    %c80 = arith.constant 80 : index
    %c0_26 = arith.constant 0 : index
    %58 = vector.load %arg12[%c80, %c0_26] : memref<864x512xf32, #tpu.memory_space<vmem>>, vector<8x512xf32>
    tpu.vector_store %arg12[%c80, %c0_26], %57 {strides = array<i32>} : memref<864x512xf32, #tpu.memory_space<vmem>>, vector<8x512xf32>,
    %59 = vector.extract_strided_slice %3 {offsets = [0, 66], sizes = [8, 512], strides = [1, 1]} : vector<8x658xf32> to vector<8x512xf32>
    %c11 = arith.constant 11 : index
    %c0_27 = arith.constant 0 : index
    %60 = vector.load %arg1[%c11, %c0_27] : memref<27x512xf32, #tpu.memory_space<vmem>>, vector<1x512xf32>
    %61 = vector.broadcast %60 : vector<1x512xf32> to vector<8x512xf32>
    %62 = arith.mulf %59, %61 : vector<8x512xf32>
    %c88 = arith.constant 88 : index
    %c0_28 = arith.constant 0 : index
    %63 = vector.load %arg12[%c88, %c0_28] : memref<864x512xf32, #tpu.memory_space<vmem>>, vector<8x512xf32>
    tpu.vector_store %arg12[%c88, %c0_28], %62 {strides = array<i32>} : memref<864x512xf32, #tpu.memory_space<vmem>>, vector<8x512xf32>,
    %64 = vector.extract_strided_slice %3 {offsets = [0, 72], sizes = [8, 512], strides = [1, 1]} : vector<8x658xf32> to vector<8x512xf32>
    %c12 = arith.constant 12 : index
    %c0_29 = arith.constant 0 : index
    %65 = vector.load %arg1[%c12, %c0_29] : memref<27x512xf32, #tpu.memory_space<vmem>>, vector<1x512xf32>
    %66 = vector.broadcast %65 : vector<1x512xf32> to vector<8x512xf32>
    %67 = arith.mulf %64, %66 : vector<8x512xf32>
    %c96 = arith.constant 96 : index
    %c0_30 = arith.constant 0 : index
    %68 = vector.load %arg12[%c96, %c0_30] : memref<864x512xf32, #tpu.memory_space<vmem>>, vector<8x512xf32>
    tpu.vector_store %arg12[%c96, %c0_30], %67 {strides = array<i32>} : memref<864x512xf32, #tpu.memory_space<vmem>>, vector<8x512xf32>,
    %69 = vector.extract_strided_slice %3 {offsets = [0, 73], sizes = [8, 512], strides = [1, 1]} : vector<8x658xf32> to vector<8x512xf32>
    %c104 = arith.constant 104 : index
    %c0_31 = arith.constant 0 : index
    %70 = vector.load %arg12[%c104, %c0_31] : memref<864x512xf32, #tpu.memory_space<vmem>>, vector<8x512xf32>
    tpu.vector_store %arg12[%c104, %c0_31], %69 {strides = array<i32>} : memref<864x512xf32, #tpu.memory_space<vmem>>, vector<8x512xf32>,
    %71 = vector.extract_strided_slice %3 {offsets = [0, 74], sizes = [8, 512], strides = [1, 1]} : vector<8x658xf32> to vector<8x512xf32>
    %c14 = arith.constant 14 : index
    %c0_32 = arith.constant 0 : index
    %72 = vector.load %arg1[%c14, %c0_32] : memref<27x512xf32, #tpu.memory_space<vmem>>, vector<1x512xf32>
    %73 = vector.broadcast %72 : vector<1x512xf32> to vector<8x512xf32>
    %74 = arith.mulf %71, %73 : vector<8x512xf32>
    %c112 = arith.constant 112 : index
    %c0_33 = arith.constant 0 : index
    %75 = vector.load %arg12[%c112, %c0_33] : memref<864x512xf32, #tpu.memory_space<vmem>>, vector<8x512xf32>
    tpu.vector_store %arg12[%c112, %c0_33], %74 {strides = array<i32>} : memref<864x512xf32, #tpu.memory_space<vmem>>, vector<8x512xf32>,
    %76 = vector.extract_strided_slice %3 {offsets = [0, 80], sizes = [8, 512], strides = [1, 1]} : vector<8x658xf32> to vector<8x512xf32>
    %c15 = arith.constant 15 : index
    %c0_34 = arith.constant 0 : index
    %77 = vector.load %arg1[%c15, %c0_34] : memref<27x512xf32, #tpu.memory_space<vmem>>, vector<1x512xf32>
    %78 = vector.broadcast %77 : vector<1x512xf32> to vector<8x512xf32>
    %79 = arith.mulf %76, %78 : vector<8x512xf32>
    %c120 = arith.constant 120 : index
    %c0_35 = arith.constant 0 : index
    %80 = vector.load %arg12[%c120, %c0_35] : memref<864x512xf32, #tpu.memory_space<vmem>>, vector<8x512xf32>
    tpu.vector_store %arg12[%c120, %c0_35], %79 {strides = array<i32>} : memref<864x512xf32, #tpu.memory_space<vmem>>, vector<8x512xf32>,
    %81 = vector.extract_strided_slice %3 {offsets = [0, 81], sizes = [8, 512], strides = [1, 1]} : vector<8x658xf32> to vector<8x512xf32>
    %c16_36 = arith.constant 16 : index
    %c0_37 = arith.constant 0 : index
    %82 = vector.load %arg1[%c16_36, %c0_37] : memref<27x512xf32, #tpu.memory_space<vmem>>, vector<1x512xf32>
    %83 = vector.broadcast %82 : vector<1x512xf32> to vector<8x512xf32>
    %84 = arith.mulf %81, %83 : vector<8x512xf32>
    %c128 = arith.constant 128 : index
    %c0_38 = arith.constant 0 : index
    %85 = vector.load %arg12[%c128, %c0_38] : memref<864x512xf32, #tpu.memory_space<vmem>>, vector<8x512xf32>
    tpu.vector_store %arg12[%c128, %c0_38], %84 {strides = array<i32>} : memref<864x512xf32, #tpu.memory_space<vmem>>, vector<8x512xf32>,
    %86 = vector.extract_strided_slice %3 {offsets = [0, 82], sizes = [8, 512], strides = [1, 1]} : vector<8x658xf32> to vector<8x512xf32>
    %c17 = arith.constant 17 : index
    %c0_39 = arith.constant 0 : index
    %87 = vector.load %arg1[%c17, %c0_39] : memref<27x512xf32, #tpu.memory_space<vmem>>, vector<1x512xf32>
    %88 = vector.broadcast %87 : vector<1x512xf32> to vector<8x512xf32>
    %89 = arith.mulf %86, %88 : vector<8x512xf32>
    %c136 = arith.constant 136 : index
    %c0_40 = arith.constant 0 : index
    %90 = vector.load %arg12[%c136, %c0_40] : memref<864x512xf32, #tpu.memory_space<vmem>>, vector<8x512xf32>
    tpu.vector_store %arg12[%c136, %c0_40], %89 {strides = array<i32>} : memref<864x512xf32, #tpu.memory_space<vmem>>, vector<8x512xf32>,
    %91 = vector.extract_strided_slice %3 {offsets = [0, 128], sizes = [8, 512], strides = [1, 1]} : vector<8x658xf32> to vector<8x512xf32>
    %c18 = arith.constant 18 : index
    %c0_41 = arith.constant 0 : index
    %92 = vector.load %arg1[%c18, %c0_41] : memref<27x512xf32, #tpu.memory_space<vmem>>, vector<1x512xf32>
    %93 = vector.broadcast %92 : vector<1x512xf32> to vector<8x512xf32>
    %94 = arith.mulf %91, %93 : vector<8x512xf32>
    %c144 = arith.constant 144 : index
    %c0_42 = arith.constant 0 : index
    %95 = vector.load %arg12[%c144, %c0_42] : memref<864x512xf32, #tpu.memory_space<vmem>>, vector<8x512xf32>
    tpu.vector_store %arg12[%c144, %c0_42], %94 {strides = array<i32>} : memref<864x512xf32, #tpu.memory_space<vmem>>, vector<8x512xf32>,
    %96 = vector.extract_strided_slice %3 {offsets = [0, 129], sizes = [8, 512], strides = [1, 1]} : vector<8x658xf32> to vector<8x512xf32>
    %c19 = arith.constant 19 : index
    %c0_43 = arith.constant 0 : index
    %97 = vector.load %arg1[%c19, %c0_43] : memref<27x512xf32, #tpu.memory_space<vmem>>, vector<1x512xf32>
    %98 = vector.broadcast %97 : vector<1x512xf32> to vector<8x512xf32>
    %99 = arith.mulf %96, %98 : vector<8x512xf32>
    %c152 = arith.constant 152 : index
    %c0_44 = arith.constant 0 : index
    %100 = vector.load %arg12[%c152, %c0_44] : memref<864x512xf32, #tpu.memory_space<vmem>>, vector<8x512xf32>
    tpu.vector_store %arg12[%c152, %c0_44], %99 {strides = array<i32>} : memref<864x512xf32, #tpu.memory_space<vmem>>, vector<8x512xf32>,
    %101 = vector.extract_strided_slice %3 {offsets = [0, 130], sizes = [8, 512], strides = [1, 1]} : vector<8x658xf32> to vector<8x512xf32>
    %c20 = arith.constant 20 : index
    %c0_45 = arith.constant 0 : index
    %102 = vector.load %arg1[%c20, %c0_45] : memref<27x512xf32, #tpu.memory_space<vmem>>, vector<1x512xf32>
    %103 = vector.broadcast %102 : vector<1x512xf32> to vector<8x512xf32>
    %104 = arith.mulf %101, %103 : vector<8x512xf32>
    %c160 = arith.constant 160 : index
    %c0_46 = arith.constant 0 : index
    %105 = vector.load %arg12[%c160, %c0_46] : memref<864x512xf32, #tpu.memory_space<vmem>>, vector<8x512xf32>
    tpu.vector_store %arg12[%c160, %c0_46], %104 {strides = array<i32>} : memref<864x512xf32, #tpu.memory_space<vmem>>, vector<8x512xf32>,
    %106 = vector.extract_strided_slice %3 {offsets = [0, 136], sizes = [8, 512], strides = [1, 1]} : vector<8x658xf32> to vector<8x512xf32>
    %c21 = arith.constant 21 : index
    %c0_47 = arith.constant 0 : index
    %107 = vector.load %arg1[%c21, %c0_47] : memref<27x512xf32, #tpu.memory_space<vmem>>, vector<1x512xf32>
    %108 = vector.broadcast %107 : vector<1x512xf32> to vector<8x512xf32>
    %109 = arith.mulf %106, %108 : vector<8x512xf32>
    %c168 = arith.constant 168 : index
    %c0_48 = arith.constant 0 : index
    %110 = vector.load %arg12[%c168, %c0_48] : memref<864x512xf32, #tpu.memory_space<vmem>>, vector<8x512xf32>
    tpu.vector_store %arg12[%c168, %c0_48], %109 {strides = array<i32>} : memref<864x512xf32, #tpu.memory_space<vmem>>, vector<8x512xf32>,
    %111 = vector.extract_strided_slice %3 {offsets = [0, 137], sizes = [8, 512], strides = [1, 1]} : vector<8x658xf32> to vector<8x512xf32>
    %c22 = arith.constant 22 : index
    %c0_49 = arith.constant 0 : index
    %112 = vector.load %arg1[%c22, %c0_49] : memref<27x512xf32, #tpu.memory_space<vmem>>, vector<1x512xf32>
    %113 = vector.broadcast %112 : vector<1x512xf32> to vector<8x512xf32>
    %114 = arith.mulf %111, %113 : vector<8x512xf32>
    %c176 = arith.constant 176 : index
    %c0_50 = arith.constant 0 : index
    %115 = vector.load %arg12[%c176, %c0_50] : memref<864x512xf32, #tpu.memory_space<vmem>>, vector<8x512xf32>
    tpu.vector_store %arg12[%c176, %c0_50], %114 {strides = array<i32>} : memref<864x512xf32, #tpu.memory_space<vmem>>, vector<8x512xf32>,
    %116 = vector.extract_strided_slice %3 {offsets = [0, 138], sizes = [8, 512], strides = [1, 1]} : vector<8x658xf32> to vector<8x512xf32>
    %c23 = arith.constant 23 : index
    %c0_51 = arith.constant 0 : index
    %117 = vector.load %arg1[%c23, %c0_51] : memref<27x512xf32, #tpu.memory_space<vmem>>, vector<1x512xf32>
    %118 = vector.broadcast %117 : vector<1x512xf32> to vector<8x512xf32>
    %119 = arith.mulf %116, %118 : vector<8x512xf32>
    %c184 = arith.constant 184 : index
    %c0_52 = arith.constant 0 : index
    %120 = vector.load %arg12[%c184, %c0_52] : memref<864x512xf32, #tpu.memory_space<vmem>>, vector<8x512xf32>
    tpu.vector_store %arg12[%c184, %c0_52], %119 {strides = array<i32>} : memref<864x512xf32, #tpu.memory_space<vmem>>, vector<8x512xf32>,
    %121 = vector.extract_strided_slice %3 {offsets = [0, 144], sizes = [8, 512], strides = [1, 1]} : vector<8x658xf32> to vector<8x512xf32>
    %c24_53 = arith.constant 24 : index
    %c0_54 = arith.constant 0 : index
    %122 = vector.load %arg1[%c24_53, %c0_54] : memref<27x512xf32, #tpu.memory_space<vmem>>, vector<1x512xf32>
    %123 = vector.broadcast %122 : vector<1x512xf32> to vector<8x512xf32>
    %124 = arith.mulf %121, %123 : vector<8x512xf32>
    %c192 = arith.constant 192 : index
    %c0_55 = arith.constant 0 : index
    %125 = vector.load %arg12[%c192, %c0_55] : memref<864x512xf32, #tpu.memory_space<vmem>>, vector<8x512xf32>
    tpu.vector_store %arg12[%c192, %c0_55], %124 {strides = array<i32>} : memref<864x512xf32, #tpu.memory_space<vmem>>, vector<8x512xf32>,
    %126 = vector.extract_strided_slice %3 {offsets = [0, 145], sizes = [8, 512], strides = [1, 1]} : vector<8x658xf32> to vector<8x512xf32>
    %c25 = arith.constant 25 : index
    %c0_56 = arith.constant 0 : index
    %127 = vector.load %arg1[%c25, %c0_56] : memref<27x512xf32, #tpu.memory_space<vmem>>, vector<1x512xf32>
    %128 = vector.broadcast %127 : vector<1x512xf32> to vector<8x512xf32>
    %129 = arith.mulf %126, %128 : vector<8x512xf32>
    %c200 = arith.constant 200 : index
    %c0_57 = arith.constant 0 : index
    %130 = vector.load %arg12[%c200, %c0_57] : memref<864x512xf32, #tpu.memory_space<vmem>>, vector<8x512xf32>
    tpu.vector_store %arg12[%c200, %c0_57], %129 {strides = array<i32>} : memref<864x512xf32, #tpu.memory_space<vmem>>, vector<8x512xf32>,
    %131 = vector.extract_strided_slice %3 {offsets = [0, 146], sizes = [8, 512], strides = [1, 1]} : vector<8x658xf32> to vector<8x512xf32>
    %c26 = arith.constant 26 : index
    %c0_58 = arith.constant 0 : index
    %132 = vector.load %arg1[%c26, %c0_58] : memref<27x512xf32, #tpu.memory_space<vmem>>, vector<1x512xf32>
    %133 = vector.broadcast %132 : vector<1x512xf32> to vector<8x512xf32>
    %134 = arith.mulf %131, %133 : vector<8x512xf32>
    %c208 = arith.constant 208 : index
    %c0_59 = arith.constant 0 : index
    %135 = vector.load %arg12[%c208, %c0_59] : memref<864x512xf32, #tpu.memory_space<vmem>>, vector<8x512xf32>
    tpu.vector_store %arg12[%c208, %c0_59], %134 {strides = array<i32>} : memref<864x512xf32, #tpu.memory_space<vmem>>, vector<8x512xf32>,
    %c0_60 = arith.constant 0 : index
    %c0_61 = arith.constant 0 : index
    %136 = vector.load %arg12[%c0_60, %c0_61] : memref<864x512xf32, #tpu.memory_space<vmem>>, vector<216x512xf32>
    %c0_62 = arith.constant 0 : index
    %c0_63 = arith.constant 0 : index
    %137 = vector.load %arg3[%c0_62, %c0_63] : memref<16x216xf32, #tpu.memory_space<vmem>>, vector<16x216xf32>
    %cst_64 = arith.constant dense<0.000000e+00> : vector<16x512xf32>
    %138 = tpu.matmul %137, %136, %cst_64 {dimension_numbers = #tpu.dot_dimension_numbers<[1], [0], [0], [1], [0, 0, 1, 1], [], []>} : vector<16x216xf32>, vector<216x512xf32>, vector<16x512xf32> -> vector<16x512xf32>
    %c0_65 = arith.constant 0 : index
    %c0_66 = arith.constant 0 : index
    %139 = vector.load %arg4[%c0_65, %c0_66] : memref<16x1xf32, #tpu.memory_space<vmem>>, vector<16x1xf32>
    %140 = vector.broadcast %139 : vector<16x1xf32> to vector<16x512xf32>
    %141 = arith.addf %138, %140 : vector<16x512xf32>
    %cst_67 = arith.constant 0.000000e+00 : f32
    %142 = vector.broadcast %cst_67 : f32 to vector<16x512xf32>
    %143 = arith.maximumf %141, %142 : vector<16x512xf32>
    %cst_68 = arith.constant 0.000000e+00 : f32
    %144 = vector.broadcast %cst_68 : f32 to vector<16x73xf32>
    %145 = tpu.concatenate %144, %143, %144 in 1 : vector<16x73xf32>, vector<16x512xf32>, vector<16x73xf32> -> vector<16x658xf32>
    %146 = vector.extract_strided_slice %145 {offsets = [0, 0], sizes = [16, 512], strides = [1, 1]} : vector<16x658xf32> to vector<16x512xf32>
    %c0_69 = arith.constant 0 : index
    %c0_70 = arith.constant 0 : index
    %147 = vector.load %arg1[%c0_69, %c0_70] : memref<27x512xf32, #tpu.memory_space<vmem>>, vector<1x512xf32>
    %148 = vector.broadcast %147 : vector<1x512xf32> to vector<16x512xf32>
    %149 = arith.mulf %146, %148 : vector<16x512xf32>
    %c0_71 = arith.constant 0 : index
    %c0_72 = arith.constant 0 : index
    %150 = vector.load %arg12[%c0_71, %c0_72] : memref<864x512xf32, #tpu.memory_space<vmem>>, vector<16x512xf32>
    tpu.vector_store %arg12[%c0_71, %c0_72], %149 {strides = array<i32>} : memref<864x512xf32, #tpu.memory_space<vmem>>, vector<16x512xf32>,
    %151 = vector.extract_strided_slice %145 {offsets = [0, 1], sizes = [16, 512], strides = [1, 1]} : vector<16x658xf32> to vector<16x512xf32>
    %c1_73 = arith.constant 1 : index
    %c0_74 = arith.constant 0 : index
    %152 = vector.load %arg1[%c1_73, %c0_74] : memref<27x512xf32, #tpu.memory_space<vmem>>, vector<1x512xf32>
    %153 = vector.broadcast %152 : vector<1x512xf32> to vector<16x512xf32>
    %154 = arith.mulf %151, %153 : vector<16x512xf32>
    %c16_75 = arith.constant 16 : index
    %c0_76 = arith.constant 0 : index
    %155 = vector.load %arg12[%c16_75, %c0_76] : memref<864x512xf32, #tpu.memory_space<vmem>>, vector<16x512xf32>
    tpu.vector_store %arg12[%c16_75, %c0_76], %154 {strides = array<i32>} : memref<864x512xf32, #tpu.memory_space<vmem>>, vector<16x512xf32>,
    %156 = vector.extract_strided_slice %145 {offsets = [0, 2], sizes = [16, 512], strides = [1, 1]} : vector<16x658xf32> to vector<16x512xf32>
    %c2_77 = arith.constant 2 : index
    %c0_78 = arith.constant 0 : index
    %157 = vector.load %arg1[%c2_77, %c0_78] : memref<27x512xf32, #tpu.memory_space<vmem>>, vector<1x512xf32>
    %158 = vector.broadcast %157 : vector<1x512xf32> to vector<16x512xf32>
    %159 = arith.mulf %156, %158 : vector<16x512xf32>
    %c32_79 = arith.constant 32 : index
    %c0_80 = arith.constant 0 : index
    %160 = vector.load %arg12[%c32_79, %c0_80] : memref<864x512xf32, #tpu.memory_space<vmem>>, vector<16x512xf32>
    tpu.vector_store %arg12[%c32_79, %c0_80], %159 {strides = array<i32>} : memref<864x512xf32, #tpu.memory_space<vmem>>, vector<16x512xf32>,
    %161 = vector.extract_strided_slice %145 {offsets = [0, 8], sizes = [16, 512], strides = [1, 1]} : vector<16x658xf32> to vector<16x512xf32>
    %c3_81 = arith.constant 3 : index
    %c0_82 = arith.constant 0 : index
    %162 = vector.load %arg1[%c3_81, %c0_82] : memref<27x512xf32, #tpu.memory_space<vmem>>, vector<1x512xf32>
    %163 = vector.broadcast %162 : vector<1x512xf32> to vector<16x512xf32>
    %164 = arith.mulf %161, %163 : vector<16x512xf32>
    %c48_83 = arith.constant 48 : index
    %c0_84 = arith.constant 0 : index
    %165 = vector.load %arg12[%c48_83, %c0_84] : memref<864x512xf32, #tpu.memory_space<vmem>>, vector<16x512xf32>
    tpu.vector_store %arg12[%c48_83, %c0_84], %164 {strides = array<i32>} : memref<864x512xf32, #tpu.memory_space<vmem>>, vector<16x512xf32>,
    %166 = vector.extract_strided_slice %145 {offsets = [0, 9], sizes = [16, 512], strides = [1, 1]} : vector<16x658xf32> to vector<16x512xf32>
    %c4_85 = arith.constant 4 : index
    %c0_86 = arith.constant 0 : index
    %167 = vector.load %arg1[%c4_85, %c0_86] : memref<27x512xf32, #tpu.memory_space<vmem>>, vector<1x512xf32>
    %168 = vector.broadcast %167 : vector<1x512xf32> to vector<16x512xf32>
    %169 = arith.mulf %166, %168 : vector<16x512xf32>
    %c64_87 = arith.constant 64 : index
    %c0_88 = arith.constant 0 : index
    %170 = vector.load %arg12[%c64_87, %c0_88] : memref<864x512xf32, #tpu.memory_space<vmem>>, vector<16x512xf32>
    tpu.vector_store %arg12[%c64_87, %c0_88], %169 {strides = array<i32>} : memref<864x512xf32, #tpu.memory_space<vmem>>, vector<16x512xf32>,
    %171 = vector.extract_strided_slice %145 {offsets = [0, 10], sizes = [16, 512], strides = [1, 1]} : vector<16x658xf32> to vector<16x512xf32>
    %c5_89 = arith.constant 5 : index
    %c0_90 = arith.constant 0 : index
    %172 = vector.load %arg1[%c5_89, %c0_90] : memref<27x512xf32, #tpu.memory_space<vmem>>, vector<1x512xf32>
    %173 = vector.broadcast %172 : vector<1x512xf32> to vector<16x512xf32>
    %174 = arith.mulf %171, %173 : vector<16x512xf32>
    %c80_91 = arith.constant 80 : index
    %c0_92 = arith.constant 0 : index
    %175 = vector.load %arg12[%c80_91, %c0_92] : memref<864x512xf32, #tpu.memory_space<vmem>>, vector<16x512xf32>
    tpu.vector_store %arg12[%c80_91, %c0_92], %174 {strides = array<i32>} : memref<864x512xf32, #tpu.memory_space<vmem>>, vector<16x512xf32>,
    %176 = vector.extract_strided_slice %145 {offsets = [0, 16], sizes = [16, 512], strides = [1, 1]} : vector<16x658xf32> to vector<16x512xf32>
    %c6_93 = arith.constant 6 : index
    %c0_94 = arith.constant 0 : index
    %177 = vector.load %arg1[%c6_93, %c0_94] : memref<27x512xf32, #tpu.memory_space<vmem>>, vector<1x512xf32>
    %178 = vector.broadcast %177 : vector<1x512xf32> to vector<16x512xf32>
    %179 = arith.mulf %176, %178 : vector<16x512xf32>
    %c96_95 = arith.constant 96 : index
    %c0_96 = arith.constant 0 : index
    %180 = vector.load %arg12[%c96_95, %c0_96] : memref<864x512xf32, #tpu.memory_space<vmem>>, vector<16x512xf32>
    tpu.vector_store %arg12[%c96_95, %c0_96], %179 {strides = array<i32>} : memref<864x512xf32, #tpu.memory_space<vmem>>, vector<16x512xf32>,
    %181 = vector.extract_strided_slice %145 {offsets = [0, 17], sizes = [16, 512], strides = [1, 1]} : vector<16x658xf32> to vector<16x512xf32>
    %c7_97 = arith.constant 7 : index
    %c0_98 = arith.constant 0 : index
    %182 = vector.load %arg1[%c7_97, %c0_98] : memref<27x512xf32, #tpu.memory_space<vmem>>, vector<1x512xf32>
    %183 = vector.broadcast %182 : vector<1x512xf32> to vector<16x512xf32>
    %184 = arith.mulf %181, %183 : vector<16x512xf32>
    %c112_99 = arith.constant 112 : index
    %c0_100 = arith.constant 0 : index
    %185 = vector.load %arg12[%c112_99, %c0_100] : memref<864x512xf32, #tpu.memory_space<vmem>>, vector<16x512xf32>
    tpu.vector_store %arg12[%c112_99, %c0_100], %184 {strides = array<i32>} : memref<864x512xf32, #tpu.memory_space<vmem>>, vector<16x512xf32>,
    %186 = vector.extract_strided_slice %145 {offsets = [0, 18], sizes = [16, 512], strides = [1, 1]} : vector<16x658xf32> to vector<16x512xf32>
    %c8_101 = arith.constant 8 : index
    %c0_102 = arith.constant 0 : index
    %187 = vector.load %arg1[%c8_101, %c0_102] : memref<27x512xf32, #tpu.memory_space<vmem>>, vector<1x512xf32>
    %188 = vector.broadcast %187 : vector<1x512xf32> to vector<16x512xf32>
    %189 = arith.mulf %186, %188 : vector<16x512xf32>
    %c128_103 = arith.constant 128 : index
    %c0_104 = arith.constant 0 : index
    %190 = vector.load %arg12[%c128_103, %c0_104] : memref<864x512xf32, #tpu.memory_space<vmem>>, vector<16x512xf32>
    tpu.vector_store %arg12[%c128_103, %c0_104], %189 {strides = array<i32>} : memref<864x512xf32, #tpu.memory_space<vmem>>, vector<16x512xf32>,
    %191 = vector.extract_strided_slice %145 {offsets = [0, 64], sizes = [16, 512], strides = [1, 1]} : vector<16x658xf32> to vector<16x512xf32>
    %c9_105 = arith.constant 9 : index
    %c0_106 = arith.constant 0 : index
    %192 = vector.load %arg1[%c9_105, %c0_106] : memref<27x512xf32, #tpu.memory_space<vmem>>, vector<1x512xf32>
    %193 = vector.broadcast %192 : vector<1x512xf32> to vector<16x512xf32>
    %194 = arith.mulf %191, %193 : vector<16x512xf32>
    %c144_107 = arith.constant 144 : index
    %c0_108 = arith.constant 0 : index
    %195 = vector.load %arg12[%c144_107, %c0_108] : memref<864x512xf32, #tpu.memory_space<vmem>>, vector<16x512xf32>
    tpu.vector_store %arg12[%c144_107, %c0_108], %194 {strides = array<i32>} : memref<864x512xf32, #tpu.memory_space<vmem>>, vector<16x512xf32>,
    %196 = vector.extract_strided_slice %145 {offsets = [0, 65], sizes = [16, 512], strides = [1, 1]} : vector<16x658xf32> to vector<16x512xf32>
    %c10_109 = arith.constant 10 : index
    %c0_110 = arith.constant 0 : index
    %197 = vector.load %arg1[%c10_109, %c0_110] : memref<27x512xf32, #tpu.memory_space<vmem>>, vector<1x512xf32>
    %198 = vector.broadcast %197 : vector<1x512xf32> to vector<16x512xf32>
    %199 = arith.mulf %196, %198 : vector<16x512xf32>
    %c160_111 = arith.constant 160 : index
    %c0_112 = arith.constant 0 : index
    %200 = vector.load %arg12[%c160_111, %c0_112] : memref<864x512xf32, #tpu.memory_space<vmem>>, vector<16x512xf32>
    tpu.vector_store %arg12[%c160_111, %c0_112], %199 {strides = array<i32>} : memref<864x512xf32, #tpu.memory_space<vmem>>, vector<16x512xf32>,
    %201 = vector.extract_strided_slice %145 {offsets = [0, 66], sizes = [16, 512], strides = [1, 1]} : vector<16x658xf32> to vector<16x512xf32>
    %c11_113 = arith.constant 11 : index
    %c0_114 = arith.constant 0 : index
    %202 = vector.load %arg1[%c11_113, %c0_114] : memref<27x512xf32, #tpu.memory_space<vmem>>, vector<1x512xf32>
    %203 = vector.broadcast %202 : vector<1x512xf32> to vector<16x512xf32>
    %204 = arith.mulf %201, %203 : vector<16x512xf32>
    %c176_115 = arith.constant 176 : index
    %c0_116 = arith.constant 0 : index
    %205 = vector.load %arg12[%c176_115, %c0_116] : memref<864x512xf32, #tpu.memory_space<vmem>>, vector<16x512xf32>
    tpu.vector_store %arg12[%c176_115, %c0_116], %204 {strides = array<i32>} : memref<864x512xf32, #tpu.memory_space<vmem>>, vector<16x512xf32>,
    %206 = vector.extract_strided_slice %145 {offsets = [0, 72], sizes = [16, 512], strides = [1, 1]} : vector<16x658xf32> to vector<16x512xf32>
    %c12_117 = arith.constant 12 : index
    %c0_118 = arith.constant 0 : index
    %207 = vector.load %arg1[%c12_117, %c0_118] : memref<27x512xf32, #tpu.memory_space<vmem>>, vector<1x512xf32>
    %208 = vector.broadcast %207 : vector<1x512xf32> to vector<16x512xf32>
    %209 = arith.mulf %206, %208 : vector<16x512xf32>
    %c192_119 = arith.constant 192 : index
    %c0_120 = arith.constant 0 : index
    %210 = vector.load %arg12[%c192_119, %c0_120] : memref<864x512xf32, #tpu.memory_space<vmem>>, vector<16x512xf32>
    tpu.vector_store %arg12[%c192_119, %c0_120], %209 {strides = array<i32>} : memref<864x512xf32, #tpu.memory_space<vmem>>, vector<16x512xf32>,
    %211 = vector.extract_strided_slice %145 {offsets = [0, 73], sizes = [16, 512], strides = [1, 1]} : vector<16x658xf32> to vector<16x512xf32>
    %c208_121 = arith.constant 208 : index
    %c0_122 = arith.constant 0 : index
    %212 = vector.load %arg12[%c208_121, %c0_122] : memref<864x512xf32, #tpu.memory_space<vmem>>, vector<16x512xf32>
    tpu.vector_store %arg12[%c208_121, %c0_122], %211 {strides = array<i32>} : memref<864x512xf32, #tpu.memory_space<vmem>>, vector<16x512xf32>,
    %213 = vector.extract_strided_slice %145 {offsets = [0, 74], sizes = [16, 512], strides = [1, 1]} : vector<16x658xf32> to vector<16x512xf32>
    %c14_123 = arith.constant 14 : index
    %c0_124 = arith.constant 0 : index
    %214 = vector.load %arg1[%c14_123, %c0_124] : memref<27x512xf32, #tpu.memory_space<vmem>>, vector<1x512xf32>
    %215 = vector.broadcast %214 : vector<1x512xf32> to vector<16x512xf32>
    %216 = arith.mulf %213, %215 : vector<16x512xf32>
    %c224 = arith.constant 224 : index
    %c0_125 = arith.constant 0 : index
    %217 = vector.load %arg12[%c224, %c0_125] : memref<864x512xf32, #tpu.memory_space<vmem>>, vector<16x512xf32>
    tpu.vector_store %arg12[%c224, %c0_125], %216 {strides = array<i32>} : memref<864x512xf32, #tpu.memory_space<vmem>>, vector<16x512xf32>,
    %218 = vector.extract_strided_slice %145 {offsets = [0, 80], sizes = [16, 512], strides = [1, 1]} : vector<16x658xf32> to vector<16x512xf32>
    %c15_126 = arith.constant 15 : index
    %c0_127 = arith.constant 0 : index
    %219 = vector.load %arg1[%c15_126, %c0_127] : memref<27x512xf32, #tpu.memory_space<vmem>>, vector<1x512xf32>
    %220 = vector.broadcast %219 : vector<1x512xf32> to vector<16x512xf32>
    %221 = arith.mulf %218, %220 : vector<16x512xf32>
    %c240 = arith.constant 240 : index
    %c0_128 = arith.constant 0 : index
    %222 = vector.load %arg12[%c240, %c0_128] : memref<864x512xf32, #tpu.memory_space<vmem>>, vector<16x512xf32>
    tpu.vector_store %arg12[%c240, %c0_128], %221 {strides = array<i32>} : memref<864x512xf32, #tpu.memory_space<vmem>>, vector<16x512xf32>,
    %223 = vector.extract_strided_slice %145 {offsets = [0, 81], sizes = [16, 512], strides = [1, 1]} : vector<16x658xf32> to vector<16x512xf32>
    %c16_129 = arith.constant 16 : index
    %c0_130 = arith.constant 0 : index
    %224 = vector.load %arg1[%c16_129, %c0_130] : memref<27x512xf32, #tpu.memory_space<vmem>>, vector<1x512xf32>
    %225 = vector.broadcast %224 : vector<1x512xf32> to vector<16x512xf32>
    %226 = arith.mulf %223, %225 : vector<16x512xf32>
    %c256 = arith.constant 256 : index
    %c0_131 = arith.constant 0 : index
    %227 = vector.load %arg12[%c256, %c0_131] : memref<864x512xf32, #tpu.memory_space<vmem>>, vector<16x512xf32>
    tpu.vector_store %arg12[%c256, %c0_131], %226 {strides = array<i32>} : memref<864x512xf32, #tpu.memory_space<vmem>>, vector<16x512xf32>,
    %228 = vector.extract_strided_slice %145 {offsets = [0, 82], sizes = [16, 512], strides = [1, 1]} : vector<16x658xf32> to vector<16x512xf32>
    %c17_132 = arith.constant 17 : index
    %c0_133 = arith.constant 0 : index
    %229 = vector.load %arg1[%c17_132, %c0_133] : memref<27x512xf32, #tpu.memory_space<vmem>>, vector<1x512xf32>
    %230 = vector.broadcast %229 : vector<1x512xf32> to vector<16x512xf32>
    %231 = arith.mulf %228, %230 : vector<16x512xf32>
    %c272 = arith.constant 272 : index
    %c0_134 = arith.constant 0 : index
    %232 = vector.load %arg12[%c272, %c0_134] : memref<864x512xf32, #tpu.memory_space<vmem>>, vector<16x512xf32>
    tpu.vector_store %arg12[%c272, %c0_134], %231 {strides = array<i32>} : memref<864x512xf32, #tpu.memory_space<vmem>>, vector<16x512xf32>,
    %233 = vector.extract_strided_slice %145 {offsets = [0, 128], sizes = [16, 512], strides = [1, 1]} : vector<16x658xf32> to vector<16x512xf32>
    %c18_135 = arith.constant 18 : index
    %c0_136 = arith.constant 0 : index
    %234 = vector.load %arg1[%c18_135, %c0_136] : memref<27x512xf32, #tpu.memory_space<vmem>>, vector<1x512xf32>
    %235 = vector.broadcast %234 : vector<1x512xf32> to vector<16x512xf32>
    %236 = arith.mulf %233, %235 : vector<16x512xf32>
    %c288 = arith.constant 288 : index
    %c0_137 = arith.constant 0 : index
    %237 = vector.load %arg12[%c288, %c0_137] : memref<864x512xf32, #tpu.memory_space<vmem>>, vector<16x512xf32>
    tpu.vector_store %arg12[%c288, %c0_137], %236 {strides = array<i32>} : memref<864x512xf32, #tpu.memory_space<vmem>>, vector<16x512xf32>,
    %238 = vector.extract_strided_slice %145 {offsets = [0, 129], sizes = [16, 512], strides = [1, 1]} : vector<16x658xf32> to vector<16x512xf32>
    %c19_138 = arith.constant 19 : index
    %c0_139 = arith.constant 0 : index
    %239 = vector.load %arg1[%c19_138, %c0_139] : memref<27x512xf32, #tpu.memory_space<vmem>>, vector<1x512xf32>
    %240 = vector.broadcast %239 : vector<1x512xf32> to vector<16x512xf32>
    %241 = arith.mulf %238, %240 : vector<16x512xf32>
    %c304 = arith.constant 304 : index
    %c0_140 = arith.constant 0 : index
    %242 = vector.load %arg12[%c304, %c0_140] : memref<864x512xf32, #tpu.memory_space<vmem>>, vector<16x512xf32>
    tpu.vector_store %arg12[%c304, %c0_140], %241 {strides = array<i32>} : memref<864x512xf32, #tpu.memory_space<vmem>>, vector<16x512xf32>,
    %243 = vector.extract_strided_slice %145 {offsets = [0, 130], sizes = [16, 512], strides = [1, 1]} : vector<16x658xf32> to vector<16x512xf32>
    %c20_141 = arith.constant 20 : index
    %c0_142 = arith.constant 0 : index
    %244 = vector.load %arg1[%c20_141, %c0_142] : memref<27x512xf32, #tpu.memory_space<vmem>>, vector<1x512xf32>
    %245 = vector.broadcast %244 : vector<1x512xf32> to vector<16x512xf32>
    %246 = arith.mulf %243, %245 : vector<16x512xf32>
    %c320 = arith.constant 320 : index
    %c0_143 = arith.constant 0 : index
    %247 = vector.load %arg12[%c320, %c0_143] : memref<864x512xf32, #tpu.memory_space<vmem>>, vector<16x512xf32>
    tpu.vector_store %arg12[%c320, %c0_143], %246 {strides = array<i32>} : memref<864x512xf32, #tpu.memory_space<vmem>>, vector<16x512xf32>,
    %248 = vector.extract_strided_slice %145 {offsets = [0, 136], sizes = [16, 512], strides = [1, 1]} : vector<16x658xf32> to vector<16x512xf32>
    %c21_144 = arith.constant 21 : index
    %c0_145 = arith.constant 0 : index
    %249 = vector.load %arg1[%c21_144, %c0_145] : memref<27x512xf32, #tpu.memory_space<vmem>>, vector<1x512xf32>
    %250 = vector.broadcast %249 : vector<1x512xf32> to vector<16x512xf32>
    %251 = arith.mulf %248, %250 : vector<16x512xf32>
    %c336 = arith.constant 336 : index
    %c0_146 = arith.constant 0 : index
    %252 = vector.load %arg12[%c336, %c0_146] : memref<864x512xf32, #tpu.memory_space<vmem>>, vector<16x512xf32>
    tpu.vector_store %arg12[%c336, %c0_146], %251 {strides = array<i32>} : memref<864x512xf32, #tpu.memory_space<vmem>>, vector<16x512xf32>,
    %253 = vector.extract_strided_slice %145 {offsets = [0, 137], sizes = [16, 512], strides = [1, 1]} : vector<16x658xf32> to vector<16x512xf32>
    %c22_147 = arith.constant 22 : index
    %c0_148 = arith.constant 0 : index
    %254 = vector.load %arg1[%c22_147, %c0_148] : memref<27x512xf32, #tpu.memory_space<vmem>>, vector<1x512xf32>
    %255 = vector.broadcast %254 : vector<1x512xf32> to vector<16x512xf32>
    %256 = arith.mulf %253, %255 : vector<16x512xf32>
    %c352 = arith.constant 352 : index
    %c0_149 = arith.constant 0 : index
    %257 = vector.load %arg12[%c352, %c0_149] : memref<864x512xf32, #tpu.memory_space<vmem>>, vector<16x512xf32>
    tpu.vector_store %arg12[%c352, %c0_149], %256 {strides = array<i32>} : memref<864x512xf32, #tpu.memory_space<vmem>>, vector<16x512xf32>,
    %258 = vector.extract_strided_slice %145 {offsets = [0, 138], sizes = [16, 512], strides = [1, 1]} : vector<16x658xf32> to vector<16x512xf32>
    %c23_150 = arith.constant 23 : index
    %c0_151 = arith.constant 0 : index
    %259 = vector.load %arg1[%c23_150, %c0_151] : memref<27x512xf32, #tpu.memory_space<vmem>>, vector<1x512xf32>
    %260 = vector.broadcast %259 : vector<1x512xf32> to vector<16x512xf32>
    %261 = arith.mulf %258, %260 : vector<16x512xf32>
    %c368 = arith.constant 368 : index
    %c0_152 = arith.constant 0 : index
    %262 = vector.load %arg12[%c368, %c0_152] : memref<864x512xf32, #tpu.memory_space<vmem>>, vector<16x512xf32>
    tpu.vector_store %arg12[%c368, %c0_152], %261 {strides = array<i32>} : memref<864x512xf32, #tpu.memory_space<vmem>>, vector<16x512xf32>,
    %263 = vector.extract_strided_slice %145 {offsets = [0, 144], sizes = [16, 512], strides = [1, 1]} : vector<16x658xf32> to vector<16x512xf32>
    %c24_153 = arith.constant 24 : index
    %c0_154 = arith.constant 0 : index
    %264 = vector.load %arg1[%c24_153, %c0_154] : memref<27x512xf32, #tpu.memory_space<vmem>>, vector<1x512xf32>
    %265 = vector.broadcast %264 : vector<1x512xf32> to vector<16x512xf32>
    %266 = arith.mulf %263, %265 : vector<16x512xf32>
    %c384 = arith.constant 384 : index
    %c0_155 = arith.constant 0 : index
    %267 = vector.load %arg12[%c384, %c0_155] : memref<864x512xf32, #tpu.memory_space<vmem>>, vector<16x512xf32>
    tpu.vector_store %arg12[%c384, %c0_155], %266 {strides = array<i32>} : memref<864x512xf32, #tpu.memory_space<vmem>>, vector<16x512xf32>,
    %268 = vector.extract_strided_slice %145 {offsets = [0, 145], sizes = [16, 512], strides = [1, 1]} : vector<16x658xf32> to vector<16x512xf32>
    %c25_156 = arith.constant 25 : index
    %c0_157 = arith.constant 0 : index
    %269 = vector.load %arg1[%c25_156, %c0_157] : memref<27x512xf32, #tpu.memory_space<vmem>>, vector<1x512xf32>
    %270 = vector.broadcast %269 : vector<1x512xf32> to vector<16x512xf32>
    %271 = arith.mulf %268, %270 : vector<16x512xf32>
    %c400 = arith.constant 400 : index
    %c0_158 = arith.constant 0 : index
    %272 = vector.load %arg12[%c400, %c0_158] : memref<864x512xf32, #tpu.memory_space<vmem>>, vector<16x512xf32>
    tpu.vector_store %arg12[%c400, %c0_158], %271 {strides = array<i32>} : memref<864x512xf32, #tpu.memory_space<vmem>>, vector<16x512xf32>,
    %273 = vector.extract_strided_slice %145 {offsets = [0, 146], sizes = [16, 512], strides = [1, 1]} : vector<16x658xf32> to vector<16x512xf32>
    %c26_159 = arith.constant 26 : index
    %c0_160 = arith.constant 0 : index
    %274 = vector.load %arg1[%c26_159, %c0_160] : memref<27x512xf32, #tpu.memory_space<vmem>>, vector<1x512xf32>
    %275 = vector.broadcast %274 : vector<1x512xf32> to vector<16x512xf32>
    %276 = arith.mulf %273, %275 : vector<16x512xf32>
    %c416 = arith.constant 416 : index
    %c0_161 = arith.constant 0 : index
    %277 = vector.load %arg12[%c416, %c0_161] : memref<864x512xf32, #tpu.memory_space<vmem>>, vector<16x512xf32>
    tpu.vector_store %arg12[%c416, %c0_161], %276 {strides = array<i32>} : memref<864x512xf32, #tpu.memory_space<vmem>>, vector<16x512xf32>,
    %c0_162 = arith.constant 0 : index
    %c0_163 = arith.constant 0 : index
    %278 = vector.load %arg12[%c0_162, %c0_163] : memref<864x512xf32, #tpu.memory_space<vmem>>, vector<432x512xf32>
    %c0_164 = arith.constant 0 : index
    %c0_165 = arith.constant 0 : index
    %279 = vector.load %arg5[%c0_164, %c0_165] : memref<32x432xf32, #tpu.memory_space<vmem>>, vector<32x432xf32>
    %cst_166 = arith.constant dense<0.000000e+00> : vector<32x512xf32>
    %280 = tpu.matmul %279, %278, %cst_166 {dimension_numbers = #tpu.dot_dimension_numbers<[1], [0], [0], [1], [0, 0, 1, 1], [], []>} : vector<32x432xf32>, vector<432x512xf32>, vector<32x512xf32> -> vector<32x512xf32>
    %c0_167 = arith.constant 0 : index
    %c0_168 = arith.constant 0 : index
    %281 = vector.load %arg6[%c0_167, %c0_168] : memref<32x1xf32, #tpu.memory_space<vmem>>, vector<32x1xf32>
    %282 = vector.broadcast %281 : vector<32x1xf32> to vector<32x512xf32>
    %283 = arith.addf %280, %282 : vector<32x512xf32>
    %cst_169 = arith.constant 0.000000e+00 : f32
    %284 = vector.broadcast %cst_169 : f32 to vector<32x512xf32>
    %285 = arith.maximumf %283, %284 : vector<32x512xf32>
    %cst_170 = arith.constant 0.000000e+00 : f32
    %286 = vector.broadcast %cst_170 : f32 to vector<32x73xf32>
    %287 = tpu.concatenate %286, %285, %286 in 1 : vector<32x73xf32>, vector<32x512xf32>, vector<32x73xf32> -> vector<32x658xf32>
    %288 = vector.extract_strided_slice %287 {offsets = [0, 0], sizes = [32, 512], strides = [1, 1]} : vector<32x658xf32> to vector<32x512xf32>
    %c0_171 = arith.constant 0 : index
    %c0_172 = arith.constant 0 : index
    %289 = vector.load %arg1[%c0_171, %c0_172] : memref<27x512xf32, #tpu.memory_space<vmem>>, vector<1x512xf32>
    %290 = vector.broadcast %289 : vector<1x512xf32> to vector<32x512xf32>
    %291 = arith.mulf %288, %290 : vector<32x512xf32>
    %c0_173 = arith.constant 0 : index
    %c0_174 = arith.constant 0 : index
    %292 = vector.load %arg12[%c0_173, %c0_174] : memref<864x512xf32, #tpu.memory_space<vmem>>, vector<32x512xf32>
    tpu.vector_store %arg12[%c0_173, %c0_174], %291 {strides = array<i32>} : memref<864x512xf32, #tpu.memory_space<vmem>>, vector<32x512xf32>,
    %293 = vector.extract_strided_slice %287 {offsets = [0, 1], sizes = [32, 512], strides = [1, 1]} : vector<32x658xf32> to vector<32x512xf32>
    %c1_175 = arith.constant 1 : index
    %c0_176 = arith.constant 0 : index
    %294 = vector.load %arg1[%c1_175, %c0_176] : memref<27x512xf32, #tpu.memory_space<vmem>>, vector<1x512xf32>
    %295 = vector.broadcast %294 : vector<1x512xf32> to vector<32x512xf32>
    %296 = arith.mulf %293, %295 : vector<32x512xf32>
    %c32_177 = arith.constant 32 : index
    %c0_178 = arith.constant 0 : index
    %297 = vector.load %arg12[%c32_177, %c0_178] : memref<864x512xf32, #tpu.memory_space<vmem>>, vector<32x512xf32>
    tpu.vector_store %arg12[%c32_177, %c0_178], %296 {strides = array<i32>} : memref<864x512xf32, #tpu.memory_space<vmem>>, vector<32x512xf32>,
    %298 = vector.extract_strided_slice %287 {offsets = [0, 2], sizes = [32, 512], strides = [1, 1]} : vector<32x658xf32> to vector<32x512xf32>
    %c2_179 = arith.constant 2 : index
    %c0_180 = arith.constant 0 : index
    %299 = vector.load %arg1[%c2_179, %c0_180] : memref<27x512xf32, #tpu.memory_space<vmem>>, vector<1x512xf32>
    %300 = vector.broadcast %299 : vector<1x512xf32> to vector<32x512xf32>
    %301 = arith.mulf %298, %300 : vector<32x512xf32>
    %c64_181 = arith.constant 64 : index
    %c0_182 = arith.constant 0 : index
    %302 = vector.load %arg12[%c64_181, %c0_182] : memref<864x512xf32, #tpu.memory_space<vmem>>, vector<32x512xf32>
    tpu.vector_store %arg12[%c64_181, %c0_182], %301 {strides = array<i32>} : memref<864x512xf32, #tpu.memory_space<vmem>>, vector<32x512xf32>,
    %303 = vector.extract_strided_slice %287 {offsets = [0, 8], sizes = [32, 512], strides = [1, 1]} : vector<32x658xf32> to vector<32x512xf32>
    %c3_183 = arith.constant 3 : index
    %c0_184 = arith.constant 0 : index
    %304 = vector.load %arg1[%c3_183, %c0_184] : memref<27x512xf32, #tpu.memory_space<vmem>>, vector<1x512xf32>
    %305 = vector.broadcast %304 : vector<1x512xf32> to vector<32x512xf32>
    %306 = arith.mulf %303, %305 : vector<32x512xf32>
    %c96_185 = arith.constant 96 : index
    %c0_186 = arith.constant 0 : index
    %307 = vector.load %arg12[%c96_185, %c0_186] : memref<864x512xf32, #tpu.memory_space<vmem>>, vector<32x512xf32>
    tpu.vector_store %arg12[%c96_185, %c0_186], %306 {strides = array<i32>} : memref<864x512xf32, #tpu.memory_space<vmem>>, vector<32x512xf32>,
    %308 = vector.extract_strided_slice %287 {offsets = [0, 9], sizes = [32, 512], strides = [1, 1]} : vector<32x658xf32> to vector<32x512xf32>
    %c4_187 = arith.constant 4 : index
    %c0_188 = arith.constant 0 : index
    %309 = vector.load %arg1[%c4_187, %c0_188] : memref<27x512xf32, #tpu.memory_space<vmem>>, vector<1x512xf32>
    %310 = vector.broadcast %309 : vector<1x512xf32> to vector<32x512xf32>
    %311 = arith.mulf %308, %310 : vector<32x512xf32>
    %c128_189 = arith.constant 128 : index
    %c0_190 = arith.constant 0 : index
    %312 = vector.load %arg12[%c128_189, %c0_190] : memref<864x512xf32, #tpu.memory_space<vmem>>, vector<32x512xf32>
    tpu.vector_store %arg12[%c128_189, %c0_190], %311 {strides = array<i32>} : memref<864x512xf32, #tpu.memory_space<vmem>>, vector<32x512xf32>,
    %313 = vector.extract_strided_slice %287 {offsets = [0, 10], sizes = [32, 512], strides = [1, 1]} : vector<32x658xf32> to vector<32x512xf32>
    %c5_191 = arith.constant 5 : index
    %c0_192 = arith.constant 0 : index
    %314 = vector.load %arg1[%c5_191, %c0_192] : memref<27x512xf32, #tpu.memory_space<vmem>>, vector<1x512xf32>
    %315 = vector.broadcast %314 : vector<1x512xf32> to vector<32x512xf32>
    %316 = arith.mulf %313, %315 : vector<32x512xf32>
    %c160_193 = arith.constant 160 : index
    %c0_194 = arith.constant 0 : index
    %317 = vector.load %arg12[%c160_193, %c0_194] : memref<864x512xf32, #tpu.memory_space<vmem>>, vector<32x512xf32>
    tpu.vector_store %arg12[%c160_193, %c0_194], %316 {strides = array<i32>} : memref<864x512xf32, #tpu.memory_space<vmem>>, vector<32x512xf32>,
    %318 = vector.extract_strided_slice %287 {offsets = [0, 16], sizes = [32, 512], strides = [1, 1]} : vector<32x658xf32> to vector<32x512xf32>
    %c6_195 = arith.constant 6 : index
    %c0_196 = arith.constant 0 : index
    %319 = vector.load %arg1[%c6_195, %c0_196] : memref<27x512xf32, #tpu.memory_space<vmem>>, vector<1x512xf32>
    %320 = vector.broadcast %319 : vector<1x512xf32> to vector<32x512xf32>
    %321 = arith.mulf %318, %320 : vector<32x512xf32>
    %c192_197 = arith.constant 192 : index
    %c0_198 = arith.constant 0 : index
    %322 = vector.load %arg12[%c192_197, %c0_198] : memref<864x512xf32, #tpu.memory_space<vmem>>, vector<32x512xf32>
    tpu.vector_store %arg12[%c192_197, %c0_198], %321 {strides = array<i32>} : memref<864x512xf32, #tpu.memory_space<vmem>>, vector<32x512xf32>,
    %323 = vector.extract_strided_slice %287 {offsets = [0, 17], sizes = [32, 512], strides = [1, 1]} : vector<32x658xf32> to vector<32x512xf32>
    %c7_199 = arith.constant 7 : index
    %c0_200 = arith.constant 0 : index
    %324 = vector.load %arg1[%c7_199, %c0_200] : memref<27x512xf32, #tpu.memory_space<vmem>>, vector<1x512xf32>
    %325 = vector.broadcast %324 : vector<1x512xf32> to vector<32x512xf32>
    %326 = arith.mulf %323, %325 : vector<32x512xf32>
    %c224_201 = arith.constant 224 : index
    %c0_202 = arith.constant 0 : index
    %327 = vector.load %arg12[%c224_201, %c0_202] : memref<864x512xf32, #tpu.memory_space<vmem>>, vector<32x512xf32>
    tpu.vector_store %arg12[%c224_201, %c0_202], %326 {strides = array<i32>} : memref<864x512xf32, #tpu.memory_space<vmem>>, vector<32x512xf32>,
    %328 = vector.extract_strided_slice %287 {offsets = [0, 18], sizes = [32, 512], strides = [1, 1]} : vector<32x658xf32> to vector<32x512xf32>
    %c8_203 = arith.constant 8 : index
    %c0_204 = arith.constant 0 : index
    %329 = vector.load %arg1[%c8_203, %c0_204] : memref<27x512xf32, #tpu.memory_space<vmem>>, vector<1x512xf32>
    %330 = vector.broadcast %329 : vector<1x512xf32> to vector<32x512xf32>
    %331 = arith.mulf %328, %330 : vector<32x512xf32>
    %c256_205 = arith.constant 256 : index
    %c0_206 = arith.constant 0 : index
    %332 = vector.load %arg12[%c256_205, %c0_206] : memref<864x512xf32, #tpu.memory_space<vmem>>, vector<32x512xf32>
    tpu.vector_store %arg12[%c256_205, %c0_206], %331 {strides = array<i32>} : memref<864x512xf32, #tpu.memory_space<vmem>>, vector<32x512xf32>,
    %333 = vector.extract_strided_slice %287 {offsets = [0, 64], sizes = [32, 512], strides = [1, 1]} : vector<32x658xf32> to vector<32x512xf32>
    %c9_207 = arith.constant 9 : index
    %c0_208 = arith.constant 0 : index
    %334 = vector.load %arg1[%c9_207, %c0_208] : memref<27x512xf32, #tpu.memory_space<vmem>>, vector<1x512xf32>
    %335 = vector.broadcast %334 : vector<1x512xf32> to vector<32x512xf32>
    %336 = arith.mulf %333, %335 : vector<32x512xf32>
    %c288_209 = arith.constant 288 : index
    %c0_210 = arith.constant 0 : index
    %337 = vector.load %arg12[%c288_209, %c0_210] : memref<864x512xf32, #tpu.memory_space<vmem>>, vector<32x512xf32>
    tpu.vector_store %arg12[%c288_209, %c0_210], %336 {strides = array<i32>} : memref<864x512xf32, #tpu.memory_space<vmem>>, vector<32x512xf32>,
    %338 = vector.extract_strided_slice %287 {offsets = [0, 65], sizes = [32, 512], strides = [1, 1]} : vector<32x658xf32> to vector<32x512xf32>
    %c10_211 = arith.constant 10 : index
    %c0_212 = arith.constant 0 : index
    %339 = vector.load %arg1[%c10_211, %c0_212] : memref<27x512xf32, #tpu.memory_space<vmem>>, vector<1x512xf32>
    %340 = vector.broadcast %339 : vector<1x512xf32> to vector<32x512xf32>
    %341 = arith.mulf %338, %340 : vector<32x512xf32>
    %c320_213 = arith.constant 320 : index
    %c0_214 = arith.constant 0 : index
    %342 = vector.load %arg12[%c320_213, %c0_214] : memref<864x512xf32, #tpu.memory_space<vmem>>, vector<32x512xf32>
    tpu.vector_store %arg12[%c320_213, %c0_214], %341 {strides = array<i32>} : memref<864x512xf32, #tpu.memory_space<vmem>>, vector<32x512xf32>,
    %343 = vector.extract_strided_slice %287 {offsets = [0, 66], sizes = [32, 512], strides = [1, 1]} : vector<32x658xf32> to vector<32x512xf32>
    %c11_215 = arith.constant 11 : index
    %c0_216 = arith.constant 0 : index
    %344 = vector.load %arg1[%c11_215, %c0_216] : memref<27x512xf32, #tpu.memory_space<vmem>>, vector<1x512xf32>
    %345 = vector.broadcast %344 : vector<1x512xf32> to vector<32x512xf32>
    %346 = arith.mulf %343, %345 : vector<32x512xf32>
    %c352_217 = arith.constant 352 : index
    %c0_218 = arith.constant 0 : index
    %347 = vector.load %arg12[%c352_217, %c0_218] : memref<864x512xf32, #tpu.memory_space<vmem>>, vector<32x512xf32>
    tpu.vector_store %arg12[%c352_217, %c0_218], %346 {strides = array<i32>} : memref<864x512xf32, #tpu.memory_space<vmem>>, vector<32x512xf32>,
    %348 = vector.extract_strided_slice %287 {offsets = [0, 72], sizes = [32, 512], strides = [1, 1]} : vector<32x658xf32> to vector<32x512xf32>
    %c12_219 = arith.constant 12 : index
    %c0_220 = arith.constant 0 : index
    %349 = vector.load %arg1[%c12_219, %c0_220] : memref<27x512xf32, #tpu.memory_space<vmem>>, vector<1x512xf32>
    %350 = vector.broadcast %349 : vector<1x512xf32> to vector<32x512xf32>
    %351 = arith.mulf %348, %350 : vector<32x512xf32>
    %c384_221 = arith.constant 384 : index
    %c0_222 = arith.constant 0 : index
    %352 = vector.load %arg12[%c384_221, %c0_222] : memref<864x512xf32, #tpu.memory_space<vmem>>, vector<32x512xf32>
    tpu.vector_store %arg12[%c384_221, %c0_222], %351 {strides = array<i32>} : memref<864x512xf32, #tpu.memory_space<vmem>>, vector<32x512xf32>,
    %353 = vector.extract_strided_slice %287 {offsets = [0, 73], sizes = [32, 512], strides = [1, 1]} : vector<32x658xf32> to vector<32x512xf32>
    %c416_223 = arith.constant 416 : index
    %c0_224 = arith.constant 0 : index
    %354 = vector.load %arg12[%c416_223, %c0_224] : memref<864x512xf32, #tpu.memory_space<vmem>>, vector<32x512xf32>
    tpu.vector_store %arg12[%c416_223, %c0_224], %353 {strides = array<i32>} : memref<864x512xf32, #tpu.memory_space<vmem>>, vector<32x512xf32>,
    %355 = vector.extract_strided_slice %287 {offsets = [0, 74], sizes = [32, 512], strides = [1, 1]} : vector<32x658xf32> to vector<32x512xf32>
    %c14_225 = arith.constant 14 : index
    %c0_226 = arith.constant 0 : index
    %356 = vector.load %arg1[%c14_225, %c0_226] : memref<27x512xf32, #tpu.memory_space<vmem>>, vector<1x512xf32>
    %357 = vector.broadcast %356 : vector<1x512xf32> to vector<32x512xf32>
    %358 = arith.mulf %355, %357 : vector<32x512xf32>
    %c448 = arith.constant 448 : index
    %c0_227 = arith.constant 0 : index
    %359 = vector.load %arg12[%c448, %c0_227] : memref<864x512xf32, #tpu.memory_space<vmem>>, vector<32x512xf32>
    tpu.vector_store %arg12[%c448, %c0_227], %358 {strides = array<i32>} : memref<864x512xf32, #tpu.memory_space<vmem>>, vector<32x512xf32>,
    %360 = vector.extract_strided_slice %287 {offsets = [0, 80], sizes = [32, 512], strides = [1, 1]} : vector<32x658xf32> to vector<32x512xf32>
    %c15_228 = arith.constant 15 : index
    %c0_229 = arith.constant 0 : index
    %361 = vector.load %arg1[%c15_228, %c0_229] : memref<27x512xf32, #tpu.memory_space<vmem>>, vector<1x512xf32>
    %362 = vector.broadcast %361 : vector<1x512xf32> to vector<32x512xf32>
    %363 = arith.mulf %360, %362 : vector<32x512xf32>
    %c480 = arith.constant 480 : index
    %c0_230 = arith.constant 0 : index
    %364 = vector.load %arg12[%c480, %c0_230] : memref<864x512xf32, #tpu.memory_space<vmem>>, vector<32x512xf32>
    tpu.vector_store %arg12[%c480, %c0_230], %363 {strides = array<i32>} : memref<864x512xf32, #tpu.memory_space<vmem>>, vector<32x512xf32>,
    %365 = vector.extract_strided_slice %287 {offsets = [0, 81], sizes = [32, 512], strides = [1, 1]} : vector<32x658xf32> to vector<32x512xf32>
    %c16_231 = arith.constant 16 : index
    %c0_232 = arith.constant 0 : index
    %366 = vector.load %arg1[%c16_231, %c0_232] : memref<27x512xf32, #tpu.memory_space<vmem>>, vector<1x512xf32>
    %367 = vector.broadcast %366 : vector<1x512xf32> to vector<32x512xf32>
    %368 = arith.mulf %365, %367 : vector<32x512xf32>
    %c512 = arith.constant 512 : index
    %c0_233 = arith.constant 0 : index
    %369 = vector.load %arg12[%c512, %c0_233] : memref<864x512xf32, #tpu.memory_space<vmem>>, vector<32x512xf32>
    tpu.vector_store %arg12[%c512, %c0_233], %368 {strides = array<i32>} : memref<864x512xf32, #tpu.memory_space<vmem>>, vector<32x512xf32>,
    %370 = vector.extract_strided_slice %287 {offsets = [0, 82], sizes = [32, 512], strides = [1, 1]} : vector<32x658xf32> to vector<32x512xf32>
    %c17_234 = arith.constant 17 : index
    %c0_235 = arith.constant 0 : index
    %371 = vector.load %arg1[%c17_234, %c0_235] : memref<27x512xf32, #tpu.memory_space<vmem>>, vector<1x512xf32>
    %372 = vector.broadcast %371 : vector<1x512xf32> to vector<32x512xf32>
    %373 = arith.mulf %370, %372 : vector<32x512xf32>
    %c544 = arith.constant 544 : index
    %c0_236 = arith.constant 0 : index
    %374 = vector.load %arg12[%c544, %c0_236] : memref<864x512xf32, #tpu.memory_space<vmem>>, vector<32x512xf32>
    tpu.vector_store %arg12[%c544, %c0_236], %373 {strides = array<i32>} : memref<864x512xf32, #tpu.memory_space<vmem>>, vector<32x512xf32>,
    %375 = vector.extract_strided_slice %287 {offsets = [0, 128], sizes = [32, 512], strides = [1, 1]} : vector<32x658xf32> to vector<32x512xf32>
    %c18_237 = arith.constant 18 : index
    %c0_238 = arith.constant 0 : index
    %376 = vector.load %arg1[%c18_237, %c0_238] : memref<27x512xf32, #tpu.memory_space<vmem>>, vector<1x512xf32>
    %377 = vector.broadcast %376 : vector<1x512xf32> to vector<32x512xf32>
    %378 = arith.mulf %375, %377 : vector<32x512xf32>
    %c576 = arith.constant 576 : index
    %c0_239 = arith.constant 0 : index
    %379 = vector.load %arg12[%c576, %c0_239] : memref<864x512xf32, #tpu.memory_space<vmem>>, vector<32x512xf32>
    tpu.vector_store %arg12[%c576, %c0_239], %378 {strides = array<i32>} : memref<864x512xf32, #tpu.memory_space<vmem>>, vector<32x512xf32>,
    %380 = vector.extract_strided_slice %287 {offsets = [0, 129], sizes = [32, 512], strides = [1, 1]} : vector<32x658xf32> to vector<32x512xf32>
    %c19_240 = arith.constant 19 : index
    %c0_241 = arith.constant 0 : index
    %381 = vector.load %arg1[%c19_240, %c0_241] : memref<27x512xf32, #tpu.memory_space<vmem>>, vector<1x512xf32>
    %382 = vector.broadcast %381 : vector<1x512xf32> to vector<32x512xf32>
    %383 = arith.mulf %380, %382 : vector<32x512xf32>
    %c608 = arith.constant 608 : index
    %c0_242 = arith.constant 0 : index
    %384 = vector.load %arg12[%c608, %c0_242] : memref<864x512xf32, #tpu.memory_space<vmem>>, vector<32x512xf32>
    tpu.vector_store %arg12[%c608, %c0_242], %383 {strides = array<i32>} : memref<864x512xf32, #tpu.memory_space<vmem>>, vector<32x512xf32>,
    %385 = vector.extract_strided_slice %287 {offsets = [0, 130], sizes = [32, 512], strides = [1, 1]} : vector<32x658xf32> to vector<32x512xf32>
    %c20_243 = arith.constant 20 : index
    %c0_244 = arith.constant 0 : index
    %386 = vector.load %arg1[%c20_243, %c0_244] : memref<27x512xf32, #tpu.memory_space<vmem>>, vector<1x512xf32>
    %387 = vector.broadcast %386 : vector<1x512xf32> to vector<32x512xf32>
    %388 = arith.mulf %385, %387 : vector<32x512xf32>
    %c640 = arith.constant 640 : index
    %c0_245 = arith.constant 0 : index
    %389 = vector.load %arg12[%c640, %c0_245] : memref<864x512xf32, #tpu.memory_space<vmem>>, vector<32x512xf32>
    tpu.vector_store %arg12[%c640, %c0_245], %388 {strides = array<i32>} : memref<864x512xf32, #tpu.memory_space<vmem>>, vector<32x512xf32>,
    %390 = vector.extract_strided_slice %287 {offsets = [0, 136], sizes = [32, 512], strides = [1, 1]} : vector<32x658xf32> to vector<32x512xf32>
    %c21_246 = arith.constant 21 : index
    %c0_247 = arith.constant 0 : index
    %391 = vector.load %arg1[%c21_246, %c0_247] : memref<27x512xf32, #tpu.memory_space<vmem>>, vector<1x512xf32>
    %392 = vector.broadcast %391 : vector<1x512xf32> to vector<32x512xf32>
    %393 = arith.mulf %390, %392 : vector<32x512xf32>
    %c672 = arith.constant 672 : index
    %c0_248 = arith.constant 0 : index
    %394 = vector.load %arg12[%c672, %c0_248] : memref<864x512xf32, #tpu.memory_space<vmem>>, vector<32x512xf32>
    tpu.vector_store %arg12[%c672, %c0_248], %393 {strides = array<i32>} : memref<864x512xf32, #tpu.memory_space<vmem>>, vector<32x512xf32>,
    %395 = vector.extract_strided_slice %287 {offsets = [0, 137], sizes = [32, 512], strides = [1, 1]} : vector<32x658xf32> to vector<32x512xf32>
    %c22_249 = arith.constant 22 : index
    %c0_250 = arith.constant 0 : index
    %396 = vector.load %arg1[%c22_249, %c0_250] : memref<27x512xf32, #tpu.memory_space<vmem>>, vector<1x512xf32>
    %397 = vector.broadcast %396 : vector<1x512xf32> to vector<32x512xf32>
    %398 = arith.mulf %395, %397 : vector<32x512xf32>
    %c704 = arith.constant 704 : index
    %c0_251 = arith.constant 0 : index
    %399 = vector.load %arg12[%c704, %c0_251] : memref<864x512xf32, #tpu.memory_space<vmem>>, vector<32x512xf32>
    tpu.vector_store %arg12[%c704, %c0_251], %398 {strides = array<i32>} : memref<864x512xf32, #tpu.memory_space<vmem>>, vector<32x512xf32>,
    %400 = vector.extract_strided_slice %287 {offsets = [0, 138], sizes = [32, 512], strides = [1, 1]} : vector<32x658xf32> to vector<32x512xf32>
    %c23_252 = arith.constant 23 : index
    %c0_253 = arith.constant 0 : index
    %401 = vector.load %arg1[%c23_252, %c0_253] : memref<27x512xf32, #tpu.memory_space<vmem>>, vector<1x512xf32>
    %402 = vector.broadcast %401 : vector<1x512xf32> to vector<32x512xf32>
    %403 = arith.mulf %400, %402 : vector<32x512xf32>
    %c736 = arith.constant 736 : index
    %c0_254 = arith.constant 0 : index
    %404 = vector.load %arg12[%c736, %c0_254] : memref<864x512xf32, #tpu.memory_space<vmem>>, vector<32x512xf32>
    tpu.vector_store %arg12[%c736, %c0_254], %403 {strides = array<i32>} : memref<864x512xf32, #tpu.memory_space<vmem>>, vector<32x512xf32>,
    %405 = vector.extract_strided_slice %287 {offsets = [0, 144], sizes = [32, 512], strides = [1, 1]} : vector<32x658xf32> to vector<32x512xf32>
    %c24_255 = arith.constant 24 : index
    %c0_256 = arith.constant 0 : index
    %406 = vector.load %arg1[%c24_255, %c0_256] : memref<27x512xf32, #tpu.memory_space<vmem>>, vector<1x512xf32>
    %407 = vector.broadcast %406 : vector<1x512xf32> to vector<32x512xf32>
    %408 = arith.mulf %405, %407 : vector<32x512xf32>
    %c768 = arith.constant 768 : index
    %c0_257 = arith.constant 0 : index
    %409 = vector.load %arg12[%c768, %c0_257] : memref<864x512xf32, #tpu.memory_space<vmem>>, vector<32x512xf32>
    tpu.vector_store %arg12[%c768, %c0_257], %408 {strides = array<i32>} : memref<864x512xf32, #tpu.memory_space<vmem>>, vector<32x512xf32>,
    %410 = vector.extract_strided_slice %287 {offsets = [0, 145], sizes = [32, 512], strides = [1, 1]} : vector<32x658xf32> to vector<32x512xf32>
    %c25_258 = arith.constant 25 : index
    %c0_259 = arith.constant 0 : index
    %411 = vector.load %arg1[%c25_258, %c0_259] : memref<27x512xf32, #tpu.memory_space<vmem>>, vector<1x512xf32>
    %412 = vector.broadcast %411 : vector<1x512xf32> to vector<32x512xf32>
    %413 = arith.mulf %410, %412 : vector<32x512xf32>
    %c800 = arith.constant 800 : index
    %c0_260 = arith.constant 0 : index
    %414 = vector.load %arg12[%c800, %c0_260] : memref<864x512xf32, #tpu.memory_space<vmem>>, vector<32x512xf32>
    tpu.vector_store %arg12[%c800, %c0_260], %413 {strides = array<i32>} : memref<864x512xf32, #tpu.memory_space<vmem>>, vector<32x512xf32>,
    %415 = vector.extract_strided_slice %287 {offsets = [0, 146], sizes = [32, 512], strides = [1, 1]} : vector<32x658xf32> to vector<32x512xf32>
    %c26_261 = arith.constant 26 : index
    %c0_262 = arith.constant 0 : index
    %416 = vector.load %arg1[%c26_261, %c0_262] : memref<27x512xf32, #tpu.memory_space<vmem>>, vector<1x512xf32>
    %417 = vector.broadcast %416 : vector<1x512xf32> to vector<32x512xf32>
    %418 = arith.mulf %415, %417 : vector<32x512xf32>
    %c832 = arith.constant 832 : index
    %c0_263 = arith.constant 0 : index
    %419 = vector.load %arg12[%c832, %c0_263] : memref<864x512xf32, #tpu.memory_space<vmem>>, vector<32x512xf32>
    tpu.vector_store %arg12[%c832, %c0_263], %418 {strides = array<i32>} : memref<864x512xf32, #tpu.memory_space<vmem>>, vector<32x512xf32>,
    %c0_264 = arith.constant 0 : index
    %c0_265 = arith.constant 0 : index
    %420 = vector.load %arg12[%c0_264, %c0_265] : memref<864x512xf32, #tpu.memory_space<vmem>>, vector<864x512xf32>
    %c0_266 = arith.constant 0 : index
    %c0_267 = arith.constant 0 : index
    %421 = vector.load %arg7[%c0_266, %c0_267] : memref<16x864xf32, #tpu.memory_space<vmem>>, vector<16x864xf32>
    %cst_268 = arith.constant dense<0.000000e+00> : vector<16x512xf32>
    %422 = tpu.matmul %421, %420, %cst_268 {dimension_numbers = #tpu.dot_dimension_numbers<[1], [0], [0], [1], [0, 0, 1, 1], [], []>} : vector<16x864xf32>, vector<864x512xf32>, vector<16x512xf32> -> vector<16x512xf32>
    %c0_269 = arith.constant 0 : index
    %c0_270 = arith.constant 0 : index
    %423 = vector.load %arg8[%c0_269, %c0_270] : memref<16x1xf32, #tpu.memory_space<vmem>>, vector<16x1xf32>
    %424 = vector.broadcast %423 : vector<16x1xf32> to vector<16x512xf32>
    %425 = arith.addf %422, %424 : vector<16x512xf32>
    %cst_271 = arith.constant 0.000000e+00 : f32
    %426 = vector.broadcast %cst_271 : f32 to vector<16x512xf32>
    %427 = arith.maximumf %425, %426 : vector<16x512xf32>
    %c0_272 = arith.constant 0 : index
    %c0_273 = arith.constant 0 : index
    %428 = vector.load %arg9[%c0_272, %c0_273] : memref<8x16xf32, #tpu.memory_space<vmem>>, vector<8x16xf32>
    %cst_274 = arith.constant dense<0.000000e+00> : vector<8x512xf32>
    %429 = tpu.matmul %428, %427, %cst_274 {dimension_numbers = #tpu.dot_dimension_numbers<[1], [0], [0], [1], [0, 0, 1, 1], [], []>} : vector<8x16xf32>, vector<16x512xf32>, vector<8x512xf32> -> vector<8x512xf32>
    %c0_275 = arith.constant 0 : index
    %c0_276 = arith.constant 0 : index
    %430 = vector.load %arg10[%c0_275, %c0_276] : memref<8x1xf32, #tpu.memory_space<vmem>>, vector<8x1xf32>
    %431 = vector.broadcast %430 : vector<8x1xf32> to vector<8x512xf32>
    %432 = arith.addf %429, %431 : vector<8x512xf32>
    %cst_277 = arith.constant dense<0xFF800000> : vector<512xf32>
    %433 = vector.multi_reduction <maximumf>, %432, %cst_277 [0] : vector<8x512xf32> to vector<512xf32>
    %434 = vector.shape_cast %433 : vector<512xf32> to vector<1x512xf32>
    %435 = vector.broadcast %434 : vector<1x512xf32> to vector<8x512xf32>
    %436 = arith.subf %432, %435 : vector<8x512xf32>
    %437 = math.exp %436 : vector<8x512xf32>
    %cst_278 = arith.constant dense<0.000000e+00> : vector<512xf32>
    %438 = vector.multi_reduction <add>, %437, %cst_278 [0] : vector<8x512xf32> to vector<512xf32>
    %439 = vector.shape_cast %438 : vector<512xf32> to vector<1x512xf32>
    %440 = tpu.reciprocal %439 : vector<1x512xf32> -> vector<1x512xf32>
    %441 = vector.broadcast %440 : vector<1x512xf32> to vector<8x512xf32>
    %442 = arith.mulf %437, %441 : vector<8x512xf32>
    %443 = vector.shape_cast %442 : vector<8x512xf32> to vector<1x8x512xf32>
    %c0_279 = arith.constant 0 : index
    %c0_280 = arith.constant 0 : index
    %c0_281 = arith.constant 0 : index
    %444 = vector.load %arg11[%c0_279, %c0_280, %c0_281] : memref<1x8x512xf32, #tpu.memory_space<vmem>>, vector<1x8x512xf32>
    tpu.vector_store %arg11[%c0_279, %c0_280, %c0_281], %443 {strides = array<i32>} : memref<1x8x512xf32, #tpu.memory_space<vmem>>, vector<1x8x512xf32>,
    return
  }
  func.func @transform_0(%arg0: i32) -> (i32, i32) {
    %c0_i32 = arith.constant 0 : i32
    %c0_i32_0 = arith.constant 0 : i32
    %c0_i32_1 = arith.constant 0 : i32
    return %c0_i32, %c0_i32_0 : i32, i32
  }
  func.func @transform_1(%arg0: i32) -> (i32, i32, i32) {
    %c0_i32 = arith.constant 0 : i32
    %c0_i32_0 = arith.constant 0 : i32
    %c0_i32_1 = arith.constant 0 : i32
    return %arg0, %c0_i32, %c0_i32_0 : i32, i32, i32
  }
  func.func @transform_2(%arg0: i32) -> (i32, i32) {
    %c0_i32 = arith.constant 0 : i32
    %c0_i32_0 = arith.constant 0 : i32
    %c0_i32_1 = arith.constant 0 : i32
    return %c0_i32, %c0_i32_0 : i32, i32
  }
  func.func @transform_3(%arg0: i32) -> (i32, i32) {
    %c0_i32 = arith.constant 0 : i32
    %c0_i32_0 = arith.constant 0 : i32
    %c0_i32_1 = arith.constant 0 : i32
    return %c0_i32, %c0_i32_0 : i32, i32
  }
  func.func @transform_4(%arg0: i32) -> (i32, i32) {
    %c0_i32 = arith.constant 0 : i32
    %c0_i32_0 = arith.constant 0 : i32
    %c0_i32_1 = arith.constant 0 : i32
    return %c0_i32, %c0_i32_0 : i32, i32
  }
  func.func @transform_5(%arg0: i32) -> (i32, i32) {
    %c0_i32 = arith.constant 0 : i32
    %c0_i32_0 = arith.constant 0 : i32
    %c0_i32_1 = arith.constant 0 : i32
    return %c0_i32, %c0_i32_0 : i32, i32
  }
  func.func @transform_6(%arg0: i32) -> (i32, i32) {
    %c0_i32 = arith.constant 0 : i32
    %c0_i32_0 = arith.constant 0 : i32
    %c0_i32_1 = arith.constant 0 : i32
    return %c0_i32, %c0_i32_0 : i32, i32
  }
  func.func @transform_7(%arg0: i32) -> (i32, i32) {
    %c0_i32 = arith.constant 0 : i32
    %c0_i32_0 = arith.constant 0 : i32
    %c0_i32_1 = arith.constant 0 : i32
    return %c0_i32, %c0_i32_0 : i32, i32
  }
  func.func @transform_8(%arg0: i32) -> (i32, i32) {
    %c0_i32 = arith.constant 0 : i32
    %c0_i32_0 = arith.constant 0 : i32
    %c0_i32_1 = arith.constant 0 : i32
    return %c0_i32, %c0_i32_0 : i32, i32
  }
  func.func @transform_9(%arg0: i32) -> (i32, i32) {
    %c0_i32 = arith.constant 0 : i32
    %c0_i32_0 = arith.constant 0 : i32
    %c0_i32_1 = arith.constant 0 : i32
    return %c0_i32, %c0_i32_0 : i32, i32
  }
  func.func @transform_10(%arg0: i32) -> (i32, i32, i32) {
    %c0_i32 = arith.constant 0 : i32
    %c0_i32_0 = arith.constant 0 : i32
    %c0_i32_1 = arith.constant 0 : i32
    return %arg0, %c0_i32, %c0_i32_0 : i32, i32, i32
  }
}

</mosaic_0001>

<llo_original>
// kernel: vnet_forward.1
$region0: #{vnet_forward.1}
  #allocation0 [shape = 'u32[]', space=smem, size = 0x4, offset = 0x4, fixed_abs, tag = 'smem constant byte address 0x4 - core index']
  #allocation1 [shape = 'u32[144,128]{1,0:T(1,128)}', space=vmem, size = 0x12000, scoped, tag = 'internal scratch']
  #allocation2 [shape = 'f32[864,512]{1,0:T(8,128)}', space=vmem, size = 0x1b0000, scoped, tag = 'scratch operand']
  %s0 = inlined_call_operand.vmem [shape: f32[27,512], index: 0, kind: input, shape index: {}]
  %s1 = inlined_call_operand.vmem [shape: f32[2,8,512], index: 1, kind: input, shape index: {}]
  %s2 = inlined_call_operand.vmem [shape: f32[16,216], index: 2, kind: input, shape index: {}]
  %s3 = inlined_call_operand.vmem [shape: f32[16,1], index: 3, kind: input, shape index: {}]
  %s4 = inlined_call_operand.vmem [shape: f32[32,432], index: 4, kind: input, shape index: {}]
  %s5 = inlined_call_operand.vmem [shape: f32[32,1], index: 5, kind: input, shape index: {}]
  %s6 = inlined_call_operand.vmem [shape: f32[16,864], index: 6, kind: input, shape index: {}]
  %s7 = inlined_call_operand.vmem [shape: f32[16,1], index: 7, kind: input, shape index: {}]
  %s8 = inlined_call_operand.vmem [shape: f32[8,16], index: 8, kind: input, shape index: {}]
  %s9 = inlined_call_operand.vmem [shape: f32[8,1], index: 9, kind: input, shape index: {}]
  %s10 = inlined_call_operand.vmem [shape: f32[2,8,512], index: 10, kind: output, shape index: {}]
  %s11 = sld [smem:[#allocation0]]
  $region73: #{vnet_forward.1} parent=0
    _
  %s13 = ssub.s32 1, %s11
  %s14 = scalar_select 0, %s13, %s11
  loop: start=0, step=1, limit=4
  $region2: #{vnet_forward.1} parent=0 // loop_pre_header
    _
  $region3: #{vnet_forward.1} parent=0 // loop_header
    %s16 = sphi 0, %s20
    %p17 = scmp.ge.s32.totalorder %s16, 4
    %s24 = sphi 0, %s24
    %s26 = sphi 0, %s24
    %s27 = sphi 0, %s26
    %s41 = sphi 0, %s27
    %s47 = sphi 0, %s49
    %s50 = sphi 0, %s47
    %s51 = sphi 0, %s50
    %s67 = sphi 0, %s51
    %s71 = sphi 0, %s71
    %s73 = sphi 0, %s71
    %s74 = sphi 0, %s73
    %s88 = sphi 0, %s74
    %s92 = sphi 0, %s92
    %s94 = sphi 0, %s92
    %s95 = sphi 0, %s94
    %s109 = sphi 0, %s95
    %s113 = sphi 0, %s113
    %s115 = sphi 0, %s113
    %s116 = sphi 0, %s115
    %s130 = sphi 0, %s116
    %s134 = sphi 0, %s134
    %s136 = sphi 0, %s134
    %s137 = sphi 0, %s136
    %s151 = sphi 0, %s137
    %s155 = sphi 0, %s155
    %s157 = sphi 0, %s155
    %s158 = sphi 0, %s157
    %s172 = sphi 0, %s158
    %s176 = sphi 0, %s176
    %s178 = sphi 0, %s176
    %s179 = sphi 0, %s178
    %s193 = sphi 0, %s179
    %s197 = sphi 0, %s197
    %s199 = sphi 0, %s197
    %s200 = sphi 0, %s199
    %s214 = sphi 0, %s200
    %s218 = sphi 0, %s218
    %s220 = sphi 0, %s218
    %s221 = sphi 0, %s220
    %s235 = sphi 0, %s221
    %s241 = sphi 0, %s243
    %s244 = sphi 0, %s241
    %s245 = sphi 0, %s244
    %s261 = sphi 0, %s245
  $region4: #{vnet_forward.1} parent=0 // loop_header_branch
    %19 = sbr.rel (%p17) target = $region8
  $region5: #{vnet_forward.1} parent=0 // loop_body
    %s21 = ssub.s32 %s16, 1
    %s22 = ssub.s32 %s16, 2
    %s23 = sadd.s32 %s16, 1
    %s25 = sadd.s32 %s24, 1
    %p28 = scmp.eq.s32.totalorder %s16, 1
    %p29 = scmp.ne.s32.totalorder %s24, %s26
    %p30 = scmp.eq.s32.totalorder %s16, 0
    %p31 = por %p29, %p30
    %p32 = scmp.ne.s32.totalorder %s24, %s26
    %p33 = scmp.eq.s32.totalorder %s21, 1
    %p34 = por %p32, %p33
    %p35 = scmp.ne.s32.totalorder %s26, %s27
    %p36 = scmp.eq.s32.totalorder %s21, 0
    %p37 = por %p35, %p36
    %p38 = scmp.ne.s32.totalorder %s26, %s27
    %p39 = scmp.eq.s32.totalorder %s22, 1
    %p40 = por %p38, %p39
    %p42 = scmp.ne.s32.totalorder %s27, %s41
    %p43 = scmp.eq.s32.totalorder %s22, 0
    %p44 = por %p42, %p43
    %s45 = ssub.s32 %s16, %s23
    %p46 = scmp.eq.s32.totalorder %s45, 0
    %s48 = sadd.s32 %s47, 1
    %s49 = scalar_select %p46, %s47, %s48
    %p52 = pneg %p46
    %p53 = scmp.eq.s32.totalorder %s16, 1
    %p54 = por %p52, %p53
    %p55 = scmp.ne.s32.totalorder %s47, %s50
    %p56 = scmp.eq.s32.totalorder %s16, 0
    %p57 = por %p55, %p56
    %p58 = scmp.ne.s32.totalorder %s47, %s50
    %p59 = scmp.eq.s32.totalorder %s21, 1
    %p60 = por %p58, %p59
    %p61 = scmp.ne.s32.totalorder %s50, %s51
    %p62 = scmp.eq.s32.totalorder %s21, 0
    %p63 = por %p61, %p62
    %p64 = scmp.ne.s32.totalorder %s50, %s51
    %p65 = scmp.eq.s32.totalorder %s22, 1
    %p66 = por %p64, %p65
    %p68 = scmp.ne.s32.totalorder %s51, %s67
    %p69 = scmp.eq.s32.totalorder %s22, 0
    %p70 = por %p68, %p69
    %s72 = sadd.s32 %s71, 1
    %p75 = scmp.eq.s32.totalorder %s16, 1
    %p76 = scmp.ne.s32.totalorder %s71, %s73
    %p77 = scmp.eq.s32.totalorder %s16, 0
    %p78 = por %p76, %p77
    %p79 = scmp.ne.s32.totalorder %s71, %s73
    %p80 = scmp.eq.s32.totalorder %s21, 1
    %p81 = por %p79, %p80
    %p82 = scmp.ne.s32.totalorder %s73, %s74
    %p83 = scmp.eq.s32.totalorder %s21, 0
    %p84 = por %p82, %p83
    %p85 = scmp.ne.s32.totalorder %s73, %s74
    %p86 = scmp.eq.s32.totalorder %s22, 1
    %p87 = por %p85, %p86
    %p89 = scmp.ne.s32.totalorder %s74, %s88
    %p90 = scmp.eq.s32.totalorder %s22, 0
    %p91 = por %p89, %p90
    %s93 = sadd.s32 %s92, 1
    %p96 = scmp.eq.s32.totalorder %s16, 1
    %p97 = scmp.ne.s32.totalorder %s92, %s94
    %p98 = scmp.eq.s32.totalorder %s16, 0
    %p99 = por %p97, %p98
    %p100 = scmp.ne.s32.totalorder %s92, %s94
    %p101 = scmp.eq.s32.totalorder %s21, 1
    %p102 = por %p100, %p101
    %p103 = scmp.ne.s32.totalorder %s94, %s95
    %p104 = scmp.eq.s32.totalorder %s21, 0
    %p105 = por %p103, %p104
    %p106 = scmp.ne.s32.totalorder %s94, %s95
    %p107 = scmp.eq.s32.totalorder %s22, 1
    %p108 = por %p106, %p107
    %p110 = scmp.ne.s32.totalorder %s95, %s109
    %p111 = scmp.eq.s32.totalorder %s22, 0
    %p112 = por %p110, %p111
    %s114 = sadd.s32 %s113, 1
    %p117 = scmp.eq.s32.totalorder %s16, 1
    %p118 = scmp.ne.s32.totalorder %s113, %s115
    %p119 = scmp.eq.s32.totalorder %s16, 0
    %p120 = por %p118, %p119
    %p121 = scmp.ne.s32.totalorder %s113, %s115
    %p122 = scmp.eq.s32.totalorder %s21, 1
    %p123 = por %p121, %p122
    %p124 = scmp.ne.s32.totalorder %s115, %s116
    %p125 = scmp.eq.s32.totalorder %s21, 0
    %p126 = por %p124, %p125
    %p127 = scmp.ne.s32.totalorder %s115, %s116
    %p128 = scmp.eq.s32.totalorder %s22, 1
    %p129 = por %p127, %p128
    %p131 = scmp.ne.s32.totalorder %s116, %s130
    %p132 = scmp.eq.s32.totalorder %s22, 0
    %p133 = por %p131, %p132
    %s135 = sadd.s32 %s134, 1
    %p138 = scmp.eq.s32.totalorder %s16, 1
    %p139 = scmp.ne.s32.totalorder %s134, %s136
    %p140 = scmp.eq.s32.totalorder %s16, 0
    %p141 = por %p139, %p140
    %p142 = scmp.ne.s32.totalorder %s134, %s136
    %p143 = scmp.eq.s32.totalorder %s21, 1
    %p144 = por %p142, %p143
    %p145 = scmp.ne.s32.totalorder %s136, %s137
    %p146 = scmp.eq.s32.totalorder %s21, 0
    %p147 = por %p145, %p146
    %p148 = scmp.ne.s32.totalorder %s136, %s137
    %p149 = scmp.eq.s32.totalorder %s22, 1
    %p150 = por %p148, %p149
    %p152 = scmp.ne.s32.totalorder %s137, %s151
    %p153 = scmp.eq.s32.totalorder %s22, 0
    %p154 = por %p152, %p153
    %s156 = sadd.s32 %s155, 1
    %p159 = scmp.eq.s32.totalorder %s16, 1
    %p160 = scmp.ne.s32.totalorder %s155, %s157
    %p161 = scmp.eq.s32.totalorder %s16, 0
    %p162 = por %p160, %p161
    %p163 = scmp.ne.s32.totalorder %s155, %s157
    %p164 = scmp.eq.s32.totalorder %s21, 1
    %p165 = por %p163, %p164
    %p166 = scmp.ne.s32.totalorder %s157, %s158
    %p167 = scmp.eq.s32.totalorder %s21, 0
    %p168 = por %p166, %p167
    %p169 = scmp.ne.s32.totalorder %s157, %s158
    %p170 = scmp.eq.s32.totalorder %s22, 1
    %p171 = por %p169, %p170
    %p173 = scmp.ne.s32.totalorder %s158, %s172
    %p174 = scmp.eq.s32.totalorder %s22, 0
    %p175 = por %p173, %p174
    %s177 = sadd.s32 %s176, 1
    %p180 = scmp.eq.s32.totalorder %s16, 1
    %p181 = scmp.ne.s32.totalorder %s176, %s178
    %p182 = scmp.eq.s32.totalorder %s16, 0
    %p183 = por %p181, %p182
    %p184 = scmp.ne.s32.totalorder %s176, %s178
    %p185 = scmp.eq.s32.totalorder %s21, 1
    %p186 = por %p184, %p185
    %p187 = scmp.ne.s32.totalorder %s178, %s179
    %p188 = scmp.eq.s32.totalorder %s21, 0
    %p189 = por %p187, %p188
    %p190 = scmp.ne.s32.totalorder %s178, %s179
    %p191 = scmp.eq.s32.totalorder %s22, 1
    %p192 = por %p190, %p191
    %p194 = scmp.ne.s32.totalorder %s179, %s193
    %p195 = scmp.eq.s32.totalorder %s22, 0
    %p196 = por %p194, %p195
    %s198 = sadd.s32 %s197, 1
    %p201 = scmp.eq.s32.totalorder %s16, 1
    %p202 = scmp.ne.s32.totalorder %s197, %s199
    %p203 = scmp.eq.s32.totalorder %s16, 0
    %p204 = por %p202, %p203
    %p205 = scmp.ne.s32.totalorder %s197, %s199
    %p206 = scmp.eq.s32.totalorder %s21, 1
    %p207 = por %p205, %p206
    %p208 = scmp.ne.s32.totalorder %s199, %s200
    %p209 = scmp.eq.s32.totalorder %s21, 0
    %p210 = por %p208, %p209
    %p211 = scmp.ne.s32.totalorder %s199, %s200
    %p212 = scmp.eq.s32.totalorder %s22, 1
    %p213 = por %p211, %p212
    %p215 = scmp.ne.s32.totalorder %s200, %s214
    %p216 = scmp.eq.s32.totalorder %s22, 0
    %p217 = por %p215, %p216
    %s219 = sadd.s32 %s218, 1
    %p222 = scmp.eq.s32.totalorder %s16, 1
    %p223 = scmp.ne.s32.totalorder %s218, %s220
    %p224 = scmp.eq.s32.totalorder %s16, 0
    %p225 = por %p223, %p224
    %p226 = scmp.ne.s32.totalorder %s218, %s220
    %p227 = scmp.eq.s32.totalorder %s21, 1
    %p228 = por %p226, %p227
    %p229 = scmp.ne.s32.totalorder %s220, %s221
    %p230 = scmp.eq.s32.totalorder %s21, 0
    %p231 = por %p229, %p230
    %p232 = scmp.ne.s32.totalorder %s220, %s221
    %p233 = scmp.eq.s32.totalorder %s22, 1
    %p234 = por %p232, %p233
    %p236 = scmp.ne.s32.totalorder %s221, %s235
    %p237 = scmp.eq.s32.totalorder %s22, 0
    %p238 = por %p236, %p237
    %s239 = ssub.s32 %s16, %s23
    %p240 = scmp.eq.s32.totalorder %s239, 0
    %s242 = sadd.s32 %s241, 1
    %s243 = scalar_select %p240, %s241, %s242
    %p246 = pneg %p240
    %p247 = scmp.eq.s32.totalorder %s16, 1
    %p248 = por %p246, %p247
    %p249 = scmp.ne.s32.totalorder %s241, %s244
    %p250 = scmp.eq.s32.totalorder %s16, 0
    %p251 = por %p249, %p250
    %p252 = scmp.ne.s32.totalorder %s241, %s244
    %p253 = scmp.eq.s32.totalorder %s21, 1
    %p254 = por %p252, %p253
    %p255 = scmp.ne.s32.totalorder %s244, %s245
    %p256 = scmp.eq.s32.totalorder %s21, 0
    %p257 = por %p255, %p256
    %p258 = scmp.ne.s32.totalorder %s244, %s245
    %p259 = scmp.eq.s32.totalorder %s22, 1
    %p260 = por %p258, %p259
    %p262 = scmp.ne.s32.totalorder %s245, %s261
    %p263 = scmp.eq.s32.totalorder %s22, 0
    %p264 = por %p262, %p263
    %p265 = scmp.le.s32.totalorder 1, %s16
    %p266 = scmp.lt.s32.totalorder %s16, 3
    %p267 = pnand %p265, %p266
    %p268 = pneg %p267
    // Predicated region
    $region9: #{vnet_forward.1} parent=5 // pred_check
      _
    $region10: #{vnet_forward.1} parent=5 // pred_check_branch
      %270 = sbr.rel (%p267) target = $region12
    $region11: #{vnet_forward.1} parent=5 // pred_region
      %s271 = ssub.s32 %s16, 1
      // Predicated region
      $region13: #{vnet_forward.1} parent=11 // pred_check
        %p272 = pneg %p37
      $region14: #{vnet_forward.1} parent=11 // pred_check_branch
        %274 = sbr.rel (%p272) target = $region16
      $region15: #{vnet_forward.1} parent=11 // pred_region
        _
      $region16: #{vnet_forward.1} parent=11 // pred_fallthru
        _
      // Predicated region
      $region17: #{vnet_forward.1} parent=11 // pred_check
        %p275 = pneg %p84
      $region18: #{vnet_forward.1} parent=11 // pred_check_branch
        %277 = sbr.rel (%p275) target = $region20
      $region19: #{vnet_forward.1} parent=11 // pred_region
        _
      $region20: #{vnet_forward.1} parent=11 // pred_fallthru
        _
      // Predicated region
      $region21: #{vnet_forward.1} parent=11 // pred_check
        %p278 = pneg %p105
      $region22: #{vnet_forward.1} parent=11 // pred_check_branch
        %280 = sbr.rel (%p278) target = $region24
      $region23: #{vnet_forward.1} parent=11 // pred_region
        _
      $region24: #{vnet_forward.1} parent=11 // pred_fallthru
        _
      // Predicated region
      $region25: #{vnet_forward.1} parent=11 // pred_check
        %p281 = pneg %p126
      $region26: #{vnet_forward.1} parent=11 // pred_check_branch
        %283 = sbr.rel (%p281) target = $region28
      $region27: #{vnet_forward.1} parent=11 // pred_region
        _
      $region28: #{vnet_forward.1} parent=11 // pred_fallthru
        _
      // Predicated region
      $region29: #{vnet_forward.1} parent=11 // pred_check
        %p284 = pneg %p147
      $region30: #{vnet_forward.1} parent=11 // pred_check_branch
        %286 = sbr.rel (%p284) target = $region32
      $region31: #{vnet_forward.1} parent=11 // pred_region
        _
      $region32: #{vnet_forward.1} parent=11 // pred_fallthru
        _
      // Predicated region
      $region33: #{vnet_forward.1} parent=11 // pred_check
        %p287 = pneg %p168
      $region34: #{vnet_forward.1} parent=11 // pred_check_branch
        %289 = sbr.rel (%p287) target = $region36
      $region35: #{vnet_forward.1} parent=11 // pred_region
        _
      $region36: #{vnet_forward.1} parent=11 // pred_fallthru
        _
      // Predicated region
      $region37: #{vnet_forward.1} parent=11 // pred_check
        %p290 = pneg %p189
      $region38: #{vnet_forward.1} parent=11 // pred_check_branch
        %292 = sbr.rel (%p290) target = $region40
      $region39: #{vnet_forward.1} parent=11 // pred_region
        _
      $region40: #{vnet_forward.1} parent=11 // pred_fallthru
        _
      // Predicated region
      $region41: #{vnet_forward.1} parent=11 // pred_check
        %p293 = pneg %p210
      $region42: #{vnet_forward.1} parent=11 // pred_check_branch
        %295 = sbr.rel (%p293) target = $region44
      $region43: #{vnet_forward.1} parent=11 // pred_region
        _
      $region44: #{vnet_forward.1} parent=11 // pred_fallthru
        _
      // Predicated region
      $region45: #{vnet_forward.1} parent=11 // pred_check
        %p296 = pneg %p231
      $region46: #{vnet_forward.1} parent=11 // pred_check_branch
        %298 = sbr.rel (%p296) target = $region48
      $region47: #{vnet_forward.1} parent=11 // pred_region
        _
      $region48: #{vnet_forward.1} parent=11 // pred_fallthru
        _
    $region12: #{vnet_forward.1} parent=5 // pred_fallthru
      _
    %p299 = scmp.lt.s32.totalorder %s16, 2
    // Predicated region
    $region49: #{vnet_forward.1} parent=5 // pred_check
      %p300 = pneg %p299
    $region50: #{vnet_forward.1} parent=5 // pred_check_branch
      %302 = sbr.rel (%p300) target = $region52
    $region51: #{vnet_forward.1} parent=5 // pred_region
      // Predicated region
      $region53: #{vnet_forward.1} parent=51 // pred_check
        %p303 = pneg %p57
      $region54: #{vnet_forward.1} parent=51 // pred_check_branch
        %305 = sbr.rel (%p303) target = $region56
      $region55: #{vnet_forward.1} parent=51 // pred_region
        %p306 = scmp.lt.s32.totalorder %s16, 1
        %s307 = scalar_select %p306, %s16, 1
        %s308 = smul.addr %s307, 4
        %s309 = smul.addr %s308, 8
        %s310 = scalar_lea.vmem %s1, %s309
      $region56: #{vnet_forward.1} parent=51 // pred_fallthru
        _
    $region52: #{vnet_forward.1} parent=5 // pred_fallthru
      _
    %p311 = scmp.le.s32.totalorder 1, %s16
    %p312 = scmp.lt.s32.totalorder %s16, 3
    %p313 = pnand %p311, %p312
    %p314 = pneg %p313
    // Predicated region
    $region57: #{vnet_forward.1} parent=5 // pred_check
      _
    $region58: #{vnet_forward.1} parent=5 // pred_check_branch
      %316 = sbr.rel (%p313) target = $region60
    $region59: #{vnet_forward.1} parent=5 // pred_region
      %s317 = ssub.s32 %s16, 1
      %p318 = pneg %p37
      %p319 = pneg %p34
      %p320 = scmp.lt.s32.totalorder %s21, 1
      %s321 = scalar_select %p320, %s21, 1
      %s322 = smul.addr %s321, 4
      %s323 = smul.addr %s322, 8
      %s324 = scalar_lea.vmem %s1, %s323
      %p325 = pneg %p63
      %p326 = pneg %p60
      %p327 = pneg %p84
      %p328 = pneg %p81
      %p329 = pneg %p105
      %p330 = pneg %p102
      %p331 = pneg %p126
      %p332 = pneg %p123
      %p333 = pneg %p147
      %p334 = pneg %p144
      %p335 = pneg %p168
      %p336 = pneg %p165
      %p337 = pneg %p189
      %p338 = pneg %p186
      %p339 = pneg %p210
      %p340 = pneg %p207
      %p341 = pneg %p231
      %p342 = pneg %p228
      %p343 = pneg %p257
      %p344 = pneg %p254
      %p345 = scmp.lt.s32.totalorder %s21, 1
      %s346 = scalar_select %p345, %s21, 1
      %s347 = smul.addr %s346, 4
      %s348 = smul.addr %s347, 8
      %s349 = scalar_lea.vmem %s10, %s348
      %p350 = scmp.lt.s32.totalorder %s21, 1
      %s351 = scalar_select %p350, %s21, 1
      %s352 = smul.addr %s351, 4
      %s353 = smul.addr %s352, 8
      %s354 = scalar_lea.vmem %s1, %s353
      %p355 = scmp.lt.s32.totalorder %s21, 1
      %s356 = scalar_select %p355, %s21, 1
      %s357 = smul.addr %s356, 4
      %s358 = smul.addr %s357, 8
      %s359 = scalar_lea.vmem %s10, %s358
      %v360 = vld [vmem:[%s354] sm:$0xff]
      %v361 = vld [vmem:[%s354 + $0x8] sm:$0xff]
      %v362 = vld [vmem:[%s354 + $0x10] sm:$0xff]
      %v363 = vld [vmem:[%s354 + $0x18] sm:$0xff]
      %368 = vrot.lane.b32.xlu0 %v360, 73
      %v369 = vpop.permute.xlu0 %368
      %370 = vrot.lane.b32.xlu0 %v361, 73
      %v371 = vpop.permute.xlu0 %370
      %372 = vrot.lane.b32.xlu0 %v362, 73
      %v373 = vpop.permute.xlu0 %372
      %374 = vrot.lane.b32.xlu0 %v363, 73
      %v375 = vpop.permute.xlu0 %374
      %vm376 = vcmask 596992
      %v377 = vsel %vm376, %v369, %v371
      %v378 = vsel %vm376, %v371, %v373
      %v379 = vsel %vm376, %v373, %v375
      %v385 = vsel %vm376, 0.0, %v369
      %v386 = vsel %vm376, %v375, 0.0
      %v387 = vld [vmem:[%s0] ss:$8 sm:$0xf]
      %v389 = vlaneseq
      %v390 = vshrl.u32 %v389, 7
      %v391 = vsub.s32 0, %v390
      %v392 = vrot.slane %v387, %v391
      %v393 = vlaneseq
      %v394 = vshrl.u32 %v393, 7
      %v395 = vsub.s32 1, %v394
      %v396 = vrot.slane %v387, %v395
      %v397 = vlaneseq
      %v398 = vshrl.u32 %v397, 7
      %v399 = vsub.s32 2, %v398
      %v400 = vrot.slane %v387, %v399
      %v401 = vlaneseq
      %v402 = vshrl.u32 %v401, 7
      %v403 = vsub.s32 3, %v402
      %v404 = vrot.slane %v387, %v403
      %v409 = vmul.f32 %v385, %v392
      %v410 = vmul.f32 %v377, %v396
      %v411 = vmul.f32 %v378, %v400
      %v412 = vmul.f32 %v379, %v404
      %413 = vst [vmem:[#allocation2] sm:$0xff] %v409
      %414 = vst [vmem:[#allocation2 + $0x8] sm:$0xff] %v410
      %415 = vst [vmem:[#allocation2 + $0x10] sm:$0xff] %v411
      %416 = vst [vmem:[#allocation2 + $0x18] sm:$0xff] %v412
      %s417 = scalar_lea.vmem %s0, 1
      %v418 = vld [vmem:[%s417] ss:$8 sm:$0xf]
      %v420 = vlaneseq
      %v421 = vshrl.u32 %v420, 7
      %v422 = vsub.s32 0, %v421
      %v423 = vrot.slane %v418, %v422
      %v424 = vlaneseq
      %v425 = vshrl.u32 %v424, 7
      %v426 = vsub.s32 1, %v425
      %v427 = vrot.slane %v418, %v426
      %v428 = vlaneseq
      %v429 = vshrl.u32 %v428, 7
      %v430 = vsub.s32 2, %v429
      %v431 = vrot.slane %v418, %v430
      %v432 = vlaneseq
      %v433 = vshrl.u32 %v432, 7
      %v434 = vsub.s32 3, %v433
      %v435 = vrot.slane %v418, %v434
      %436 = vrot.lane.b32.xlu0 %v423, 1
      %v437 = vpop.permute.xlu0 %436
      %438 = vrot.lane.b32.xlu0 %v427, 1
      %v439 = vpop.permute.xlu0 %438
      %440 = vrot.lane.b32.xlu0 %v431, 1
      %v441 = vpop.permute.xlu0 %440
      %442 = vrot.lane.b32.xlu0 %v435, 1
      %v443 = vpop.permute.xlu0 %442
      %vm444 = vcmask 7168
      %v445 = vsel %vm444, %v437, %v439
      %v446 = vsel %vm444, %v439, %v441
      %v447 = vsel %vm444, %v441, %v443
      %v453 = vmul.f32 %v385, %v437
      %v454 = vmul.f32 %v377, %v445
      %v455 = vmul.f32 %v378, %v446
      %v456 = vmul.f32 %v379, %v447
      %v457 = vmul.f32 %v386, %v443
      %463 = vrot.lane.b32.xlu0 %v453, 127
      %v464 = vpop.permute.xlu0 %463
      %465 = vrot.lane.b32.xlu0 %v454, 127
      %v466 = vpop.permute.xlu0 %465
      %467 = vrot.lane.b32.xlu0 %v455, 127
      %v468 = vpop.permute.xlu0 %467
      %469 = vrot.lane.b32.xlu0 %v456, 127
      %v470 = vpop.permute.xlu0 %469
      %471 = vrot.lane.b32.xlu0 %v457, 127
      %v472 = vpop.permute.xlu0 %471
      %vm473 = vcmask 1039360
      %v474 = vsel %vm473, %v464, %v466
      %v475 = vsel %vm473, %v466, %v468
      %v476 = vsel %vm473, %v468, %v470
      %v477 = vsel %vm473, %v470, %v472
      %482 = vst [vmem:[#allocation2 + $0x20] sm:$0xff] %v474
      %483 = vst [vmem:[#allocation2 + $0x28] sm:$0xff] %v475
      %484 = vst [vmem:[#allocation2 + $0x30] sm:$0xff] %v476
      %485 = vst [vmem:[#allocation2 + $0x38] sm:$0xff] %v477
      %s486 = scalar_lea.vmem %s0, 2
      %v487 = vld [vmem:[%s486] ss:$8 sm:$0xf]
      %v489 = vlaneseq
      %v490 = vshrl.u32 %v489, 7
      %v491 = vsub.s32 0, %v490
      %v492 = vrot.slane %v487, %v491
      %v493 = vlaneseq
      %v494 = vshrl.u32 %v493, 7
      %v495 = vsub.s32 1, %v494
      %v496 = vrot.slane %v487, %v495
      %v497 = vlaneseq
      %v498 = vshrl.u32 %v497, 7
      %v499 = vsub.s32 2, %v498
      %v500 = vrot.slane %v487, %v499
      %v501 = vlaneseq
      %v502 = vshrl.u32 %v501, 7
      %v503 = vsub.s32 3, %v502
      %v504 = vrot.slane %v487, %v503
      %505 = vrot.lane.b32.xlu0 %v492, 2
      %v506 = vpop.permute.xlu0 %505
      %507 = vrot.lane.b32.xlu0 %v496, 2
      %v508 = vpop.permute.xlu0 %507
      %509 = vrot.lane.b32.xlu0 %v500, 2
      %v510 = vpop.permute.xlu0 %509
      %511 = vrot.lane.b32.xlu0 %v504, 2
      %v512 = vpop.permute.xlu0 %511
      %vm513 = vcmask 15360
      %v514 = vsel %vm513, %v506, %v508
      %v515 = vsel %vm513, %v508, %v510
      %v516 = vsel %vm513, %v510, %v512
      %v522 = vmul.f32 %v385, %v506
      %v523 = vmul.f32 %v377, %v514
      %v524 = vmul.f32 %v378, %v515
      %v525 = vmul.f32 %v379, %v516
      %v526 = vmul.f32 %v386, %v512
      %532 = vrot.lane.b32.xlu0 %v522, 126
      %v533 = vpop.permute.xlu0 %532
      %534 = vrot.lane.b32.xlu0 %v523, 126
      %v535 = vpop.permute.xlu0 %534
      %536 = vrot.lane.b32.xlu0 %v524, 126
      %v537 = vpop.permute.xlu0 %536
      %538 = vrot.lane.b32.xlu0 %v525, 126
      %v539 = vpop.permute.xlu0 %538
      %540 = vrot.lane.b32.xlu0 %v526, 126
      %v541 = vpop.permute.xlu0 %540
      %vm542 = vcmask 1031168
      %v543 = vsel %vm542, %v533, %v535
      %v544 = vsel %vm542, %v535, %v537
      %v545 = vsel %vm542, %v537, %v539
      %v546 = vsel %vm542, %v539, %v541
      %551 = vst [vmem:[#allocation2 + $0x40] sm:$0xff] %v543
      %552 = vst [vmem:[#allocation2 + $0x48] sm:$0xff] %v544
      %553 = vst [vmem:[#allocation2 + $0x50] sm:$0xff] %v545
      %554 = vst [vmem:[#allocation2 + $0x58] sm:$0xff] %v546
      %s555 = scalar_lea.vmem %s0, 3
      %v556 = vld [vmem:[%s555] ss:$8 sm:$0xf]
      %v558 = vlaneseq
      %v559 = vshrl.u32 %v558, 7
      %v560 = vsub.s32 0, %v559
      %v561 = vrot.slane %v556, %v560
      %v562 = vlaneseq
      %v563 = vshrl.u32 %v562, 7
      %v564 = vsub.s32 1, %v563
      %v565 = vrot.slane %v556, %v564
      %v566 = vlaneseq
      %v567 = vshrl.u32 %v566, 7
      %v568 = vsub.s32 2, %v567
      %v569 = vrot.slane %v556, %v568
      %v570 = vlaneseq
      %v571 = vshrl.u32 %v570, 7
      %v572 = vsub.s32 3, %v571
      %v573 = vrot.slane %v556, %v572
      %574 = vrot.lane.b32.xlu0 %v561, 8
      %v575 = vpop.permute.xlu0 %574
      %576 = vrot.lane.b32.xlu0 %v565, 8
      %v577 = vpop.permute.xlu0 %576
      %578 = vrot.lane.b32.xlu0 %v569, 8
      %v579 = vpop.permute.xlu0 %578
      %580 = vrot.lane.b32.xlu0 %v573, 8
      %v581 = vpop.permute.xlu0 %580
      %vm582 = vcmask 64512
      %v583 = vsel %vm582, %v575, %v577
      %v584 = vsel %vm582, %v577, %v579
      %v585 = vsel %vm582, %v579, %v581
      %v591 = vmul.f32 %v385, %v575
      %v592 = vmul.f32 %v377, %v583
      %v593 = vmul.f32 %v378, %v584
      %v594 = vmul.f32 %v379, %v585
      %v595 = vmul.f32 %v386, %v581
      %601 = vrot.lane.b32.xlu0 %v591, 120
      %v602 = vpop.permute.xlu0 %601
      %603 = vrot.lane.b32.xlu0 %v592, 120
      %v604 = vpop.permute.xlu0 %603
      %605 = vrot.lane.b32.xlu0 %v593, 120
      %v606 = vpop.permute.xlu0 %605
      %607 = vrot.lane.b32.xlu0 %v594, 120
      %v608 = vpop.permute.xlu0 %607
      %609 = vrot.lane.b32.xlu0 %v595, 120
      %v610 = vpop.permute.xlu0 %609
      %vm611 = vcmask 982016
      %v612 = vsel %vm611, %v602, %v604
      %v613 = vsel %vm611, %v604, %v606
      %v614 = vsel %vm611, %v606, %v608
      %v615 = vsel %vm611, %v608, %v610
      %620 = vst [vmem:[#allocation2 + $0x60] sm:$0xff] %v612
      %621 = vst [vmem:[#allocation2 + $0x68] sm:$0xff] %v613
      %622 = vst [vmem:[#allocation2 + $0x70] sm:$0xff] %v614
      %623 = vst [vmem:[#allocation2 + $0x78] sm:$0xff] %v615
      %s624 = scalar_lea.vmem %s0, 4
      %v625 = vld [vmem:[%s624] ss:$8 sm:$0xf]
      %v627 = vlaneseq
      %v628 = vshrl.u32 %v627, 7
      %v629 = vsub.s32 0, %v628
      %v630 = vrot.slane %v625, %v629
      %v631 = vlaneseq
      %v632 = vshrl.u32 %v631, 7
      %v633 = vsub.s32 1, %v632
      %v634 = vrot.slane %v625, %v633
      %v635 = vlaneseq
      %v636 = vshrl.u32 %v635, 7
      %v637 = vsub.s32 2, %v636
      %v638 = vrot.slane %v625, %v637
      %v639 = vlaneseq
      %v640 = vshrl.u32 %v639, 7
      %v641 = vsub.s32 3, %v640
      %v642 = vrot.slane %v625, %v641
      %643 = vrot.lane.b32.xlu0 %v630, 9
      %v644 = vpop.permute.xlu0 %643
      %645 = vrot.lane.b32.xlu0 %v634, 9
      %v646 = vpop.permute.xlu0 %645
      %647 = vrot.lane.b32.xlu0 %v638, 9
      %v648 = vpop.permute.xlu0 %647
      %649 = vrot.lane.b32.xlu0 %v642, 9
      %v650 = vpop.permute.xlu0 %649
      %vm651 = vcmask 72704
      %v652 = vsel %vm651, %v644, %v646
      %v653 = vsel %vm651, %v646, %v648
      %v654 = vsel %vm651, %v648, %v650
      %v660 = vmul.f32 %v385, %v644
      %v661 = vmul.f32 %v377, %v652
      %v662 = vmul.f32 %v378, %v653
      %v663 = vmul.f32 %v379, %v654
      %v664 = vmul.f32 %v386, %v650
      %670 = vrot.lane.b32.xlu0 %v660, 119
      %v671 = vpop.permute.xlu0 %670
      %672 = vrot.lane.b32.xlu0 %v661, 119
      %v673 = vpop.permute.xlu0 %672
      %674 = vrot.lane.b32.xlu0 %v662, 119
      %v675 = vpop.permute.xlu0 %674
      %676 = vrot.lane.b32.xlu0 %v663, 119
      %v677 = vpop.permute.xlu0 %676
      %678 = vrot.lane.b32.xlu0 %v664, 119
      %v679 = vpop.permute.xlu0 %678
      %vm680 = vcmask 973824
      %v681 = vsel %vm680, %v671, %v673
      %v682 = vsel %vm680, %v673, %v675
      %v683 = vsel %vm680, %v675, %v677
      %v684 = vsel %vm680, %v677, %v679
      %689 = vst [vmem:[#allocation2 + $0x80] sm:$0xff] %v681
      %690 = vst [vmem:[#allocation2 + $0x88] sm:$0xff] %v682
      %691 = vst [vmem:[#allocation2 + $0x90] sm:$0xff] %v683
      %692 = vst [vmem:[#allocation2 + $0x98] sm:$0xff] %v684
      %s693 = scalar_lea.vmem %s0, 5
      %v694 = vld [vmem:[%s693] ss:$8 sm:$0xf]
      %v696 = vlaneseq
      %v697 = vshrl.u32 %v696, 7
      %v698 = vsub.s32 0, %v697
      %v699 = vrot.slane %v694, %v698
      %v700 = vlaneseq
      %v701 = vshrl.u32 %v700, 7
      %v702 = vsub.s32 1, %v701
      %v703 = vrot.slane %v694, %v702
      %v704 = vlaneseq
      %v705 = vshrl.u32 %v704, 7
      %v706 = vsub.s32 2, %v705
      %v707 = vrot.slane %v694, %v706
      %v708 = vlaneseq
      %v709 = vshrl.u32 %v708, 7
      %v710 = vsub.s32 3, %v709
      %v711 = vrot.slane %v694, %v710
      %712 = vrot.lane.b32.xlu0 %v699, 10
      %v713 = vpop.permute.xlu0 %712
      %714 = vrot.lane.b32.xlu0 %v703, 10
      %v715 = vpop.permute.xlu0 %714
      %716 = vrot.lane.b32.xlu0 %v707, 10
      %v717 = vpop.permute.xlu0 %716
      %718 = vrot.lane.b32.xlu0 %v711, 10
      %v719 = vpop.permute.xlu0 %718
      %vm720 = vcmask 80896
      %v721 = vsel %vm720, %v713, %v715
      %v722 = vsel %vm720, %v715, %v717
      %v723 = vsel %vm720, %v717, %v719
      %v729 = vmul.f32 %v385, %v713
      %v730 = vmul.f32 %v377, %v721
      %v731 = vmul.f32 %v378, %v722
      %v732 = vmul.f32 %v379, %v723
      %v733 = vmul.f32 %v386, %v719
      %739 = vrot.lane.b32.xlu0 %v729, 118
      %v740 = vpop.permute.xlu0 %739
      %741 = vrot.lane.b32.xlu0 %v730, 118
      %v742 = vpop.permute.xlu0 %741
      %743 = vrot.lane.b32.xlu0 %v731, 118
      %v744 = vpop.permute.xlu0 %743
      %745 = vrot.lane.b32.xlu0 %v732, 118
      %v746 = vpop.permute.xlu0 %745
      %747 = vrot.lane.b32.xlu0 %v733, 118
      %v748 = vpop.permute.xlu0 %747
      %vm749 = vcmask 965632
      %v750 = vsel %vm749, %v740, %v742
      %v751 = vsel %vm749, %v742, %v744
      %v752 = vsel %vm749, %v744, %v746
      %v753 = vsel %vm749, %v746, %v748
      %758 = vst [vmem:[#allocation2 + $0xa0] sm:$0xff] %v750
      %759 = vst [vmem:[#allocation2 + $0xa8] sm:$0xff] %v751
      %760 = vst [vmem:[#allocation2 + $0xb0] sm:$0xff] %v752
      %761 = vst [vmem:[#allocation2 + $0xb8] sm:$0xff] %v753
      %s762 = scalar_lea.vmem %s0, 6
      %v763 = vld [vmem:[%s762] ss:$8 sm:$0xf]
      %v765 = vlaneseq
      %v766 = vshrl.u32 %v765, 7
      %v767 = vsub.s32 0, %v766
      %v768 = vrot.slane %v763, %v767
      %v769 = vlaneseq
      %v770 = vshrl.u32 %v769, 7
      %v771 = vsub.s32 1, %v770
      %v772 = vrot.slane %v763, %v771
      %v773 = vlaneseq
      %v774 = vshrl.u32 %v773, 7
      %v775 = vsub.s32 2, %v774
      %v776 = vrot.slane %v763, %v775
      %v777 = vlaneseq
      %v778 = vshrl.u32 %v777, 7
      %v779 = vsub.s32 3, %v778
      %v780 = vrot.slane %v763, %v779
      %781 = vrot.lane.b32.xlu0 %v768, 16
      %v782 = vpop.permute.xlu0 %781
      %783 = vrot.lane.b32.xlu0 %v772, 16
      %v784 = vpop.permute.xlu0 %783
      %785 = vrot.lane.b32.xlu0 %v776, 16
      %v786 = vpop.permute.xlu0 %785
      %787 = vrot.lane.b32.xlu0 %v780, 16
      %v788 = vpop.permute.xlu0 %787
      %vm789 = vcmask 130048
      %v790 = vsel %vm789, %v782, %v784
      %v791 = vsel %vm789, %v784, %v786
      %v792 = vsel %vm789, %v786, %v788
      %v798 = vmul.f32 %v385, %v782
      %v799 = vmul.f32 %v377, %v790
      %v800 = vmul.f32 %v378, %v791
      %v801 = vmul.f32 %v379, %v792
      %v802 = vmul.f32 %v386, %v788
      %808 = vrot.lane.b32.xlu0 %v798, 112
      %v809 = vpop.permute.xlu0 %808
      %810 = vrot.lane.b32.xlu0 %v799, 112
      %v811 = vpop.permute.xlu0 %810
      %812 = vrot.lane.b32.xlu0 %v800, 112
      %v813 = vpop.permute.xlu0 %812
      %814 = vrot.lane.b32.xlu0 %v801, 112
      %v815 = vpop.permute.xlu0 %814
      %816 = vrot.lane.b32.xlu0 %v802, 112
      %v817 = vpop.permute.xlu0 %816
      %vm818 = vcmask 916480
      %v819 = vsel %vm818, %v809, %v811
      %v820 = vsel %vm818, %v811, %v813
      %v821 = vsel %vm818, %v813, %v815
      %v822 = vsel %vm818, %v815, %v817
      %827 = vst [vmem:[#allocation2 + $0xc0] sm:$0xff] %v819
      %828 = vst [vmem:[#allocation2 + $0xc8] sm:$0xff] %v820
      %829 = vst [vmem:[#allocation2 + $0xd0] sm:$0xff] %v821
      %830 = vst [vmem:[#allocation2 + $0xd8] sm:$0xff] %v822
      %s831 = scalar_lea.vmem %s0, 7
      %v832 = vld [vmem:[%s831] ss:$8 sm:$0xf]
      %v834 = vlaneseq
      %v835 = vshrl.u32 %v834, 7
      %v836 = vsub.s32 0, %v835
      %v837 = vrot.slane %v832, %v836
      %v838 = vlaneseq
      %v839 = vshrl.u32 %v838, 7
      %v840 = vsub.s32 1, %v839
      %v841 = vrot.slane %v832, %v840
      %v842 = vlaneseq
      %v843 = vshrl.u32 %v842, 7
      %v844 = vsub.s32 2, %v843
      %v845 = vrot.slane %v832, %v844
      %v846 = vlaneseq
      %v847 = vshrl.u32 %v846, 7
      %v848 = vsub.s32 3, %v847
      %v849 = vrot.slane %v832, %v848
      %850 = vrot.lane.b32.xlu0 %v837, 17
      %v851 = vpop.permute.xlu0 %850
      %852 = vrot.lane.b32.xlu0 %v841, 17
      %v853 = vpop.permute.xlu0 %852
      %854 = vrot.lane.b32.xlu0 %v845, 17
      %v855 = vpop.permute.xlu0 %854
      %856 = vrot.lane.b32.xlu0 %v849, 17
      %v857 = vpop.permute.xlu0 %856
      %vm858 = vcmask 138240
      %v859 = vsel %vm858, %v851, %v853
      %v860 = vsel %vm858, %v853, %v855
      %v861 = vsel %vm858, %v855, %v857
      %v867 = vmul.f32 %v385, %v851
      %v868 = vmul.f32 %v377, %v859
      %v869 = vmul.f32 %v378, %v860
      %v870 = vmul.f32 %v379, %v861
      %v871 = vmul.f32 %v386, %v857
      %877 = vrot.lane.b32.xlu0 %v867, 111
      %v878 = vpop.permute.xlu0 %877
      %879 = vrot.lane.b32.xlu0 %v868, 111
      %v880 = vpop.permute.xlu0 %879
      %881 = vrot.lane.b32.xlu0 %v869, 111
      %v882 = vpop.permute.xlu0 %881
      %883 = vrot.lane.b32.xlu0 %v870, 111
      %v884 = vpop.permute.xlu0 %883
      %885 = vrot.lane.b32.xlu0 %v871, 111
      %v886 = vpop.permute.xlu0 %885
      %vm887 = vcmask 908288
      %v888 = vsel %vm887, %v878, %v880
      %v889 = vsel %vm887, %v880, %v882
      %v890 = vsel %vm887, %v882, %v884
      %v891 = vsel %vm887, %v884, %v886
      %896 = vst [vmem:[#allocation2 + $0xe0] sm:$0xff] %v888
      %897 = vst [vmem:[#allocation2 + $0xe8] sm:$0xff] %v889
      %898 = vst [vmem:[#allocation2 + $0xf0] sm:$0xff] %v890
      %899 = vst [vmem:[#allocation2 + $0xf8] sm:$0xff] %v891
      %s900 = scalar_lea.vmem %s0, 32
      %v901 = vld [vmem:[%s900] ss:$8 sm:$0xf]
      %v903 = vlaneseq
      %v904 = vshrl.u32 %v903, 7
      %v905 = vsub.s32 0, %v904
      %v906 = vrot.slane %v901, %v905
      %v907 = vlaneseq
      %v908 = vshrl.u32 %v907, 7
      %v909 = vsub.s32 1, %v908
      %v910 = vrot.slane %v901, %v909
      %v911 = vlaneseq
      %v912 = vshrl.u32 %v911, 7
      %v913 = vsub.s32 2, %v912
      %v914 = vrot.slane %v901, %v913
      %v915 = vlaneseq
      %v916 = vshrl.u32 %v915, 7
      %v917 = vsub.s32 3, %v916
      %v918 = vrot.slane %v901, %v917
      %919 = vrot.lane.b32.xlu0 %v906, 18
      %v920 = vpop.permute.xlu0 %919
      %921 = vrot.lane.b32.xlu0 %v910, 18
      %v922 = vpop.permute.xlu0 %921
      %923 = vrot.lane.b32.xlu0 %v914, 18
      %v924 = vpop.permute.xlu0 %923
      %925 = vrot.lane.b32.xlu0 %v918, 18
      %v926 = vpop.permute.xlu0 %925
      %vm927 = vcmask 146432
      %v928 = vsel %vm927, %v920, %v922
      %v929 = vsel %vm927, %v922, %v924
      %v930 = vsel %vm927, %v924, %v926
      %v936 = vmul.f32 %v385, %v920
      %v937 = vmul.f32 %v377, %v928
      %v938 = vmul.f32 %v378, %v929
      %v939 = vmul.f32 %v379, %v930
      %v940 = vmul.f32 %v386, %v926
      %946 = vrot.lane.b32.xlu0 %v936, 110
      %v947 = vpop.permute.xlu0 %946
      %948 = vrot.lane.b32.xlu0 %v937, 110
      %v949 = vpop.permute.xlu0 %948
      %950 = vrot.lane.b32.xlu0 %v938, 110
      %v951 = vpop.permute.xlu0 %950
      %952 = vrot.lane.b32.xlu0 %v939, 110
      %v953 = vpop.permute.xlu0 %952
      %954 = vrot.lane.b32.xlu0 %v940, 110
      %v955 = vpop.permute.xlu0 %954
      %vm956 = vcmask 900096
      %v957 = vsel %vm956, %v947, %v949
      %v958 = vsel %vm956, %v949, %v951
      %v959 = vsel %vm956, %v951, %v953
      %v960 = vsel %vm956, %v953, %v955
      %965 = vst [vmem:[#allocation2 + $0x100] sm:$0xff] %v957
      %966 = vst [vmem:[#allocation2 + $0x108] sm:$0xff] %v958
      %967 = vst [vmem:[#allocation2 + $0x110] sm:$0xff] %v959
      %968 = vst [vmem:[#allocation2 + $0x118] sm:$0xff] %v960
      %s969 = scalar_lea.vmem %s0, 33
      %v970 = vld [vmem:[%s969] ss:$8 sm:$0xf]
      %v972 = vlaneseq
      %v973 = vshrl.u32 %v972, 7
      %v974 = vsub.s32 0, %v973
      %v975 = vrot.slane %v970, %v974
      %v976 = vlaneseq
      %v977 = vshrl.u32 %v976, 7
      %v978 = vsub.s32 1, %v977
      %v979 = vrot.slane %v970, %v978
      %v980 = vlaneseq
      %v981 = vshrl.u32 %v980, 7
      %v982 = vsub.s32 2, %v981
      %v983 = vrot.slane %v970, %v982
      %v984 = vlaneseq
      %v985 = vshrl.u32 %v984, 7
      %v986 = vsub.s32 3, %v985
      %v987 = vrot.slane %v970, %v986
      %988 = vrot.lane.b32.xlu0 %v975, 64
      %v989 = vpop.permute.xlu0 %988
      %990 = vrot.lane.b32.xlu0 %v979, 64
      %v991 = vpop.permute.xlu0 %990
      %992 = vrot.lane.b32.xlu0 %v983, 64
      %v993 = vpop.permute.xlu0 %992
      %994 = vrot.lane.b32.xlu0 %v987, 64
      %v995 = vpop.permute.xlu0 %994
      %vm996 = vcmask 523264
      %v997 = vsel %vm996, %v989, %v991
      %v998 = vsel %vm996, %v991, %v993
      %v999 = vsel %vm996, %v993, %v995
      %v1005 = vmul.f32 %v385, %v989
      %v1006 = vmul.f32 %v377, %v997
      %v1007 = vmul.f32 %v378, %v998
      %v1008 = vmul.f32 %v379, %v999
      %v1009 = vmul.f32 %v386, %v995
      %1015 = vrot.lane.b32.xlu0 %v1005, 64
      %v1016 = vpop.permute.xlu0 %1015
      %1017 = vrot.lane.b32.xlu0 %v1006, 64
      %v1018 = vpop.permute.xlu0 %1017
      %1019 = vrot.lane.b32.xlu0 %v1007, 64
      %v1020 = vpop.permute.xlu0 %1019
      %1021 = vrot.lane.b32.xlu0 %v1008, 64
      %v1022 = vpop.permute.xlu0 %1021
      %1023 = vrot.lane.b32.xlu0 %v1009, 64
      %v1024 = vpop.permute.xlu0 %1023
      %v1025 = vsel %vm996, %v1016, %v1018
      %v1026 = vsel %vm996, %v1018, %v1020
      %v1027 = vsel %vm996, %v1020, %v1022
      %v1028 = vsel %vm996, %v1022, %v1024
      %1033 = vst [vmem:[#allocation2 + $0x120] sm:$0xff] %v1025
      %1034 = vst [vmem:[#allocation2 + $0x128] sm:$0xff] %v1026
      %1035 = vst [vmem:[#allocation2 + $0x130] sm:$0xff] %v1027
      %1036 = vst [vmem:[#allocation2 + $0x138] sm:$0xff] %v1028
      %s1037 = scalar_lea.vmem %s0, 34
      %v1038 = vld [vmem:[%s1037] ss:$8 sm:$0xf]
      %v1040 = vlaneseq
      %v1041 = vshrl.u32 %v1040, 7
      %v1042 = vsub.s32 0, %v1041
      %v1043 = vrot.slane %v1038, %v1042
      %v1044 = vlaneseq
      %v1045 = vshrl.u32 %v1044, 7
      %v1046 = vsub.s32 1, %v1045
      %v1047 = vrot.slane %v1038, %v1046
      %v1048 = vlaneseq
      %v1049 = vshrl.u32 %v1048, 7
      %v1050 = vsub.s32 2, %v1049
      %v1051 = vrot.slane %v1038, %v1050
      %v1052 = vlaneseq
      %v1053 = vshrl.u32 %v1052, 7
      %v1054 = vsub.s32 3, %v1053
      %v1055 = vrot.slane %v1038, %v1054
      %1056 = vrot.lane.b32.xlu0 %v1043, 65
      %v1057 = vpop.permute.xlu0 %1056
      %1058 = vrot.lane.b32.xlu0 %v1047, 65
      %v1059 = vpop.permute.xlu0 %1058
      %1060 = vrot.lane.b32.xlu0 %v1051, 65
      %v1061 = vpop.permute.xlu0 %1060
      %1062 = vrot.lane.b32.xlu0 %v1055, 65
      %v1063 = vpop.permute.xlu0 %1062
      %vm1064 = vcmask 531456
      %v1065 = vsel %vm1064, %v1057, %v1059
      %v1066 = vsel %vm1064, %v1059, %v1061
      %v1067 = vsel %vm1064, %v1061, %v1063
      %v1073 = vmul.f32 %v385, %v1057
      %v1074 = vmul.f32 %v377, %v1065
      %v1075 = vmul.f32 %v378, %v1066
      %v1076 = vmul.f32 %v379, %v1067
      %v1077 = vmul.f32 %v386, %v1063
      %1083 = vrot.lane.b32.xlu0 %v1073, 63
      %v1084 = vpop.permute.xlu0 %1083
      %1085 = vrot.lane.b32.xlu0 %v1074, 63
      %v1086 = vpop.permute.xlu0 %1085
      %1087 = vrot.lane.b32.xlu0 %v1075, 63
      %v1088 = vpop.permute.xlu0 %1087
      %1089 = vrot.lane.b32.xlu0 %v1076, 63
      %v1090 = vpop.permute.xlu0 %1089
      %1091 = vrot.lane.b32.xlu0 %v1077, 63
      %v1092 = vpop.permute.xlu0 %1091
      %vm1093 = vcmask 515072
      %v1094 = vsel %vm1093, %v1084, %v1086
      %v1095 = vsel %vm1093, %v1086, %v1088
      %v1096 = vsel %vm1093, %v1088, %v1090
      %v1097 = vsel %vm1093, %v1090, %v1092
      %1102 = vst [vmem:[#allocation2 + $0x140] sm:$0xff] %v1094
      %1103 = vst [vmem:[#allocation2 + $0x148] sm:$0xff] %v1095
      %1104 = vst [vmem:[#allocation2 + $0x150] sm:$0xff] %v1096
      %1105 = vst [vmem:[#allocation2 + $0x158] sm:$0xff] %v1097
      %s1106 = scalar_lea.vmem %s0, 35
      %v1107 = vld [vmem:[%s1106] ss:$8 sm:$0xf]
      %v1109 = vlaneseq
      %v1110 = vshrl.u32 %v1109, 7
      %v1111 = vsub.s32 0, %v1110
      %v1112 = vrot.slane %v1107, %v1111
      %v1113 = vlaneseq
      %v1114 = vshrl.u32 %v1113, 7
      %v1115 = vsub.s32 1, %v1114
      %v1116 = vrot.slane %v1107, %v1115
      %v1117 = vlaneseq
      %v1118 = vshrl.u32 %v1117, 7
      %v1119 = vsub.s32 2, %v1118
      %v1120 = vrot.slane %v1107, %v1119
      %v1121 = vlaneseq
      %v1122 = vshrl.u32 %v1121, 7
      %v1123 = vsub.s32 3, %v1122
      %v1124 = vrot.slane %v1107, %v1123
      %1125 = vrot.lane.b32.xlu0 %v1112, 66
      %v1126 = vpop.permute.xlu0 %1125
      %1127 = vrot.lane.b32.xlu0 %v1116, 66
      %v1128 = vpop.permute.xlu0 %1127
      %1129 = vrot.lane.b32.xlu0 %v1120, 66
      %v1130 = vpop.permute.xlu0 %1129
      %1131 = vrot.lane.b32.xlu0 %v1124, 66
      %v1132 = vpop.permute.xlu0 %1131
      %vm1133 = vcmask 539648
      %v1134 = vsel %vm1133, %v1126, %v1128
      %v1135 = vsel %vm1133, %v1128, %v1130
      %v1136 = vsel %vm1133, %v1130, %v1132
      %v1142 = vmul.f32 %v385, %v1126
      %v1143 = vmul.f32 %v377, %v1134
      %v1144 = vmul.f32 %v378, %v1135
      %v1145 = vmul.f32 %v379, %v1136
      %v1146 = vmul.f32 %v386, %v1132
      %1152 = vrot.lane.b32.xlu0 %v1142, 62
      %v1153 = vpop.permute.xlu0 %1152
      %1154 = vrot.lane.b32.xlu0 %v1143, 62
      %v1155 = vpop.permute.xlu0 %1154
      %1156 = vrot.lane.b32.xlu0 %v1144, 62
      %v1157 = vpop.permute.xlu0 %1156
      %1158 = vrot.lane.b32.xlu0 %v1145, 62
      %v1159 = vpop.permute.xlu0 %1158
      %1160 = vrot.lane.b32.xlu0 %v1146, 62
      %v1161 = vpop.permute.xlu0 %1160
      %vm1162 = vcmask 506880
      %v1163 = vsel %vm1162, %v1153, %v1155
      %v1164 = vsel %vm1162, %v1155, %v1157
      %v1165 = vsel %vm1162, %v1157, %v1159
      %v1166 = vsel %vm1162, %v1159, %v1161
      %1171 = vst [vmem:[#allocation2 + $0x160] sm:$0xff] %v1163
      %1172 = vst [vmem:[#allocation2 + $0x168] sm:$0xff] %v1164
      %1173 = vst [vmem:[#allocation2 + $0x170] sm:$0xff] %v1165
      %1174 = vst [vmem:[#allocation2 + $0x178] sm:$0xff] %v1166
      %s1175 = scalar_lea.vmem %s0, 36
      %v1176 = vld [vmem:[%s1175] ss:$8 sm:$0xf]
      %v1178 = vlaneseq
      %v1179 = vshrl.u32 %v1178, 7
      %v1180 = vsub.s32 0, %v1179
      %v1181 = vrot.slane %v1176, %v1180
      %v1182 = vlaneseq
      %v1183 = vshrl.u32 %v1182, 7
      %v1184 = vsub.s32 1, %v1183
      %v1185 = vrot.slane %v1176, %v1184
      %v1186 = vlaneseq
      %v1187 = vshrl.u32 %v1186, 7
      %v1188 = vsub.s32 2, %v1187
      %v1189 = vrot.slane %v1176, %v1188
      %v1190 = vlaneseq
      %v1191 = vshrl.u32 %v1190, 7
      %v1192 = vsub.s32 3, %v1191
      %v1193 = vrot.slane %v1176, %v1192
      %1194 = vrot.lane.b32.xlu0 %v1181, 72
      %v1195 = vpop.permute.xlu0 %1194
      %1196 = vrot.lane.b32.xlu0 %v1185, 72
      %v1197 = vpop.permute.xlu0 %1196
      %1198 = vrot.lane.b32.xlu0 %v1189, 72
      %v1199 = vpop.permute.xlu0 %1198
      %1200 = vrot.lane.b32.xlu0 %v1193, 72
      %v1201 = vpop.permute.xlu0 %1200
      %vm1202 = vcmask 588800
      %v1203 = vsel %vm1202, %v1195, %v1197
      %v1204 = vsel %vm1202, %v1197, %v1199
      %v1205 = vsel %vm1202, %v1199, %v1201
      %v1211 = vmul.f32 %v385, %v1195
      %v1212 = vmul.f32 %v377, %v1203
      %v1213 = vmul.f32 %v378, %v1204
      %v1214 = vmul.f32 %v379, %v1205
      %v1215 = vmul.f32 %v386, %v1201
      %1221 = vrot.lane.b32.xlu0 %v1211, 56
      %v1222 = vpop.permute.xlu0 %1221
      %1223 = vrot.lane.b32.xlu0 %v1212, 56
      %v1224 = vpop.permute.xlu0 %1223
      %1225 = vrot.lane.b32.xlu0 %v1213, 56
      %v1226 = vpop.permute.xlu0 %1225
      %1227 = vrot.lane.b32.xlu0 %v1214, 56
      %v1228 = vpop.permute.xlu0 %1227
      %1229 = vrot.lane.b32.xlu0 %v1215, 56
      %v1230 = vpop.permute.xlu0 %1229
      %vm1231 = vcmask 457728
      %v1232 = vsel %vm1231, %v1222, %v1224
      %v1233 = vsel %vm1231, %v1224, %v1226
      %v1234 = vsel %vm1231, %v1226, %v1228
      %v1235 = vsel %vm1231, %v1228, %v1230
      %1240 = vst [vmem:[#allocation2 + $0x180] sm:$0xff] %v1232
      %1241 = vst [vmem:[#allocation2 + $0x188] sm:$0xff] %v1233
      %1242 = vst [vmem:[#allocation2 + $0x190] sm:$0xff] %v1234
      %1243 = vst [vmem:[#allocation2 + $0x198] sm:$0xff] %v1235
      %1246 = vrot.lane.b32.xlu0 %v385, 55
      %v1247 = vpop.permute.xlu0 %1246
      %1248 = vrot.lane.b32.xlu0 %v377, 55
      %v1249 = vpop.permute.xlu0 %1248
      %1250 = vrot.lane.b32.xlu0 %v378, 55
      %v1251 = vpop.permute.xlu0 %1250
      %1252 = vrot.lane.b32.xlu0 %v379, 55
      %v1253 = vpop.permute.xlu0 %1252
      %1254 = vrot.lane.b32.xlu0 %v386, 55
      %v1255 = vpop.permute.xlu0 %1254
      %vm1256 = vcmask 449536
      %v1257 = vsel %vm1256, %v1247, %v1249
      %v1258 = vsel %vm1256, %v1249, %v1251
      %v1259 = vsel %vm1256, %v1251, %v1253
      %v1260 = vsel %vm1256, %v1253, %v1255
      %1265 = vst [vmem:[#allocation2 + $0x1a0] sm:$0xff] %v1257
      %1266 = vst [vmem:[#allocation2 + $0x1a8] sm:$0xff] %v1258
      %1267 = vst [vmem:[#allocation2 + $0x1b0] sm:$0xff] %v1259
      %1268 = vst [vmem:[#allocation2 + $0x1b8] sm:$0xff] %v1260
      %s1269 = scalar_lea.vmem %s0, 38
      %v1270 = vld [vmem:[%s1269] ss:$8 sm:$0xf]
      %v1272 = vlaneseq
      %v1273 = vshrl.u32 %v1272, 7
      %v1274 = vsub.s32 0, %v1273
      %v1275 = vrot.slane %v1270, %v1274
      %v1276 = vlaneseq
      %v1277 = vshrl.u32 %v1276, 7
      %v1278 = vsub.s32 1, %v1277
      %v1279 = vrot.slane %v1270, %v1278
      %v1280 = vlaneseq
      %v1281 = vshrl.u32 %v1280, 7
      %v1282 = vsub.s32 2, %v1281
      %v1283 = vrot.slane %v1270, %v1282
      %v1284 = vlaneseq
      %v1285 = vshrl.u32 %v1284, 7
      %v1286 = vsub.s32 3, %v1285
      %v1287 = vrot.slane %v1270, %v1286
      %1288 = vrot.lane.b32.xlu0 %v1275, 74
      %v1289 = vpop.permute.xlu0 %1288
      %1290 = vrot.lane.b32.xlu0 %v1279, 74
      %v1291 = vpop.permute.xlu0 %1290
      %1292 = vrot.lane.b32.xlu0 %v1283, 74
      %v1293 = vpop.permute.xlu0 %1292
      %1294 = vrot.lane.b32.xlu0 %v1287, 74
      %v1295 = vpop.permute.xlu0 %1294
      %vm1296 = vcmask 605184
      %v1297 = vsel %vm1296, %v1289, %v1291
      %v1298 = vsel %vm1296, %v1291, %v1293
      %v1299 = vsel %vm1296, %v1293, %v1295
      %v1305 = vmul.f32 %v385, %v1289
      %v1306 = vmul.f32 %v377, %v1297
      %v1307 = vmul.f32 %v378, %v1298
      %v1308 = vmul.f32 %v379, %v1299
      %v1309 = vmul.f32 %v386, %v1295
      %1315 = vrot.lane.b32.xlu0 %v1305, 54
      %v1316 = vpop.permute.xlu0 %1315
      %1317 = vrot.lane.b32.xlu0 %v1306, 54
      %v1318 = vpop.permute.xlu0 %1317
      %1319 = vrot.lane.b32.xlu0 %v1307, 54
      %v1320 = vpop.permute.xlu0 %1319
      %1321 = vrot.lane.b32.xlu0 %v1308, 54
      %v1322 = vpop.permute.xlu0 %1321
      %1323 = vrot.lane.b32.xlu0 %v1309, 54
      %v1324 = vpop.permute.xlu0 %1323
      %vm1325 = vcmask 441344
      %v1326 = vsel %vm1325, %v1316, %v1318
      %v1327 = vsel %vm1325, %v1318, %v1320
      %v1328 = vsel %vm1325, %v1320, %v1322
      %v1329 = vsel %vm1325, %v1322, %v1324
      %1334 = vst [vmem:[#allocation2 + $0x1c0] sm:$0xff] %v1326
      %1335 = vst [vmem:[#allocation2 + $0x1c8] sm:$0xff] %v1327
      %1336 = vst [vmem:[#allocation2 + $0x1d0] sm:$0xff] %v1328
      %1337 = vst [vmem:[#allocation2 + $0x1d8] sm:$0xff] %v1329
      %s1338 = scalar_lea.vmem %s0, 39
      %v1339 = vld [vmem:[%s1338] ss:$8 sm:$0xf]
      %v1341 = vlaneseq
      %v1342 = vshrl.u32 %v1341, 7
      %v1343 = vsub.s32 0, %v1342
      %v1344 = vrot.slane %v1339, %v1343
      %v1345 = vlaneseq
      %v1346 = vshrl.u32 %v1345, 7
      %v1347 = vsub.s32 1, %v1346
      %v1348 = vrot.slane %v1339, %v1347
      %v1349 = vlaneseq
      %v1350 = vshrl.u32 %v1349, 7
      %v1351 = vsub.s32 2, %v1350
      %v1352 = vrot.slane %v1339, %v1351
      %v1353 = vlaneseq
      %v1354 = vshrl.u32 %v1353, 7
      %v1355 = vsub.s32 3, %v1354
      %v1356 = vrot.slane %v1339, %v1355
      %1357 = vrot.lane.b32.xlu0 %v1344, 80
      %v1358 = vpop.permute.xlu0 %1357
      %1359 = vrot.lane.b32.xlu0 %v1348, 80
      %v1360 = vpop.permute.xlu0 %1359
      %1361 = vrot.lane.b32.xlu0 %v1352, 80
      %v1362 = vpop.permute.xlu0 %1361
      %1363 = vrot.lane.b32.xlu0 %v1356, 80
      %v1364 = vpop.permute.xlu0 %1363
      %vm1365 = vcmask 654336
      %v1366 = vsel %vm1365, %v1358, %v1360
      %v1367 = vsel %vm1365, %v1360, %v1362
      %v1368 = vsel %vm1365, %v1362, %v1364
      %v1374 = vmul.f32 %v385, %v1358
      %v1375 = vmul.f32 %v377, %v1366
      %v1376 = vmul.f32 %v378, %v1367
      %v1377 = vmul.f32 %v379, %v1368
      %v1378 = vmul.f32 %v386, %v1364
      %1384 = vrot.lane.b32.xlu0 %v1374, 48
      %v1385 = vpop.permute.xlu0 %1384
      %1386 = vrot.lane.b32.xlu0 %v1375, 48
      %v1387 = vpop.permute.xlu0 %1386
      %1388 = vrot.lane.b32.xlu0 %v1376, 48
      %v1389 = vpop.permute.xlu0 %1388
      %1390 = vrot.lane.b32.xlu0 %v1377, 48
      %v1391 = vpop.permute.xlu0 %1390
      %1392 = vrot.lane.b32.xlu0 %v1378, 48
      %v1393 = vpop.permute.xlu0 %1392
      %vm1394 = vcmask 392192
      %v1395 = vsel %vm1394, %v1385, %v1387
      %v1396 = vsel %vm1394, %v1387, %v1389
      %v1397 = vsel %vm1394, %v1389, %v1391
      %v1398 = vsel %vm1394, %v1391, %v1393
      %1403 = vst [vmem:[#allocation2 + $0x1e0] sm:$0xff] %v1395
      %1404 = vst [vmem:[#allocation2 + $0x1e8] sm:$0xff] %v1396
      %1405 = vst [vmem:[#allocation2 + $0x1f0] sm:$0xff] %v1397
      %1406 = vst [vmem:[#allocation2 + $0x1f8] sm:$0xff] %v1398
      %s1407 = scalar_lea.vmem %s0, 64
      %v1408 = vld [vmem:[%s1407] ss:$8 sm:$0xf]
      %v1410 = vlaneseq
      %v1411 = vshrl.u32 %v1410, 7
      %v1412 = vsub.s32 0, %v1411
      %v1413 = vrot.slane %v1408, %v1412
      %v1414 = vlaneseq
      %v1415 = vshrl.u32 %v1414, 7
      %v1416 = vsub.s32 1, %v1415
      %v1417 = vrot.slane %v1408, %v1416
      %v1418 = vlaneseq
      %v1419 = vshrl.u32 %v1418, 7
      %v1420 = vsub.s32 2, %v1419
      %v1421 = vrot.slane %v1408, %v1420
      %v1422 = vlaneseq
      %v1423 = vshrl.u32 %v1422, 7
      %v1424 = vsub.s32 3, %v1423
      %v1425 = vrot.slane %v1408, %v1424
      %1426 = vrot.lane.b32.xlu0 %v1413, 81
      %v1427 = vpop.permute.xlu0 %1426
      %1428 = vrot.lane.b32.xlu0 %v1417, 81
      %v1429 = vpop.permute.xlu0 %1428
      %1430 = vrot.lane.b32.xlu0 %v1421, 81
      %v1431 = vpop.permute.xlu0 %1430
      %1432 = vrot.lane.b32.xlu0 %v1425, 81
      %v1433 = vpop.permute.xlu0 %1432
      %vm1434 = vcmask 662528
      %v1435 = vsel %vm1434, %v1427, %v1429
      %v1436 = vsel %vm1434, %v1429, %v1431
      %v1437 = vsel %vm1434, %v1431, %v1433
      %v1443 = vmul.f32 %v385, %v1427
      %v1444 = vmul.f32 %v377, %v1435
      %v1445 = vmul.f32 %v378, %v1436
      %v1446 = vmul.f32 %v379, %v1437
      %v1447 = vmul.f32 %v386, %v1433
      %1453 = vrot.lane.b32.xlu0 %v1443, 47
      %v1454 = vpop.permute.xlu0 %1453
      %1455 = vrot.lane.b32.xlu0 %v1444, 47
      %v1456 = vpop.permute.xlu0 %1455
      %1457 = vrot.lane.b32.xlu0 %v1445, 47
      %v1458 = vpop.permute.xlu0 %1457
      %1459 = vrot.lane.b32.xlu0 %v1446, 47
      %v1460 = vpop.permute.xlu0 %1459
      %1461 = vrot.lane.b32.xlu0 %v1447, 47
      %v1462 = vpop.permute.xlu0 %1461
      %vm1463 = vcmask 384000
      %v1464 = vsel %vm1463, %v1454, %v1456
      %v1465 = vsel %vm1463, %v1456, %v1458
      %v1466 = vsel %vm1463, %v1458, %v1460
      %v1467 = vsel %vm1463, %v1460, %v1462
      %1472 = vst [vmem:[#allocation2 + $0x200] sm:$0xff] %v1464
      %1473 = vst [vmem:[#allocation2 + $0x208] sm:$0xff] %v1465
      %1474 = vst [vmem:[#allocation2 + $0x210] sm:$0xff] %v1466
      %1475 = vst [vmem:[#allocation2 + $0x218] sm:$0xff] %v1467
      %s1476 = scalar_lea.vmem %s0, 65
      %v1477 = vld [vmem:[%s1476] ss:$8 sm:$0xf]
      %v1479 = vlaneseq
      %v1480 = vshrl.u32 %v1479, 7
      %v1481 = vsub.s32 0, %v1480
      %v1482 = vrot.slane %v1477, %v1481
      %v1483 = vlaneseq
      %v1484 = vshrl.u32 %v1483, 7
      %v1485 = vsub.s32 1, %v1484
      %v1486 = vrot.slane %v1477, %v1485
      %v1487 = vlaneseq
      %v1488 = vshrl.u32 %v1487, 7
      %v1489 = vsub.s32 2, %v1488
      %v1490 = vrot.slane %v1477, %v1489
      %v1491 = vlaneseq
      %v1492 = vshrl.u32 %v1491, 7
      %v1493 = vsub.s32 3, %v1492
      %v1494 = vrot.slane %v1477, %v1493
      %1495 = vrot.lane.b32.xlu0 %v1482, 82
      %v1496 = vpop.permute.xlu0 %1495
      %1497 = vrot.lane.b32.xlu0 %v1486, 82
      %v1498 = vpop.permute.xlu0 %1497
      %1499 = vrot.lane.b32.xlu0 %v1490, 82
      %v1500 = vpop.permute.xlu0 %1499
      %1501 = vrot.lane.b32.xlu0 %v1494, 82
      %v1502 = vpop.permute.xlu0 %1501
      %vm1503 = vcmask 670720
      %v1504 = vsel %vm1503, %v1496, %v1498
      %v1505 = vsel %vm1503, %v1498, %v1500
      %v1506 = vsel %vm1503, %v1500, %v1502
      %v1512 = vmul.f32 %v385, %v1496
      %v1513 = vmul.f32 %v377, %v1504
      %v1514 = vmul.f32 %v378, %v1505
      %v1515 = vmul.f32 %v379, %v1506
      %v1516 = vmul.f32 %v386, %v1502
      %1522 = vrot.lane.b32.xlu0 %v1512, 46
      %v1523 = vpop.permute.xlu0 %1522
      %1524 = vrot.lane.b32.xlu0 %v1513, 46
      %v1525 = vpop.permute.xlu0 %1524
      %1526 = vrot.lane.b32.xlu0 %v1514, 46
      %v1527 = vpop.permute.xlu0 %1526
      %1528 = vrot.lane.b32.xlu0 %v1515, 46
      %v1529 = vpop.permute.xlu0 %1528
      %1530 = vrot.lane.b32.xlu0 %v1516, 46
      %v1531 = vpop.permute.xlu0 %1530
      %vm1532 = vcmask 375808
      %v1533 = vsel %vm1532, %v1523, %v1525
      %v1534 = vsel %vm1532, %v1525, %v1527
      %v1535 = vsel %vm1532, %v1527, %v1529
      %v1536 = vsel %vm1532, %v1529, %v1531
      %1541 = vst [vmem:[#allocation2 + $0x220] sm:$0xff] %v1533
      %1542 = vst [vmem:[#allocation2 + $0x228] sm:$0xff] %v1534
      %1543 = vst [vmem:[#allocation2 + $0x230] sm:$0xff] %v1535
      %1544 = vst [vmem:[#allocation2 + $0x238] sm:$0xff] %v1536
      %s1545 = scalar_lea.vmem %s0, 66
      %v1546 = vld [vmem:[%s1545] ss:$8 sm:$0xf]
      %v1548 = vlaneseq
      %v1549 = vshrl.u32 %v1548, 7
      %v1550 = vsub.s32 0, %v1549
      %v1551 = vrot.slane %v1546, %v1550
      %v1552 = vlaneseq
      %v1553 = vshrl.u32 %v1552, 7
      %v1554 = vsub.s32 1, %v1553
      %v1555 = vrot.slane %v1546, %v1554
      %v1556 = vlaneseq
      %v1557 = vshrl.u32 %v1556, 7
      %v1558 = vsub.s32 2, %v1557
      %v1559 = vrot.slane %v1546, %v1558
      %v1560 = vlaneseq
      %v1561 = vshrl.u32 %v1560, 7
      %v1562 = vsub.s32 3, %v1561
      %v1563 = vrot.slane %v1546, %v1562
      %v1568 = vmul.f32 %v377, %v1551
      %v1569 = vmul.f32 %v378, %v1555
      %v1570 = vmul.f32 %v379, %v1559
      %v1571 = vmul.f32 %v386, %v1563
      %1572 = vst [vmem:[#allocation2 + $0x240] sm:$0xff] %v1568
      %1573 = vst [vmem:[#allocation2 + $0x248] sm:$0xff] %v1569
      %1574 = vst [vmem:[#allocation2 + $0x250] sm:$0xff] %v1570
      %1575 = vst [vmem:[#allocation2 + $0x258] sm:$0xff] %v1571
      %s1576 = scalar_lea.vmem %s0, 67
      %v1577 = vld [vmem:[%s1576] ss:$8 sm:$0xf]
      %v1579 = vlaneseq
      %v1580 = vshrl.u32 %v1579, 7
      %v1581 = vsub.s32 0, %v1580
      %v1582 = vrot.slane %v1577, %v1581
      %v1583 = vlaneseq
      %v1584 = vshrl.u32 %v1583, 7
      %v1585 = vsub.s32 1, %v1584
      %v1586 = vrot.slane %v1577, %v1585
      %v1587 = vlaneseq
      %v1588 = vshrl.u32 %v1587, 7
      %v1589 = vsub.s32 2, %v1588
      %v1590 = vrot.slane %v1577, %v1589
      %v1591 = vlaneseq
      %v1592 = vshrl.u32 %v1591, 7
      %v1593 = vsub.s32 3, %v1592
      %v1594 = vrot.slane %v1577, %v1593
      %1595 = vrot.lane.b32.xlu0 %v1582, 1
      %v1596 = vpop.permute.xlu0 %1595
      %1597 = vrot.lane.b32.xlu0 %v1586, 1
      %v1598 = vpop.permute.xlu0 %1597
      %1599 = vrot.lane.b32.xlu0 %v1590, 1
      %v1600 = vpop.permute.xlu0 %1599
      %1601 = vrot.lane.b32.xlu0 %v1594, 1
      %v1602 = vpop.permute.xlu0 %1601
      %v1603 = vsel %vm444, %v1596, %v1598
      %v1604 = vsel %vm444, %v1598, %v1600
      %v1605 = vsel %vm444, %v1600, %v1602
      %v1611 = vmul.f32 %v377, %v1596
      %v1612 = vmul.f32 %v378, %v1603
      %v1613 = vmul.f32 %v379, %v1604
      %v1614 = vmul.f32 %v386, %v1605
      %v1615 = vmul.f32 %v1602, 0.0
      %1621 = vrot.lane.b32.xlu0 %v1611, 127
      %v1622 = vpop.permute.xlu0 %1621
      %1623 = vrot.lane.b32.xlu0 %v1612, 127
      %v1624 = vpop.permute.xlu0 %1623
      %1625 = vrot.lane.b32.xlu0 %v1613, 127
      %v1626 = vpop.permute.xlu0 %1625
      %1627 = vrot.lane.b32.xlu0 %v1614, 127
      %v1628 = vpop.permute.xlu0 %1627
      %1629 = vrot.lane.b32.xlu0 %v1615, 127
      %v1630 = vpop.permute.xlu0 %1629
      %v1631 = vsel %vm473, %v1622, %v1624
      %v1632 = vsel %vm473, %v1624, %v1626
      %v1633 = vsel %vm473, %v1626, %v1628
      %v1634 = vsel %vm473, %v1628, %v1630
      %1639 = vst [vmem:[#allocation2 + $0x260] sm:$0xff] %v1631
      %1640 = vst [vmem:[#allocation2 + $0x268] sm:$0xff] %v1632
      %1641 = vst [vmem:[#allocation2 + $0x270] sm:$0xff] %v1633
      %1642 = vst [vmem:[#allocation2 + $0x278] sm:$0xff] %v1634
      %s1643 = scalar_lea.vmem %s0, 68
      %v1644 = vld [vmem:[%s1643] ss:$8 sm:$0xf]
      %v1646 = vlaneseq
      %v1647 = vshrl.u32 %v1646, 7
      %v1648 = vsub.s32 0, %v1647
      %v1649 = vrot.slane %v1644, %v1648
      %v1650 = vlaneseq
      %v1651 = vshrl.u32 %v1650, 7
      %v1652 = vsub.s32 1, %v1651
      %v1653 = vrot.slane %v1644, %v1652
      %v1654 = vlaneseq
      %v1655 = vshrl.u32 %v1654, 7
      %v1656 = vsub.s32 2, %v1655
      %v1657 = vrot.slane %v1644, %v1656
      %v1658 = vlaneseq
      %v1659 = vshrl.u32 %v1658, 7
      %v1660 = vsub.s32 3, %v1659
      %v1661 = vrot.slane %v1644, %v1660
      %1662 = vrot.lane.b32.xlu0 %v1649, 2
      %v1663 = vpop.permute.xlu0 %1662
      %1664 = vrot.lane.b32.xlu0 %v1653, 2
      %v1665 = vpop.permute.xlu0 %1664
      %1666 = vrot.lane.b32.xlu0 %v1657, 2
      %v1667 = vpop.permute.xlu0 %1666
      %1668 = vrot.lane.b32.xlu0 %v1661, 2
      %v1669 = vpop.permute.xlu0 %1668
      %v1670 = vsel %vm513, %v1663, %v1665
      %v1671 = vsel %vm513, %v1665, %v1667
      %v1672 = vsel %vm513, %v1667, %v1669
      %v1678 = vmul.f32 %v377, %v1663
      %v1679 = vmul.f32 %v378, %v1670
      %v1680 = vmul.f32 %v379, %v1671
      %v1681 = vmul.f32 %v386, %v1672
      %v1682 = vmul.f32 %v1669, 0.0
      %1688 = vrot.lane.b32.xlu0 %v1678, 126
      %v1689 = vpop.permute.xlu0 %1688
      %1690 = vrot.lane.b32.xlu0 %v1679, 126
      %v1691 = vpop.permute.xlu0 %1690
      %1692 = vrot.lane.b32.xlu0 %v1680, 126
      %v1693 = vpop.permute.xlu0 %1692
      %1694 = vrot.lane.b32.xlu0 %v1681, 126
      %v1695 = vpop.permute.xlu0 %1694
      %1696 = vrot.lane.b32.xlu0 %v1682, 126
      %v1697 = vpop.permute.xlu0 %1696
      %v1698 = vsel %vm542, %v1689, %v1691
      %v1699 = vsel %vm542, %v1691, %v1693
      %v1700 = vsel %vm542, %v1693, %v1695
      %v1701 = vsel %vm542, %v1695, %v1697
      %1706 = vst [vmem:[#allocation2 + $0x280] sm:$0xff] %v1698
      %1707 = vst [vmem:[#allocation2 + $0x288] sm:$0xff] %v1699
      %1708 = vst [vmem:[#allocation2 + $0x290] sm:$0xff] %v1700
      %1709 = vst [vmem:[#allocation2 + $0x298] sm:$0xff] %v1701
      %s1710 = scalar_lea.vmem %s0, 69
      %v1711 = vld [vmem:[%s1710] ss:$8 sm:$0xf]
      %v1713 = vlaneseq
      %v1714 = vshrl.u32 %v1713, 7
      %v1715 = vsub.s32 0, %v1714
      %v1716 = vrot.slane %v1711, %v1715
      %v1717 = vlaneseq
      %v1718 = vshrl.u32 %v1717, 7
      %v1719 = vsub.s32 1, %v1718
      %v1720 = vrot.slane %v1711, %v1719
      %v1721 = vlaneseq
      %v1722 = vshrl.u32 %v1721, 7
      %v1723 = vsub.s32 2, %v1722
      %v1724 = vrot.slane %v1711, %v1723
      %v1725 = vlaneseq
      %v1726 = vshrl.u32 %v1725, 7
      %v1727 = vsub.s32 3, %v1726
      %v1728 = vrot.slane %v1711, %v1727
      %1729 = vrot.lane.b32.xlu0 %v1716, 8
      %v1730 = vpop.permute.xlu0 %1729
      %1731 = vrot.lane.b32.xlu0 %v1720, 8
      %v1732 = vpop.permute.xlu0 %1731
      %1733 = vrot.lane.b32.xlu0 %v1724, 8
      %v1734 = vpop.permute.xlu0 %1733
      %1735 = vrot.lane.b32.xlu0 %v1728, 8
      %v1736 = vpop.permute.xlu0 %1735
      %v1737 = vsel %vm582, %v1730, %v1732
      %v1738 = vsel %vm582, %v1732, %v1734
      %v1739 = vsel %vm582, %v1734, %v1736
      %v1745 = vmul.f32 %v377, %v1730
      %v1746 = vmul.f32 %v378, %v1737
      %v1747 = vmul.f32 %v379, %v1738
      %v1748 = vmul.f32 %v386, %v1739
      %v1749 = vmul.f32 %v1736, 0.0
      %1755 = vrot.lane.b32.xlu0 %v1745, 120
      %v1756 = vpop.permute.xlu0 %1755
      %1757 = vrot.lane.b32.xlu0 %v1746, 120
      %v1758 = vpop.permute.xlu0 %1757
      %1759 = vrot.lane.b32.xlu0 %v1747, 120
      %v1760 = vpop.permute.xlu0 %1759
      %1761 = vrot.lane.b32.xlu0 %v1748, 120
      %v1762 = vpop.permute.xlu0 %1761
      %1763 = vrot.lane.b32.xlu0 %v1749, 120
      %v1764 = vpop.permute.xlu0 %1763
      %v1765 = vsel %vm611, %v1756, %v1758
      %v1766 = vsel %vm611, %v1758, %v1760
      %v1767 = vsel %vm611, %v1760, %v1762
      %v1768 = vsel %vm611, %v1762, %v1764
      %1773 = vst [vmem:[#allocation2 + $0x2a0] sm:$0xff] %v1765
      %1774 = vst [vmem:[#allocation2 + $0x2a8] sm:$0xff] %v1766
      %1775 = vst [vmem:[#allocation2 + $0x2b0] sm:$0xff] %v1767
      %1776 = vst [vmem:[#allocation2 + $0x2b8] sm:$0xff] %v1768
      %s1777 = scalar_lea.vmem %s0, 70
      %v1778 = vld [vmem:[%s1777] ss:$8 sm:$0xf]
      %v1780 = vlaneseq
      %v1781 = vshrl.u32 %v1780, 7
      %v1782 = vsub.s32 0, %v1781
      %v1783 = vrot.slane %v1778, %v1782
      %v1784 = vlaneseq
      %v1785 = vshrl.u32 %v1784, 7
      %v1786 = vsub.s32 1, %v1785
      %v1787 = vrot.slane %v1778, %v1786
      %v1788 = vlaneseq
      %v1789 = vshrl.u32 %v1788, 7
      %v1790 = vsub.s32 2, %v1789
      %v1791 = vrot.slane %v1778, %v1790
      %v1792 = vlaneseq
      %v1793 = vshrl.u32 %v1792, 7
      %v1794 = vsub.s32 3, %v1793
      %v1795 = vrot.slane %v1778, %v1794
      %1796 = vrot.lane.b32.xlu0 %v1783, 9
      %v1797 = vpop.permute.xlu0 %1796
      %1798 = vrot.lane.b32.xlu0 %v1787, 9
      %v1799 = vpop.permute.xlu0 %1798
      %1800 = vrot.lane.b32.xlu0 %v1791, 9
      %v1801 = vpop.permute.xlu0 %1800
      %1802 = vrot.lane.b32.xlu0 %v1795, 9
      %v1803 = vpop.permute.xlu0 %1802
      %v1804 = vsel %vm651, %v1797, %v1799
      %v1805 = vsel %vm651, %v1799, %v1801
      %v1806 = vsel %vm651, %v1801, %v1803
      %v1812 = vmul.f32 %v377, %v1797
      %v1813 = vmul.f32 %v378, %v1804
      %v1814 = vmul.f32 %v379, %v1805
      %v1815 = vmul.f32 %v386, %v1806
      %v1816 = vmul.f32 %v1803, 0.0
      %1822 = vrot.lane.b32.xlu0 %v1812, 119
      %v1823 = vpop.permute.xlu0 %1822
      %1824 = vrot.lane.b32.xlu0 %v1813, 119
      %v1825 = vpop.permute.xlu0 %1824
      %1826 = vrot.lane.b32.xlu0 %v1814, 119
      %v1827 = vpop.permute.xlu0 %1826
      %1828 = vrot.lane.b32.xlu0 %v1815, 119
      %v1829 = vpop.permute.xlu0 %1828
      %1830 = vrot.lane.b32.xlu0 %v1816, 119
      %v1831 = vpop.permute.xlu0 %1830
      %v1832 = vsel %vm680, %v1823, %v1825
      %v1833 = vsel %vm680, %v1825, %v1827
      %v1834 = vsel %vm680, %v1827, %v1829
      %v1835 = vsel %vm680, %v1829, %v1831
      %1840 = vst [vmem:[#allocation2 + $0x2c0] sm:$0xff] %v1832
      %1841 = vst [vmem:[#allocation2 + $0x2c8] sm:$0xff] %v1833
      %1842 = vst [vmem:[#allocation2 + $0x2d0] sm:$0xff] %v1834
      %1843 = vst [vmem:[#allocation2 + $0x2d8] sm:$0xff] %v1835
      %s1844 = scalar_lea.vmem %s0, 71
      %v1845 = vld [vmem:[%s1844] ss:$8 sm:$0xf]
      %v1847 = vlaneseq
      %v1848 = vshrl.u32 %v1847, 7
      %v1849 = vsub.s32 0, %v1848
      %v1850 = vrot.slane %v1845, %v1849
      %v1851 = vlaneseq
      %v1852 = vshrl.u32 %v1851, 7
      %v1853 = vsub.s32 1, %v1852
      %v1854 = vrot.slane %v1845, %v1853
      %v1855 = vlaneseq
      %v1856 = vshrl.u32 %v1855, 7
      %v1857 = vsub.s32 2, %v1856
      %v1858 = vrot.slane %v1845, %v1857
      %v1859 = vlaneseq
      %v1860 = vshrl.u32 %v1859, 7
      %v1861 = vsub.s32 3, %v1860
      %v1862 = vrot.slane %v1845, %v1861
      %1863 = vrot.lane.b32.xlu0 %v1850, 10
      %v1864 = vpop.permute.xlu0 %1863
      %1865 = vrot.lane.b32.xlu0 %v1854, 10
      %v1866 = vpop.permute.xlu0 %1865
      %1867 = vrot.lane.b32.xlu0 %v1858, 10
      %v1868 = vpop.permute.xlu0 %1867
      %1869 = vrot.lane.b32.xlu0 %v1862, 10
      %v1870 = vpop.permute.xlu0 %1869
      %v1871 = vsel %vm720, %v1864, %v1866
      %v1872 = vsel %vm720, %v1866, %v1868
      %v1873 = vsel %vm720, %v1868, %v1870
      %v1879 = vmul.f32 %v377, %v1864
      %v1880 = vmul.f32 %v378, %v1871
      %v1881 = vmul.f32 %v379, %v1872
      %v1882 = vmul.f32 %v386, %v1873
      %v1883 = vmul.f32 %v1870, 0.0
      %1889 = vrot.lane.b32.xlu0 %v1879, 118
      %v1890 = vpop.permute.xlu0 %1889
      %1891 = vrot.lane.b32.xlu0 %v1880, 118
      %v1892 = vpop.permute.xlu0 %1891
      %1893 = vrot.lane.b32.xlu0 %v1881, 118
      %v1894 = vpop.permute.xlu0 %1893
      %1895 = vrot.lane.b32.xlu0 %v1882, 118
      %v1896 = vpop.permute.xlu0 %1895
      %1897 = vrot.lane.b32.xlu0 %v1883, 118
      %v1898 = vpop.permute.xlu0 %1897
      %v1899 = vsel %vm749, %v1890, %v1892
      %v1900 = vsel %vm749, %v1892, %v1894
      %v1901 = vsel %vm749, %v1894, %v1896
      %v1902 = vsel %vm749, %v1896, %v1898
      %1907 = vst [vmem:[#allocation2 + $0x2e0] sm:$0xff] %v1899
      %1908 = vst [vmem:[#allocation2 + $0x2e8] sm:$0xff] %v1900
      %1909 = vst [vmem:[#allocation2 + $0x2f0] sm:$0xff] %v1901
      %1910 = vst [vmem:[#allocation2 + $0x2f8] sm:$0xff] %v1902
      %s1911 = scalar_lea.vmem %s0, 96
      %v1912 = vld [vmem:[%s1911] ss:$8 sm:$0xf]
      %v1914 = vlaneseq
      %v1915 = vshrl.u32 %v1914, 7
      %v1916 = vsub.s32 0, %v1915
      %v1917 = vrot.slane %v1912, %v1916
      %v1918 = vlaneseq
      %v1919 = vshrl.u32 %v1918, 7
      %v1920 = vsub.s32 1, %v1919
      %v1921 = vrot.slane %v1912, %v1920
      %v1922 = vlaneseq
      %v1923 = vshrl.u32 %v1922, 7
      %v1924 = vsub.s32 2, %v1923
      %v1925 = vrot.slane %v1912, %v1924
      %v1926 = vlaneseq
      %v1927 = vshrl.u32 %v1926, 7
      %v1928 = vsub.s32 3, %v1927
      %v1929 = vrot.slane %v1912, %v1928
      %1930 = vrot.lane.b32.xlu0 %v1917, 16
      %v1931 = vpop.permute.xlu0 %1930
      %1932 = vrot.lane.b32.xlu0 %v1921, 16
      %v1933 = vpop.permute.xlu0 %1932
      %1934 = vrot.lane.b32.xlu0 %v1925, 16
      %v1935 = vpop.permute.xlu0 %1934
      %1936 = vrot.lane.b32.xlu0 %v1929, 16
      %v1937 = vpop.permute.xlu0 %1936
      %v1938 = vsel %vm789, %v1931, %v1933
      %v1939 = vsel %vm789, %v1933, %v1935
      %v1940 = vsel %vm789, %v1935, %v1937
      %v1946 = vmul.f32 %v377, %v1931
      %v1947 = vmul.f32 %v378, %v1938
      %v1948 = vmul.f32 %v379, %v1939
      %v1949 = vmul.f32 %v386, %v1940
      %v1950 = vmul.f32 %v1937, 0.0
      %1956 = vrot.lane.b32.xlu0 %v1946, 112
      %v1957 = vpop.permute.xlu0 %1956
      %1958 = vrot.lane.b32.xlu0 %v1947, 112
      %v1959 = vpop.permute.xlu0 %1958
      %1960 = vrot.lane.b32.xlu0 %v1948, 112
      %v1961 = vpop.permute.xlu0 %1960
      %1962 = vrot.lane.b32.xlu0 %v1949, 112
      %v1963 = vpop.permute.xlu0 %1962
      %1964 = vrot.lane.b32.xlu0 %v1950, 112
      %v1965 = vpop.permute.xlu0 %1964
      %v1966 = vsel %vm818, %v1957, %v1959
      %v1967 = vsel %vm818, %v1959, %v1961
      %v1968 = vsel %vm818, %v1961, %v1963
      %v1969 = vsel %vm818, %v1963, %v1965
      %1974 = vst [vmem:[#allocation2 + $0x300] sm:$0xff] %v1966
      %1975 = vst [vmem:[#allocation2 + $0x308] sm:$0xff] %v1967
      %1976 = vst [vmem:[#allocation2 + $0x310] sm:$0xff] %v1968
      %1977 = vst [vmem:[#allocation2 + $0x318] sm:$0xff] %v1969
      %s1978 = scalar_lea.vmem %s0, 97
      %v1979 = vld [vmem:[%s1978] ss:$8 sm:$0xf]
      %v1981 = vlaneseq
      %v1982 = vshrl.u32 %v1981, 7
      %v1983 = vsub.s32 0, %v1982
      %v1984 = vrot.slane %v1979, %v1983
      %v1985 = vlaneseq
      %v1986 = vshrl.u32 %v1985, 7
      %v1987 = vsub.s32 1, %v1986
      %v1988 = vrot.slane %v1979, %v1987
      %v1989 = vlaneseq
      %v1990 = vshrl.u32 %v1989, 7
      %v1991 = vsub.s32 2, %v1990
      %v1992 = vrot.slane %v1979, %v1991
      %v1993 = vlaneseq
      %v1994 = vshrl.u32 %v1993, 7
      %v1995 = vsub.s32 3, %v1994
      %v1996 = vrot.slane %v1979, %v1995
      %1997 = vrot.lane.b32.xlu0 %v1984, 17
      %v1998 = vpop.permute.xlu0 %1997
      %1999 = vrot.lane.b32.xlu0 %v1988, 17
      %v2000 = vpop.permute.xlu0 %1999
      %2001 = vrot.lane.b32.xlu0 %v1992, 17
      %v2002 = vpop.permute.xlu0 %2001
      %2003 = vrot.lane.b32.xlu0 %v1996, 17
      %v2004 = vpop.permute.xlu0 %2003
      %v2005 = vsel %vm858, %v1998, %v2000
      %v2006 = vsel %vm858, %v2000, %v2002
      %v2007 = vsel %vm858, %v2002, %v2004
      %v2013 = vmul.f32 %v377, %v1998
      %v2014 = vmul.f32 %v378, %v2005
      %v2015 = vmul.f32 %v379, %v2006
      %v2016 = vmul.f32 %v386, %v2007
      %v2017 = vmul.f32 %v2004, 0.0
      %2023 = vrot.lane.b32.xlu0 %v2013, 111
      %v2024 = vpop.permute.xlu0 %2023
      %2025 = vrot.lane.b32.xlu0 %v2014, 111
      %v2026 = vpop.permute.xlu0 %2025
      %2027 = vrot.lane.b32.xlu0 %v2015, 111
      %v2028 = vpop.permute.xlu0 %2027
      %2029 = vrot.lane.b32.xlu0 %v2016, 111
      %v2030 = vpop.permute.xlu0 %2029
      %2031 = vrot.lane.b32.xlu0 %v2017, 111
      %v2032 = vpop.permute.xlu0 %2031
      %v2033 = vsel %vm887, %v2024, %v2026
      %v2034 = vsel %vm887, %v2026, %v2028
      %v2035 = vsel %vm887, %v2028, %v2030
      %v2036 = vsel %vm887, %v2030, %v2032
      %2041 = vst [vmem:[#allocation2 + $0x320] sm:$0xff] %v2033
      %2042 = vst [vmem:[#allocation2 + $0x328] sm:$0xff] %v2034
      %2043 = vst [vmem:[#allocation2 + $0x330] sm:$0xff] %v2035
      %2044 = vst [vmem:[#allocation2 + $0x338] sm:$0xff] %v2036
      %s2045 = scalar_lea.vmem %s0, 98
      %v2046 = vld [vmem:[%s2045] ss:$8 sm:$0xf]
      %v2048 = vlaneseq
      %v2049 = vshrl.u32 %v2048, 7
      %v2050 = vsub.s32 0, %v2049
      %v2051 = vrot.slane %v2046, %v2050
      %v2052 = vlaneseq
      %v2053 = vshrl.u32 %v2052, 7
      %v2054 = vsub.s32 1, %v2053
      %v2055 = vrot.slane %v2046, %v2054
      %v2056 = vlaneseq
      %v2057 = vshrl.u32 %v2056, 7
      %v2058 = vsub.s32 2, %v2057
      %v2059 = vrot.slane %v2046, %v2058
      %v2060 = vlaneseq
      %v2061 = vshrl.u32 %v2060, 7
      %v2062 = vsub.s32 3, %v2061
      %v2063 = vrot.slane %v2046, %v2062
      %2064 = vrot.lane.b32.xlu0 %v2051, 18
      %v2065 = vpop.permute.xlu0 %2064
      %2066 = vrot.lane.b32.xlu0 %v2055, 18
      %v2067 = vpop.permute.xlu0 %2066
      %2068 = vrot.lane.b32.xlu0 %v2059, 18
      %v2069 = vpop.permute.xlu0 %2068
      %2070 = vrot.lane.b32.xlu0 %v2063, 18
      %v2071 = vpop.permute.xlu0 %2070
      %v2072 = vsel %vm927, %v2065, %v2067
      %v2073 = vsel %vm927, %v2067, %v2069
      %v2074 = vsel %vm927, %v2069, %v2071
      %v2080 = vmul.f32 %v377, %v2065
      %v2081 = vmul.f32 %v378, %v2072
      %v2082 = vmul.f32 %v379, %v2073
      %v2083 = vmul.f32 %v386, %v2074
      %v2084 = vmul.f32 %v2071, 0.0
      %2090 = vrot.lane.b32.xlu0 %v2080, 110
      %v2091 = vpop.permute.xlu0 %2090
      %2092 = vrot.lane.b32.xlu0 %v2081, 110
      %v2093 = vpop.permute.xlu0 %2092
      %2094 = vrot.lane.b32.xlu0 %v2082, 110
      %v2095 = vpop.permute.xlu0 %2094
      %2096 = vrot.lane.b32.xlu0 %v2083, 110
      %v2097 = vpop.permute.xlu0 %2096
      %2098 = vrot.lane.b32.xlu0 %v2084, 110
      %v2099 = vpop.permute.xlu0 %2098
      %v2100 = vsel %vm956, %v2091, %v2093
      %v2101 = vsel %vm956, %v2093, %v2095
      %v2102 = vsel %vm956, %v2095, %v2097
      %v2103 = vsel %vm956, %v2097, %v2099
      %2108 = vst [vmem:[#allocation2 + $0x340] sm:$0xff] %v2100
      %2109 = vst [vmem:[#allocation2 + $0x348] sm:$0xff] %v2101
      %2110 = vst [vmem:[#allocation2 + $0x350] sm:$0xff] %v2102
      %2111 = vst [vmem:[#allocation2 + $0x358] sm:$0xff] %v2103
      %v2112 = vld [vmem:[#allocation2] sm:$0xff]
      %v2113 = vld [vmem:[#allocation2 + $0x8] sm:$0xff]
      %v2114 = vld [vmem:[#allocation2 + $0x10] sm:$0xff]
      %v2115 = vld [vmem:[#allocation2 + $0x18] sm:$0xff]
      %v2116 = vld [vmem:[#allocation2 + $0x20] sm:$0xff]
      %v2117 = vld [vmem:[#allocation2 + $0x28] sm:$0xff]
      %v2118 = vld [vmem:[#allocation2 + $0x30] sm:$0xff]
      %v2119 = vld [vmem:[#allocation2 + $0x38] sm:$0xff]
      %v2120 = vld [vmem:[#allocation2 + $0x40] sm:$0xff]
      %v2121 = vld [vmem:[#allocation2 + $0x48] sm:$0xff]
      %v2122 = vld [vmem:[#allocation2 + $0x50] sm:$0xff]
      %v2123 = vld [vmem:[#allocation2 + $0x58] sm:$0xff]
      %v2124 = vld [vmem:[#allocation2 + $0x60] sm:$0xff]
      %v2125 = vld [vmem:[#allocation2 + $0x68] sm:$0xff]
      %v2126 = vld [vmem:[#allocation2 + $0x70] sm:$0xff]
      %v2127 = vld [vmem:[#allocation2 + $0x78] sm:$0xff]
      %v2128 = vld [vmem:[#allocation2 + $0x80] sm:$0xff]
      %v2129 = vld [vmem:[#allocation2 + $0x88] sm:$0xff]
      %v2130 = vld [vmem:[#allocation2 + $0x90] sm:$0xff]
      %v2131 = vld [vmem:[#allocation2 + $0x98] sm:$0xff]
      %v2132 = vld [vmem:[#allocation2 + $0xa0] sm:$0xff]
      %v2133 = vld [vmem:[#allocation2 + $0xa8] sm:$0xff]
      %v2134 = vld [vmem:[#allocation2 + $0xb0] sm:$0xff]
      %v2135 = vld [vmem:[#allocation2 + $0xb8] sm:$0xff]
      %v2136 = vld [vmem:[#allocation2 + $0xc0] sm:$0xff]
      %v2137 = vld [vmem:[#allocation2 + $0xc8] sm:$0xff]
      %v2138 = vld [vmem:[#allocation2 + $0xd0] sm:$0xff]
      %v2139 = vld [vmem:[#allocation2 + $0xd8] sm:$0xff]
      %v2140 = vld [vmem:[#allocation2 + $0xe0] sm:$0xff]
      %v2141 = vld [vmem:[#allocation2 + $0xe8] sm:$0xff]
      %v2142 = vld [vmem:[#allocation2 + $0xf0] sm:$0xff]
      %v2143 = vld [vmem:[#allocation2 + $0xf8] sm:$0xff]
      %v2144 = vld [vmem:[#allocation2 + $0x100] sm:$0xff]
      %v2145 = vld [vmem:[#allocation2 + $0x108] sm:$0xff]
      %v2146 = vld [vmem:[#allocation2 + $0x110] sm:$0xff]
      %v2147 = vld [vmem:[#allocation2 + $0x118] sm:$0xff]
      %v2148 = vld [vmem:[#allocation2 + $0x120] sm:$0xff]
      %v2149 = vld [vmem:[#allocation2 + $0x128] sm:$0xff]
      %v2150 = vld [vmem:[#allocation2 + $0x130] sm:$0xff]
      %v2151 = vld [vmem:[#allocation2 + $0x138] sm:$0xff]
      %v2152 = vld [vmem:[#allocation2 + $0x140] sm:$0xff]
      %v2153 = vld [vmem:[#allocation2 + $0x148] sm:$0xff]
      %v2154 = vld [vmem:[#allocation2 + $0x150] sm:$0xff]
      %v2155 = vld [vmem:[#allocation2 + $0x158] sm:$0xff]
      %v2156 = vld [vmem:[#allocation2 + $0x160] sm:$0xff]
      %v2157 = vld [vmem:[#allocation2 + $0x168] sm:$0xff]
      %v2158 = vld [vmem:[#allocation2 + $0x170] sm:$0xff]
      %v2159 = vld [vmem:[#allocation2 + $0x178] sm:$0xff]
      %v2160 = vld [vmem:[#allocation2 + $0x180] sm:$0xff]
      %v2161 = vld [vmem:[#allocation2 + $0x188] sm:$0xff]
      %v2162 = vld [vmem:[#allocation2 + $0x190] sm:$0xff]
      %v2163 = vld [vmem:[#allocation2 + $0x198] sm:$0xff]
      %v2164 = vld [vmem:[#allocation2 + $0x1a0] sm:$0xff]
      %v2165 = vld [vmem:[#allocation2 + $0x1a8] sm:$0xff]
      %v2166 = vld [vmem:[#allocation2 + $0x1b0] sm:$0xff]
      %v2167 = vld [vmem:[#allocation2 + $0x1b8] sm:$0xff]
      %v2168 = vld [vmem:[#allocation2 + $0x1c0] sm:$0xff]
      %v2169 = vld [vmem:[#allocation2 + $0x1c8] sm:$0xff]
      %v2170 = vld [vmem:[#allocation2 + $0x1d0] sm:$0xff]
      %v2171 = vld [vmem:[#allocation2 + $0x1d8] sm:$0xff]
      %v2172 = vld [vmem:[#allocation2 + $0x1e0] sm:$0xff]
      %v2173 = vld [vmem:[#allocation2 + $0x1e8] sm:$0xff]
      %v2174 = vld [vmem:[#allocation2 + $0x1f0] sm:$0xff]
      %v2175 = vld [vmem:[#allocation2 + $0x1f8] sm:$0xff]
      %v2176 = vld [vmem:[#allocation2 + $0x200] sm:$0xff]
      %v2177 = vld [vmem:[#allocation2 + $0x208] sm:$0xff]
      %v2178 = vld [vmem:[#allocation2 + $0x210] sm:$0xff]
      %v2179 = vld [vmem:[#allocation2 + $0x218] sm:$0xff]
      %v2180 = vld [vmem:[#allocation2 + $0x220] sm:$0xff]
      %v2181 = vld [vmem:[#allocation2 + $0x228] sm:$0xff]
      %v2182 = vld [vmem:[#allocation2 + $0x230] sm:$0xff]
      %v2183 = vld [vmem:[#allocation2 + $0x238] sm:$0xff]
      %v2184 = vld [vmem:[#allocation2 + $0x240] sm:$0xff]
      %v2185 = vld [vmem:[#allocation2 + $0x248] sm:$0xff]
      %v2186 = vld [vmem:[#allocation2 + $0x250] sm:$0xff]
      %v2187 = vld [vmem:[#allocation2 + $0x258] sm:$0xff]
      %v2188 = vld [vmem:[#allocation2 + $0x260] sm:$0xff]
      %v2189 = vld [vmem:[#allocation2 + $0x268] sm:$0xff]
      %v2190 = vld [vmem:[#allocation2 + $0x270] sm:$0xff]
      %v2191 = vld [vmem:[#allocation2 + $0x278] sm:$0xff]
      %v2192 = vld [vmem:[#allocation2 + $0x280] sm:$0xff]
      %v2193 = vld [vmem:[#allocation2 + $0x288] sm:$0xff]
      %v2194 = vld [vmem:[#allocation2 + $0x290] sm:$0xff]
      %v2195 = vld [vmem:[#allocation2 + $0x298] sm:$0xff]
      %v2196 = vld [vmem:[#allocation2 + $0x2a0] sm:$0xff]
      %v2197 = vld [vmem:[#allocation2 + $0x2a8] sm:$0xff]
      %v2198 = vld [vmem:[#allocation2 + $0x2b0] sm:$0xff]
      %v2199 = vld [vmem:[#allocation2 + $0x2b8] sm:$0xff]
      %v2200 = vld [vmem:[#allocation2 + $0x2c0] sm:$0xff]
      %v2201 = vld [vmem:[#allocation2 + $0x2c8] sm:$0xff]
      %v2202 = vld [vmem:[#allocation2 + $0x2d0] sm:$0xff]
      %v2203 = vld [vmem:[#allocation2 + $0x2d8] sm:$0xff]
      %v2204 = vld [vmem:[#allocation2 + $0x2e0] sm:$0xff]
      %v2205 = vld [vmem:[#allocation2 + $0x2e8] sm:$0xff]
      %v2206 = vld [vmem:[#allocation2 + $0x2f0] sm:$0xff]
      %v2207 = vld [vmem:[#allocation2 + $0x2f8] sm:$0xff]
      %v2208 = vld [vmem:[#allocation2 + $0x300] sm:$0xff]
      %v2209 = vld [vmem:[#allocation2 + $0x308] sm:$0xff]
      %v2210 = vld [vmem:[#allocation2 + $0x310] sm:$0xff]
      %v2211 = vld [vmem:[#allocation2 + $0x318] sm:$0xff]
      %v2212 = vld [vmem:[#allocation2 + $0x320] sm:$0xff]
      %v2213 = vld [vmem:[#allocation2 + $0x328] sm:$0xff]
      %v2214 = vld [vmem:[#allocation2 + $0x330] sm:$0xff]
      %v2215 = vld [vmem:[#allocation2 + $0x338] sm:$0xff]
      %v2216 = vld [vmem:[#allocation2 + $0x340] sm:$0xff]
      %v2217 = vld [vmem:[#allocation2 + $0x348] sm:$0xff]
      %v2218 = vld [vmem:[#allocation2 + $0x350] sm:$0xff]
      %v2219 = vld [vmem:[#allocation2 + $0x358] sm:$0xff]
      %v2220 = vld [vmem:[%s2] sm:$0xff]
      %v2221 = vld [vmem:[%s2 + $0x8] sm:$0xff]
      %v2222 = vld [vmem:[%s2 + $0x10] sm:$0xff]
      %v2223 = vld [vmem:[%s2 + $0x18] sm:$0xff]
      %v2224 = vld [vmem:[%s3] sm:$0xff]
      %v2225 = vld [vmem:[%s3 + $0x8] sm:$0xff]
      %2227 = vset.pattern.permute.xlu0 0
      %2228 = vperm.xlu0 %2227, %v2224
      %v2229 = vpop.permute.xlu0 %2228
      %2232 = vset.pattern.permute.xlu0 0
      %2233 = vperm.xlu0 %2232, %v2225
      %v2234 = vpop.permute.xlu0 %2233
      %vm2236 = vcmask 719872
      %v2238 = vsel %vm2236, %v2221, 0
      %v2241 = vsel %vm2236, %v2223, 0
      %2243 = vmatprep.subr.mxu0 %v2113
      %2244 = vmatpush1.msra.mxu0 %v2112
      %2245 = vmatprep.subr.mxu0 %v2117
      %2246 = vmatpush1.msra.mxu0 %v2116
      %2247 = vmatprep.subr.mxu0 %v2121
      %2248 = vmatpush1.msra.mxu0 %v2120
      %2249 = vmatprep.subr.mxu0 %v2125
      %2250 = vmatpush1.msra.mxu0 %v2124
      %2251 = vmatprep.subr.mxu0 %v2129
      %2252 = vmatpush1.msra.mxu0 %v2128
      %2253 = vmatprep.subr.mxu0 %v2133
      %2254 = vmatpush1.msra.mxu0 %v2132
      %2255 = vmatprep.subr.mxu0 %v2137
      %2256 = vmatpush1.msra.mxu0 %v2136
      %2257 = vmatprep.subr.mxu0 %v2141
      %2258 = vmatpush1.msra.mxu0 %v2140
      %2259 = vmatprep.subr.mxu0 %v2145
      %2260 = vmatpush1.msra.mxu0 %v2144
      %2261 = vmatprep.subr.mxu0 %v2149
      %2262 = vmatpush1.msra.mxu0 %v2148
      %2263 = vmatprep.subr.mxu0 %v2153
      %2264 = vmatpush1.msra.mxu0 %v2152
      %2265 = vmatprep.subr.mxu0 %v2157
      %2266 = vmatpush1.msra.mxu0 %v2156
      %2267 = vmatprep.subr.mxu0 %v2161
      %2268 = vmatpush1.msra.mxu0 %v2160
      %2269 = vmatprep.subr.mxu0 %v2165
      %2270 = vmatpush1.msra.mxu0 %v2164
      %2271 = vmatprep.subr.mxu0 %v2169
      %2272 = vmatpush1.msra.mxu0 %v2168
      %2273 = vmatprep.subr.mxu0 %v2173
      %2274 = vmatpush1.msra.mxu0 %v2172
      %2275 = vmatprep.subr.mxu0 %v2177
      %2276 = vmatpush1.msra.mxu0 %v2176
      %2277 = vmatprep.subr.mxu0 %v2181
      %2278 = vmatpush1.msra.mxu0 %v2180
      %2279 = vmatprep.subr.mxu0 %v2185
      %2280 = vmatpush1.msra.mxu0 %v2184
      %2281 = vmatprep.subr.mxu0 %v2189
      %2282 = vmatpush1.msra.mxu0 %v2188
      %2283 = vmatprep.subr.mxu0 %v2193
      %2284 = vmatpush1.msra.mxu0 %v2192
      %2285 = vmatprep.subr.mxu0 %v2197
      %2286 = vmatpush1.msra.mxu0 %v2196
      %2287 = vmatprep.subr.mxu0 %v2201
      %2288 = vmatpush1.msra.mxu0 %v2200
      %2289 = vmatprep.subr.mxu0 %v2205
      %2290 = vmatpush1.msra.mxu0 %v2204
      %2291 = vmatprep.subr.mxu0 %v2209
      %2292 = vmatpush1.msra.mxu0 %v2208
      %2293 = vmatprep.subr.mxu0 %v2213
      %2294 = vmatpush1.msra.mxu0 %v2212
      %2295 = vmatprep.subr.mxu0 %v2217
      %2296 = vmatpush1.msra.mxu0 %v2216
      %2297 = vmatprep.subr.mxu0 0.0
      %2298 = vmatpush1.msra.mxu0 0.0
      %2299 = vmatprep.subr.mxu0 0.0
      %2300 = vmatpush1.msra.mxu0 0.0
      %2301 = vmatprep.subr.mxu0 0.0
      %2302 = vmatpush1.msra.mxu0 0.0
      %2303 = vmatprep.subr.mxu0 0.0
      %2304 = vmatpush1.msra.mxu0 0.0
      %2305 = vmatprep.subr.mxu0 0.0
      %2306 = vmatpush1.msra.mxu0 0.0
      %2307 = vmatprep.mubr.f32.mxu0 %v2238
      %2308 = vmatmul.mubr.f32.gmra.mrb[0].mxu0 %v2220
      %v2309 = vpop.f32.mrb[0].mxu0
      %v2310 = vadd.f32 %v2229, %v2309
      %v2311 = vpop.f32.mrb[0].mxu0
      %v2312 = vadd.f32 %v2229, %v2311
      %2313 = vmatprep.mubr.f32.mxu0 %v2241
      %2314 = vmatmul.mubr.f32.gmra.mrb[0].mxu0 %v2222
      %v2315 = vpop.f32.mrb[0].mxu0
      %v2316 = vadd.f32 %v2234, %v2315
      %v2317 = vpop.f32.mrb[0].mxu0
      %v2318 = vadd.f32 %v2234, %v2317
      %2319 = vdwg.mxu0
      %2320 = vmatprep.subr.mxu0 %v2115
      %2321 = vmatpush1.msra.mxu0 %v2114
      %2322 = vmatprep.subr.mxu0 %v2119
      %2323 = vmatpush1.msra.mxu0 %v2118
      %2324 = vmatprep.subr.mxu0 %v2123
      %2325 = vmatpush1.msra.mxu0 %v2122
      %2326 = vmatprep.subr.mxu0 %v2127
      %2327 = vmatpush1.msra.mxu0 %v2126
      %2328 = vmatprep.subr.mxu0 %v2131
      %2329 = vmatpush1.msra.mxu0 %v2130
      %2330 = vmatprep.subr.mxu0 %v2135
      %2331 = vmatpush1.msra.mxu0 %v2134
      %2332 = vmatprep.subr.mxu0 %v2139
      %2333 = vmatpush1.msra.mxu0 %v2138
      %2334 = vmatprep.subr.mxu0 %v2143
      %2335 = vmatpush1.msra.mxu0 %v2142
      %2336 = vmatprep.subr.mxu0 %v2147
      %2337 = vmatpush1.msra.mxu0 %v2146
      %2338 = vmatprep.subr.mxu0 %v2151
      %2339 = vmatpush1.msra.mxu0 %v2150
      %2340 = vmatprep.subr.mxu0 %v2155
      %2341 = vmatpush1.msra.mxu0 %v2154
      %2342 = vmatprep.subr.mxu0 %v2159
      %2343 = vmatpush1.msra.mxu0 %v2158
      %2344 = vmatprep.subr.mxu0 %v2163
      %2345 = vmatpush1.msra.mxu0 %v2162
      %2346 = vmatprep.subr.mxu0 %v2167
      %2347 = vmatpush1.msra.mxu0 %v2166
      %2348 = vmatprep.subr.mxu0 %v2171
      %2349 = vmatpush1.msra.mxu0 %v2170
      %2350 = vmatprep.subr.mxu0 %v2175
      %2351 = vmatpush1.msra.mxu0 %v2174
      %2352 = vmatprep.subr.mxu0 %v2179
      %2353 = vmatpush1.msra.mxu0 %v2178
      %2354 = vmatprep.subr.mxu0 %v2183
      %2355 = vmatpush1.msra.mxu0 %v2182
      %2356 = vmatprep.subr.mxu0 %v2187
      %2357 = vmatpush1.msra.mxu0 %v2186
      %2358 = vmatprep.subr.mxu0 %v2191
      %2359 = vmatpush1.msra.mxu0 %v2190
      %2360 = vmatprep.subr.mxu0 %v2195
      %2361 = vmatpush1.msra.mxu0 %v2194
      %2362 = vmatprep.subr.mxu0 %v2199
      %2363 = vmatpush1.msra.mxu0 %v2198
      %2364 = vmatprep.subr.mxu0 %v2203
      %2365 = vmatpush1.msra.mxu0 %v2202
      %2366 = vmatprep.subr.mxu0 %v2207
      %2367 = vmatpush1.msra.mxu0 %v2206
      %2368 = vmatprep.subr.mxu0 %v2211
      %2369 = vmatpush1.msra.mxu0 %v2210
      %2370 = vmatprep.subr.mxu0 %v2215
      %2371 = vmatpush1.msra.mxu0 %v2214
      %2372 = vmatprep.subr.mxu0 %v2219
      %2373 = vmatpush1.msra.mxu0 %v2218
      %2374 = vmatprep.subr.mxu0 0.0
      %2375 = vmatpush1.msra.mxu0 0.0
      %2376 = vmatprep.subr.mxu0 0.0
      %2377 = vmatpush1.msra.mxu0 0.0
      %2378 = vmatprep.subr.mxu0 0.0
      %2379 = vmatpush1.msra.mxu0 0.0
      %2380 = vmatprep.subr.mxu0 0.0
      %2381 = vmatpush1.msra.mxu0 0.0
      %2382 = vmatprep.subr.mxu0 0.0
      %2383 = vmatpush1.msra.mxu0 0.0
      %2384 = vmatprep.mubr.f32.mxu0 %v2238
      %2385 = vmatmul.mubr.f32.gmra.mrb[0].mxu0 %v2220
      %v2386 = vpop.f32.mrb[0].mxu0
      %v2387 = vadd.f32 %v2229, %v2386
      %v2388 = vpop.f32.mrb[0].mxu0
      %v2389 = vadd.f32 %v2229, %v2388
      %2390 = vmatprep.mubr.f32.mxu0 %v2241
      %2391 = vmatmul.mubr.f32.gmra.mrb[0].mxu0 %v2222
      %v2392 = vpop.f32.mrb[0].mxu0
      %v2393 = vadd.f32 %v2234, %v2392
      %v2394 = vpop.f32.mrb[0].mxu0
      %v2395 = vadd.f32 %v2234, %v2394
      %2396 = vdwg.mxu0
      %v2397 = vmax.f32 %v2310, 0.0
      %v2398 = vmax.f32 %v2312, 0.0
      %v2399 = vmax.f32 %v2387, 0.0
      %v2400 = vmax.f32 %v2389, 0.0
      %v2401 = vmax.f32 %v2316, 0.0
      %v2402 = vmax.f32 %v2318, 0.0
      %v2403 = vmax.f32 %v2393, 0.0
      %v2404 = vmax.f32 %v2395, 0.0
      %2413 = vrot.lane.b32.xlu0 %v2397, 73
      %v2414 = vpop.permute.xlu0 %2413
      %2415 = vrot.lane.b32.xlu0 %v2398, 73
      %v2416 = vpop.permute.xlu0 %2415
      %2417 = vrot.lane.b32.xlu0 %v2399, 73
      %v2418 = vpop.permute.xlu0 %2417
      %2419 = vrot.lane.b32.xlu0 %v2400, 73
      %v2420 = vpop.permute.xlu0 %2419
      %2421 = vrot.lane.b32.xlu0 %v2401, 73
      %v2422 = vpop.permute.xlu0 %2421
      %2423 = vrot.lane.b32.xlu0 %v2402, 73
      %v2424 = vpop.permute.xlu0 %2423
      %2425 = vrot.lane.b32.xlu0 %v2403, 73
      %v2426 = vpop.permute.xlu0 %2425
      %2427 = vrot.lane.b32.xlu0 %v2404, 73
      %v2428 = vpop.permute.xlu0 %2427
      %v2429 = vsel %vm376, %v2414, %v2416
      %v2430 = vsel %vm376, %v2416, %v2418
      %v2431 = vsel %vm376, %v2418, %v2420
      %v2432 = vsel %vm376, %v2422, %v2424
      %v2433 = vsel %vm376, %v2424, %v2426
      %v2434 = vsel %vm376, %v2426, %v2428
      %v2445 = vsel %vm376, 0.0, %v2414
      %v2446 = vsel %vm376, 0.0, %v2422
      %v2447 = vsel %vm376, %v2420, 0.0
      %v2448 = vsel %vm376, %v2428, 0.0
      %v2449 = vld [vmem:[%s0] ss:$8 sm:$0xf]
      %v2451 = vlaneseq
      %v2452 = vshrl.u32 %v2451, 7
      %v2453 = vsub.s32 0, %v2452
      %v2454 = vrot.slane %v2449, %v2453
      %v2455 = vlaneseq
      %v2456 = vshrl.u32 %v2455, 7
      %v2457 = vsub.s32 1, %v2456
      %v2458 = vrot.slane %v2449, %v2457
      %v2459 = vlaneseq
      %v2460 = vshrl.u32 %v2459, 7
      %v2461 = vsub.s32 2, %v2460
      %v2462 = vrot.slane %v2449, %v2461
      %v2463 = vlaneseq
      %v2464 = vshrl.u32 %v2463, 7
      %v2465 = vsub.s32 3, %v2464
      %v2466 = vrot.slane %v2449, %v2465
      %v2471 = vmul.f32 %v2445, %v2454
      %v2472 = vmul.f32 %v2429, %v2458
      %v2473 = vmul.f32 %v2430, %v2462
      %v2474 = vmul.f32 %v2431, %v2466
      %v2475 = vmul.f32 %v2446, %v2454
      %v2476 = vmul.f32 %v2432, %v2458
      %v2477 = vmul.f32 %v2433, %v2462
      %v2478 = vmul.f32 %v2434, %v2466
      %2479 = vst [vmem:[#allocation2] sm:$0xff] %v2471
      %2480 = vst [vmem:[#allocation2 + $0x8] sm:$0xff] %v2472
      %2481 = vst [vmem:[#allocation2 + $0x10] sm:$0xff] %v2473
      %2482 = vst [vmem:[#allocation2 + $0x18] sm:$0xff] %v2474
      %2483 = vst [vmem:[#allocation2 + $0x20] sm:$0xff] %v2475
      %2484 = vst [vmem:[#allocation2 + $0x28] sm:$0xff] %v2476
      %2485 = vst [vmem:[#allocation2 + $0x30] sm:$0xff] %v2477
      %2486 = vst [vmem:[#allocation2 + $0x38] sm:$0xff] %v2478
      %v2487 = vld [vmem:[%s417] ss:$8 sm:$0xf]
      %v2489 = vlaneseq
      %v2490 = vshrl.u32 %v2489, 7
      %v2491 = vsub.s32 0, %v2490
      %v2492 = vrot.slane %v2487, %v2491
      %v2493 = vlaneseq
      %v2494 = vshrl.u32 %v2493, 7
      %v2495 = vsub.s32 1, %v2494
      %v2496 = vrot.slane %v2487, %v2495
      %v2497 = vlaneseq
      %v2498 = vshrl.u32 %v2497, 7
      %v2499 = vsub.s32 2, %v2498
      %v2500 = vrot.slane %v2487, %v2499
      %v2501 = vlaneseq
      %v2502 = vshrl.u32 %v2501, 7
      %v2503 = vsub.s32 3, %v2502
      %v2504 = vrot.slane %v2487, %v2503
      %2505 = vrot.lane.b32.xlu0 %v2492, 1
      %v2506 = vpop.permute.xlu0 %2505
      %2507 = vrot.lane.b32.xlu0 %v2496, 1
      %v2508 = vpop.permute.xlu0 %2507
      %2509 = vrot.lane.b32.xlu0 %v2500, 1
      %v2510 = vpop.permute.xlu0 %2509
      %2511 = vrot.lane.b32.xlu0 %v2504, 1
      %v2512 = vpop.permute.xlu0 %2511
      %v2513 = vsel %vm444, %v2506, %v2508
      %v2514 = vsel %vm444, %v2508, %v2510
      %v2515 = vsel %vm444, %v2510, %v2512
      %v2521 = vmul.f32 %v2445, %v2506
      %v2522 = vmul.f32 %v2429, %v2513
      %v2523 = vmul.f32 %v2430, %v2514
      %v2524 = vmul.f32 %v2431, %v2515
      %v2525 = vmul.f32 %v2447, %v2512
      %v2526 = vmul.f32 %v2446, %v2506
      %v2527 = vmul.f32 %v2432, %v2513
      %v2528 = vmul.f32 %v2433, %v2514
      %v2529 = vmul.f32 %v2434, %v2515
      %v2530 = vmul.f32 %v2448, %v2512
      %2541 = vrot.lane.b32.xlu0 %v2521, 127
      %v2542 = vpop.permute.xlu0 %2541
      %2543 = vrot.lane.b32.xlu0 %v2522, 127
      %v2544 = vpop.permute.xlu0 %2543
      %2545 = vrot.lane.b32.xlu0 %v2523, 127
      %v2546 = vpop.permute.xlu0 %2545
      %2547 = vrot.lane.b32.xlu0 %v2524, 127
      %v2548 = vpop.permute.xlu0 %2547
      %2549 = vrot.lane.b32.xlu0 %v2525, 127
      %v2550 = vpop.permute.xlu0 %2549
      %2551 = vrot.lane.b32.xlu0 %v2526, 127
      %v2552 = vpop.permute.xlu0 %2551
      %2553 = vrot.lane.b32.xlu0 %v2527, 127
      %v2554 = vpop.permute.xlu0 %2553
      %2555 = vrot.lane.b32.xlu0 %v2528, 127
      %v2556 = vpop.permute.xlu0 %2555
      %2557 = vrot.lane.b32.xlu0 %v2529, 127
      %v2558 = vpop.permute.xlu0 %2557
      %2559 = vrot.lane.b32.xlu0 %v2530, 127
      %v2560 = vpop.permute.xlu0 %2559
      %v2561 = vsel %vm473, %v2542, %v2544
      %v2562 = vsel %vm473, %v2544, %v2546
      %v2563 = vsel %vm473, %v2546, %v2548
      %v2564 = vsel %vm473, %v2548, %v2550
      %v2565 = vsel %vm473, %v2552, %v2554
      %v2566 = vsel %vm473, %v2554, %v2556
      %v2567 = vsel %vm473, %v2556, %v2558
      %v2568 = vsel %vm473, %v2558, %v2560
      %2577 = vst [vmem:[#allocation2 + $0x40] sm:$0xff] %v2561
      %2578 = vst [vmem:[#allocation2 + $0x48] sm:$0xff] %v2562
      %2579 = vst [vmem:[#allocation2 + $0x50] sm:$0xff] %v2563
      %2580 = vst [vmem:[#allocation2 + $0x58] sm:$0xff] %v2564
      %2581 = vst [vmem:[#allocation2 + $0x60] sm:$0xff] %v2565
      %2582 = vst [vmem:[#allocation2 + $0x68] sm:$0xff] %v2566
      %2583 = vst [vmem:[#allocation2 + $0x70] sm:$0xff] %v2567
      %2584 = vst [vmem:[#allocation2 + $0x78] sm:$0xff] %v2568
      %v2585 = vld [vmem:[%s486] ss:$8 sm:$0xf]
      %v2587 = vlaneseq
      %v2588 = vshrl.u32 %v2587, 7
      %v2589 = vsub.s32 0, %v2588
      %v2590 = vrot.slane %v2585, %v2589
      %v2591 = vlaneseq
      %v2592 = vshrl.u32 %v2591, 7
      %v2593 = vsub.s32 1, %v2592
      %v2594 = vrot.slane %v2585, %v2593
      %v2595 = vlaneseq
      %v2596 = vshrl.u32 %v2595, 7
      %v2597 = vsub.s32 2, %v2596
      %v2598 = vrot.slane %v2585, %v2597
      %v2599 = vlaneseq
      %v2600 = vshrl.u32 %v2599, 7
      %v2601 = vsub.s32 3, %v2600
      %v2602 = vrot.slane %v2585, %v2601
      %2603 = vrot.lane.b32.xlu0 %v2590, 2
      %v2604 = vpop.permute.xlu0 %2603
      %2605 = vrot.lane.b32.xlu0 %v2594, 2
      %v2606 = vpop.permute.xlu0 %2605
      %2607 = vrot.lane.b32.xlu0 %v2598, 2
      %v2608 = vpop.permute.xlu0 %2607
      %2609 = vrot.lane.b32.xlu0 %v2602, 2
      %v2610 = vpop.permute.xlu0 %2609
      %v2611 = vsel %vm513, %v2604, %v2606
      %v2612 = vsel %vm513, %v2606, %v2608
      %v2613 = vsel %vm513, %v2608, %v2610
      %v2619 = vmul.f32 %v2445, %v2604
      %v2620 = vmul.f32 %v2429, %v2611
      %v2621 = vmul.f32 %v2430, %v2612
      %v2622 = vmul.f32 %v2431, %v2613
      %v2623 = vmul.f32 %v2447, %v2610
      %v2624 = vmul.f32 %v2446, %v2604
      %v2625 = vmul.f32 %v2432, %v2611
      %v2626 = vmul.f32 %v2433, %v2612
      %v2627 = vmul.f32 %v2434, %v2613
      %v2628 = vmul.f32 %v2448, %v2610
      %2639 = vrot.lane.b32.xlu0 %v2619, 126
      %v2640 = vpop.permute.xlu0 %2639
      %2641 = vrot.lane.b32.xlu0 %v2620, 126
      %v2642 = vpop.permute.xlu0 %2641
      %2643 = vrot.lane.b32.xlu0 %v2621, 126
      %v2644 = vpop.permute.xlu0 %2643
      %2645 = vrot.lane.b32.xlu0 %v2622, 126
      %v2646 = vpop.permute.xlu0 %2645
      %2647 = vrot.lane.b32.xlu0 %v2623, 126
      %v2648 = vpop.permute.xlu0 %2647
      %2649 = vrot.lane.b32.xlu0 %v2624, 126
      %v2650 = vpop.permute.xlu0 %2649
      %2651 = vrot.lane.b32.xlu0 %v2625, 126
      %v2652 = vpop.permute.xlu0 %2651
      %2653 = vrot.lane.b32.xlu0 %v2626, 126
      %v2654 = vpop.permute.xlu0 %2653
      %2655 = vrot.lane.b32.xlu0 %v2627, 126
      %v2656 = vpop.permute.xlu0 %2655
      %2657 = vrot.lane.b32.xlu0 %v2628, 126
      %v2658 = vpop.permute.xlu0 %2657
      %v2659 = vsel %vm542, %v2640, %v2642
      %v2660 = vsel %vm542, %v2642, %v2644
      %v2661 = vsel %vm542, %v2644, %v2646
      %v2662 = vsel %vm542, %v2646, %v2648
      %v2663 = vsel %vm542, %v2650, %v2652
      %v2664 = vsel %vm542, %v2652, %v2654
      %v2665 = vsel %vm542, %v2654, %v2656
      %v2666 = vsel %vm542, %v2656, %v2658
      %2675 = vst [vmem:[#allocation2 + $0x80] sm:$0xff] %v2659
      %2676 = vst [vmem:[#allocation2 + $0x88] sm:$0xff] %v2660
      %2677 = vst [vmem:[#allocation2 + $0x90] sm:$0xff] %v2661
      %2678 = vst [vmem:[#allocation2 + $0x98] sm:$0xff] %v2662
      %2679 = vst [vmem:[#allocation2 + $0xa0] sm:$0xff] %v2663
      %2680 = vst [vmem:[#allocation2 + $0xa8] sm:$0xff] %v2664
      %2681 = vst [vmem:[#allocation2 + $0xb0] sm:$0xff] %v2665
      %2682 = vst [vmem:[#allocation2 + $0xb8] sm:$0xff] %v2666
      %v2683 = vld [vmem:[%s555] ss:$8 sm:$0xf]
      %v2685 = vlaneseq
      %v2686 = vshrl.u32 %v2685, 7
      %v2687 = vsub.s32 0, %v2686
      %v2688 = vrot.slane %v2683, %v2687
      %v2689 = vlaneseq
      %v2690 = vshrl.u32 %v2689, 7
      %v2691 = vsub.s32 1, %v2690
      %v2692 = vrot.slane %v2683, %v2691
      %v2693 = vlaneseq
      %v2694 = vshrl.u32 %v2693, 7
      %v2695 = vsub.s32 2, %v2694
      %v2696 = vrot.slane %v2683, %v2695
      %v2697 = vlaneseq
      %v2698 = vshrl.u32 %v2697, 7
      %v2699 = vsub.s32 3, %v2698
      %v2700 = vrot.slane %v2683, %v2699
      %2701 = vrot.lane.b32.xlu0 %v2688, 8
      %v2702 = vpop.permute.xlu0 %2701
      %2703 = vrot.lane.b32.xlu0 %v2692, 8
      %v2704 = vpop.permute.xlu0 %2703
      %2705 = vrot.lane.b32.xlu0 %v2696, 8
      %v2706 = vpop.permute.xlu0 %2705
      %2707 = vrot.lane.b32.xlu0 %v2700, 8
      %v2708 = vpop.permute.xlu0 %2707
      %v2709 = vsel %vm582, %v2702, %v2704
      %v2710 = vsel %vm582, %v2704, %v2706
      %v2711 = vsel %vm582, %v2706, %v2708
      %v2717 = vmul.f32 %v2445, %v2702
      %v2718 = vmul.f32 %v2429, %v2709
      %v2719 = vmul.f32 %v2430, %v2710
      %v2720 = vmul.f32 %v2431, %v2711
      %v2721 = vmul.f32 %v2447, %v2708
      %v2722 = vmul.f32 %v2446, %v2702
      %v2723 = vmul.f32 %v2432, %v2709
      %v2724 = vmul.f32 %v2433, %v2710
      %v2725 = vmul.f32 %v2434, %v2711
      %v2726 = vmul.f32 %v2448, %v2708
      %2737 = vrot.lane.b32.xlu0 %v2717, 120
      %v2738 = vpop.permute.xlu0 %2737
      %2739 = vrot.lane.b32.xlu0 %v2718, 120
      %v2740 = vpop.permute.xlu0 %2739
      %2741 = vrot.lane.b32.xlu0 %v2719, 120
      %v2742 = vpop.permute.xlu0 %2741
      %2743 = vrot.lane.b32.xlu0 %v2720, 120
      %v2744 = vpop.permute.xlu0 %2743
      %2745 = vrot.lane.b32.xlu0 %v2721, 120
      %v2746 = vpop.permute.xlu0 %2745
      %2747 = vrot.lane.b32.xlu0 %v2722, 120
      %v2748 = vpop.permute.xlu0 %2747
      %2749 = vrot.lane.b32.xlu0 %v2723, 120
      %v2750 = vpop.permute.xlu0 %2749
      %2751 = vrot.lane.b32.xlu0 %v2724, 120
      %v2752 = vpop.permute.xlu0 %2751
      %2753 = vrot.lane.b32.xlu0 %v2725, 120
      %v2754 = vpop.permute.xlu0 %2753
      %2755 = vrot.lane.b32.xlu0 %v2726, 120
      %v2756 = vpop.permute.xlu0 %2755
      %v2757 = vsel %vm611, %v2738, %v2740
      %v2758 = vsel %vm611, %v2740, %v2742
      %v2759 = vsel %vm611, %v2742, %v2744
      %v2760 = vsel %vm611, %v2744, %v2746
      %v2761 = vsel %vm611, %v2748, %v2750
      %v2762 = vsel %vm611, %v2750, %v2752
      %v2763 = vsel %vm611, %v2752, %v2754
      %v2764 = vsel %vm611, %v2754, %v2756
      %2773 = vst [vmem:[#allocation2 + $0xc0] sm:$0xff] %v2757
      %2774 = vst [vmem:[#allocation2 + $0xc8] sm:$0xff] %v2758
      %2775 = vst [vmem:[#allocation2 + $0xd0] sm:$0xff] %v2759
      %2776 = vst [vmem:[#allocation2 + $0xd8] sm:$0xff] %v2760
      %2777 = vst [vmem:[#allocation2 + $0xe0] sm:$0xff] %v2761
      %2778 = vst [vmem:[#allocation2 + $0xe8] sm:$0xff] %v2762
      %2779 = vst [vmem:[#allocation2 + $0xf0] sm:$0xff] %v2763
      %2780 = vst [vmem:[#allocation2 + $0xf8] sm:$0xff] %v2764
      %v2781 = vld [vmem:[%s624] ss:$8 sm:$0xf]
      %v2783 = vlaneseq
      %v2784 = vshrl.u32 %v2783, 7
      %v2785 = vsub.s32 0, %v2784
      %v2786 = vrot.slane %v2781, %v2785
      %v2787 = vlaneseq
      %v2788 = vshrl.u32 %v2787, 7
      %v2789 = vsub.s32 1, %v2788
      %v2790 = vrot.slane %v2781, %v2789
      %v2791 = vlaneseq
      %v2792 = vshrl.u32 %v2791, 7
      %v2793 = vsub.s32 2, %v2792
      %v2794 = vrot.slane %v2781, %v2793
      %v2795 = vlaneseq
      %v2796 = vshrl.u32 %v2795, 7
      %v2797 = vsub.s32 3, %v2796
      %v2798 = vrot.slane %v2781, %v2797
      %2799 = vrot.lane.b32.xlu0 %v2786, 9
      %v2800 = vpop.permute.xlu0 %2799
      %2801 = vrot.lane.b32.xlu0 %v2790, 9
      %v2802 = vpop.permute.xlu0 %2801
      %2803 = vrot.lane.b32.xlu0 %v2794, 9
      %v2804 = vpop.permute.xlu0 %2803
      %2805 = vrot.lane.b32.xlu0 %v2798, 9
      %v2806 = vpop.permute.xlu0 %2805
      %v2807 = vsel %vm651, %v2800, %v2802
      %v2808 = vsel %vm651, %v2802, %v2804
      %v2809 = vsel %vm651, %v2804, %v2806
      %v2815 = vmul.f32 %v2445, %v2800
      %v2816 = vmul.f32 %v2429, %v2807
      %v2817 = vmul.f32 %v2430, %v2808
      %v2818 = vmul.f32 %v2431, %v2809
      %v2819 = vmul.f32 %v2447, %v2806
      %v2820 = vmul.f32 %v2446, %v2800
      %v2821 = vmul.f32 %v2432, %v2807
      %v2822 = vmul.f32 %v2433, %v2808
      %v2823 = vmul.f32 %v2434, %v2809
      %v2824 = vmul.f32 %v2448, %v2806
      %2835 = vrot.lane.b32.xlu0 %v2815, 119
      %v2836 = vpop.permute.xlu0 %2835
      %2837 = vrot.lane.b32.xlu0 %v2816, 119
      %v2838 = vpop.permute.xlu0 %2837
      %2839 = vrot.lane.b32.xlu0 %v2817, 119
      %v2840 = vpop.permute.xlu0 %2839
      %2841 = vrot.lane.b32.xlu0 %v2818, 119
      %v2842 = vpop.permute.xlu0 %2841
      %2843 = vrot.lane.b32.xlu0 %v2819, 119
      %v2844 = vpop.permute.xlu0 %2843
      %2845 = vrot.lane.b32.xlu0 %v2820, 119
      %v2846 = vpop.permute.xlu0 %2845
      %2847 = vrot.lane.b32.xlu0 %v2821, 119
      %v2848 = vpop.permute.xlu0 %2847
      %2849 = vrot.lane.b32.xlu0 %v2822, 119
      %v2850 = vpop.permute.xlu0 %2849
      %2851 = vrot.lane.b32.xlu0 %v2823, 119
      %v2852 = vpop.permute.xlu0 %2851
      %2853 = vrot.lane.b32.xlu0 %v2824, 119
      %v2854 = vpop.permute.xlu0 %2853
      %v2855 = vsel %vm680, %v2836, %v2838
      %v2856 = vsel %vm680, %v2838, %v2840
      %v2857 = vsel %vm680, %v2840, %v2842
      %v2858 = vsel %vm680, %v2842, %v2844
      %v2859 = vsel %vm680, %v2846, %v2848
      %v2860 = vsel %vm680, %v2848, %v2850
      %v2861 = vsel %vm680, %v2850, %v2852
      %v2862 = vsel %vm680, %v2852, %v2854
      %2871 = vst [vmem:[#allocation2 + $0x100] sm:$0xff] %v2855
      %2872 = vst [vmem:[#allocation2 + $0x108] sm:$0xff] %v2856
      %2873 = vst [vmem:[#allocation2 + $0x110] sm:$0xff] %v2857
      %2874 = vst [vmem:[#allocation2 + $0x118] sm:$0xff] %v2858
      %2875 = vst [vmem:[#allocation2 + $0x120] sm:$0xff] %v2859
      %2876 = vst [vmem:[#allocation2 + $0x128] sm:$0xff] %v2860
      %2877 = vst [vmem:[#allocation2 + $0x130] sm:$0xff] %v2861
      %2878 = vst [vmem:[#allocation2 + $0x138] sm:$0xff] %v2862
      %v2879 = vld [vmem:[%s693] ss:$8 sm:$0xf]
      %v2881 = vlaneseq
      %v2882 = vshrl.u32 %v2881, 7
      %v2883 = vsub.s32 0, %v2882
      %v2884 = vrot.slane %v2879, %v2883
      %v2885 = vlaneseq
      %v2886 = vshrl.u32 %v2885, 7
      %v2887 = vsub.s32 1, %v2886
      %v2888 = vrot.slane %v2879, %v2887
      %v2889 = vlaneseq
      %v2890 = vshrl.u32 %v2889, 7
      %v2891 = vsub.s32 2, %v2890
      %v2892 = vrot.slane %v2879, %v2891
      %v2893 = vlaneseq
      %v2894 = vshrl.u32 %v2893, 7
      %v2895 = vsub.s32 3, %v2894
      %v2896 = vrot.slane %v2879, %v2895
      %2897 = vrot.lane.b32.xlu0 %v2884, 10
      %v2898 = vpop.permute.xlu0 %2897
      %2899 = vrot.lane.b32.xlu0 %v2888, 10
      %v2900 = vpop.permute.xlu0 %2899
      %2901 = vrot.lane.b32.xlu0 %v2892, 10
      %v2902 = vpop.permute.xlu0 %2901
      %2903 = vrot.lane.b32.xlu0 %v2896, 10
      %v2904 = vpop.permute.xlu0 %2903
      %v2905 = vsel %vm720, %v2898, %v2900
      %v2906 = vsel %vm720, %v2900, %v2902
      %v2907 = vsel %vm720, %v2902, %v2904
      %v2913 = vmul.f32 %v2445, %v2898
      %v2914 = vmul.f32 %v2429, %v2905
      %v2915 = vmul.f32 %v2430, %v2906
      %v2916 = vmul.f32 %v2431, %v2907
      %v2917 = vmul.f32 %v2447, %v2904
      %v2918 = vmul.f32 %v2446, %v2898
      %v2919 = vmul.f32 %v2432, %v2905
      %v2920 = vmul.f32 %v2433, %v2906
      %v2921 = vmul.f32 %v2434, %v2907
      %v2922 = vmul.f32 %v2448, %v2904
      %2933 = vrot.lane.b32.xlu0 %v2913, 118
      %v2934 = vpop.permute.xlu0 %2933
      %2935 = vrot.lane.b32.xlu0 %v2914, 118
      %v2936 = vpop.permute.xlu0 %2935
      %2937 = vrot.lane.b32.xlu0 %v2915, 118
      %v2938 = vpop.permute.xlu0 %2937
      %2939 = vrot.lane.b32.xlu0 %v2916, 118
      %v2940 = vpop.permute.xlu0 %2939
      %2941 = vrot.lane.b32.xlu0 %v2917, 118
      %v2942 = vpop.permute.xlu0 %2941
      %2943 = vrot.lane.b32.xlu0 %v2918, 118
      %v2944 = vpop.permute.xlu0 %2943
      %2945 = vrot.lane.b32.xlu0 %v2919, 118
      %v2946 = vpop.permute.xlu0 %2945
      %2947 = vrot.lane.b32.xlu0 %v2920, 118
      %v2948 = vpop.permute.xlu0 %2947
      %2949 = vrot.lane.b32.xlu0 %v2921, 118
      %v2950 = vpop.permute.xlu0 %2949
      %2951 = vrot.lane.b32.xlu0 %v2922, 118
      %v2952 = vpop.permute.xlu0 %2951
      %v2953 = vsel %vm749, %v2934, %v2936
      %v2954 = vsel %vm749, %v2936, %v2938
      %v2955 = vsel %vm749, %v2938, %v2940
      %v2956 = vsel %vm749, %v2940, %v2942
      %v2957 = vsel %vm749, %v2944, %v2946
      %v2958 = vsel %vm749, %v2946, %v2948
      %v2959 = vsel %vm749, %v2948, %v2950
      %v2960 = vsel %vm749, %v2950, %v2952
      %2969 = vst [vmem:[#allocation2 + $0x140] sm:$0xff] %v2953
      %2970 = vst [vmem:[#allocation2 + $0x148] sm:$0xff] %v2954
      %2971 = vst [vmem:[#allocation2 + $0x150] sm:$0xff] %v2955
      %2972 = vst [vmem:[#allocation2 + $0x158] sm:$0xff] %v2956
      %2973 = vst [vmem:[#allocation2 + $0x160] sm:$0xff] %v2957
      %2974 = vst [vmem:[#allocation2 + $0x168] sm:$0xff] %v2958
      %2975 = vst [vmem:[#allocation2 + $0x170] sm:$0xff] %v2959
      %2976 = vst [vmem:[#allocation2 + $0x178] sm:$0xff] %v2960
      %v2977 = vld [vmem:[%s762] ss:$8 sm:$0xf]
      %v2979 = vlaneseq
      %v2980 = vshrl.u32 %v2979, 7
      %v2981 = vsub.s32 0, %v2980
      %v2982 = vrot.slane %v2977, %v2981
      %v2983 = vlaneseq
      %v2984 = vshrl.u32 %v2983, 7
      %v2985 = vsub.s32 1, %v2984
      %v2986 = vrot.slane %v2977, %v2985
      %v2987 = vlaneseq
      %v2988 = vshrl.u32 %v2987, 7
      %v2989 = vsub.s32 2, %v2988
      %v2990 = vrot.slane %v2977, %v2989
      %v2991 = vlaneseq
      %v2992 = vshrl.u32 %v2991, 7
      %v2993 = vsub.s32 3, %v2992
      %v2994 = vrot.slane %v2977, %v2993
      %2995 = vrot.lane.b32.xlu0 %v2982, 16
      %v2996 = vpop.permute.xlu0 %2995
      %2997 = vrot.lane.b32.xlu0 %v2986, 16
      %v2998 = vpop.permute.xlu0 %2997
      %2999 = vrot.lane.b32.xlu0 %v2990, 16
      %v3000 = vpop.permute.xlu0 %2999
      %3001 = vrot.lane.b32.xlu0 %v2994, 16
      %v3002 = vpop.permute.xlu0 %3001
      %v3003 = vsel %vm789, %v2996, %v2998
      %v3004 = vsel %vm789, %v2998, %v3000
      %v3005 = vsel %vm789, %v3000, %v3002
      %v3011 = vmul.f32 %v2445, %v2996
      %v3012 = vmul.f32 %v2429, %v3003
      %v3013 = vmul.f32 %v2430, %v3004
      %v3014 = vmul.f32 %v2431, %v3005
      %v3015 = vmul.f32 %v2447, %v3002
      %v3016 = vmul.f32 %v2446, %v2996
      %v3017 = vmul.f32 %v2432, %v3003
      %v3018 = vmul.f32 %v2433, %v3004
      %v3019 = vmul.f32 %v2434, %v3005
      %v3020 = vmul.f32 %v2448, %v3002
      %3031 = vrot.lane.b32.xlu0 %v3011, 112
      %v3032 = vpop.permute.xlu0 %3031
      %3033 = vrot.lane.b32.xlu0 %v3012, 112
      %v3034 = vpop.permute.xlu0 %3033
      %3035 = vrot.lane.b32.xlu0 %v3013, 112
      %v3036 = vpop.permute.xlu0 %3035
      %3037 = vrot.lane.b32.xlu0 %v3014, 112
      %v3038 = vpop.permute.xlu0 %3037
      %3039 = vrot.lane.b32.xlu0 %v3015, 112
      %v3040 = vpop.permute.xlu0 %3039
      %3041 = vrot.lane.b32.xlu0 %v3016, 112
      %v3042 = vpop.permute.xlu0 %3041
      %3043 = vrot.lane.b32.xlu0 %v3017, 112
      %v3044 = vpop.permute.xlu0 %3043
      %3045 = vrot.lane.b32.xlu0 %v3018, 112
      %v3046 = vpop.permute.xlu0 %3045
      %3047 = vrot.lane.b32.xlu0 %v3019, 112
      %v3048 = vpop.permute.xlu0 %3047
      %3049 = vrot.lane.b32.xlu0 %v3020, 112
      %v3050 = vpop.permute.xlu0 %3049
      %v3051 = vsel %vm818, %v3032, %v3034
      %v3052 = vsel %vm818, %v3034, %v3036
      %v3053 = vsel %vm818, %v3036, %v3038
      %v3054 = vsel %vm818, %v3038, %v3040
      %v3055 = vsel %vm818, %v3042, %v3044
      %v3056 = vsel %vm818, %v3044, %v3046
      %v3057 = vsel %vm818, %v3046, %v3048
      %v3058 = vsel %vm818, %v3048, %v3050
      %3067 = vst [vmem:[#allocation2 + $0x180] sm:$0xff] %v3051
      %3068 = vst [vmem:[#allocation2 + $0x188] sm:$0xff] %v3052
      %3069 = vst [vmem:[#allocation2 + $0x190] sm:$0xff] %v3053
      %3070 = vst [vmem:[#allocation2 + $0x198] sm:$0xff] %v3054
      %3071 = vst [vmem:[#allocation2 + $0x1a0] sm:$0xff] %v3055
      %3072 = vst [vmem:[#allocation2 + $0x1a8] sm:$0xff] %v3056
      %3073 = vst [vmem:[#allocation2 + $0x1b0] sm:$0xff] %v3057
      %3074 = vst [vmem:[#allocation2 + $0x1b8] sm:$0xff] %v3058
      %v3075 = vld [vmem:[%s831] ss:$8 sm:$0xf]
      %v3077 = vlaneseq
      %v3078 = vshrl.u32 %v3077, 7
      %v3079 = vsub.s32 0, %v3078
      %v3080 = vrot.slane %v3075, %v3079
      %v3081 = vlaneseq
      %v3082 = vshrl.u32 %v3081, 7
      %v3083 = vsub.s32 1, %v3082
      %v3084 = vrot.slane %v3075, %v3083
      %v3085 = vlaneseq
      %v3086 = vshrl.u32 %v3085, 7
      %v3087 = vsub.s32 2, %v3086
      %v3088 = vrot.slane %v3075, %v3087
      %v3089 = vlaneseq
      %v3090 = vshrl.u32 %v3089, 7
      %v3091 = vsub.s32 3, %v3090
      %v3092 = vrot.slane %v3075, %v3091
      %3093 = vrot.lane.b32.xlu0 %v3080, 17
      %v3094 = vpop.permute.xlu0 %3093
      %3095 = vrot.lane.b32.xlu0 %v3084, 17
      %v3096 = vpop.permute.xlu0 %3095
      %3097 = vrot.lane.b32.xlu0 %v3088, 17
      %v3098 = vpop.permute.xlu0 %3097
      %3099 = vrot.lane.b32.xlu0 %v3092, 17
      %v3100 = vpop.permute.xlu0 %3099
      %v3101 = vsel %vm858, %v3094, %v3096
      %v3102 = vsel %vm858, %v3096, %v3098
      %v3103 = vsel %vm858, %v3098, %v3100
      %v3109 = vmul.f32 %v2445, %v3094
      %v3110 = vmul.f32 %v2429, %v3101
      %v3111 = vmul.f32 %v2430, %v3102
      %v3112 = vmul.f32 %v2431, %v3103
      %v3113 = vmul.f32 %v2447, %v3100
      %v3114 = vmul.f32 %v2446, %v3094
      %v3115 = vmul.f32 %v2432, %v3101
      %v3116 = vmul.f32 %v2433, %v3102
      %v3117 = vmul.f32 %v2434, %v3103
      %v3118 = vmul.f32 %v2448, %v3100
      %3129 = vrot.lane.b32.xlu0 %v3109, 111
      %v3130 = vpop.permute.xlu0 %3129
      %3131 = vrot.lane.b32.xlu0 %v3110, 111
      %v3132 = vpop.permute.xlu0 %3131
      %3133 = vrot.lane.b32.xlu0 %v3111, 111
      %v3134 = vpop.permute.xlu0 %3133
      %3135 = vrot.lane.b32.xlu0 %v3112, 111
      %v3136 = vpop.permute.xlu0 %3135
      %3137 = vrot.lane.b32.xlu0 %v3113, 111
      %v3138 = vpop.permute.xlu0 %3137
      %3139 = vrot.lane.b32.xlu0 %v3114, 111
      %v3140 = vpop.permute.xlu0 %3139
      %3141 = vrot.lane.b32.xlu0 %v3115, 111
      %v3142 = vpop.permute.xlu0 %3141
      %3143 = vrot.lane.b32.xlu0 %v3116, 111
      %v3144 = vpop.permute.xlu0 %3143
      %3145 = vrot.lane.b32.xlu0 %v3117, 111
      %v3146 = vpop.permute.xlu0 %3145
      %3147 = vrot.lane.b32.xlu0 %v3118, 111
      %v3148 = vpop.permute.xlu0 %3147
      %v3149 = vsel %vm887, %v3130, %v3132
      %v3150 = vsel %vm887, %v3132, %v3134
      %v3151 = vsel %vm887, %v3134, %v3136
      %v3152 = vsel %vm887, %v3136, %v3138
      %v3153 = vsel %vm887, %v3140, %v3142
      %v3154 = vsel %vm887, %v3142, %v3144
      %v3155 = vsel %vm887, %v3144, %v3146
      %v3156 = vsel %vm887, %v3146, %v3148
      %3165 = vst [vmem:[#allocation2 + $0x1c0] sm:$0xff] %v3149
      %3166 = vst [vmem:[#allocation2 + $0x1c8] sm:$0xff] %v3150
      %3167 = vst [vmem:[#allocation2 + $0x1d0] sm:$0xff] %v3151
      %3168 = vst [vmem:[#allocation2 + $0x1d8] sm:$0xff] %v3152
      %3169 = vst [vmem:[#allocation2 + $0x1e0] sm:$0xff] %v3153
      %3170 = vst [vmem:[#allocation2 + $0x1e8] sm:$0xff] %v3154
      %3171 = vst [vmem:[#allocation2 + $0x1f0] sm:$0xff] %v3155
      %3172 = vst [vmem:[#allocation2 + $0x1f8] sm:$0xff] %v3156
      %v3173 = vld [vmem:[%s900] ss:$8 sm:$0xf]
      %v3175 = vlaneseq
      %v3176 = vshrl.u32 %v3175, 7
      %v3177 = vsub.s32 0, %v3176
      %v3178 = vrot.slane %v3173, %v3177
      %v3179 = vlaneseq
      %v3180 = vshrl.u32 %v3179, 7
      %v3181 = vsub.s32 1, %v3180
      %v3182 = vrot.slane %v3173, %v3181
      %v3183 = vlaneseq
      %v3184 = vshrl.u32 %v3183, 7
      %v3185 = vsub.s32 2, %v3184
      %v3186 = vrot.slane %v3173, %v3185
      %v3187 = vlaneseq
      %v3188 = vshrl.u32 %v3187, 7
      %v3189 = vsub.s32 3, %v3188
      %v3190 = vrot.slane %v3173, %v3189
      %3191 = vrot.lane.b32.xlu0 %v3178, 18
      %v3192 = vpop.permute.xlu0 %3191
      %3193 = vrot.lane.b32.xlu0 %v3182, 18
      %v3194 = vpop.permute.xlu0 %3193
      %3195 = vrot.lane.b32.xlu0 %v3186, 18
      %v3196 = vpop.permute.xlu0 %3195
      %3197 = vrot.lane.b32.xlu0 %v3190, 18
      %v3198 = vpop.permute.xlu0 %3197
      %v3199 = vsel %vm927, %v3192, %v3194
      %v3200 = vsel %vm927, %v3194, %v3196
      %v3201 = vsel %vm927, %v3196, %v3198
      %v3207 = vmul.f32 %v2445, %v3192
      %v3208 = vmul.f32 %v2429, %v3199
      %v3209 = vmul.f32 %v2430, %v3200
      %v3210 = vmul.f32 %v2431, %v3201
      %v3211 = vmul.f32 %v2447, %v3198
      %v3212 = vmul.f32 %v2446, %v3192
      %v3213 = vmul.f32 %v2432, %v3199
      %v3214 = vmul.f32 %v2433, %v3200
      %v3215 = vmul.f32 %v2434, %v3201
      %v3216 = vmul.f32 %v2448, %v3198
      %3227 = vrot.lane.b32.xlu0 %v3207, 110
      %v3228 = vpop.permute.xlu0 %3227
      %3229 = vrot.lane.b32.xlu0 %v3208, 110
      %v3230 = vpop.permute.xlu0 %3229
      %3231 = vrot.lane.b32.xlu0 %v3209, 110
      %v3232 = vpop.permute.xlu0 %3231
      %3233 = vrot.lane.b32.xlu0 %v3210, 110
      %v3234 = vpop.permute.xlu0 %3233
      %3235 = vrot.lane.b32.xlu0 %v3211, 110
      %v3236 = vpop.permute.xlu0 %3235
      %3237 = vrot.lane.b32.xlu0 %v3212, 110
      %v3238 = vpop.permute.xlu0 %3237
      %3239 = vrot.lane.b32.xlu0 %v3213, 110
      %v3240 = vpop.permute.xlu0 %3239
      %3241 = vrot.lane.b32.xlu0 %v3214, 110
      %v3242 = vpop.permute.xlu0 %3241
      %3243 = vrot.lane.b32.xlu0 %v3215, 110
      %v3244 = vpop.permute.xlu0 %3243
      %3245 = vrot.lane.b32.xlu0 %v3216, 110
      %v3246 = vpop.permute.xlu0 %3245
      %v3247 = vsel %vm956, %v3228, %v3230
      %v3248 = vsel %vm956, %v3230, %v3232
      %v3249 = vsel %vm956, %v3232, %v3234
      %v3250 = vsel %vm956, %v3234, %v3236
      %v3251 = vsel %vm956, %v3238, %v3240
      %v3252 = vsel %vm956, %v3240, %v3242
      %v3253 = vsel %vm956, %v3242, %v3244
      %v3254 = vsel %vm956, %v3244, %v3246
      %3263 = vst [vmem:[#allocation2 + $0x200] sm:$0xff] %v3247
      %3264 = vst [vmem:[#allocation2 + $0x208] sm:$0xff] %v3248
      %3265 = vst [vmem:[#allocation2 + $0x210] sm:$0xff] %v3249
      %3266 = vst [vmem:[#allocation2 + $0x218] sm:$0xff] %v3250
      %3267 = vst [vmem:[#allocation2 + $0x220] sm:$0xff] %v3251
      %3268 = vst [vmem:[#allocation2 + $0x228] sm:$0xff] %v3252
      %3269 = vst [vmem:[#allocation2 + $0x230] sm:$0xff] %v3253
      %3270 = vst [vmem:[#allocation2 + $0x238] sm:$0xff] %v3254
      %v3271 = vld [vmem:[%s969] ss:$8 sm:$0xf]
      %v3273 = vlaneseq
      %v3274 = vshrl.u32 %v3273, 7
      %v3275 = vsub.s32 0, %v3274
      %v3276 = vrot.slane %v3271, %v3275
      %v3277 = vlaneseq
      %v3278 = vshrl.u32 %v3277, 7
      %v3279 = vsub.s32 1, %v3278
      %v3280 = vrot.slane %v3271, %v3279
      %v3281 = vlaneseq
      %v3282 = vshrl.u32 %v3281, 7
      %v3283 = vsub.s32 2, %v3282
      %v3284 = vrot.slane %v3271, %v3283
      %v3285 = vlaneseq
      %v3286 = vshrl.u32 %v3285, 7
      %v3287 = vsub.s32 3, %v3286
      %v3288 = vrot.slane %v3271, %v3287
      %3289 = vrot.lane.b32.xlu0 %v3276, 64
      %v3290 = vpop.permute.xlu0 %3289
      %3291 = vrot.lane.b32.xlu0 %v3280, 64
      %v3292 = vpop.permute.xlu0 %3291
      %3293 = vrot.lane.b32.xlu0 %v3284, 64
      %v3294 = vpop.permute.xlu0 %3293
      %3295 = vrot.lane.b32.xlu0 %v3288, 64
      %v3296 = vpop.permute.xlu0 %3295
      %v3297 = vsel %vm996, %v3290, %v3292
      %v3298 = vsel %vm996, %v3292, %v3294
      %v3299 = vsel %vm996, %v3294, %v3296
      %v3305 = vmul.f32 %v2445, %v3290
      %v3306 = vmul.f32 %v2429, %v3297
      %v3307 = vmul.f32 %v2430, %v3298
      %v3308 = vmul.f32 %v2431, %v3299
      %v3309 = vmul.f32 %v2447, %v3296
      %v3310 = vmul.f32 %v2446, %v3290
      %v3311 = vmul.f32 %v2432, %v3297
      %v3312 = vmul.f32 %v2433, %v3298
      %v3313 = vmul.f32 %v2434, %v3299
      %v3314 = vmul.f32 %v2448, %v3296
      %3325 = vrot.lane.b32.xlu0 %v3305, 64
      %v3326 = vpop.permute.xlu0 %3325
      %3327 = vrot.lane.b32.xlu0 %v3306, 64
      %v3328 = vpop.permute.xlu0 %3327
      %3329 = vrot.lane.b32.xlu0 %v3307, 64
      %v3330 = vpop.permute.xlu0 %3329
      %3331 = vrot.lane.b32.xlu0 %v3308, 64
      %v3332 = vpop.permute.xlu0 %3331
      %3333 = vrot.lane.b32.xlu0 %v3309, 64
      %v3334 = vpop.permute.xlu0 %3333
      %3335 = vrot.lane.b32.xlu0 %v3310, 64
      %v3336 = vpop.permute.xlu0 %3335
      %3337 = vrot.lane.b32.xlu0 %v3311, 64
      %v3338 = vpop.permute.xlu0 %3337
      %3339 = vrot.lane.b32.xlu0 %v3312, 64
      %v3340 = vpop.permute.xlu0 %3339
      %3341 = vrot.lane.b32.xlu0 %v3313, 64
      %v3342 = vpop.permute.xlu0 %3341
      %3343 = vrot.lane.b32.xlu0 %v3314, 64
      %v3344 = vpop.permute.xlu0 %3343
      %v3345 = vsel %vm996, %v3326, %v3328
      %v3346 = vsel %vm996, %v3328, %v3330
      %v3347 = vsel %vm996, %v3330, %v3332
      %v3348 = vsel %vm996, %v3332, %v3334
      %v3349 = vsel %vm996, %v3336, %v3338
      %v3350 = vsel %vm996, %v3338, %v3340
      %v3351 = vsel %vm996, %v3340, %v3342
      %v3352 = vsel %vm996, %v3342, %v3344
      %3361 = vst [vmem:[#allocation2 + $0x240] sm:$0xff] %v3345
      %3362 = vst [vmem:[#allocation2 + $0x248] sm:$0xff] %v3346
      %3363 = vst [vmem:[#allocation2 + $0x250] sm:$0xff] %v3347
      %3364 = vst [vmem:[#allocation2 + $0x258] sm:$0xff] %v3348
      %3365 = vst [vmem:[#allocation2 + $0x260] sm:$0xff] %v3349
      %3366 = vst [vmem:[#allocation2 + $0x268] sm:$0xff] %v3350
      %3367 = vst [vmem:[#allocation2 + $0x270] sm:$0xff] %v3351
      %3368 = vst [vmem:[#allocation2 + $0x278] sm:$0xff] %v3352
      %v3369 = vld [vmem:[%s1037] ss:$8 sm:$0xf]
      %v3371 = vlaneseq
      %v3372 = vshrl.u32 %v3371, 7
      %v3373 = vsub.s32 0, %v3372
      %v3374 = vrot.slane %v3369, %v3373
      %v3375 = vlaneseq
      %v3376 = vshrl.u32 %v3375, 7
      %v3377 = vsub.s32 1, %v3376
      %v3378 = vrot.slane %v3369, %v3377
      %v3379 = vlaneseq
      %v3380 = vshrl.u32 %v3379, 7
      %v3381 = vsub.s32 2, %v3380
      %v3382 = vrot.slane %v3369, %v3381
      %v3383 = vlaneseq
      %v3384 = vshrl.u32 %v3383, 7
      %v3385 = vsub.s32 3, %v3384
      %v3386 = vrot.slane %v3369, %v3385
      %3387 = vrot.lane.b32.xlu0 %v3374, 65
      %v3388 = vpop.permute.xlu0 %3387
      %3389 = vrot.lane.b32.xlu0 %v3378, 65
      %v3390 = vpop.permute.xlu0 %3389
      %3391 = vrot.lane.b32.xlu0 %v3382, 65
      %v3392 = vpop.permute.xlu0 %3391
      %3393 = vrot.lane.b32.xlu0 %v3386, 65
      %v3394 = vpop.permute.xlu0 %3393
      %v3395 = vsel %vm1064, %v3388, %v3390
      %v3396 = vsel %vm1064, %v3390, %v3392
      %v3397 = vsel %vm1064, %v3392, %v3394
      %v3403 = vmul.f32 %v2445, %v3388
      %v3404 = vmul.f32 %v2429, %v3395
      %v3405 = vmul.f32 %v2430, %v3396
      %v3406 = vmul.f32 %v2431, %v3397
      %v3407 = vmul.f32 %v2447, %v3394
      %v3408 = vmul.f32 %v2446, %v3388
      %v3409 = vmul.f32 %v2432, %v3395
      %v3410 = vmul.f32 %v2433, %v3396
      %v3411 = vmul.f32 %v2434, %v3397
      %v3412 = vmul.f32 %v2448, %v3394
      %3423 = vrot.lane.b32.xlu0 %v3403, 63
      %v3424 = vpop.permute.xlu0 %3423
      %3425 = vrot.lane.b32.xlu0 %v3404, 63
      %v3426 = vpop.permute.xlu0 %3425
      %3427 = vrot.lane.b32.xlu0 %v3405, 63
      %v3428 = vpop.permute.xlu0 %3427
      %3429 = vrot.lane.b32.xlu0 %v3406, 63
      %v3430 = vpop.permute.xlu0 %3429
      %3431 = vrot.lane.b32.xlu0 %v3407, 63
      %v3432 = vpop.permute.xlu0 %3431
      %3433 = vrot.lane.b32.xlu0 %v3408, 63
      %v3434 = vpop.permute.xlu0 %3433
      %3435 = vrot.lane.b32.xlu0 %v3409, 63
      %v3436 = vpop.permute.xlu0 %3435
      %3437 = vrot.lane.b32.xlu0 %v3410, 63
      %v3438 = vpop.permute.xlu0 %3437
      %3439 = vrot.lane.b32.xlu0 %v3411, 63
      %v3440 = vpop.permute.xlu0 %3439
      %3441 = vrot.lane.b32.xlu0 %v3412, 63
      %v3442 = vpop.permute.xlu0 %3441
      %v3443 = vsel %vm1093, %v3424, %v3426
      %v3444 = vsel %vm1093, %v3426, %v3428
      %v3445 = vsel %vm1093, %v3428, %v3430
      %v3446 = vsel %vm1093, %v3430, %v3432
      %v3447 = vsel %vm1093, %v3434, %v3436
      %v3448 = vsel %vm1093, %v3436, %v3438
      %v3449 = vsel %vm1093, %v3438, %v3440
      %v3450 = vsel %vm1093, %v3440, %v3442
      %3459 = vst [vmem:[#allocation2 + $0x280] sm:$0xff] %v3443
      %3460 = vst [vmem:[#allocation2 + $0x288] sm:$0xff] %v3444
      %3461 = vst [vmem:[#allocation2 + $0x290] sm:$0xff] %v3445
      %3462 = vst [vmem:[#allocation2 + $0x298] sm:$0xff] %v3446
      %3463 = vst [vmem:[#allocation2 + $0x2a0] sm:$0xff] %v3447
      %3464 = vst [vmem:[#allocation2 + $0x2a8] sm:$0xff] %v3448
      %3465 = vst [vmem:[#allocation2 + $0x2b0] sm:$0xff] %v3449
      %3466 = vst [vmem:[#allocation2 + $0x2b8] sm:$0xff] %v3450
      %v3467 = vld [vmem:[%s1106] ss:$8 sm:$0xf]
      %v3469 = vlaneseq
      %v3470 = vshrl.u32 %v3469, 7
      %v3471 = vsub.s32 0, %v3470
      %v3472 = vrot.slane %v3467, %v3471
      %v3473 = vlaneseq
      %v3474 = vshrl.u32 %v3473, 7
      %v3475 = vsub.s32 1, %v3474
      %v3476 = vrot.slane %v3467, %v3475
      %v3477 = vlaneseq
      %v3478 = vshrl.u32 %v3477, 7
      %v3479 = vsub.s32 2, %v3478
      %v3480 = vrot.slane %v3467, %v3479
      %v3481 = vlaneseq
      %v3482 = vshrl.u32 %v3481, 7
      %v3483 = vsub.s32 3, %v3482
      %v3484 = vrot.slane %v3467, %v3483
      %3485 = vrot.lane.b32.xlu0 %v3472, 66
      %v3486 = vpop.permute.xlu0 %3485
      %3487 = vrot.lane.b32.xlu0 %v3476, 66
      %v3488 = vpop.permute.xlu0 %3487
      %3489 = vrot.lane.b32.xlu0 %v3480, 66
      %v3490 = vpop.permute.xlu0 %3489
      %3491 = vrot.lane.b32.xlu0 %v3484, 66
      %v3492 = vpop.permute.xlu0 %3491
      %v3493 = vsel %vm1133, %v3486, %v3488
      %v3494 = vsel %vm1133, %v3488, %v3490
      %v3495 = vsel %vm1133, %v3490, %v3492
      %v3501 = vmul.f32 %v2445, %v3486
      %v3502 = vmul.f32 %v2429, %v3493
      %v3503 = vmul.f32 %v2430, %v3494
      %v3504 = vmul.f32 %v2431, %v3495
      %v3505 = vmul.f32 %v2447, %v3492
      %v3506 = vmul.f32 %v2446, %v3486
      %v3507 = vmul.f32 %v2432, %v3493
      %v3508 = vmul.f32 %v2433, %v3494
      %v3509 = vmul.f32 %v2434, %v3495
      %v3510 = vmul.f32 %v2448, %v3492
      %3521 = vrot.lane.b32.xlu0 %v3501, 62
      %v3522 = vpop.permute.xlu0 %3521
      %3523 = vrot.lane.b32.xlu0 %v3502, 62
      %v3524 = vpop.permute.xlu0 %3523
      %3525 = vrot.lane.b32.xlu0 %v3503, 62
      %v3526 = vpop.permute.xlu0 %3525
      %3527 = vrot.lane.b32.xlu0 %v3504, 62
      %v3528 = vpop.permute.xlu0 %3527
      %3529 = vrot.lane.b32.xlu0 %v3505, 62
      %v3530 = vpop.permute.xlu0 %3529
      %3531 = vrot.lane.b32.xlu0 %v3506, 62
      %v3532 = vpop.permute.xlu0 %3531
      %3533 = vrot.lane.b32.xlu0 %v3507, 62
      %v3534 = vpop.permute.xlu0 %3533
      %3535 = vrot.lane.b32.xlu0 %v3508, 62
      %v3536 = vpop.permute.xlu0 %3535
      %3537 = vrot.lane.b32.xlu0 %v3509, 62
      %v3538 = vpop.permute.xlu0 %3537
      %3539 = vrot.lane.b32.xlu0 %v3510, 62
      %v3540 = vpop.permute.xlu0 %3539
      %v3541 = vsel %vm1162, %v3522, %v3524
      %v3542 = vsel %vm1162, %v3524, %v3526
      %v3543 = vsel %vm1162, %v3526, %v3528
      %v3544 = vsel %vm1162, %v3528, %v3530
      %v3545 = vsel %vm1162, %v3532, %v3534
      %v3546 = vsel %vm1162, %v3534, %v3536
      %v3547 = vsel %vm1162, %v3536, %v3538
      %v3548 = vsel %vm1162, %v3538, %v3540
      %3557 = vst [vmem:[#allocation2 + $0x2c0] sm:$0xff] %v3541
      %3558 = vst [vmem:[#allocation2 + $0x2c8] sm:$0xff] %v3542
      %3559 = vst [vmem:[#allocation2 + $0x2d0] sm:$0xff] %v3543
      %3560 = vst [vmem:[#allocation2 + $0x2d8] sm:$0xff] %v3544
      %3561 = vst [vmem:[#allocation2 + $0x2e0] sm:$0xff] %v3545
      %3562 = vst [vmem:[#allocation2 + $0x2e8] sm:$0xff] %v3546
      %3563 = vst [vmem:[#allocation2 + $0x2f0] sm:$0xff] %v3547
      %3564 = vst [vmem:[#allocation2 + $0x2f8] sm:$0xff] %v3548
      %v3565 = vld [vmem:[%s1175] ss:$8 sm:$0xf]
      %v3567 = vlaneseq
      %v3568 = vshrl.u32 %v3567, 7
      %v3569 = vsub.s32 0, %v3568
      %v3570 = vrot.slane %v3565, %v3569
      %v3571 = vlaneseq
      %v3572 = vshrl.u32 %v3571, 7
      %v3573 = vsub.s32 1, %v3572
      %v3574 = vrot.slane %v3565, %v3573
      %v3575 = vlaneseq
      %v3576 = vshrl.u32 %v3575, 7
      %v3577 = vsub.s32 2, %v3576
      %v3578 = vrot.slane %v3565, %v3577
      %v3579 = vlaneseq
      %v3580 = vshrl.u32 %v3579, 7
      %v3581 = vsub.s32 3, %v3580
      %v3582 = vrot.slane %v3565, %v3581
      %3583 = vrot.lane.b32.xlu0 %v3570, 72
      %v3584 = vpop.permute.xlu0 %3583
      %3585 = vrot.lane.b32.xlu0 %v3574, 72
      %v3586 = vpop.permute.xlu0 %3585
      %3587 = vrot.lane.b32.xlu0 %v3578, 72
      %v3588 = vpop.permute.xlu0 %3587
      %3589 = vrot.lane.b32.xlu0 %v3582, 72
      %v3590 = vpop.permute.xlu0 %3589
      %v3591 = vsel %vm1202, %v3584, %v3586
      %v3592 = vsel %vm1202, %v3586, %v3588
      %v3593 = vsel %vm1202, %v3588, %v3590
      %v3599 = vmul.f32 %v2445, %v3584
      %v3600 = vmul.f32 %v2429, %v3591
      %v3601 = vmul.f32 %v2430, %v3592
      %v3602 = vmul.f32 %v2431, %v3593
      %v3603 = vmul.f32 %v2447, %v3590
      %v3604 = vmul.f32 %v2446, %v3584
      %v3605 = vmul.f32 %v2432, %v3591
      %v3606 = vmul.f32 %v2433, %v3592
      %v3607 = vmul.f32 %v2434, %v3593
      %v3608 = vmul.f32 %v2448, %v3590
      %3619 = vrot.lane.b32.xlu0 %v3599, 56
      %v3620 = vpop.permute.xlu0 %3619
      %3621 = vrot.lane.b32.xlu0 %v3600, 56
      %v3622 = vpop.permute.xlu0 %3621
      %3623 = vrot.lane.b32.xlu0 %v3601, 56
      %v3624 = vpop.permute.xlu0 %3623
      %3625 = vrot.lane.b32.xlu0 %v3602, 56
      %v3626 = vpop.permute.xlu0 %3625
      %3627 = vrot.lane.b32.xlu0 %v3603, 56
      %v3628 = vpop.permute.xlu0 %3627
      %3629 = vrot.lane.b32.xlu0 %v3604, 56
      %v3630 = vpop.permute.xlu0 %3629
      %3631 = vrot.lane.b32.xlu0 %v3605, 56
      %v3632 = vpop.permute.xlu0 %3631
      %3633 = vrot.lane.b32.xlu0 %v3606, 56
      %v3634 = vpop.permute.xlu0 %3633
      %3635 = vrot.lane.b32.xlu0 %v3607, 56
      %v3636 = vpop.permute.xlu0 %3635
      %3637 = vrot.lane.b32.xlu0 %v3608, 56
      %v3638 = vpop.permute.xlu0 %3637
      %v3639 = vsel %vm1231, %v3620, %v3622
      %v3640 = vsel %vm1231, %v3622, %v3624
      %v3641 = vsel %vm1231, %v3624, %v3626
      %v3642 = vsel %vm1231, %v3626, %v3628
      %v3643 = vsel %vm1231, %v3630, %v3632
      %v3644 = vsel %vm1231, %v3632, %v3634
      %v3645 = vsel %vm1231, %v3634, %v3636
      %v3646 = vsel %vm1231, %v3636, %v3638
      %3655 = vst [vmem:[#allocation2 + $0x300] sm:$0xff] %v3639
      %3656 = vst [vmem:[#allocation2 + $0x308] sm:$0xff] %v3640
      %3657 = vst [vmem:[#allocation2 + $0x310] sm:$0xff] %v3641
      %3658 = vst [vmem:[#allocation2 + $0x318] sm:$0xff] %v3642
      %3659 = vst [vmem:[#allocation2 + $0x320] sm:$0xff] %v3643
      %3660 = vst [vmem:[#allocation2 + $0x328] sm:$0xff] %v3644
      %3661 = vst [vmem:[#allocation2 + $0x330] sm:$0xff] %v3645
      %3662 = vst [vmem:[#allocation2 + $0x338] sm:$0xff] %v3646
      %3667 = vrot.lane.b32.xlu0 %v2445, 55
      %v3668 = vpop.permute.xlu0 %3667
      %3669 = vrot.lane.b32.xlu0 %v2429, 55
      %v3670 = vpop.permute.xlu0 %3669
      %3671 = vrot.lane.b32.xlu0 %v2430, 55
      %v3672 = vpop.permute.xlu0 %3671
      %3673 = vrot.lane.b32.xlu0 %v2431, 55
      %v3674 = vpop.permute.xlu0 %3673
      %3675 = vrot.lane.b32.xlu0 %v2447, 55
      %v3676 = vpop.permute.xlu0 %3675
      %3677 = vrot.lane.b32.xlu0 %v2446, 55
      %v3678 = vpop.permute.xlu0 %3677
      %3679 = vrot.lane.b32.xlu0 %v2432, 55
      %v3680 = vpop.permute.xlu0 %3679
      %3681 = vrot.lane.b32.xlu0 %v2433, 55
      %v3682 = vpop.permute.xlu0 %3681
      %3683 = vrot.lane.b32.xlu0 %v2434, 55
      %v3684 = vpop.permute.xlu0 %3683
      %3685 = vrot.lane.b32.xlu0 %v2448, 55
      %v3686 = vpop.permute.xlu0 %3685
      %v3687 = vsel %vm1256, %v3668, %v3670
      %v3688 = vsel %vm1256, %v3670, %v3672
      %v3689 = vsel %vm1256, %v3672, %v3674
      %v3690 = vsel %vm1256, %v3674, %v3676
      %v3691 = vsel %vm1256, %v3678, %v3680
      %v3692 = vsel %vm1256, %v3680, %v3682
      %v3693 = vsel %vm1256, %v3682, %v3684
      %v3694 = vsel %vm1256, %v3684, %v3686
      %3703 = vst [vmem:[#allocation2 + $0x340] sm:$0xff] %v3687
      %3704 = vst [vmem:[#allocation2 + $0x348] sm:$0xff] %v3688
      %3705 = vst [vmem:[#allocation2 + $0x350] sm:$0xff] %v3689
      %3706 = vst [vmem:[#allocation2 + $0x358] sm:$0xff] %v3690
      %3707 = vst [vmem:[#allocation2 + $0x360] sm:$0xff] %v3691
      %3708 = vst [vmem:[#allocation2 + $0x368] sm:$0xff] %v3692
      %3709 = vst [vmem:[#allocation2 + $0x370] sm:$0xff] %v3693
      %3710 = vst [vmem:[#allocation2 + $0x378] sm:$0xff] %v3694
      %v3711 = vld [vmem:[%s1269] ss:$8 sm:$0xf]
      %v3713 = vlaneseq
      %v3714 = vshrl.u32 %v3713, 7
      %v3715 = vsub.s32 0, %v3714
      %v3716 = vrot.slane %v3711, %v3715
      %v3717 = vlaneseq
      %v3718 = vshrl.u32 %v3717, 7
      %v3719 = vsub.s32 1, %v3718
      %v3720 = vrot.slane %v3711, %v3719
      %v3721 = vlaneseq
      %v3722 = vshrl.u32 %v3721, 7
      %v3723 = vsub.s32 2, %v3722
      %v3724 = vrot.slane %v3711, %v3723
      %v3725 = vlaneseq
      %v3726 = vshrl.u32 %v3725, 7
      %v3727 = vsub.s32 3, %v3726
      %v3728 = vrot.slane %v3711, %v3727
      %3729 = vrot.lane.b32.xlu0 %v3716, 74
      %v3730 = vpop.permute.xlu0 %3729
      %3731 = vrot.lane.b32.xlu0 %v3720, 74
      %v3732 = vpop.permute.xlu0 %3731
      %3733 = vrot.lane.b32.xlu0 %v3724, 74
      %v3734 = vpop.permute.xlu0 %3733
      %3735 = vrot.lane.b32.xlu0 %v3728, 74
      %v3736 = vpop.permute.xlu0 %3735
      %v3737 = vsel %vm1296, %v3730, %v3732
      %v3738 = vsel %vm1296, %v3732, %v3734
      %v3739 = vsel %vm1296, %v3734, %v3736
      %v3745 = vmul.f32 %v2445, %v3730
      %v3746 = vmul.f32 %v2429, %v3737
      %v3747 = vmul.f32 %v2430, %v3738
      %v3748 = vmul.f32 %v2431, %v3739
      %v3749 = vmul.f32 %v2447, %v3736
      %v3750 = vmul.f32 %v2446, %v3730
      %v3751 = vmul.f32 %v2432, %v3737
      %v3752 = vmul.f32 %v2433, %v3738
      %v3753 = vmul.f32 %v2434, %v3739
      %v3754 = vmul.f32 %v2448, %v3736
      %3765 = vrot.lane.b32.xlu0 %v3745, 54
      %v3766 = vpop.permute.xlu0 %3765
      %3767 = vrot.lane.b32.xlu0 %v3746, 54
      %v3768 = vpop.permute.xlu0 %3767
      %3769 = vrot.lane.b32.xlu0 %v3747, 54
      %v3770 = vpop.permute.xlu0 %3769
      %3771 = vrot.lane.b32.xlu0 %v3748, 54
      %v3772 = vpop.permute.xlu0 %3771
      %3773 = vrot.lane.b32.xlu0 %v3749, 54
      %v3774 = vpop.permute.xlu0 %3773
      %3775 = vrot.lane.b32.xlu0 %v3750, 54
      %v3776 = vpop.permute.xlu0 %3775
      %3777 = vrot.lane.b32.xlu0 %v3751, 54
      %v3778 = vpop.permute.xlu0 %3777
      %3779 = vrot.lane.b32.xlu0 %v3752, 54
      %v3780 = vpop.permute.xlu0 %3779
      %3781 = vrot.lane.b32.xlu0 %v3753, 54
      %v3782 = vpop.permute.xlu0 %3781
      %3783 = vrot.lane.b32.xlu0 %v3754, 54
      %v3784 = vpop.permute.xlu0 %3783
      %v3785 = vsel %vm1325, %v3766, %v3768
      %v3786 = vsel %vm1325, %v3768, %v3770
      %v3787 = vsel %vm1325, %v3770, %v3772
      %v3788 = vsel %vm1325, %v3772, %v3774
      %v3789 = vsel %vm1325, %v3776, %v3778
      %v3790 = vsel %vm1325, %v3778, %v3780
      %v3791 = vsel %vm1325, %v3780, %v3782
      %v3792 = vsel %vm1325, %v3782, %v3784
      %3801 = vst [vmem:[#allocation2 + $0x380] sm:$0xff] %v3785
      %3802 = vst [vmem:[#allocation2 + $0x388] sm:$0xff] %v3786
      %3803 = vst [vmem:[#allocation2 + $0x390] sm:$0xff] %v3787
      %3804 = vst [vmem:[#allocation2 + $0x398] sm:$0xff] %v3788
      %3805 = vst [vmem:[#allocation2 + $0x3a0] sm:$0xff] %v3789
      %3806 = vst [vmem:[#allocation2 + $0x3a8] sm:$0xff] %v3790
      %3807 = vst [vmem:[#allocation2 + $0x3b0] sm:$0xff] %v3791
      %3808 = vst [vmem:[#allocation2 + $0x3b8] sm:$0xff] %v3792
      %v3809 = vld [vmem:[%s1338] ss:$8 sm:$0xf]
      %v3811 = vlaneseq
      %v3812 = vshrl.u32 %v3811, 7
      %v3813 = vsub.s32 0, %v3812
      %v3814 = vrot.slane %v3809, %v3813
      %v3815 = vlaneseq
      %v3816 = vshrl.u32 %v3815, 7
      %v3817 = vsub.s32 1, %v3816
      %v3818 = vrot.slane %v3809, %v3817
      %v3819 = vlaneseq
      %v3820 = vshrl.u32 %v3819, 7
      %v3821 = vsub.s32 2, %v3820
      %v3822 = vrot.slane %v3809, %v3821
      %v3823 = vlaneseq
      %v3824 = vshrl.u32 %v3823, 7
      %v3825 = vsub.s32 3, %v3824
      %v3826 = vrot.slane %v3809, %v3825
      %3827 = vrot.lane.b32.xlu0 %v3814, 80
      %v3828 = vpop.permute.xlu0 %3827
      %3829 = vrot.lane.b32.xlu0 %v3818, 80
      %v3830 = vpop.permute.xlu0 %3829
      %3831 = vrot.lane.b32.xlu0 %v3822, 80
      %v3832 = vpop.permute.xlu0 %3831
      %3833 = vrot.lane.b32.xlu0 %v3826, 80
      %v3834 = vpop.permute.xlu0 %3833
      %v3835 = vsel %vm1365, %v3828, %v3830
      %v3836 = vsel %vm1365, %v3830, %v3832
      %v3837 = vsel %vm1365, %v3832, %v3834
      %v3843 = vmul.f32 %v2445, %v3828
      %v3844 = vmul.f32 %v2429, %v3835
      %v3845 = vmul.f32 %v2430, %v3836
      %v3846 = vmul.f32 %v2431, %v3837
      %v3847 = vmul.f32 %v2447, %v3834
      %v3848 = vmul.f32 %v2446, %v3828
      %v3849 = vmul.f32 %v2432, %v3835
      %v3850 = vmul.f32 %v2433, %v3836
      %v3851 = vmul.f32 %v2434, %v3837
      %v3852 = vmul.f32 %v2448, %v3834
      %3863 = vrot.lane.b32.xlu0 %v3843, 48
      %v3864 = vpop.permute.xlu0 %3863
      %3865 = vrot.lane.b32.xlu0 %v3844, 48
      %v3866 = vpop.permute.xlu0 %3865
      %3867 = vrot.lane.b32.xlu0 %v3845, 48
      %v3868 = vpop.permute.xlu0 %3867
      %3869 = vrot.lane.b32.xlu0 %v3846, 48
      %v3870 = vpop.permute.xlu0 %3869
      %3871 = vrot.lane.b32.xlu0 %v3847, 48
      %v3872 = vpop.permute.xlu0 %3871
      %3873 = vrot.lane.b32.xlu0 %v3848, 48
      %v3874 = vpop.permute.xlu0 %3873
      %3875 = vrot.lane.b32.xlu0 %v3849, 48
      %v3876 = vpop.permute.xlu0 %3875
      %3877 = vrot.lane.b32.xlu0 %v3850, 48
      %v3878 = vpop.permute.xlu0 %3877
      %3879 = vrot.lane.b32.xlu0 %v3851, 48
      %v3880 = vpop.permute.xlu0 %3879
      %3881 = vrot.lane.b32.xlu0 %v3852, 48
      %v3882 = vpop.permute.xlu0 %3881
      %v3883 = vsel %vm1394, %v3864, %v3866
      %v3884 = vsel %vm1394, %v3866, %v3868
      %v3885 = vsel %vm1394, %v3868, %v3870
      %v3886 = vsel %vm1394, %v3870, %v3872
      %v3887 = vsel %vm1394, %v3874, %v3876
      %v3888 = vsel %vm1394, %v3876, %v3878
      %v3889 = vsel %vm1394, %v3878, %v3880
      %v3890 = vsel %vm1394, %v3880, %v3882
      %3899 = vst [vmem:[#allocation2 + $0x3c0] sm:$0xff] %v3883
      %3900 = vst [vmem:[#allocation2 + $0x3c8] sm:$0xff] %v3884
      %3901 = vst [vmem:[#allocation2 + $0x3d0] sm:$0xff] %v3885
      %3902 = vst [vmem:[#allocation2 + $0x3d8] sm:$0xff] %v3886
      %3903 = vst [vmem:[#allocation2 + $0x3e0] sm:$0xff] %v3887
      %3904 = vst [vmem:[#allocation2 + $0x3e8] sm:$0xff] %v3888
      %3905 = vst [vmem:[#allocation2 + $0x3f0] sm:$0xff] %v3889
      %3906 = vst [vmem:[#allocation2 + $0x3f8] sm:$0xff] %v3890
      %v3907 = vld [vmem:[%s1407] ss:$8 sm:$0xf]
      %v3909 = vlaneseq
      %v3910 = vshrl.u32 %v3909, 7
      %v3911 = vsub.s32 0, %v3910
      %v3912 = vrot.slane %v3907, %v3911
      %v3913 = vlaneseq
      %v3914 = vshrl.u32 %v3913, 7
      %v3915 = vsub.s32 1, %v3914
      %v3916 = vrot.slane %v3907, %v3915
      %v3917 = vlaneseq
      %v3918 = vshrl.u32 %v3917, 7
      %v3919 = vsub.s32 2, %v3918
      %v3920 = vrot.slane %v3907, %v3919
      %v3921 = vlaneseq
      %v3922 = vshrl.u32 %v3921, 7
      %v3923 = vsub.s32 3, %v3922
      %v3924 = vrot.slane %v3907, %v3923
      %3925 = vrot.lane.b32.xlu0 %v3912, 81
      %v3926 = vpop.permute.xlu0 %3925
      %3927 = vrot.lane.b32.xlu0 %v3916, 81
      %v3928 = vpop.permute.xlu0 %3927
      %3929 = vrot.lane.b32.xlu0 %v3920, 81
      %v3930 = vpop.permute.xlu0 %3929
      %3931 = vrot.lane.b32.xlu0 %v3924, 81
      %v3932 = vpop.permute.xlu0 %3931
      %v3933 = vsel %vm1434, %v3926, %v3928
      %v3934 = vsel %vm1434, %v3928, %v3930
      %v3935 = vsel %vm1434, %v3930, %v3932
      %v3941 = vmul.f32 %v2445, %v3926
      %v3942 = vmul.f32 %v2429, %v3933
      %v3943 = vmul.f32 %v2430, %v3934
      %v3944 = vmul.f32 %v2431, %v3935
      %v3945 = vmul.f32 %v2447, %v3932
      %v3946 = vmul.f32 %v2446, %v3926
      %v3947 = vmul.f32 %v2432, %v3933
      %v3948 = vmul.f32 %v2433, %v3934
      %v3949 = vmul.f32 %v2434, %v3935
      %v3950 = vmul.f32 %v2448, %v3932
      %3961 = vrot.lane.b32.xlu0 %v3941, 47
      %v3962 = vpop.permute.xlu0 %3961
      %3963 = vrot.lane.b32.xlu0 %v3942, 47
      %v3964 = vpop.permute.xlu0 %3963
      %3965 = vrot.lane.b32.xlu0 %v3943, 47
      %v3966 = vpop.permute.xlu0 %3965
      %3967 = vrot.lane.b32.xlu0 %v3944, 47
      %v3968 = vpop.permute.xlu0 %3967
      %3969 = vrot.lane.b32.xlu0 %v3945, 47
      %v3970 = vpop.permute.xlu0 %3969
      %3971 = vrot.lane.b32.xlu0 %v3946, 47
      %v3972 = vpop.permute.xlu0 %3971
      %3973 = vrot.lane.b32.xlu0 %v3947, 47
      %v3974 = vpop.permute.xlu0 %3973
      %3975 = vrot.lane.b32.xlu0 %v3948, 47
      %v3976 = vpop.permute.xlu0 %3975
      %3977 = vrot.lane.b32.xlu0 %v3949, 47
      %v3978 = vpop.permute.xlu0 %3977
      %3979 = vrot.lane.b32.xlu0 %v3950, 47
      %v3980 = vpop.permute.xlu0 %3979
      %v3981 = vsel %vm1463, %v3962, %v3964
      %v3982 = vsel %vm1463, %v3964, %v3966
      %v3983 = vsel %vm1463, %v3966, %v3968
      %v3984 = vsel %vm1463, %v3968, %v3970
      %v3985 = vsel %vm1463, %v3972, %v3974
      %v3986 = vsel %vm1463, %v3974, %v3976
      %v3987 = vsel %vm1463, %v3976, %v3978
      %v3988 = vsel %vm1463, %v3978, %v3980
      %3997 = vst [vmem:[#allocation2 + $0x400] sm:$0xff] %v3981
      %3998 = vst [vmem:[#allocation2 + $0x408] sm:$0xff] %v3982
      %3999 = vst [vmem:[#allocation2 + $0x410] sm:$0xff] %v3983
      %4000 = vst [vmem:[#allocation2 + $0x418] sm:$0xff] %v3984
      %4001 = vst [vmem:[#allocation2 + $0x420] sm:$0xff] %v3985
      %4002 = vst [vmem:[#allocation2 + $0x428] sm:$0xff] %v3986
      %4003 = vst [vmem:[#allocation2 + $0x430] sm:$0xff] %v3987
      %4004 = vst [vmem:[#allocation2 + $0x438] sm:$0xff] %v3988
      %v4005 = vld [vmem:[%s1476] ss:$8 sm:$0xf]
      %v4007 = vlaneseq
      %v4008 = vshrl.u32 %v4007, 7
      %v4009 = vsub.s32 0, %v4008
      %v4010 = vrot.slane %v4005, %v4009
      %v4011 = vlaneseq
      %v4012 = vshrl.u32 %v4011, 7
      %v4013 = vsub.s32 1, %v4012
      %v4014 = vrot.slane %v4005, %v4013
      %v4015 = vlaneseq
      %v4016 = vshrl.u32 %v4015, 7
      %v4017 = vsub.s32 2, %v4016
      %v4018 = vrot.slane %v4005, %v4017
      %v4019 = vlaneseq
      %v4020 = vshrl.u32 %v4019, 7
      %v4021 = vsub.s32 3, %v4020
      %v4022 = vrot.slane %v4005, %v4021
      %4023 = vrot.lane.b32.xlu0 %v4010, 82
      %v4024 = vpop.permute.xlu0 %4023
      %4025 = vrot.lane.b32.xlu0 %v4014, 82
      %v4026 = vpop.permute.xlu0 %4025
      %4027 = vrot.lane.b32.xlu0 %v4018, 82
      %v4028 = vpop.permute.xlu0 %4027
      %4029 = vrot.lane.b32.xlu0 %v4022, 82
      %v4030 = vpop.permute.xlu0 %4029
      %v4031 = vsel %vm1503, %v4024, %v4026
      %v4032 = vsel %vm1503, %v4026, %v4028
      %v4033 = vsel %vm1503, %v4028, %v4030
      %v4039 = vmul.f32 %v2445, %v4024
      %v4040 = vmul.f32 %v2429, %v4031
      %v4041 = vmul.f32 %v2430, %v4032
      %v4042 = vmul.f32 %v2431, %v4033
      %v4043 = vmul.f32 %v2447, %v4030
      %v4044 = vmul.f32 %v2446, %v4024
      %v4045 = vmul.f32 %v2432, %v4031
      %v4046 = vmul.f32 %v2433, %v4032
      %v4047 = vmul.f32 %v2434, %v4033
      %v4048 = vmul.f32 %v2448, %v4030
      %4059 = vrot.lane.b32.xlu0 %v4039, 46
      %v4060 = vpop.permute.xlu0 %4059
      %4061 = vrot.lane.b32.xlu0 %v4040, 46
      %v4062 = vpop.permute.xlu0 %4061
      %4063 = vrot.lane.b32.xlu0 %v4041, 46
      %v4064 = vpop.permute.xlu0 %4063
      %4065 = vrot.lane.b32.xlu0 %v4042, 46
      %v4066 = vpop.permute.xlu0 %4065
      %4067 = vrot.lane.b32.xlu0 %v4043, 46
      %v4068 = vpop.permute.xlu0 %4067
      %4069 = vrot.lane.b32.xlu0 %v4044, 46
      %v4070 = vpop.permute.xlu0 %4069
      %4071 = vrot.lane.b32.xlu0 %v4045, 46
      %v4072 = vpop.permute.xlu0 %4071
      %4073 = vrot.lane.b32.xlu0 %v4046, 46
      %v4074 = vpop.permute.xlu0 %4073
      %4075 = vrot.lane.b32.xlu0 %v4047, 46
      %v4076 = vpop.permute.xlu0 %4075
      %4077 = vrot.lane.b32.xlu0 %v4048, 46
      %v4078 = vpop.permute.xlu0 %4077
      %v4079 = vsel %vm1532, %v4060, %v4062
      %v4080 = vsel %vm1532, %v4062, %v4064
      %v4081 = vsel %vm1532, %v4064, %v4066
      %v4082 = vsel %vm1532, %v4066, %v4068
      %v4083 = vsel %vm1532, %v4070, %v4072
      %v4084 = vsel %vm1532, %v4072, %v4074
      %v4085 = vsel %vm1532, %v4074, %v4076
      %v4086 = vsel %vm1532, %v4076, %v4078
      %4095 = vst [vmem:[#allocation2 + $0x440] sm:$0xff] %v4079
      %4096 = vst [vmem:[#allocation2 + $0x448] sm:$0xff] %v4080
      %4097 = vst [vmem:[#allocation2 + $0x450] sm:$0xff] %v4081
      %4098 = vst [vmem:[#allocation2 + $0x458] sm:$0xff] %v4082
      %4099 = vst [vmem:[#allocation2 + $0x460] sm:$0xff] %v4083
      %4100 = vst [vmem:[#allocation2 + $0x468] sm:$0xff] %v4084
      %4101 = vst [vmem:[#allocation2 + $0x470] sm:$0xff] %v4085
      %4102 = vst [vmem:[#allocation2 + $0x478] sm:$0xff] %v4086
      %v4103 = vld [vmem:[%s1545] ss:$8 sm:$0xf]
      %v4105 = vlaneseq
      %v4106 = vshrl.u32 %v4105, 7
      %v4107 = vsub.s32 0, %v4106
      %v4108 = vrot.slane %v4103, %v4107
      %v4109 = vlaneseq
      %v4110 = vshrl.u32 %v4109, 7
      %v4111 = vsub.s32 1, %v4110
      %v4112 = vrot.slane %v4103, %v4111
      %v4113 = vlaneseq
      %v4114 = vshrl.u32 %v4113, 7
      %v4115 = vsub.s32 2, %v4114
      %v4116 = vrot.slane %v4103, %v4115
      %v4117 = vlaneseq
      %v4118 = vshrl.u32 %v4117, 7
      %v4119 = vsub.s32 3, %v4118
      %v4120 = vrot.slane %v4103, %v4119
      %v4125 = vmul.f32 %v2429, %v4108
      %v4126 = vmul.f32 %v2430, %v4112
      %v4127 = vmul.f32 %v2431, %v4116
      %v4128 = vmul.f32 %v2447, %v4120
      %v4129 = vmul.f32 %v2432, %v4108
      %v4130 = vmul.f32 %v2433, %v4112
      %v4131 = vmul.f32 %v2434, %v4116
      %v4132 = vmul.f32 %v2448, %v4120
      %4133 = vst [vmem:[#allocation2 + $0x480] sm:$0xff] %v4125
      %4134 = vst [vmem:[#allocation2 + $0x488] sm:$0xff] %v4126
      %4135 = vst [vmem:[#allocation2 + $0x490] sm:$0xff] %v4127
      %4136 = vst [vmem:[#allocation2 + $0x498] sm:$0xff] %v4128
      %4137 = vst [vmem:[#allocation2 + $0x4a0] sm:$0xff] %v4129
      %4138 = vst [vmem:[#allocation2 + $0x4a8] sm:$0xff] %v4130
      %4139 = vst [vmem:[#allocation2 + $0x4b0] sm:$0xff] %v4131
      %4140 = vst [vmem:[#allocation2 + $0x4b8] sm:$0xff] %v4132
      %v4141 = vld [vmem:[%s1576] ss:$8 sm:$0xf]
      %v4143 = vlaneseq
      %v4144 = vshrl.u32 %v4143, 7
      %v4145 = vsub.s32 0, %v4144
      %v4146 = vrot.slane %v4141, %v4145
      %v4147 = vlaneseq
      %v4148 = vshrl.u32 %v4147, 7
      %v4149 = vsub.s32 1, %v4148
      %v4150 = vrot.slane %v4141, %v4149
      %v4151 = vlaneseq
      %v4152 = vshrl.u32 %v4151, 7
      %v4153 = vsub.s32 2, %v4152
      %v4154 = vrot.slane %v4141, %v4153
      %v4155 = vlaneseq
      %v4156 = vshrl.u32 %v4155, 7
      %v4157 = vsub.s32 3, %v4156
      %v4158 = vrot.slane %v4141, %v4157
      %4159 = vrot.lane.b32.xlu0 %v4146, 1
      %v4160 = vpop.permute.xlu0 %4159
      %4161 = vrot.lane.b32.xlu0 %v4150, 1
      %v4162 = vpop.permute.xlu0 %4161
      %4163 = vrot.lane.b32.xlu0 %v4154, 1
      %v4164 = vpop.permute.xlu0 %4163
      %4165 = vrot.lane.b32.xlu0 %v4158, 1
      %v4166 = vpop.permute.xlu0 %4165
      %v4167 = vsel %vm444, %v4160, %v4162
      %v4168 = vsel %vm444, %v4162, %v4164
      %v4169 = vsel %vm444, %v4164, %v4166
      %v4175 = vmul.f32 %v2429, %v4160
      %v4176 = vmul.f32 %v2430, %v4167
      %v4177 = vmul.f32 %v2431, %v4168
      %v4178 = vmul.f32 %v2447, %v4169
      %v4179 = vmul.f32 %v4166, 0.0
      %v4180 = vmul.f32 %v2432, %v4160
      %v4181 = vmul.f32 %v2433, %v4167
      %v4182 = vmul.f32 %v2434, %v4168
      %v4183 = vmul.f32 %v2448, %v4169
      %4193 = vrot.lane.b32.xlu0 %v4175, 127
      %v4194 = vpop.permute.xlu0 %4193
      %4195 = vrot.lane.b32.xlu0 %v4176, 127
      %v4196 = vpop.permute.xlu0 %4195
      %4197 = vrot.lane.b32.xlu0 %v4177, 127
      %v4198 = vpop.permute.xlu0 %4197
      %4199 = vrot.lane.b32.xlu0 %v4178, 127
      %v4200 = vpop.permute.xlu0 %4199
      %4201 = vrot.lane.b32.xlu0 %v4179, 127
      %v4202 = vpop.permute.xlu0 %4201
      %4203 = vrot.lane.b32.xlu0 %v4180, 127
      %v4204 = vpop.permute.xlu0 %4203
      %4205 = vrot.lane.b32.xlu0 %v4181, 127
      %v4206 = vpop.permute.xlu0 %4205
      %4207 = vrot.lane.b32.xlu0 %v4182, 127
      %v4208 = vpop.permute.xlu0 %4207
      %4209 = vrot.lane.b32.xlu0 %v4183, 127
      %v4210 = vpop.permute.xlu0 %4209
      %v4211 = vsel %vm473, %v4194, %v4196
      %v4212 = vsel %vm473, %v4196, %v4198
      %v4213 = vsel %vm473, %v4198, %v4200
      %v4214 = vsel %vm473, %v4200, %v4202
      %v4215 = vsel %vm473, %v4204, %v4206
      %v4216 = vsel %vm473, %v4206, %v4208
      %v4217 = vsel %vm473, %v4208, %v4210
      %v4218 = vsel %vm473, %v4210, %v4202
      %4227 = vst [vmem:[#allocation2 + $0x4c0] sm:$0xff] %v4211
      %4228 = vst [vmem:[#allocation2 + $0x4c8] sm:$0xff] %v4212
      %4229 = vst [vmem:[#allocation2 + $0x4d0] sm:$0xff] %v4213
      %4230 = vst [vmem:[#allocation2 + $0x4d8] sm:$0xff] %v4214
      %4231 = vst [vmem:[#allocation2 + $0x4e0] sm:$0xff] %v4215
      %4232 = vst [vmem:[#allocation2 + $0x4e8] sm:$0xff] %v4216
      %4233 = vst [vmem:[#allocation2 + $0x4f0] sm:$0xff] %v4217
      %4234 = vst [vmem:[#allocation2 + $0x4f8] sm:$0xff] %v4218
      %v4235 = vld [vmem:[%s1643] ss:$8 sm:$0xf]
      %v4237 = vlaneseq
      %v4238 = vshrl.u32 %v4237, 7
      %v4239 = vsub.s32 0, %v4238
      %v4240 = vrot.slane %v4235, %v4239
      %v4241 = vlaneseq
      %v4242 = vshrl.u32 %v4241, 7
      %v4243 = vsub.s32 1, %v4242
      %v4244 = vrot.slane %v4235, %v4243
      %v4245 = vlaneseq
      %v4246 = vshrl.u32 %v4245, 7
      %v4247 = vsub.s32 2, %v4246
      %v4248 = vrot.slane %v4235, %v4247
      %v4249 = vlaneseq
      %v4250 = vshrl.u32 %v4249, 7
      %v4251 = vsub.s32 3, %v4250
      %v4252 = vrot.slane %v4235, %v4251
      %4253 = vrot.lane.b32.xlu0 %v4240, 2
      %v4254 = vpop.permute.xlu0 %4253
      %4255 = vrot.lane.b32.xlu0 %v4244, 2
      %v4256 = vpop.permute.xlu0 %4255
      %4257 = vrot.lane.b32.xlu0 %v4248, 2
      %v4258 = vpop.permute.xlu0 %4257
      %4259 = vrot.lane.b32.xlu0 %v4252, 2
      %v4260 = vpop.permute.xlu0 %4259
      %v4261 = vsel %vm513, %v4254, %v4256
      %v4262 = vsel %vm513, %v4256, %v4258
      %v4263 = vsel %vm513, %v4258, %v4260
      %v4269 = vmul.f32 %v2429, %v4254
      %v4270 = vmul.f32 %v2430, %v4261
      %v4271 = vmul.f32 %v2431, %v4262
      %v4272 = vmul.f32 %v2447, %v4263
      %v4273 = vmul.f32 %v4260, 0.0
      %v4274 = vmul.f32 %v2432, %v4254
      %v4275 = vmul.f32 %v2433, %v4261
      %v4276 = vmul.f32 %v2434, %v4262
      %v4277 = vmul.f32 %v2448, %v4263
      %4287 = vrot.lane.b32.xlu0 %v4269, 126
      %v4288 = vpop.permute.xlu0 %4287
      %4289 = vrot.lane.b32.xlu0 %v4270, 126
      %v4290 = vpop.permute.xlu0 %4289
      %4291 = vrot.lane.b32.xlu0 %v4271, 126
      %v4292 = vpop.permute.xlu0 %4291
      %4293 = vrot.lane.b32.xlu0 %v4272, 126
      %v4294 = vpop.permute.xlu0 %4293
      %4295 = vrot.lane.b32.xlu0 %v4273, 126
      %v4296 = vpop.permute.xlu0 %4295
      %4297 = vrot.lane.b32.xlu0 %v4274, 126
      %v4298 = vpop.permute.xlu0 %4297
      %4299 = vrot.lane.b32.xlu0 %v4275, 126
      %v4300 = vpop.permute.xlu0 %4299
      %4301 = vrot.lane.b32.xlu0 %v4276, 126
      %v4302 = vpop.permute.xlu0 %4301
      %4303 = vrot.lane.b32.xlu0 %v4277, 126
      %v4304 = vpop.permute.xlu0 %4303
      %v4305 = vsel %vm542, %v4288, %v4290
      %v4306 = vsel %vm542, %v4290, %v4292
      %v4307 = vsel %vm542, %v4292, %v4294
      %v4308 = vsel %vm542, %v4294, %v4296
      %v4309 = vsel %vm542, %v4298, %v4300
      %v4310 = vsel %vm542, %v4300, %v4302
      %v4311 = vsel %vm542, %v4302, %v4304
      %v4312 = vsel %vm542, %v4304, %v4296
      %4321 = vst [vmem:[#allocation2 + $0x500] sm:$0xff] %v4305
      %4322 = vst [vmem:[#allocation2 + $0x508] sm:$0xff] %v4306
      %4323 = vst [vmem:[#allocation2 + $0x510] sm:$0xff] %v4307
      %4324 = vst [vmem:[#allocation2 + $0x518] sm:$0xff] %v4308
      %4325 = vst [vmem:[#allocation2 + $0x520] sm:$0xff] %v4309
      %4326 = vst [vmem:[#allocation2 + $0x528] sm:$0xff] %v4310
      %4327 = vst [vmem:[#allocation2 + $0x530] sm:$0xff] %v4311
      %4328 = vst [vmem:[#allocation2 + $0x538] sm:$0xff] %v4312
      %v4329 = vld [vmem:[%s1710] ss:$8 sm:$0xf]
      %v4331 = vlaneseq
      %v4332 = vshrl.u32 %v4331, 7
      %v4333 = vsub.s32 0, %v4332
      %v4334 = vrot.slane %v4329, %v4333
      %v4335 = vlaneseq
      %v4336 = vshrl.u32 %v4335, 7
      %v4337 = vsub.s32 1, %v4336
      %v4338 = vrot.slane %v4329, %v4337
      %v4339 = vlaneseq
      %v4340 = vshrl.u32 %v4339, 7
      %v4341 = vsub.s32 2, %v4340
      %v4342 = vrot.slane %v4329, %v4341
      %v4343 = vlaneseq
      %v4344 = vshrl.u32 %v4343, 7
      %v4345 = vsub.s32 3, %v4344
      %v4346 = vrot.slane %v4329, %v4345
      %4347 = vrot.lane.b32.xlu0 %v4334, 8
      %v4348 = vpop.permute.xlu0 %4347
      %4349 = vrot.lane.b32.xlu0 %v4338, 8
      %v4350 = vpop.permute.xlu0 %4349
      %4351 = vrot.lane.b32.xlu0 %v4342, 8
      %v4352 = vpop.permute.xlu0 %4351
      %4353 = vrot.lane.b32.xlu0 %v4346, 8
      %v4354 = vpop.permute.xlu0 %4353
      %v4355 = vsel %vm582, %v4348, %v4350
      %v4356 = vsel %vm582, %v4350, %v4352
      %v4357 = vsel %vm582, %v4352, %v4354
      %v4363 = vmul.f32 %v2429, %v4348
      %v4364 = vmul.f32 %v2430, %v4355
      %v4365 = vmul.f32 %v2431, %v4356
      %v4366 = vmul.f32 %v2447, %v4357
      %v4367 = vmul.f32 %v4354, 0.0
      %v4368 = vmul.f32 %v2432, %v4348
      %v4369 = vmul.f32 %v2433, %v4355
      %v4370 = vmul.f32 %v2434, %v4356
      %v4371 = vmul.f32 %v2448, %v4357
      %4381 = vrot.lane.b32.xlu0 %v4363, 120
      %v4382 = vpop.permute.xlu0 %4381
      %4383 = vrot.lane.b32.xlu0 %v4364, 120
      %v4384 = vpop.permute.xlu0 %4383
      %4385 = vrot.lane.b32.xlu0 %v4365, 120
      %v4386 = vpop.permute.xlu0 %4385
      %4387 = vrot.lane.b32.xlu0 %v4366, 120
      %v4388 = vpop.permute.xlu0 %4387
      %4389 = vrot.lane.b32.xlu0 %v4367, 120
      %v4390 = vpop.permute.xlu0 %4389
      %4391 = vrot.lane.b32.xlu0 %v4368, 120
      %v4392 = vpop.permute.xlu0 %4391
      %4393 = vrot.lane.b32.xlu0 %v4369, 120
      %v4394 = vpop.permute.xlu0 %4393
      %4395 = vrot.lane.b32.xlu0 %v4370, 120
      %v4396 = vpop.permute.xlu0 %4395
      %4397 = vrot.lane.b32.xlu0 %v4371, 120
      %v4398 = vpop.permute.xlu0 %4397
      %v4399 = vsel %vm611, %v4382, %v4384
      %v4400 = vsel %vm611, %v4384, %v4386
      %v4401 = vsel %vm611, %v4386, %v4388
      %v4402 = vsel %vm611, %v4388, %v4390
      %v4403 = vsel %vm611, %v4392, %v4394
      %v4404 = vsel %vm611, %v4394, %v4396
      %v4405 = vsel %vm611, %v4396, %v4398
      %v4406 = vsel %vm611, %v4398, %v4390
      %4415 = vst [vmem:[#allocation2 + $0x540] sm:$0xff] %v4399
      %4416 = vst [vmem:[#allocation2 + $0x548] sm:$0xff] %v4400
      %4417 = vst [vmem:[#allocation2 + $0x550] sm:$0xff] %v4401
      %4418 = vst [vmem:[#allocation2 + $0x558] sm:$0xff] %v4402
      %4419 = vst [vmem:[#allocation2 + $0x560] sm:$0xff] %v4403
      %4420 = vst [vmem:[#allocation2 + $0x568] sm:$0xff] %v4404
      %4421 = vst [vmem:[#allocation2 + $0x570] sm:$0xff] %v4405
      %4422 = vst [vmem:[#allocation2 + $0x578] sm:$0xff] %v4406
      %v4423 = vld [vmem:[%s1777] ss:$8 sm:$0xf]
      %v4425 = vlaneseq
      %v4426 = vshrl.u32 %v4425, 7
      %v4427 = vsub.s32 0, %v4426
      %v4428 = vrot.slane %v4423, %v4427
      %v4429 = vlaneseq
      %v4430 = vshrl.u32 %v4429, 7
      %v4431 = vsub.s32 1, %v4430
      %v4432 = vrot.slane %v4423, %v4431
      %v4433 = vlaneseq
      %v4434 = vshrl.u32 %v4433, 7
      %v4435 = vsub.s32 2, %v4434
      %v4436 = vrot.slane %v4423, %v4435
      %v4437 = vlaneseq
      %v4438 = vshrl.u32 %v4437, 7
      %v4439 = vsub.s32 3, %v4438
      %v4440 = vrot.slane %v4423, %v4439
      %4441 = vrot.lane.b32.xlu0 %v4428, 9
      %v4442 = vpop.permute.xlu0 %4441
      %4443 = vrot.lane.b32.xlu0 %v4432, 9
      %v4444 = vpop.permute.xlu0 %4443
      %4445 = vrot.lane.b32.xlu0 %v4436, 9
      %v4446 = vpop.permute.xlu0 %4445
      %4447 = vrot.lane.b32.xlu0 %v4440, 9
      %v4448 = vpop.permute.xlu0 %4447
      %v4449 = vsel %vm651, %v4442, %v4444
      %v4450 = vsel %vm651, %v4444, %v4446
      %v4451 = vsel %vm651, %v4446, %v4448
      %v4457 = vmul.f32 %v2429, %v4442
      %v4458 = vmul.f32 %v2430, %v4449
      %v4459 = vmul.f32 %v2431, %v4450
      %v4460 = vmul.f32 %v2447, %v4451
      %v4461 = vmul.f32 %v4448, 0.0
      %v4462 = vmul.f32 %v2432, %v4442
      %v4463 = vmul.f32 %v2433, %v4449
      %v4464 = vmul.f32 %v2434, %v4450
      %v4465 = vmul.f32 %v2448, %v4451
      %4475 = vrot.lane.b32.xlu0 %v4457, 119
      %v4476 = vpop.permute.xlu0 %4475
      %4477 = vrot.lane.b32.xlu0 %v4458, 119
      %v4478 = vpop.permute.xlu0 %4477
      %4479 = vrot.lane.b32.xlu0 %v4459, 119
      %v4480 = vpop.permute.xlu0 %4479
      %4481 = vrot.lane.b32.xlu0 %v4460, 119
      %v4482 = vpop.permute.xlu0 %4481
      %4483 = vrot.lane.b32.xlu0 %v4461, 119
      %v4484 = vpop.permute.xlu0 %4483
      %4485 = vrot.lane.b32.xlu0 %v4462, 119
      %v4486 = vpop.permute.xlu0 %4485
      %4487 = vrot.lane.b32.xlu0 %v4463, 119
      %v4488 = vpop.permute.xlu0 %4487
      %4489 = vrot.lane.b32.xlu0 %v4464, 119
      %v4490 = vpop.permute.xlu0 %4489
      %4491 = vrot.lane.b32.xlu0 %v4465, 119
      %v4492 = vpop.permute.xlu0 %4491
      %v4493 = vsel %vm680, %v4476, %v4478
      %v4494 = vsel %vm680, %v4478, %v4480
      %v4495 = vsel %vm680, %v4480, %v4482
      %v4496 = vsel %vm680, %v4482, %v4484
      %v4497 = vsel %vm680, %v4486, %v4488
      %v4498 = vsel %vm680, %v4488, %v4490
      %v4499 = vsel %vm680, %v4490, %v4492
      %v4500 = vsel %vm680, %v4492, %v4484
      %4509 = vst [vmem:[#allocation2 + $0x580] sm:$0xff] %v4493
      %4510 = vst [vmem:[#allocation2 + $0x588] sm:$0xff] %v4494
      %4511 = vst [vmem:[#allocation2 + $0x590] sm:$0xff] %v4495
      %4512 = vst [vmem:[#allocation2 + $0x598] sm:$0xff] %v4496
      %4513 = vst [vmem:[#allocation2 + $0x5a0] sm:$0xff] %v4497
      %4514 = vst [vmem:[#allocation2 + $0x5a8] sm:$0xff] %v4498
      %4515 = vst [vmem:[#allocation2 + $0x5b0] sm:$0xff] %v4499
      %4516 = vst [vmem:[#allocation2 + $0x5b8] sm:$0xff] %v4500
      %v4517 = vld [vmem:[%s1844] ss:$8 sm:$0xf]
      %v4519 = vlaneseq
      %v4520 = vshrl.u32 %v4519, 7
      %v4521 = vsub.s32 0, %v4520
      %v4522 = vrot.slane %v4517, %v4521
      %v4523 = vlaneseq
      %v4524 = vshrl.u32 %v4523, 7
      %v4525 = vsub.s32 1, %v4524
      %v4526 = vrot.slane %v4517, %v4525
      %v4527 = vlaneseq
      %v4528 = vshrl.u32 %v4527, 7
      %v4529 = vsub.s32 2, %v4528
      %v4530 = vrot.slane %v4517, %v4529
      %v4531 = vlaneseq
      %v4532 = vshrl.u32 %v4531, 7
      %v4533 = vsub.s32 3, %v4532
      %v4534 = vrot.slane %v4517, %v4533
      %4535 = vrot.lane.b32.xlu0 %v4522, 10
      %v4536 = vpop.permute.xlu0 %4535
      %4537 = vrot.lane.b32.xlu0 %v4526, 10
      %v4538 = vpop.permute.xlu0 %4537
      %4539 = vrot.lane.b32.xlu0 %v4530, 10
      %v4540 = vpop.permute.xlu0 %4539
      %4541 = vrot.lane.b32.xlu0 %v4534, 10
      %v4542 = vpop.permute.xlu0 %4541
      %v4543 = vsel %vm720, %v4536, %v4538
      %v4544 = vsel %vm720, %v4538, %v4540
      %v4545 = vsel %vm720, %v4540, %v4542
      %v4551 = vmul.f32 %v2429, %v4536
      %v4552 = vmul.f32 %v2430, %v4543
      %v4553 = vmul.f32 %v2431, %v4544
      %v4554 = vmul.f32 %v2447, %v4545
      %v4555 = vmul.f32 %v4542, 0.0
      %v4556 = vmul.f32 %v2432, %v4536
      %v4557 = vmul.f32 %v2433, %v4543
      %v4558 = vmul.f32 %v2434, %v4544
      %v4559 = vmul.f32 %v2448, %v4545
      %4569 = vrot.lane.b32.xlu0 %v4551, 118
      %v4570 = vpop.permute.xlu0 %4569
      %4571 = vrot.lane.b32.xlu0 %v4552, 118
      %v4572 = vpop.permute.xlu0 %4571
      %4573 = vrot.lane.b32.xlu0 %v4553, 118
      %v4574 = vpop.permute.xlu0 %4573
      %4575 = vrot.lane.b32.xlu0 %v4554, 118
      %v4576 = vpop.permute.xlu0 %4575
      %4577 = vrot.lane.b32.xlu0 %v4555, 118
      %v4578 = vpop.permute.xlu0 %4577
      %4579 = vrot.lane.b32.xlu0 %v4556, 118
      %v4580 = vpop.permute.xlu0 %4579
      %4581 = vrot.lane.b32.xlu0 %v4557, 118
      %v4582 = vpop.permute.xlu0 %4581
      %4583 = vrot.lane.b32.xlu0 %v4558, 118
      %v4584 = vpop.permute.xlu0 %4583
      %4585 = vrot.lane.b32.xlu0 %v4559, 118
      %v4586 = vpop.permute.xlu0 %4585
      %v4587 = vsel %vm749, %v4570, %v4572
      %v4588 = vsel %vm749, %v4572, %v4574
      %v4589 = vsel %vm749, %v4574, %v4576
      %v4590 = vsel %vm749, %v4576, %v4578
      %v4591 = vsel %vm749, %v4580, %v4582
      %v4592 = vsel %vm749, %v4582, %v4584
      %v4593 = vsel %vm749, %v4584, %v4586
      %v4594 = vsel %vm749, %v4586, %v4578
      %4603 = vst [vmem:[#allocation2 + $0x5c0] sm:$0xff] %v4587
      %4604 = vst [vmem:[#allocation2 + $0x5c8] sm:$0xff] %v4588
      %4605 = vst [vmem:[#allocation2 + $0x5d0] sm:$0xff] %v4589
      %4606 = vst [vmem:[#allocation2 + $0x5d8] sm:$0xff] %v4590
      %4607 = vst [vmem:[#allocation2 + $0x5e0] sm:$0xff] %v4591
      %4608 = vst [vmem:[#allocation2 + $0x5e8] sm:$0xff] %v4592
      %4609 = vst [vmem:[#allocation2 + $0x5f0] sm:$0xff] %v4593
      %4610 = vst [vmem:[#allocation2 + $0x5f8] sm:$0xff] %v4594
      %v4611 = vld [vmem:[%s1911] ss:$8 sm:$0xf]
      %v4613 = vlaneseq
      %v4614 = vshrl.u32 %v4613, 7
      %v4615 = vsub.s32 0, %v4614
      %v4616 = vrot.slane %v4611, %v4615
      %v4617 = vlaneseq
      %v4618 = vshrl.u32 %v4617, 7
      %v4619 = vsub.s32 1, %v4618
      %v4620 = vrot.slane %v4611, %v4619
      %v4621 = vlaneseq
      %v4622 = vshrl.u32 %v4621, 7
      %v4623 = vsub.s32 2, %v4622
      %v4624 = vrot.slane %v4611, %v4623
      %v4625 = vlaneseq
      %v4626 = vshrl.u32 %v4625, 7
      %v4627 = vsub.s32 3, %v4626
      %v4628 = vrot.slane %v4611, %v4627
      %4629 = vrot.lane.b32.xlu0 %v4616, 16
      %v4630 = vpop.permute.xlu0 %4629
      %4631 = vrot.lane.b32.xlu0 %v4620, 16
      %v4632 = vpop.permute.xlu0 %4631
      %4633 = vrot.lane.b32.xlu0 %v4624, 16
      %v4634 = vpop.permute.xlu0 %4633
      %4635 = vrot.lane.b32.xlu0 %v4628, 16
      %v4636 = vpop.permute.xlu0 %4635
      %v4637 = vsel %vm789, %v4630, %v4632
      %v4638 = vsel %vm789, %v4632, %v4634
      %v4639 = vsel %vm789, %v4634, %v4636
      %v4645 = vmul.f32 %v2429, %v4630
      %v4646 = vmul.f32 %v2430, %v4637
      %v4647 = vmul.f32 %v2431, %v4638
      %v4648 = vmul.f32 %v2447, %v4639
      %v4649 = vmul.f32 %v4636, 0.0
      %v4650 = vmul.f32 %v2432, %v4630
      %v4651 = vmul.f32 %v2433, %v4637
      %v4652 = vmul.f32 %v2434, %v4638
      %v4653 = vmul.f32 %v2448, %v4639
      %4663 = vrot.lane.b32.xlu0 %v4645, 112
      %v4664 = vpop.permute.xlu0 %4663
      %4665 = vrot.lane.b32.xlu0 %v4646, 112
      %v4666 = vpop.permute.xlu0 %4665
      %4667 = vrot.lane.b32.xlu0 %v4647, 112
      %v4668 = vpop.permute.xlu0 %4667
      %4669 = vrot.lane.b32.xlu0 %v4648, 112
      %v4670 = vpop.permute.xlu0 %4669
      %4671 = vrot.lane.b32.xlu0 %v4649, 112
      %v4672 = vpop.permute.xlu0 %4671
      %4673 = vrot.lane.b32.xlu0 %v4650, 112
      %v4674 = vpop.permute.xlu0 %4673
      %4675 = vrot.lane.b32.xlu0 %v4651, 112
      %v4676 = vpop.permute.xlu0 %4675
      %4677 = vrot.lane.b32.xlu0 %v4652, 112
      %v4678 = vpop.permute.xlu0 %4677
      %4679 = vrot.lane.b32.xlu0 %v4653, 112
      %v4680 = vpop.permute.xlu0 %4679
      %v4681 = vsel %vm818, %v4664, %v4666
      %v4682 = vsel %vm818, %v4666, %v4668
      %v4683 = vsel %vm818, %v4668, %v4670
      %v4684 = vsel %vm818, %v4670, %v4672
      %v4685 = vsel %vm818, %v4674, %v4676
      %v4686 = vsel %vm818, %v4676, %v4678
      %v4687 = vsel %vm818, %v4678, %v4680
      %v4688 = vsel %vm818, %v4680, %v4672
      %4697 = vst [vmem:[#allocation2 + $0x600] sm:$0xff] %v4681
      %4698 = vst [vmem:[#allocation2 + $0x608] sm:$0xff] %v4682
      %4699 = vst [vmem:[#allocation2 + $0x610] sm:$0xff] %v4683
      %4700 = vst [vmem:[#allocation2 + $0x618] sm:$0xff] %v4684
      %4701 = vst [vmem:[#allocation2 + $0x620] sm:$0xff] %v4685
      %4702 = vst [vmem:[#allocation2 + $0x628] sm:$0xff] %v4686
      %4703 = vst [vmem:[#allocation2 + $0x630] sm:$0xff] %v4687
      %4704 = vst [vmem:[#allocation2 + $0x638] sm:$0xff] %v4688
      %v4705 = vld [vmem:[%s1978] ss:$8 sm:$0xf]
      %v4707 = vlaneseq
      %v4708 = vshrl.u32 %v4707, 7
      %v4709 = vsub.s32 0, %v4708
      %v4710 = vrot.slane %v4705, %v4709
      %v4711 = vlaneseq
      %v4712 = vshrl.u32 %v4711, 7
      %v4713 = vsub.s32 1, %v4712
      %v4714 = vrot.slane %v4705, %v4713
      %v4715 = vlaneseq
      %v4716 = vshrl.u32 %v4715, 7
      %v4717 = vsub.s32 2, %v4716
      %v4718 = vrot.slane %v4705, %v4717
      %v4719 = vlaneseq
      %v4720 = vshrl.u32 %v4719, 7
      %v4721 = vsub.s32 3, %v4720
      %v4722 = vrot.slane %v4705, %v4721
      %4723 = vrot.lane.b32.xlu0 %v4710, 17
      %v4724 = vpop.permute.xlu0 %4723
      %4725 = vrot.lane.b32.xlu0 %v4714, 17
      %v4726 = vpop.permute.xlu0 %4725
      %4727 = vrot.lane.b32.xlu0 %v4718, 17
      %v4728 = vpop.permute.xlu0 %4727
      %4729 = vrot.lane.b32.xlu0 %v4722, 17
      %v4730 = vpop.permute.xlu0 %4729
      %v4731 = vsel %vm858, %v4724, %v4726
      %v4732 = vsel %vm858, %v4726, %v4728
      %v4733 = vsel %vm858, %v4728, %v4730
      %v4739 = vmul.f32 %v2429, %v4724
      %v4740 = vmul.f32 %v2430, %v4731
      %v4741 = vmul.f32 %v2431, %v4732
      %v4742 = vmul.f32 %v2447, %v4733
      %v4743 = vmul.f32 %v4730, 0.0
      %v4744 = vmul.f32 %v2432, %v4724
      %v4745 = vmul.f32 %v2433, %v4731
      %v4746 = vmul.f32 %v2434, %v4732
      %v4747 = vmul.f32 %v2448, %v4733
      %4757 = vrot.lane.b32.xlu0 %v4739, 111
      %v4758 = vpop.permute.xlu0 %4757
      %4759 = vrot.lane.b32.xlu0 %v4740, 111
      %v4760 = vpop.permute.xlu0 %4759
      %4761 = vrot.lane.b32.xlu0 %v4741, 111
      %v4762 = vpop.permute.xlu0 %4761
      %4763 = vrot.lane.b32.xlu0 %v4742, 111
      %v4764 = vpop.permute.xlu0 %4763
      %4765 = vrot.lane.b32.xlu0 %v4743, 111
      %v4766 = vpop.permute.xlu0 %4765
      %4767 = vrot.lane.b32.xlu0 %v4744, 111
      %v4768 = vpop.permute.xlu0 %4767
      %4769 = vrot.lane.b32.xlu0 %v4745, 111
      %v4770 = vpop.permute.xlu0 %4769
      %4771 = vrot.lane.b32.xlu0 %v4746, 111
      %v4772 = vpop.permute.xlu0 %4771
      %4773 = vrot.lane.b32.xlu0 %v4747, 111
      %v4774 = vpop.permute.xlu0 %4773
      %v4775 = vsel %vm887, %v4758, %v4760
      %v4776 = vsel %vm887, %v4760, %v4762
      %v4777 = vsel %vm887, %v4762, %v4764
      %v4778 = vsel %vm887, %v4764, %v4766
      %v4779 = vsel %vm887, %v4768, %v4770
      %v4780 = vsel %vm887, %v4770, %v4772
      %v4781 = vsel %vm887, %v4772, %v4774
      %v4782 = vsel %vm887, %v4774, %v4766
      %4791 = vst [vmem:[#allocation2 + $0x640] sm:$0xff] %v4775
      %4792 = vst [vmem:[#allocation2 + $0x648] sm:$0xff] %v4776
      %4793 = vst [vmem:[#allocation2 + $0x650] sm:$0xff] %v4777
      %4794 = vst [vmem:[#allocation2 + $0x658] sm:$0xff] %v4778
      %4795 = vst [vmem:[#allocation2 + $0x660] sm:$0xff] %v4779
      %4796 = vst [vmem:[#allocation2 + $0x668] sm:$0xff] %v4780
      %4797 = vst [vmem:[#allocation2 + $0x670] sm:$0xff] %v4781
      %4798 = vst [vmem:[#allocation2 + $0x678] sm:$0xff] %v4782
      %v4799 = vld [vmem:[%s2045] ss:$8 sm:$0xf]
      %v4801 = vlaneseq
      %v4802 = vshrl.u32 %v4801, 7
      %v4803 = vsub.s32 0, %v4802
      %v4804 = vrot.slane %v4799, %v4803
      %v4805 = vlaneseq
      %v4806 = vshrl.u32 %v4805, 7
      %v4807 = vsub.s32 1, %v4806
      %v4808 = vrot.slane %v4799, %v4807
      %v4809 = vlaneseq
      %v4810 = vshrl.u32 %v4809, 7
      %v4811 = vsub.s32 2, %v4810
      %v4812 = vrot.slane %v4799, %v4811
      %v4813 = vlaneseq
      %v4814 = vshrl.u32 %v4813, 7
      %v4815 = vsub.s32 3, %v4814
      %v4816 = vrot.slane %v4799, %v4815
      %4817 = vrot.lane.b32.xlu0 %v4804, 18
      %v4818 = vpop.permute.xlu0 %4817
      %4819 = vrot.lane.b32.xlu0 %v4808, 18
      %v4820 = vpop.permute.xlu0 %4819
      %4821 = vrot.lane.b32.xlu0 %v4812, 18
      %v4822 = vpop.permute.xlu0 %4821
      %4823 = vrot.lane.b32.xlu0 %v4816, 18
      %v4824 = vpop.permute.xlu0 %4823
      %v4825 = vsel %vm927, %v4818, %v4820
      %v4826 = vsel %vm927, %v4820, %v4822
      %v4827 = vsel %vm927, %v4822, %v4824
      %v4833 = vmul.f32 %v2429, %v4818
      %v4834 = vmul.f32 %v2430, %v4825
      %v4835 = vmul.f32 %v2431, %v4826
      %v4836 = vmul.f32 %v2447, %v4827
      %v4837 = vmul.f32 %v4824, 0.0
      %v4838 = vmul.f32 %v2432, %v4818
      %v4839 = vmul.f32 %v2433, %v4825
      %v4840 = vmul.f32 %v2434, %v4826
      %v4841 = vmul.f32 %v2448, %v4827
      %4851 = vrot.lane.b32.xlu0 %v4833, 110
      %v4852 = vpop.permute.xlu0 %4851
      %4853 = vrot.lane.b32.xlu0 %v4834, 110
      %v4854 = vpop.permute.xlu0 %4853
      %4855 = vrot.lane.b32.xlu0 %v4835, 110
      %v4856 = vpop.permute.xlu0 %4855
      %4857 = vrot.lane.b32.xlu0 %v4836, 110
      %v4858 = vpop.permute.xlu0 %4857
      %4859 = vrot.lane.b32.xlu0 %v4837, 110
      %v4860 = vpop.permute.xlu0 %4859
      %4861 = vrot.lane.b32.xlu0 %v4838, 110
      %v4862 = vpop.permute.xlu0 %4861
      %4863 = vrot.lane.b32.xlu0 %v4839, 110
      %v4864 = vpop.permute.xlu0 %4863
      %4865 = vrot.lane.b32.xlu0 %v4840, 110
      %v4866 = vpop.permute.xlu0 %4865
      %4867 = vrot.lane.b32.xlu0 %v4841, 110
      %v4868 = vpop.permute.xlu0 %4867
      %v4869 = vsel %vm956, %v4852, %v4854
      %v4870 = vsel %vm956, %v4854, %v4856
      %v4871 = vsel %vm956, %v4856, %v4858
      %v4872 = vsel %vm956, %v4858, %v4860
      %v4873 = vsel %vm956, %v4862, %v4864
      %v4874 = vsel %vm956, %v4864, %v4866
      %v4875 = vsel %vm956, %v4866, %v4868
      %v4876 = vsel %vm956, %v4868, %v4860
      %4885 = vst [vmem:[#allocation2 + $0x680] sm:$0xff] %v4869
      %4886 = vst [vmem:[#allocation2 + $0x688] sm:$0xff] %v4870
      %4887 = vst [vmem:[#allocation2 + $0x690] sm:$0xff] %v4871
      %4888 = vst [vmem:[#allocation2 + $0x698] sm:$0xff] %v4872
      %4889 = vst [vmem:[#allocation2 + $0x6a0] sm:$0xff] %v4873
      %4890 = vst [vmem:[#allocation2 + $0x6a8] sm:$0xff] %v4874
      %4891 = vst [vmem:[#allocation2 + $0x6b0] sm:$0xff] %v4875
      %4892 = vst [vmem:[#allocation2 + $0x6b8] sm:$0xff] %v4876
      %v4893 = vld [vmem:[#allocation2] sm:$0xff]
      %v4894 = vld [vmem:[#allocation2 + $0x8] sm:$0xff]
      %v4895 = vld [vmem:[#allocation2 + $0x10] sm:$0xff]
      %v4896 = vld [vmem:[#allocation2 + $0x18] sm:$0xff]
      %v4897 = vld [vmem:[#allocation2 + $0x20] sm:$0xff]
      %v4898 = vld [vmem:[#allocation2 + $0x28] sm:$0xff]
      %v4899 = vld [vmem:[#allocation2 + $0x30] sm:$0xff]
      %v4900 = vld [vmem:[#allocation2 + $0x38] sm:$0xff]
      %v4901 = vld [vmem:[#allocation2 + $0x40] sm:$0xff]
      %v4902 = vld [vmem:[#allocation2 + $0x48] sm:$0xff]
      %v4903 = vld [vmem:[#allocation2 + $0x50] sm:$0xff]
      %v4904 = vld [vmem:[#allocation2 + $0x58] sm:$0xff]
      %v4905 = vld [vmem:[#allocation2 + $0x60] sm:$0xff]
      %v4906 = vld [vmem:[#allocation2 + $0x68] sm:$0xff]
      %v4907 = vld [vmem:[#allocation2 + $0x70] sm:$0xff]
      %v4908 = vld [vmem:[#allocation2 + $0x78] sm:$0xff]
      %v4909 = vld [vmem:[#allocation2 + $0x80] sm:$0xff]
      %v4910 = vld [vmem:[#allocation2 + $0x88] sm:$0xff]
      %v4911 = vld [vmem:[#allocation2 + $0x90] sm:$0xff]
      %v4912 = vld [vmem:[#allocation2 + $0x98] sm:$0xff]
      %v4913 = vld [vmem:[#allocation2 + $0xa0] sm:$0xff]
      %v4914 = vld [vmem:[#allocation2 + $0xa8] sm:$0xff]
      %v4915 = vld [vmem:[#allocation2 + $0xb0] sm:$0xff]
      %v4916 = vld [vmem:[#allocation2 + $0xb8] sm:$0xff]
      %v4917 = vld [vmem:[#allocation2 + $0xc0] sm:$0xff]
      %v4918 = vld [vmem:[#allocation2 + $0xc8] sm:$0xff]
      %v4919 = vld [vmem:[#allocation2 + $0xd0] sm:$0xff]
      %v4920 = vld [vmem:[#allocation2 + $0xd8] sm:$0xff]
      %v4921 = vld [vmem:[#allocation2 + $0xe0] sm:$0xff]
      %v4922 = vld [vmem:[#allocation2 + $0xe8] sm:$0xff]
      %v4923 = vld [vmem:[#allocation2 + $0xf0] sm:$0xff]
      %v4924 = vld [vmem:[#allocation2 + $0xf8] sm:$0xff]
      %v4925 = vld [vmem:[#allocation2 + $0x100] sm:$0xff]
      %v4926 = vld [vmem:[#allocation2 + $0x108] sm:$0xff]
      %v4927 = vld [vmem:[#allocation2 + $0x110] sm:$0xff]
      %v4928 = vld [vmem:[#allocation2 + $0x118] sm:$0xff]
      %v4929 = vld [vmem:[#allocation2 + $0x120] sm:$0xff]
      %v4930 = vld [vmem:[#allocation2 + $0x128] sm:$0xff]
      %v4931 = vld [vmem:[#allocation2 + $0x130] sm:$0xff]
      %v4932 = vld [vmem:[#allocation2 + $0x138] sm:$0xff]
      %v4933 = vld [vmem:[#allocation2 + $0x140] sm:$0xff]
      %v4934 = vld [vmem:[#allocation2 + $0x148] sm:$0xff]
      %v4935 = vld [vmem:[#allocation2 + $0x150] sm:$0xff]
      %v4936 = vld [vmem:[#allocation2 + $0x158] sm:$0xff]
      %v4937 = vld [vmem:[#allocation2 + $0x160] sm:$0xff]
      %v4938 = vld [vmem:[#allocation2 + $0x168] sm:$0xff]
      %v4939 = vld [vmem:[#allocation2 + $0x170] sm:$0xff]
      %v4940 = vld [vmem:[#allocation2 + $0x178] sm:$0xff]
      %v4941 = vld [vmem:[#allocation2 + $0x180] sm:$0xff]
      %v4942 = vld [vmem:[#allocation2 + $0x188] sm:$0xff]
      %v4943 = vld [vmem:[#allocation2 + $0x190] sm:$0xff]
      %v4944 = vld [vmem:[#allocation2 + $0x198] sm:$0xff]
      %v4945 = vld [vmem:[#allocation2 + $0x1a0] sm:$0xff]
      %v4946 = vld [vmem:[#allocation2 + $0x1a8] sm:$0xff]
      %v4947 = vld [vmem:[#allocation2 + $0x1b0] sm:$0xff]
      %v4948 = vld [vmem:[#allocation2 + $0x1b8] sm:$0xff]
      %v4949 = vld [vmem:[#allocation2 + $0x1c0] sm:$0xff]
      %v4950 = vld [vmem:[#allocation2 + $0x1c8] sm:$0xff]
      %v4951 = vld [vmem:[#allocation2 + $0x1d0] sm:$0xff]
      %v4952 = vld [vmem:[#allocation2 + $0x1d8] sm:$0xff]
      %v4953 = vld [vmem:[#allocation2 + $0x1e0] sm:$0xff]
      %v4954 = vld [vmem:[#allocation2 + $0x1e8] sm:$0xff]
      %v4955 = vld [vmem:[#allocation2 + $0x1f0] sm:$0xff]
      %v4956 = vld [vmem:[#allocation2 + $0x1f8] sm:$0xff]
      %v4957 = vld [vmem:[#allocation2 + $0x200] sm:$0xff]
      %v4958 = vld [vmem:[#allocation2 + $0x208] sm:$0xff]
      %v4959 = vld [vmem:[#allocation2 + $0x210] sm:$0xff]
      %v4960 = vld [vmem:[#allocation2 + $0x218] sm:$0xff]
      %v4961 = vld [vmem:[#allocation2 + $0x220] sm:$0xff]
      %v4962 = vld [vmem:[#allocation2 + $0x228] sm:$0xff]
      %v4963 = vld [vmem:[#allocation2 + $0x230] sm:$0xff]
      %v4964 = vld [vmem:[#allocation2 + $0x238] sm:$0xff]
      %v4965 = vld [vmem:[#allocation2 + $0x240] sm:$0xff]
      %v4966 = vld [vmem:[#allocation2 + $0x248] sm:$0xff]
      %v4967 = vld [vmem:[#allocation2 + $0x250] sm:$0xff]
      %v4968 = vld [vmem:[#allocation2 + $0x258] sm:$0xff]
      %v4969 = vld [vmem:[#allocation2 + $0x260] sm:$0xff]
      %v4970 = vld [vmem:[#allocation2 + $0x268] sm:$0xff]
      %v4971 = vld [vmem:[#allocation2 + $0x270] sm:$0xff]
      %v4972 = vld [vmem:[#allocation2 + $0x278] sm:$0xff]
      %v4973 = vld [vmem:[#allocation2 + $0x280] sm:$0xff]
      %v4974 = vld [vmem:[#allocation2 + $0x288] sm:$0xff]
      %v4975 = vld [vmem:[#allocation2 + $0x290] sm:$0xff]
      %v4976 = vld [vmem:[#allocation2 + $0x298] sm:$0xff]
      %v4977 = vld [vmem:[#allocation2 + $0x2a0] sm:$0xff]
      %v4978 = vld [vmem:[#allocation2 + $0x2a8] sm:$0xff]
      %v4979 = vld [vmem:[#allocation2 + $0x2b0] sm:$0xff]
      %v4980 = vld [vmem:[#allocation2 + $0x2b8] sm:$0xff]
      %v4981 = vld [vmem:[#allocation2 + $0x2c0] sm:$0xff]
      %v4982 = vld [vmem:[#allocation2 + $0x2c8] sm:$0xff]
      %v4983 = vld [vmem:[#allocation2 + $0x2d0] sm:$0xff]
      %v4984 = vld [vmem:[#allocation2 + $0x2d8] sm:$0xff]
      %v4985 = vld [vmem:[#allocation2 + $0x2e0] sm:$0xff]
      %v4986 = vld [vmem:[#allocation2 + $0x2e8] sm:$0xff]
      %v4987 = vld [vmem:[#allocation2 + $0x2f0] sm:$0xff]
      %v4988 = vld [vmem:[#allocation2 + $0x2f8] sm:$0xff]
      %v4989 = vld [vmem:[#allocation2 + $0x300] sm:$0xff]
      %v4990 = vld [vmem:[#allocation2 + $0x308] sm:$0xff]
      %v4991 = vld [vmem:[#allocation2 + $0x310] sm:$0xff]
      %v4992 = vld [vmem:[#allocation2 + $0x318] sm:$0xff]
      %v4993 = vld [vmem:[#allocation2 + $0x320] sm:$0xff]
      %v4994 = vld [vmem:[#allocation2 + $0x328] sm:$0xff]
      %v4995 = vld [vmem:[#allocation2 + $0x330] sm:$0xff]
      %v4996 = vld [vmem:[#allocation2 + $0x338] sm:$0xff]
      %v4997 = vld [vmem:[#allocation2 + $0x340] sm:$0xff]
      %v4998 = vld [vmem:[#allocation2 + $0x348] sm:$0xff]
      %v4999 = vld [vmem:[#allocation2 + $0x350] sm:$0xff]
      %v5000 = vld [vmem:[#allocation2 + $0x358] sm:$0xff]
      %v5001 = vld [vmem:[#allocation2 + $0x360] sm:$0xff]
      %v5002 = vld [vmem:[#allocation2 + $0x368] sm:$0xff]
      %v5003 = vld [vmem:[#allocation2 + $0x370] sm:$0xff]
      %v5004 = vld [vmem:[#allocation2 + $0x378] sm:$0xff]
      %v5005 = vld [vmem:[#allocation2 + $0x380] sm:$0xff]
      %v5006 = vld [vmem:[#allocation2 + $0x388] sm:$0xff]
      %v5007 = vld [vmem:[#allocation2 + $0x390] sm:$0xff]
      %v5008 = vld [vmem:[#allocation2 + $0x398] sm:$0xff]
      %v5009 = vld [vmem:[#allocation2 + $0x3a0] sm:$0xff]
      %v5010 = vld [vmem:[#allocation2 + $0x3a8] sm:$0xff]
      %v5011 = vld [vmem:[#allocation2 + $0x3b0] sm:$0xff]
      %v5012 = vld [vmem:[#allocation2 + $0x3b8] sm:$0xff]
      %v5013 = vld [vmem:[#allocation2 + $0x3c0] sm:$0xff]
      %v5014 = vld [vmem:[#allocation2 + $0x3c8] sm:$0xff]
      %v5015 = vld [vmem:[#allocation2 + $0x3d0] sm:$0xff]
      %v5016 = vld [vmem:[#allocation2 + $0x3d8] sm:$0xff]
      %v5017 = vld [vmem:[#allocation2 + $0x3e0] sm:$0xff]
      %v5018 = vld [vmem:[#allocation2 + $0x3e8] sm:$0xff]
      %v5019 = vld [vmem:[#allocation2 + $0x3f0] sm:$0xff]
      %v5020 = vld [vmem:[#allocation2 + $0x3f8] sm:$0xff]
      %v5021 = vld [vmem:[#allocation2 + $0x400] sm:$0xff]
      %v5022 = vld [vmem:[#allocation2 + $0x408] sm:$0xff]
      %v5023 = vld [vmem:[#allocation2 + $0x410] sm:$0xff]
      %v5024 = vld [vmem:[#allocation2 + $0x418] sm:$0xff]
      %v5025 = vld [vmem:[#allocation2 + $0x420] sm:$0xff]
      %v5026 = vld [vmem:[#allocation2 + $0x428] sm:$0xff]
      %v5027 = vld [vmem:[#allocation2 + $0x430] sm:$0xff]
      %v5028 = vld [vmem:[#allocation2 + $0x438] sm:$0xff]
      %v5029 = vld [vmem:[#allocation2 + $0x440] sm:$0xff]
      %v5030 = vld [vmem:[#allocation2 + $0x448] sm:$0xff]
      %v5031 = vld [vmem:[#allocation2 + $0x450] sm:$0xff]
      %v5032 = vld [vmem:[#allocation2 + $0x458] sm:$0xff]
      %v5033 = vld [vmem:[#allocation2 + $0x460] sm:$0xff]
      %v5034 = vld [vmem:[#allocation2 + $0x468] sm:$0xff]
      %v5035 = vld [vmem:[#allocation2 + $0x470] sm:$0xff]
      %v5036 = vld [vmem:[#allocation2 + $0x478] sm:$0xff]
      %v5037 = vld [vmem:[#allocation2 + $0x480] sm:$0xff]
      %v5038 = vld [vmem:[#allocation2 + $0x488] sm:$0xff]
      %v5039 = vld [vmem:[#allocation2 + $0x490] sm:$0xff]
      %v5040 = vld [vmem:[#allocation2 + $0x498] sm:$0xff]
      %v5041 = vld [vmem:[#allocation2 + $0x4a0] sm:$0xff]
      %v5042 = vld [vmem:[#allocation2 + $0x4a8] sm:$0xff]
      %v5043 = vld [vmem:[#allocation2 + $0x4b0] sm:$0xff]
      %v5044 = vld [vmem:[#allocation2 + $0x4b8] sm:$0xff]
      %v5045 = vld [vmem:[#allocation2 + $0x4c0] sm:$0xff]
      %v5046 = vld [vmem:[#allocation2 + $0x4c8] sm:$0xff]
      %v5047 = vld [vmem:[#allocation2 + $0x4d0] sm:$0xff]
      %v5048 = vld [vmem:[#allocation2 + $0x4d8] sm:$0xff]
      %v5049 = vld [vmem:[#allocation2 + $0x4e0] sm:$0xff]
      %v5050 = vld [vmem:[#allocation2 + $0x4e8] sm:$0xff]
      %v5051 = vld [vmem:[#allocation2 + $0x4f0] sm:$0xff]
      %v5052 = vld [vmem:[#allocation2 + $0x4f8] sm:$0xff]
      %v5053 = vld [vmem:[#allocation2 + $0x500] sm:$0xff]
      %v5054 = vld [vmem:[#allocation2 + $0x508] sm:$0xff]
      %v5055 = vld [vmem:[#allocation2 + $0x510] sm:$0xff]
      %v5056 = vld [vmem:[#allocation2 + $0x518] sm:$0xff]
      %v5057 = vld [vmem:[#allocation2 + $0x520] sm:$0xff]
      %v5058 = vld [vmem:[#allocation2 + $0x528] sm:$0xff]
      %v5059 = vld [vmem:[#allocation2 + $0x530] sm:$0xff]
      %v5060 = vld [vmem:[#allocation2 + $0x538] sm:$0xff]
      %v5061 = vld [vmem:[#allocation2 + $0x540] sm:$0xff]
      %v5062 = vld [vmem:[#allocation2 + $0x548] sm:$0xff]
      %v5063 = vld [vmem:[#allocation2 + $0x550] sm:$0xff]
      %v5064 = vld [vmem:[#allocation2 + $0x558] sm:$0xff]
      %v5065 = vld [vmem:[#allocation2 + $0x560] sm:$0xff]
      %v5066 = vld [vmem:[#allocation2 + $0x568] sm:$0xff]
      %v5067 = vld [vmem:[#allocation2 + $0x570] sm:$0xff]
      %v5068 = vld [vmem:[#allocation2 + $0x578] sm:$0xff]
      %v5069 = vld [vmem:[#allocation2 + $0x580] sm:$0xff]
      %v5070 = vld [vmem:[#allocation2 + $0x588] sm:$0xff]
      %v5071 = vld [vmem:[#allocation2 + $0x590] sm:$0xff]
      %v5072 = vld [vmem:[#allocation2 + $0x598] sm:$0xff]
      %v5073 = vld [vmem:[#allocation2 + $0x5a0] sm:$0xff]
      %v5074 = vld [vmem:[#allocation2 + $0x5a8] sm:$0xff]
      %v5075 = vld [vmem:[#allocation2 + $0x5b0] sm:$0xff]
      %v5076 = vld [vmem:[#allocation2 + $0x5b8] sm:$0xff]
      %v5077 = vld [vmem:[#allocation2 + $0x5c0] sm:$0xff]
      %v5078 = vld [vmem:[#allocation2 + $0x5c8] sm:$0xff]
      %v5079 = vld [vmem:[#allocation2 + $0x5d0] sm:$0xff]
      %v5080 = vld [vmem:[#allocation2 + $0x5d8] sm:$0xff]
      %v5081 = vld [vmem:[#allocation2 + $0x5e0] sm:$0xff]
      %v5082 = vld [vmem:[#allocation2 + $0x5e8] sm:$0xff]
      %v5083 = vld [vmem:[#allocation2 + $0x5f0] sm:$0xff]
      %v5084 = vld [vmem:[#allocation2 + $0x5f8] sm:$0xff]
      %v5085 = vld [vmem:[#allocation2 + $0x600] sm:$0xff]
      %v5086 = vld [vmem:[#allocation2 + $0x608] sm:$0xff]
      %v5087 = vld [vmem:[#allocation2 + $0x610] sm:$0xff]
      %v5088 = vld [vmem:[#allocation2 + $0x618] sm:$0xff]
      %v5089 = vld [vmem:[#allocation2 + $0x620] sm:$0xff]
      %v5090 = vld [vmem:[#allocation2 + $0x628] sm:$0xff]
      %v5091 = vld [vmem:[#allocation2 + $0x630] sm:$0xff]
      %v5092 = vld [vmem:[#allocation2 + $0x638] sm:$0xff]
      %v5093 = vld [vmem:[#allocation2 + $0x640] sm:$0xff]
      %v5094 = vld [vmem:[#allocation2 + $0x648] sm:$0xff]
      %v5095 = vld [vmem:[#allocation2 + $0x650] sm:$0xff]
      %v5096 = vld [vmem:[#allocation2 + $0x658] sm:$0xff]
      %v5097 = vld [vmem:[#allocation2 + $0x660] sm:$0xff]
      %v5098 = vld [vmem:[#allocation2 + $0x668] sm:$0xff]
      %v5099 = vld [vmem:[#allocation2 + $0x670] sm:$0xff]
      %v5100 = vld [vmem:[#allocation2 + $0x678] sm:$0xff]
      %v5101 = vld [vmem:[#allocation2 + $0x680] sm:$0xff]
      %v5102 = vld [vmem:[#allocation2 + $0x688] sm:$0xff]
      %v5103 = vld [vmem:[#allocation2 + $0x690] sm:$0xff]
      %v5104 = vld [vmem:[#allocation2 + $0x698] sm:$0xff]
      %v5105 = vld [vmem:[#allocation2 + $0x6a0] sm:$0xff]
      %v5106 = vld [vmem:[#allocation2 + $0x6a8] sm:$0xff]
      %v5107 = vld [vmem:[#allocation2 + $0x6b0] sm:$0xff]
      %v5108 = vld [vmem:[#allocation2 + $0x6b8] sm:$0xff]
      %v5109 = vld [vmem:[%s4] sm:$0xff]
      %v5110 = vld [vmem:[%s4 + $0x8] sm:$0xff]
      %v5111 = vld [vmem:[%s4 + $0x10] sm:$0xff]
      %v5112 = vld [vmem:[%s4 + $0x18] sm:$0xff]
      %v5113 = vld [vmem:[%s4 + $0x20] sm:$0xff]
      %v5114 = vld [vmem:[%s4 + $0x28] sm:$0xff]
      %v5115 = vld [vmem:[%s4 + $0x30] sm:$0xff]
      %v5116 = vld [vmem:[%s4 + $0x38] sm:$0xff]
      %v5117 = vld [vmem:[%s4 + $0x40] sm:$0xff]
      %v5118 = vld [vmem:[%s4 + $0x48] sm:$0xff]
      %v5119 = vld [vmem:[%s4 + $0x50] sm:$0xff]
      %v5120 = vld [vmem:[%s4 + $0x58] sm:$0xff]
      %v5121 = vld [vmem:[%s4 + $0x60] sm:$0xff]
      %v5122 = vld [vmem:[%s4 + $0x68] sm:$0xff]
      %v5123 = vld [vmem:[%s4 + $0x70] sm:$0xff]
      %v5124 = vld [vmem:[%s4 + $0x78] sm:$0xff]
      %v5125 = vld [vmem:[%s5] sm:$0xff]
      %v5126 = vld [vmem:[%s5 + $0x8] sm:$0xff]
      %v5127 = vld [vmem:[%s5 + $0x10] sm:$0xff]
      %v5128 = vld [vmem:[%s5 + $0x18] sm:$0xff]
      %5130 = vset.pattern.permute.xlu0 0
      %5131 = vperm.xlu0 %5130, %v5125
      %v5132 = vpop.permute.xlu0 %5131
      %5135 = vset.pattern.permute.xlu0 0
      %5136 = vperm.xlu0 %5135, %v5126
      %v5137 = vpop.permute.xlu0 %5136
      %5140 = vset.pattern.permute.xlu0 0
      %5141 = vperm.xlu0 %5140, %v5127
      %v5142 = vpop.permute.xlu0 %5141
      %5145 = vset.pattern.permute.xlu0 0
      %5146 = vperm.xlu0 %5145, %v5128
      %v5147 = vpop.permute.xlu0 %5146
      %v5150 = vsel %vm1394, %v5112, 0
      %v5153 = vsel %vm1394, %v5116, 0
      %v5156 = vsel %vm1394, %v5120, 0
      %v5159 = vsel %vm1394, %v5124, 0
      %5161 = vmatprep.subr.mxu0 %v4894
      %5162 = vmatpush1.msra.mxu0 %v4893
      %5163 = vmatprep.subr.mxu0 %v4898
      %5164 = vmatpush1.msra.mxu0 %v4897
      %5165 = vmatprep.subr.mxu0 %v4902
      %5166 = vmatpush1.msra.mxu0 %v4901
      %5167 = vmatprep.subr.mxu0 %v4906
      %5168 = vmatpush1.msra.mxu0 %v4905
      %5169 = vmatprep.subr.mxu0 %v4910
      %5170 = vmatpush1.msra.mxu0 %v4909
      %5171 = vmatprep.subr.mxu0 %v4914
      %5172 = vmatpush1.msra.mxu0 %v4913
      %5173 = vmatprep.subr.mxu0 %v4918
      %5174 = vmatpush1.msra.mxu0 %v4917
      %5175 = vmatprep.subr.mxu0 %v4922
      %5176 = vmatpush1.msra.mxu0 %v4921
      %5177 = vmatprep.subr.mxu0 %v4926
      %5178 = vmatpush1.msra.mxu0 %v4925
      %5179 = vmatprep.subr.mxu0 %v4930
      %5180 = vmatpush1.msra.mxu0 %v4929
      %5181 = vmatprep.subr.mxu0 %v4934
      %5182 = vmatpush1.msra.mxu0 %v4933
      %5183 = vmatprep.subr.mxu0 %v4938
      %5184 = vmatpush1.msra.mxu0 %v4937
      %5185 = vmatprep.subr.mxu0 %v4942
      %5186 = vmatpush1.msra.mxu0 %v4941
      %5187 = vmatprep.subr.mxu0 %v4946
      %5188 = vmatpush1.msra.mxu0 %v4945
      %5189 = vmatprep.subr.mxu0 %v4950
      %5190 = vmatpush1.msra.mxu0 %v4949
      %5191 = vmatprep.subr.mxu0 %v4954
      %5192 = vmatpush1.msra.mxu0 %v4953
      %5193 = vmatprep.subr.mxu0 %v4958
      %5194 = vmatpush1.msra.mxu0 %v4957
      %5195 = vmatprep.subr.mxu0 %v4962
      %5196 = vmatpush1.msra.mxu0 %v4961
      %5197 = vmatprep.subr.mxu0 %v4966
      %5198 = vmatpush1.msra.mxu0 %v4965
      %5199 = vmatprep.subr.mxu0 %v4970
      %5200 = vmatpush1.msra.mxu0 %v4969
      %5201 = vmatprep.subr.mxu0 %v4974
      %5202 = vmatpush1.msra.mxu0 %v4973
      %5203 = vmatprep.subr.mxu0 %v4978
      %5204 = vmatpush1.msra.mxu0 %v4977
      %5205 = vmatprep.subr.mxu0 %v4982
      %5206 = vmatpush1.msra.mxu0 %v4981
      %5207 = vmatprep.subr.mxu0 %v4986
      %5208 = vmatpush1.msra.mxu0 %v4985
      %5209 = vmatprep.subr.mxu0 %v4990
      %5210 = vmatpush1.msra.mxu0 %v4989
      %5211 = vmatprep.subr.mxu0 %v4994
      %5212 = vmatpush1.msra.mxu0 %v4993
      %5213 = vmatprep.subr.mxu0 %v4998
      %5214 = vmatpush1.msra.mxu0 %v4997
      %5215 = vmatprep.subr.mxu0 %v5002
      %5216 = vmatpush1.msra.mxu0 %v5001
      %5217 = vmatprep.subr.mxu0 %v5006
      %5218 = vmatpush1.msra.mxu0 %v5005
      %5219 = vmatprep.subr.mxu0 %v5010
      %5220 = vmatpush1.msra.mxu0 %v5009
      %5221 = vmatprep.subr.mxu0 %v5014
      %5222 = vmatpush1.msra.mxu0 %v5013
      %5223 = vmatprep.subr.mxu0 %v5018
      %5224 = vmatpush1.msra.mxu0 %v5017
      %5225 = vmatprep.mubr.f32.mxu0 %v5110
      %5226 = vmatmul.mubr.f32.gmra.mrb[0].mxu0 %v5109
      %v5227 = vpop.f32.mrb[0].mxu0
      %v5228 = vadd.f32 %v5132, %v5227
      %v5229 = vpop.f32.mrb[0].mxu0
      %v5230 = vadd.f32 %v5132, %v5229
      %5231 = vmatprep.mubr.f32.mxu0 %v5114
      %5232 = vmatmul.mubr.f32.gmra.mrb[0].mxu0 %v5113
      %v5233 = vpop.f32.mrb[0].mxu0
      %v5234 = vadd.f32 %v5137, %v5233
      %v5235 = vpop.f32.mrb[0].mxu0
      %v5236 = vadd.f32 %v5137, %v5235
      %5237 = vmatprep.mubr.f32.mxu0 %v5118
      %5238 = vmatmul.mubr.f32.gmra.mrb[0].mxu0 %v5117
      %v5239 = vpop.f32.mrb[0].mxu0
      %v5240 = vadd.f32 %v5142, %v5239
      %v5241 = vpop.f32.mrb[0].mxu0
      %v5242 = vadd.f32 %v5142, %v5241
      %5243 = vmatprep.mubr.f32.mxu0 %v5122
      %5244 = vmatmul.mubr.f32.gmra.mrb[0].mxu0 %v5121
      %v5245 = vpop.f32.mrb[0].mxu0
      %v5246 = vadd.f32 %v5147, %v5245
      %v5247 = vpop.f32.mrb[0].mxu0
      %v5248 = vadd.f32 %v5147, %v5247
      %5249 = vdwg.mxu0
      %5250 = vmatprep.subr.mxu0 %v5022
      %5251 = vmatpush1.msra.mxu0 %v5021
      %5252 = vmatprep.subr.mxu0 %v5026
      %5253 = vmatpush1.msra.mxu0 %v5025
      %5254 = vmatprep.subr.mxu0 %v5030
      %5255 = vmatpush1.msra.mxu0 %v5029
      %5256 = vmatprep.subr.mxu0 %v5034
      %5257 = vmatpush1.msra.mxu0 %v5033
      %5258 = vmatprep.subr.mxu0 %v5038
      %5259 = vmatpush1.msra.mxu0 %v5037
      %5260 = vmatprep.subr.mxu0 %v5042
      %5261 = vmatpush1.msra.mxu0 %v5041
      %5262 = vmatprep.subr.mxu0 %v5046
      %5263 = vmatpush1.msra.mxu0 %v5045
      %5264 = vmatprep.subr.mxu0 %v5050
      %5265 = vmatpush1.msra.mxu0 %v5049
      %5266 = vmatprep.subr.mxu0 %v5054
      %5267 = vmatpush1.msra.mxu0 %v5053
      %5268 = vmatprep.subr.mxu0 %v5058
      %5269 = vmatpush1.msra.mxu0 %v5057
      %5270 = vmatprep.subr.mxu0 %v5062
      %5271 = vmatpush1.msra.mxu0 %v5061
      %5272 = vmatprep.subr.mxu0 %v5066
      %5273 = vmatpush1.msra.mxu0 %v5065
      %5274 = vmatprep.subr.mxu0 %v5070
      %5275 = vmatpush1.msra.mxu0 %v5069
      %5276 = vmatprep.subr.mxu0 %v5074
      %5277 = vmatpush1.msra.mxu0 %v5073
      %5278 = vmatprep.subr.mxu0 %v5078
      %5279 = vmatpush1.msra.mxu0 %v5077
      %5280 = vmatprep.subr.mxu0 %v5082
      %5281 = vmatpush1.msra.mxu0 %v5081
      %5282 = vmatprep.subr.mxu0 %v5086
      %5283 = vmatpush1.msra.mxu0 %v5085
      %5284 = vmatprep.subr.mxu0 %v5090
      %5285 = vmatpush1.msra.mxu0 %v5089
      %5286 = vmatprep.subr.mxu0 %v5094
      %5287 = vmatpush1.msra.mxu0 %v5093
      %5288 = vmatprep.subr.mxu0 %v5098
      %5289 = vmatpush1.msra.mxu0 %v5097
      %5290 = vmatprep.subr.mxu0 %v5102
      %5291 = vmatpush1.msra.mxu0 %v5101
      %5292 = vmatprep.subr.mxu0 %v5106
      %5293 = vmatpush1.msra.mxu0 %v5105
      %5294 = vmatprep.subr.mxu0 0.0
      %5295 = vmatpush1.msra.mxu0 0.0
      %5296 = vmatprep.subr.mxu0 0.0
      %5297 = vmatpush1.msra.mxu0 0.0
      %5298 = vmatprep.subr.mxu0 0.0
      %5299 = vmatpush1.msra.mxu0 0.0
      %5300 = vmatprep.subr.mxu0 0.0
      %5301 = vmatpush1.msra.mxu0 0.0
      %5302 = vmatprep.subr.mxu0 0.0
      %5303 = vmatpush1.msra.mxu0 0.0
      %5304 = vmatprep.subr.mxu0 0.0
      %5305 = vmatpush1.msra.mxu0 0.0
      %5306 = vmatprep.subr.mxu0 0.0
      %5307 = vmatpush1.msra.mxu0 0.0
      %5308 = vmatprep.subr.mxu0 0.0
      %5309 = vmatpush1.msra.mxu0 0.0
      %5310 = vmatprep.subr.mxu0 0.0
      %5311 = vmatpush1.msra.mxu0 0.0
      %5312 = vmatprep.subr.mxu0 0.0
      %5313 = vmatpush1.msra.mxu0 0.0
      %5314 = vmatprep.mubr.f32.mxu0 %v5150
      %5315 = vmatmul.mubr.f32.gmra.mrb[0].mxu0 %v5111
      %v5316 = vpop.f32.mrb[0].mxu0
      %v5317 = vadd.f32 %v5228, %v5316
      %v5318 = vpop.f32.mrb[0].mxu0
      %v5319 = vadd.f32 %v5230, %v5318
      %5320 = vmatprep.mubr.f32.mxu0 %v5153
      %5321 = vmatmul.mubr.f32.gmra.mrb[0].mxu0 %v5115
      %v5322 = vpop.f32.mrb[0].mxu0
      %v5323 = vadd.f32 %v5234, %v5322
      %v5324 = vpop.f32.mrb[0].mxu0
      %v5325 = vadd.f32 %v5236, %v5324
      %5326 = vmatprep.mubr.f32.mxu0 %v5156
      %5327 = vmatmul.mubr.f32.gmra.mrb[0].mxu0 %v5119
      %v5328 = vpop.f32.mrb[0].mxu0
      %v5329 = vadd.f32 %v5240, %v5328
      %v5330 = vpop.f32.mrb[0].mxu0
      %v5331 = vadd.f32 %v5242, %v5330
      %5332 = vmatprep.mubr.f32.mxu0 %v5159
      %5333 = vmatmul.mubr.f32.gmra.mrb[0].mxu0 %v5123
      %v5334 = vpop.f32.mrb[0].mxu0
      %v5335 = vadd.f32 %v5246, %v5334
      %v5336 = vpop.f32.mrb[0].mxu0
      %v5337 = vadd.f32 %v5248, %v5336
      %5338 = vdwg.mxu0
      %5339 = vmatprep.subr.mxu0 %v4896
      %5340 = vmatpush1.msra.mxu0 %v4895
      %5341 = vmatprep.subr.mxu0 %v4900
      %5342 = vmatpush1.msra.mxu0 %v4899
      %5343 = vmatprep.subr.mxu0 %v4904
      %5344 = vmatpush1.msra.mxu0 %v4903
      %5345 = vmatprep.subr.mxu0 %v4908
      %5346 = vmatpush1.msra.mxu0 %v4907
      %5347 = vmatprep.subr.mxu0 %v4912
      %5348 = vmatpush1.msra.mxu0 %v4911
      %5349 = vmatprep.subr.mxu0 %v4916
      %5350 = vmatpush1.msra.mxu0 %v4915
      %5351 = vmatprep.subr.mxu0 %v4920
      %5352 = vmatpush1.msra.mxu0 %v4919
      %5353 = vmatprep.subr.mxu0 %v4924
      %5354 = vmatpush1.msra.mxu0 %v4923
      %5355 = vmatprep.subr.mxu0 %v4928
      %5356 = vmatpush1.msra.mxu0 %v4927
      %5357 = vmatprep.subr.mxu0 %v4932
      %5358 = vmatpush1.msra.mxu0 %v4931
      %5359 = vmatprep.subr.mxu0 %v4936
      %5360 = vmatpush1.msra.mxu0 %v4935
      %5361 = vmatprep.subr.mxu0 %v4940
      %5362 = vmatpush1.msra.mxu0 %v4939
      %5363 = vmatprep.subr.mxu0 %v4944
      %5364 = vmatpush1.msra.mxu0 %v4943
      %5365 = vmatprep.subr.mxu0 %v4948
      %5366 = vmatpush1.msra.mxu0 %v4947
      %5367 = vmatprep.subr.mxu0 %v4952
      %5368 = vmatpush1.msra.mxu0 %v4951
      %5369 = vmatprep.subr.mxu0 %v4956
      %5370 = vmatpush1.msra.mxu0 %v4955
      %5371 = vmatprep.subr.mxu0 %v4960
      %5372 = vmatpush1.msra.mxu0 %v4959
      %5373 = vmatprep.subr.mxu0 %v4964
      %5374 = vmatpush1.msra.mxu0 %v4963
      %5375 = vmatprep.subr.mxu0 %v4968
      %5376 = vmatpush1.msra.mxu0 %v4967
      %5377 = vmatprep.subr.mxu0 %v4972
      %5378 = vmatpush1.msra.mxu0 %v4971
      %5379 = vmatprep.subr.mxu0 %v4976
      %5380 = vmatpush1.msra.mxu0 %v4975
      %5381 = vmatprep.subr.mxu0 %v4980
      %5382 = vmatpush1.msra.mxu0 %v4979
      %5383 = vmatprep.subr.mxu0 %v4984
      %5384 = vmatpush1.msra.mxu0 %v4983
      %5385 = vmatprep.subr.mxu0 %v4988
      %5386 = vmatpush1.msra.mxu0 %v4987
      %5387 = vmatprep.subr.mxu0 %v4992
      %5388 = vmatpush1.msra.mxu0 %v4991
      %5389 = vmatprep.subr.mxu0 %v4996
      %5390 = vmatpush1.msra.mxu0 %v4995
      %5391 = vmatprep.subr.mxu0 %v5000
      %5392 = vmatpush1.msra.mxu0 %v4999
      %5393 = vmatprep.subr.mxu0 %v5004
      %5394 = vmatpush1.msra.mxu0 %v5003
      %5395 = vmatprep.subr.mxu0 %v5008
      %5396 = vmatpush1.msra.mxu0 %v5007
      %5397 = vmatprep.subr.mxu0 %v5012
      %5398 = vmatpush1.msra.mxu0 %v5011
      %5399 = vmatprep.subr.mxu0 %v5016
      %5400 = vmatpush1.msra.mxu0 %v5015
      %5401 = vmatprep.subr.mxu0 %v5020
      %5402 = vmatpush1.msra.mxu0 %v5019
      %5403 = vmatprep.mubr.f32.mxu0 %v5110
      %5404 = vmatmul.mubr.f32.gmra.mrb[0].mxu0 %v5109
      %v5405 = vpop.f32.mrb[0].mxu0
      %v5406 = vadd.f32 %v5132, %v5405
      %v5407 = vpop.f32.mrb[0].mxu0
      %v5408 = vadd.f32 %v5132, %v5407
      %5409 = vmatprep.mubr.f32.mxu0 %v5114
      %5410 = vmatmul.mubr.f32.gmra.mrb[0].mxu0 %v5113
      %v5411 = vpop.f32.mrb[0].mxu0
      %v5412 = vadd.f32 %v5137, %v5411
      %v5413 = vpop.f32.mrb[0].mxu0
      %v5414 = vadd.f32 %v5137, %v5413
      %5415 = vmatprep.mubr.f32.mxu0 %v5118
      %5416 = vmatmul.mubr.f32.gmra.mrb[0].mxu0 %v5117
      %v5417 = vpop.f32.mrb[0].mxu0
      %v5418 = vadd.f32 %v5142, %v5417
      %v5419 = vpop.f32.mrb[0].mxu0
      %v5420 = vadd.f32 %v5142, %v5419
      %5421 = vmatprep.mubr.f32.mxu0 %v5122
      %5422 = vmatmul.mubr.f32.gmra.mrb[0].mxu0 %v5121
      %v5423 = vpop.f32.mrb[0].mxu0
      %v5424 = vadd.f32 %v5147, %v5423
      %v5425 = vpop.f32.mrb[0].mxu0
      %v5426 = vadd.f32 %v5147, %v5425
      %5427 = vdwg.mxu0
      %5428 = vmatprep.subr.mxu0 %v5024
      %5429 = vmatpush1.msra.mxu0 %v5023
      %5430 = vmatprep.subr.mxu0 %v5028
      %5431 = vmatpush1.msra.mxu0 %v5027
      %5432 = vmatprep.subr.mxu0 %v5032
      %5433 = vmatpush1.msra.mxu0 %v5031
      %5434 = vmatprep.subr.mxu0 %v5036
      %5435 = vmatpush1.msra.mxu0 %v5035
      %5436 = vmatprep.subr.mxu0 %v5040
      %5437 = vmatpush1.msra.mxu0 %v5039
      %5438 = vmatprep.subr.mxu0 %v5044
      %5439 = vmatpush1.msra.mxu0 %v5043
      %5440 = vmatprep.subr.mxu0 %v5048
      %5441 = vmatpush1.msra.mxu0 %v5047
      %5442 = vmatprep.subr.mxu0 %v5052
      %5443 = vmatpush1.msra.mxu0 %v5051
      %5444 = vmatprep.subr.mxu0 %v5056
      %5445 = vmatpush1.msra.mxu0 %v5055
      %5446 = vmatprep.subr.mxu0 %v5060
      %5447 = vmatpush1.msra.mxu0 %v5059
      %5448 = vmatprep.subr.mxu0 %v5064
      %5449 = vmatpush1.msra.mxu0 %v5063
      %5450 = vmatprep.subr.mxu0 %v5068
      %5451 = vmatpush1.msra.mxu0 %v5067
      %5452 = vmatprep.subr.mxu0 %v5072
      %5453 = vmatpush1.msra.mxu0 %v5071
      %5454 = vmatprep.subr.mxu0 %v5076
      %5455 = vmatpush1.msra.mxu0 %v5075
      %5456 = vmatprep.subr.mxu0 %v5080
      %5457 = vmatpush1.msra.mxu0 %v5079
      %5458 = vmatprep.subr.mxu0 %v5084
      %5459 = vmatpush1.msra.mxu0 %v5083
      %5460 = vmatprep.subr.mxu0 %v5088
      %5461 = vmatpush1.msra.mxu0 %v5087
      %5462 = vmatprep.subr.mxu0 %v5092
      %5463 = vmatpush1.msra.mxu0 %v5091
      %5464 = vmatprep.subr.mxu0 %v5096
      %5465 = vmatpush1.msra.mxu0 %v5095
      %5466 = vmatprep.subr.mxu0 %v5100
      %5467 = vmatpush1.msra.mxu0 %v5099
      %5468 = vmatprep.subr.mxu0 %v5104
      %5469 = vmatpush1.msra.mxu0 %v5103
      %5470 = vmatprep.subr.mxu0 %v5108
      %5471 = vmatpush1.msra.mxu0 %v5107
      %5472 = vmatprep.subr.mxu0 0.0
      %5473 = vmatpush1.msra.mxu0 0.0
      %5474 = vmatprep.subr.mxu0 0.0
      %5475 = vmatpush1.msra.mxu0 0.0
      %5476 = vmatprep.subr.mxu0 0.0
      %5477 = vmatpush1.msra.mxu0 0.0
      %5478 = vmatprep.subr.mxu0 0.0
      %5479 = vmatpush1.msra.mxu0 0.0
      %5480 = vmatprep.subr.mxu0 0.0
      %5481 = vmatpush1.msra.mxu0 0.0
      %5482 = vmatprep.subr.mxu0 0.0
      %5483 = vmatpush1.msra.mxu0 0.0
      %5484 = vmatprep.subr.mxu0 0.0
      %5485 = vmatpush1.msra.mxu0 0.0
      %5486 = vmatprep.subr.mxu0 0.0
      %5487 = vmatpush1.msra.mxu0 0.0
      %5488 = vmatprep.subr.mxu0 0.0
      %5489 = vmatpush1.msra.mxu0 0.0
      %5490 = vmatprep.subr.mxu0 0.0
      %5491 = vmatpush1.msra.mxu0 0.0
      %5492 = vmatprep.mubr.f32.mxu0 %v5150
      %5493 = vmatmul.mubr.f32.gmra.mrb[0].mxu0 %v5111
      %v5494 = vpop.f32.mrb[0].mxu0
      %v5495 = vadd.f32 %v5406, %v5494
      %v5496 = vpop.f32.mrb[0].mxu0
      %v5497 = vadd.f32 %v5408, %v5496
      %5498 = vmatprep.mubr.f32.mxu0 %v5153
      %5499 = vmatmul.mubr.f32.gmra.mrb[0].mxu0 %v5115
      %v5500 = vpop.f32.mrb[0].mxu0
      %v5501 = vadd.f32 %v5412, %v5500
      %v5502 = vpop.f32.mrb[0].mxu0
      %v5503 = vadd.f32 %v5414, %v5502
      %5504 = vmatprep.mubr.f32.mxu0 %v5156
      %5505 = vmatmul.mubr.f32.gmra.mrb[0].mxu0 %v5119
      %v5506 = vpop.f32.mrb[0].mxu0
      %v5507 = vadd.f32 %v5418, %v5506
      %v5508 = vpop.f32.mrb[0].mxu0
      %v5509 = vadd.f32 %v5420, %v5508
      %5510 = vmatprep.mubr.f32.mxu0 %v5159
      %5511 = vmatmul.mubr.f32.gmra.mrb[0].mxu0 %v5123
      %v5512 = vpop.f32.mrb[0].mxu0
      %v5513 = vadd.f32 %v5424, %v5512
      %v5514 = vpop.f32.mrb[0].mxu0
      %v5515 = vadd.f32 %v5426, %v5514
      %5516 = vdwg.mxu0
      %v5517 = vmax.f32 %v5317, 0.0
      %v5518 = vmax.f32 %v5319, 0.0
      %v5519 = vmax.f32 %v5495, 0.0
      %v5520 = vmax.f32 %v5497, 0.0
      %v5521 = vmax.f32 %v5323, 0.0
      %v5522 = vmax.f32 %v5325, 0.0
      %v5523 = vmax.f32 %v5501, 0.0
      %v5524 = vmax.f32 %v5503, 0.0
      %v5525 = vmax.f32 %v5329, 0.0
      %v5526 = vmax.f32 %v5331, 0.0
      %v5527 = vmax.f32 %v5507, 0.0
      %v5528 = vmax.f32 %v5509, 0.0
      %v5529 = vmax.f32 %v5335, 0.0
      %v5530 = vmax.f32 %v5337, 0.0
      %v5531 = vmax.f32 %v5513, 0.0
      %v5532 = vmax.f32 %v5515, 0.0
      %5549 = vrot.lane.b32.xlu0 %v5517, 73
      %v5550 = vpop.permute.xlu0 %5549
      %5551 = vrot.lane.b32.xlu0 %v5518, 73
      %v5552 = vpop.permute.xlu0 %5551
      %5553 = vrot.lane.b32.xlu0 %v5519, 73
      %v5554 = vpop.permute.xlu0 %5553
      %5555 = vrot.lane.b32.xlu0 %v5520, 73
      %v5556 = vpop.permute.xlu0 %5555
      %5557 = vrot.lane.b32.xlu0 %v5521, 73
      %v5558 = vpop.permute.xlu0 %5557
      %5559 = vrot.lane.b32.xlu0 %v5522, 73
      %v5560 = vpop.permute.xlu0 %5559
      %5561 = vrot.lane.b32.xlu0 %v5523, 73
      %v5562 = vpop.permute.xlu0 %5561
      %5563 = vrot.lane.b32.xlu0 %v5524, 73
      %v5564 = vpop.permute.xlu0 %5563
      %5565 = vrot.lane.b32.xlu0 %v5525, 73
      %v5566 = vpop.permute.xlu0 %5565
      %5567 = vrot.lane.b32.xlu0 %v5526, 73
      %v5568 = vpop.permute.xlu0 %5567
      %5569 = vrot.lane.b32.xlu0 %v5527, 73
      %v5570 = vpop.permute.xlu0 %5569
      %5571 = vrot.lane.b32.xlu0 %v5528, 73
      %v5572 = vpop.permute.xlu0 %5571
      %5573 = vrot.lane.b32.xlu0 %v5529, 73
      %v5574 = vpop.permute.xlu0 %5573
      %5575 = vrot.lane.b32.xlu0 %v5530, 73
      %v5576 = vpop.permute.xlu0 %5575
      %5577 = vrot.lane.b32.xlu0 %v5531, 73
      %v5578 = vpop.permute.xlu0 %5577
      %5579 = vrot.lane.b32.xlu0 %v5532, 73
      %v5580 = vpop.permute.xlu0 %5579
      %v5581 = vsel %vm376, %v5550, %v5552
      %v5582 = vsel %vm376, %v5552, %v5554
      %v5583 = vsel %vm376, %v5554, %v5556
      %v5584 = vsel %vm376, %v5558, %v5560
      %v5585 = vsel %vm376, %v5560, %v5562
      %v5586 = vsel %vm376, %v5562, %v5564
      %v5587 = vsel %vm376, %v5566, %v5568
      %v5588 = vsel %vm376, %v5568, %v5570
      %v5589 = vsel %vm376, %v5570, %v5572
      %v5590 = vsel %vm376, %v5574, %v5576
      %v5591 = vsel %vm376, %v5576, %v5578
      %v5592 = vsel %vm376, %v5578, %v5580
      %v5613 = vsel %vm376, 0.0, %v5550
      %v5614 = vsel %vm376, 0.0, %v5558
      %v5615 = vsel %vm376, 0.0, %v5566
      %v5616 = vsel %vm376, 0.0, %v5574
      %v5617 = vsel %vm376, %v5556, 0.0
      %v5618 = vsel %vm376, %v5564, 0.0
      %v5619 = vsel %vm376, %v5572, 0.0
      %v5620 = vsel %vm376, %v5580, 0.0
      %v5621 = vld [vmem:[%s0] ss:$8 sm:$0xf]
      %v5623 = vlaneseq
      %v5624 = vshrl.u32 %v5623, 7
      %v5625 = vsub.s32 0, %v5624
      %v5626 = vrot.slane %v5621, %v5625
      %v5627 = vlaneseq
      %v5628 = vshrl.u32 %v5627, 7
      %v5629 = vsub.s32 1, %v5628
      %v5630 = vrot.slane %v5621, %v5629
      %v5631 = vlaneseq
      %v5632 = vshrl.u32 %v5631, 7
      %v5633 = vsub.s32 2, %v5632
      %v5634 = vrot.slane %v5621, %v5633
      %v5635 = vlaneseq
      %v5636 = vshrl.u32 %v5635, 7
      %v5637 = vsub.s32 3, %v5636
      %v5638 = vrot.slane %v5621, %v5637
      %v5643 = vmul.f32 %v5613, %v5626
      %v5644 = vmul.f32 %v5581, %v5630
      %v5645 = vmul.f32 %v5582, %v5634
      %v5646 = vmul.f32 %v5583, %v5638
      %v5647 = vmul.f32 %v5614, %v5626
      %v5648 = vmul.f32 %v5584, %v5630
      %v5649 = vmul.f32 %v5585, %v5634
      %v5650 = vmul.f32 %v5586, %v5638
      %v5651 = vmul.f32 %v5615, %v5626
      %v5652 = vmul.f32 %v5587, %v5630
      %v5653 = vmul.f32 %v5588, %v5634
      %v5654 = vmul.f32 %v5589, %v5638
      %v5655 = vmul.f32 %v5616, %v5626
      %v5656 = vmul.f32 %v5590, %v5630
      %v5657 = vmul.f32 %v5591, %v5634
      %v5658 = vmul.f32 %v5592, %v5638
      %5659 = vst [vmem:[#allocation2] sm:$0xff] %v5643
      %5660 = vst [vmem:[#allocation2 + $0x8] sm:$0xff] %v5644
      %5661 = vst [vmem:[#allocation2 + $0x10] sm:$0xff] %v5645
      %5662 = vst [vmem:[#allocation2 + $0x18] sm:$0xff] %v5646
      %5663 = vst [vmem:[#allocation2 + $0x20] sm:$0xff] %v5647
      %5664 = vst [vmem:[#allocation2 + $0x28] sm:$0xff] %v5648
      %5665 = vst [vmem:[#allocation2 + $0x30] sm:$0xff] %v5649
      %5666 = vst [vmem:[#allocation2 + $0x38] sm:$0xff] %v5650
      %5667 = vst [vmem:[#allocation2 + $0x40] sm:$0xff] %v5651
      %5668 = vst [vmem:[#allocation2 + $0x48] sm:$0xff] %v5652
      %5669 = vst [vmem:[#allocation2 + $0x50] sm:$0xff] %v5653
      %5670 = vst [vmem:[#allocation2 + $0x58] sm:$0xff] %v5654
      %5671 = vst [vmem:[#allocation2 + $0x60] sm:$0xff] %v5655
      %5672 = vst [vmem:[#allocation2 + $0x68] sm:$0xff] %v5656
      %5673 = vst [vmem:[#allocation2 + $0x70] sm:$0xff] %v5657
      %5674 = vst [vmem:[#allocation2 + $0x78] sm:$0xff] %v5658
      %v5675 = vld [vmem:[%s417] ss:$8 sm:$0xf]
      %v5677 = vlaneseq
      %v5678 = vshrl.u32 %v5677, 7
      %v5679 = vsub.s32 0, %v5678
      %v5680 = vrot.slane %v5675, %v5679
      %v5681 = vlaneseq
      %v5682 = vshrl.u32 %v5681, 7
      %v5683 = vsub.s32 1, %v5682
      %v5684 = vrot.slane %v5675, %v5683
      %v5685 = vlaneseq
      %v5686 = vshrl.u32 %v5685, 7
      %v5687 = vsub.s32 2, %v5686
      %v5688 = vrot.slane %v5675, %v5687
      %v5689 = vlaneseq
      %v5690 = vshrl.u32 %v5689, 7
      %v5691 = vsub.s32 3, %v5690
      %v5692 = vrot.slane %v5675, %v5691
      %5693 = vrot.lane.b32.xlu0 %v5680, 1
      %v5694 = vpop.permute.xlu0 %5693
      %5695 = vrot.lane.b32.xlu0 %v5684, 1
      %v5696 = vpop.permute.xlu0 %5695
      %5697 = vrot.lane.b32.xlu0 %v5688, 1
      %v5698 = vpop.permute.xlu0 %5697
      %5699 = vrot.lane.b32.xlu0 %v5692, 1
      %v5700 = vpop.permute.xlu0 %5699
      %v5701 = vsel %vm444, %v5694, %v5696
      %v5702 = vsel %vm444, %v5696, %v5698
      %v5703 = vsel %vm444, %v5698, %v5700
      %v5709 = vmul.f32 %v5613, %v5694
      %v5710 = vmul.f32 %v5581, %v5701
      %v5711 = vmul.f32 %v5582, %v5702
      %v5712 = vmul.f32 %v5583, %v5703
      %v5713 = vmul.f32 %v5617, %v5700
      %v5714 = vmul.f32 %v5614, %v5694
      %v5715 = vmul.f32 %v5584, %v5701
      %v5716 = vmul.f32 %v5585, %v5702
      %v5717 = vmul.f32 %v5586, %v5703
      %v5718 = vmul.f32 %v5618, %v5700
      %v5719 = vmul.f32 %v5615, %v5694
      %v5720 = vmul.f32 %v5587, %v5701
      %v5721 = vmul.f32 %v5588, %v5702
      %v5722 = vmul.f32 %v5589, %v5703
      %v5723 = vmul.f32 %v5619, %v5700
      %v5724 = vmul.f32 %v5616, %v5694
      %v5725 = vmul.f32 %v5590, %v5701
      %v5726 = vmul.f32 %v5591, %v5702
      %v5727 = vmul.f32 %v5592, %v5703
      %v5728 = vmul.f32 %v5620, %v5700
      %5749 = vrot.lane.b32.xlu0 %v5709, 127
      %v5750 = vpop.permute.xlu0 %5749
      %5751 = vrot.lane.b32.xlu0 %v5710, 127
      %v5752 = vpop.permute.xlu0 %5751
      %5753 = vrot.lane.b32.xlu0 %v5711, 127
      %v5754 = vpop.permute.xlu0 %5753
      %5755 = vrot.lane.b32.xlu0 %v5712, 127
      %v5756 = vpop.permute.xlu0 %5755
      %5757 = vrot.lane.b32.xlu0 %v5713, 127
      %v5758 = vpop.permute.xlu0 %5757
      %5759 = vrot.lane.b32.xlu0 %v5714, 127
      %v5760 = vpop.permute.xlu0 %5759
      %5761 = vrot.lane.b32.xlu0 %v5715, 127
      %v5762 = vpop.permute.xlu0 %5761
      %5763 = vrot.lane.b32.xlu0 %v5716, 127
      %v5764 = vpop.permute.xlu0 %5763
      %5765 = vrot.lane.b32.xlu0 %v5717, 127
      %v5766 = vpop.permute.xlu0 %5765
      %5767 = vrot.lane.b32.xlu0 %v5718, 127
      %v5768 = vpop.permute.xlu0 %5767
      %5769 = vrot.lane.b32.xlu0 %v5719, 127
      %v5770 = vpop.permute.xlu0 %5769
      %5771 = vrot.lane.b32.xlu0 %v5720, 127
      %v5772 = vpop.permute.xlu0 %5771
      %5773 = vrot.lane.b32.xlu0 %v5721, 127
      %v5774 = vpop.permute.xlu0 %5773
      %5775 = vrot.lane.b32.xlu0 %v5722, 127
      %v5776 = vpop.permute.xlu0 %5775
      %5777 = vrot.lane.b32.xlu0 %v5723, 127
      %v5778 = vpop.permute.xlu0 %5777
      %5779 = vrot.lane.b32.xlu0 %v5724, 127
      %v5780 = vpop.permute.xlu0 %5779
      %5781 = vrot.lane.b32.xlu0 %v5725, 127
      %v5782 = vpop.permute.xlu0 %5781
      %5783 = vrot.lane.b32.xlu0 %v5726, 127
      %v5784 = vpop.permute.xlu0 %5783
      %5785 = vrot.lane.b32.xlu0 %v5727, 127
      %v5786 = vpop.permute.xlu0 %5785
      %5787 = vrot.lane.b32.xlu0 %v5728, 127
      %v5788 = vpop.permute.xlu0 %5787
      %v5789 = vsel %vm473, %v5750, %v5752
      %v5790 = vsel %vm473, %v5752, %v5754
      %v5791 = vsel %vm473, %v5754, %v5756
      %v5792 = vsel %vm473, %v5756, %v5758
      %v5793 = vsel %vm473, %v5760, %v5762
      %v5794 = vsel %vm473, %v5762, %v5764
      %v5795 = vsel %vm473, %v5764, %v5766
      %v5796 = vsel %vm473, %v5766, %v5768
      %v5797 = vsel %vm473, %v5770, %v5772
      %v5798 = vsel %vm473, %v5772, %v5774
      %v5799 = vsel %vm473, %v5774, %v5776
      %v5800 = vsel %vm473, %v5776, %v5778
      %v5801 = vsel %vm473, %v5780, %v5782
      %v5802 = vsel %vm473, %v5782, %v5784
      %v5803 = vsel %vm473, %v5784, %v5786
      %v5804 = vsel %vm473, %v5786, %v5788
      %5821 = vst [vmem:[#allocation2 + $0x80] sm:$0xff] %v5789
      %5822 = vst [vmem:[#allocation2 + $0x88] sm:$0xff] %v5790
      %5823 = vst [vmem:[#allocation2 + $0x90] sm:$0xff] %v5791
      %5824 = vst [vmem:[#allocation2 + $0x98] sm:$0xff] %v5792
      %5825 = vst [vmem:[#allocation2 + $0xa0] sm:$0xff] %v5793
      %5826 = vst [vmem:[#allocation2 + $0xa8] sm:$0xff] %v5794
      %5827 = vst [vmem:[#allocation2 + $0xb0] sm:$0xff] %v5795
      %5828 = vst [vmem:[#allocation2 + $0xb8] sm:$0xff] %v5796
      %5829 = vst [vmem:[#allocation2 + $0xc0] sm:$0xff] %v5797
      %5830 = vst [vmem:[#allocation2 + $0xc8] sm:$0xff] %v5798
      %5831 = vst [vmem:[#allocation2 + $0xd0] sm:$0xff] %v5799
      %5832 = vst [vmem:[#allocation2 + $0xd8] sm:$0xff] %v5800
      %5833 = vst [vmem:[#allocation2 + $0xe0] sm:$0xff] %v5801
      %5834 = vst [vmem:[#allocation2 + $0xe8] sm:$0xff] %v5802
      %5835 = vst [vmem:[#allocation2 + $0xf0] sm:$0xff] %v5803
      %5836 = vst [vmem:[#allocation2 + $0xf8] sm:$0xff] %v5804
      %v5837 = vld [vmem:[%s486] ss:$8 sm:$0xf]
      %v5839 = vlaneseq
      %v5840 = vshrl.u32 %v5839, 7
      %v5841 = vsub.s32 0, %v5840
      %v5842 = vrot.slane %v5837, %v5841
      %v5843 = vlaneseq
      %v5844 = vshrl.u32 %v5843, 7
      %v5845 = vsub.s32 1, %v5844
      %v5846 = vrot.slane %v5837, %v5845
      %v5847 = vlaneseq
      %v5848 = vshrl.u32 %v5847, 7
      %v5849 = vsub.s32 2, %v5848
      %v5850 = vrot.slane %v5837, %v5849
      %v5851 = vlaneseq
      %v5852 = vshrl.u32 %v5851, 7
      %v5853 = vsub.s32 3, %v5852
      %v5854 = vrot.slane %v5837, %v5853
      %5855 = vrot.lane.b32.xlu0 %v5842, 2
      %v5856 = vpop.permute.xlu0 %5855
      %5857 = vrot.lane.b32.xlu0 %v5846, 2
      %v5858 = vpop.permute.xlu0 %5857
      %5859 = vrot.lane.b32.xlu0 %v5850, 2
      %v5860 = vpop.permute.xlu0 %5859
      %5861 = vrot.lane.b32.xlu0 %v5854, 2
      %v5862 = vpop.permute.xlu0 %5861
      %v5863 = vsel %vm513, %v5856, %v5858
      %v5864 = vsel %vm513, %v5858, %v5860
      %v5865 = vsel %vm513, %v5860, %v5862
      %v5871 = vmul.f32 %v5613, %v5856
      %v5872 = vmul.f32 %v5581, %v5863
      %v5873 = vmul.f32 %v5582, %v5864
      %v5874 = vmul.f32 %v5583, %v5865
      %v5875 = vmul.f32 %v5617, %v5862
      %v5876 = vmul.f32 %v5614, %v5856
      %v5877 = vmul.f32 %v5584, %v5863
      %v5878 = vmul.f32 %v5585, %v5864
      %v5879 = vmul.f32 %v5586, %v5865
      %v5880 = vmul.f32 %v5618, %v5862
      %v5881 = vmul.f32 %v5615, %v5856
      %v5882 = vmul.f32 %v5587, %v5863
      %v5883 = vmul.f32 %v5588, %v5864
      %v5884 = vmul.f32 %v5589, %v5865
      %v5885 = vmul.f32 %v5619, %v5862
      %v5886 = vmul.f32 %v5616, %v5856
      %v5887 = vmul.f32 %v5590, %v5863
      %v5888 = vmul.f32 %v5591, %v5864
      %v5889 = vmul.f32 %v5592, %v5865
      %v5890 = vmul.f32 %v5620, %v5862
      %5911 = vrot.lane.b32.xlu0 %v5871, 126
      %v5912 = vpop.permute.xlu0 %5911
      %5913 = vrot.lane.b32.xlu0 %v5872, 126
      %v5914 = vpop.permute.xlu0 %5913
      %5915 = vrot.lane.b32.xlu0 %v5873, 126
      %v5916 = vpop.permute.xlu0 %5915
      %5917 = vrot.lane.b32.xlu0 %v5874, 126
      %v5918 = vpop.permute.xlu0 %5917
      %5919 = vrot.lane.b32.xlu0 %v5875, 126
      %v5920 = vpop.permute.xlu0 %5919
      %5921 = vrot.lane.b32.xlu0 %v5876, 126
      %v5922 = vpop.permute.xlu0 %5921
      %5923 = vrot.lane.b32.xlu0 %v5877, 126
      %v5924 = vpop.permute.xlu0 %5923
      %5925 = vrot.lane.b32.xlu0 %v5878, 126
      %v5926 = vpop.permute.xlu0 %5925
      %5927 = vrot.lane.b32.xlu0 %v5879, 126
      %v5928 = vpop.permute.xlu0 %5927
      %5929 = vrot.lane.b32.xlu0 %v5880, 126
      %v5930 = vpop.permute.xlu0 %5929
      %5931 = vrot.lane.b32.xlu0 %v5881, 126
      %v5932 = vpop.permute.xlu0 %5931
      %5933 = vrot.lane.b32.xlu0 %v5882, 126
      %v5934 = vpop.permute.xlu0 %5933
      %5935 = vrot.lane.b32.xlu0 %v5883, 126
      %v5936 = vpop.permute.xlu0 %5935
      %5937 = vrot.lane.b32.xlu0 %v5884, 126
      %v5938 = vpop.permute.xlu0 %5937
      %5939 = vrot.lane.b32.xlu0 %v5885, 126
      %v5940 = vpop.permute.xlu0 %5939
      %5941 = vrot.lane.b32.xlu0 %v5886, 126
      %v5942 = vpop.permute.xlu0 %5941
      %5943 = vrot.lane.b32.xlu0 %v5887, 126
      %v5944 = vpop.permute.xlu0 %5943
      %5945 = vrot.lane.b32.xlu0 %v5888, 126
      %v5946 = vpop.permute.xlu0 %5945
      %5947 = vrot.lane.b32.xlu0 %v5889, 126
      %v5948 = vpop.permute.xlu0 %5947
      %5949 = vrot.lane.b32.xlu0 %v5890, 126
      %v5950 = vpop.permute.xlu0 %5949
      %v5951 = vsel %vm542, %v5912, %v5914
      %v5952 = vsel %vm542, %v5914, %v5916
      %v5953 = vsel %vm542, %v5916, %v5918
      %v5954 = vsel %vm542, %v5918, %v5920
      %v5955 = vsel %vm542, %v5922, %v5924
      %v5956 = vsel %vm542, %v5924, %v5926
      %v5957 = vsel %vm542, %v5926, %v5928
      %v5958 = vsel %vm542, %v5928, %v5930
      %v5959 = vsel %vm542, %v5932, %v5934
      %v5960 = vsel %vm542, %v5934, %v5936
      %v5961 = vsel %vm542, %v5936, %v5938
      %v5962 = vsel %vm542, %v5938, %v5940
      %v5963 = vsel %vm542, %v5942, %v5944
      %v5964 = vsel %vm542, %v5944, %v5946
      %v5965 = vsel %vm542, %v5946, %v5948
      %v5966 = vsel %vm542, %v5948, %v5950
      %5983 = vst [vmem:[#allocation2 + $0x100] sm:$0xff] %v5951
      %5984 = vst [vmem:[#allocation2 + $0x108] sm:$0xff] %v5952
      %5985 = vst [vmem:[#allocation2 + $0x110] sm:$0xff] %v5953
      %5986 = vst [vmem:[#allocation2 + $0x118] sm:$0xff] %v5954
      %5987 = vst [vmem:[#allocation2 + $0x120] sm:$0xff] %v5955
      %5988 = vst [vmem:[#allocation2 + $0x128] sm:$0xff] %v5956
      %5989 = vst [vmem:[#allocation2 + $0x130] sm:$0xff] %v5957
      %5990 = vst [vmem:[#allocation2 + $0x138] sm:$0xff] %v5958
      %5991 = vst [vmem:[#allocation2 + $0x140] sm:$0xff] %v5959
      %5992 = vst [vmem:[#allocation2 + $0x148] sm:$0xff] %v5960
      %5993 = vst [vmem:[#allocation2 + $0x150] sm:$0xff] %v5961
      %5994 = vst [vmem:[#allocation2 + $0x158] sm:$0xff] %v5962
      %5995 = vst [vmem:[#allocation2 + $0x160] sm:$0xff] %v5963
      %5996 = vst [vmem:[#allocation2 + $0x168] sm:$0xff] %v5964
      %5997 = vst [vmem:[#allocation2 + $0x170] sm:$0xff] %v5965
      %5998 = vst [vmem:[#allocation2 + $0x178] sm:$0xff] %v5966
      %v5999 = vld [vmem:[%s555] ss:$8 sm:$0xf]
      %v6001 = vlaneseq
      %v6002 = vshrl.u32 %v6001, 7
      %v6003 = vsub.s32 0, %v6002
      %v6004 = vrot.slane %v5999, %v6003
      %v6005 = vlaneseq
      %v6006 = vshrl.u32 %v6005, 7
      %v6007 = vsub.s32 1, %v6006
      %v6008 = vrot.slane %v5999, %v6007
      %v6009 = vlaneseq
      %v6010 = vshrl.u32 %v6009, 7
      %v6011 = vsub.s32 2, %v6010
      %v6012 = vrot.slane %v5999, %v6011
      %v6013 = vlaneseq
      %v6014 = vshrl.u32 %v6013, 7
      %v6015 = vsub.s32 3, %v6014
      %v6016 = vrot.slane %v5999, %v6015
      %6017 = vrot.lane.b32.xlu0 %v6004, 8
      %v6018 = vpop.permute.xlu0 %6017
      %6019 = vrot.lane.b32.xlu0 %v6008, 8
      %v6020 = vpop.permute.xlu0 %6019
      %6021 = vrot.lane.b32.xlu0 %v6012, 8
      %v6022 = vpop.permute.xlu0 %6021
      %6023 = vrot.lane.b32.xlu0 %v6016, 8
      %v6024 = vpop.permute.xlu0 %6023
      %v6025 = vsel %vm582, %v6018, %v6020
      %v6026 = vsel %vm582, %v6020, %v6022
      %v6027 = vsel %vm582, %v6022, %v6024
      %v6033 = vmul.f32 %v5613, %v6018
      %v6034 = vmul.f32 %v5581, %v6025
      %v6035 = vmul.f32 %v5582, %v6026
      %v6036 = vmul.f32 %v5583, %v6027
      %v6037 = vmul.f32 %v5617, %v6024
      %v6038 = vmul.f32 %v5614, %v6018
      %v6039 = vmul.f32 %v5584, %v6025
      %v6040 = vmul.f32 %v5585, %v6026
      %v6041 = vmul.f32 %v5586, %v6027
      %v6042 = vmul.f32 %v5618, %v6024
      %v6043 = vmul.f32 %v5615, %v6018
      %v6044 = vmul.f32 %v5587, %v6025
      %v6045 = vmul.f32 %v5588, %v6026
      %v6046 = vmul.f32 %v5589, %v6027
      %v6047 = vmul.f32 %v5619, %v6024
      %v6048 = vmul.f32 %v5616, %v6018
      %v6049 = vmul.f32 %v5590, %v6025
      %v6050 = vmul.f32 %v5591, %v6026
      %v6051 = vmul.f32 %v5592, %v6027
      %v6052 = vmul.f32 %v5620, %v6024
      %6073 = vrot.lane.b32.xlu0 %v6033, 120
      %v6074 = vpop.permute.xlu0 %6073
      %6075 = vrot.lane.b32.xlu0 %v6034, 120
      %v6076 = vpop.permute.xlu0 %6075
      %6077 = vrot.lane.b32.xlu0 %v6035, 120
      %v6078 = vpop.permute.xlu0 %6077
      %6079 = vrot.lane.b32.xlu0 %v6036, 120
      %v6080 = vpop.permute.xlu0 %6079
      %6081 = vrot.lane.b32.xlu0 %v6037, 120
      %v6082 = vpop.permute.xlu0 %6081
      %6083 = vrot.lane.b32.xlu0 %v6038, 120
      %v6084 = vpop.permute.xlu0 %6083
      %6085 = vrot.lane.b32.xlu0 %v6039, 120
      %v6086 = vpop.permute.xlu0 %6085
      %6087 = vrot.lane.b32.xlu0 %v6040, 120
      %v6088 = vpop.permute.xlu0 %6087
      %6089 = vrot.lane.b32.xlu0 %v6041, 120
      %v6090 = vpop.permute.xlu0 %6089
      %6091 = vrot.lane.b32.xlu0 %v6042, 120
      %v6092 = vpop.permute.xlu0 %6091
      %6093 = vrot.lane.b32.xlu0 %v6043, 120
      %v6094 = vpop.permute.xlu0 %6093
      %6095 = vrot.lane.b32.xlu0 %v6044, 120
      %v6096 = vpop.permute.xlu0 %6095
      %6097 = vrot.lane.b32.xlu0 %v6045, 120
      %v6098 = vpop.permute.xlu0 %6097
      %6099 = vrot.lane.b32.xlu0 %v6046, 120
      %v6100 = vpop.permute.xlu0 %6099
      %6101 = vrot.lane.b32.xlu0 %v6047, 120
      %v6102 = vpop.permute.xlu0 %6101
      %6103 = vrot.lane.b32.xlu0 %v6048, 120
      %v6104 = vpop.permute.xlu0 %6103
      %6105 = vrot.lane.b32.xlu0 %v6049, 120
      %v6106 = vpop.permute.xlu0 %6105
      %6107 = vrot.lane.b32.xlu0 %v6050, 120
      %v6108 = vpop.permute.xlu0 %6107
      %6109 = vrot.lane.b32.xlu0 %v6051, 120
      %v6110 = vpop.permute.xlu0 %6109
      %6111 = vrot.lane.b32.xlu0 %v6052, 120
      %v6112 = vpop.permute.xlu0 %6111
      %v6113 = vsel %vm611, %v6074, %v6076
      %v6114 = vsel %vm611, %v6076, %v6078
      %v6115 = vsel %vm611, %v6078, %v6080
      %v6116 = vsel %vm611, %v6080, %v6082
      %v6117 = vsel %vm611, %v6084, %v6086
      %v6118 = vsel %vm611, %v6086, %v6088
      %v6119 = vsel %vm611, %v6088, %v6090
      %v6120 = vsel %vm611, %v6090, %v6092
      %v6121 = vsel %vm611, %v6094, %v6096
      %v6122 = vsel %vm611, %v6096, %v6098
      %v6123 = vsel %vm611, %v6098, %v6100
      %v6124 = vsel %vm611, %v6100, %v6102
      %v6125 = vsel %vm611, %v6104, %v6106
      %v6126 = vsel %vm611, %v6106, %v6108
      %v6127 = vsel %vm611, %v6108, %v6110
      %v6128 = vsel %vm611, %v6110, %v6112
      %6145 = vst [vmem:[#allocation2 + $0x180] sm:$0xff] %v6113
      %6146 = vst [vmem:[#allocation2 + $0x188] sm:$0xff] %v6114
      %6147 = vst [vmem:[#allocation2 + $0x190] sm:$0xff] %v6115
      %6148 = vst [vmem:[#allocation2 + $0x198] sm:$0xff] %v6116
      %6149 = vst [vmem:[#allocation2 + $0x1a0] sm:$0xff] %v6117
      %6150 = vst [vmem:[#allocation2 + $0x1a8] sm:$0xff] %v6118
      %6151 = vst [vmem:[#allocation2 + $0x1b0] sm:$0xff] %v6119
      %6152 = vst [vmem:[#allocation2 + $0x1b8] sm:$0xff] %v6120
      %6153 = vst [vmem:[#allocation2 + $0x1c0] sm:$0xff] %v6121
      %6154 = vst [vmem:[#allocation2 + $0x1c8] sm:$0xff] %v6122
      %6155 = vst [vmem:[#allocation2 + $0x1d0] sm:$0xff] %v6123
      %6156 = vst [vmem:[#allocation2 + $0x1d8] sm:$0xff] %v6124
      %6157 = vst [vmem:[#allocation2 + $0x1e0] sm:$0xff] %v6125
      %6158 = vst [vmem:[#allocation2 + $0x1e8] sm:$0xff] %v6126
      %6159 = vst [vmem:[#allocation2 + $0x1f0] sm:$0xff] %v6127
      %6160 = vst [vmem:[#allocation2 + $0x1f8] sm:$0xff] %v6128
      %v6161 = vld [vmem:[%s624] ss:$8 sm:$0xf]
      %v6163 = vlaneseq
      %v6164 = vshrl.u32 %v6163, 7
      %v6165 = vsub.s32 0, %v6164
      %v6166 = vrot.slane %v6161, %v6165
      %v6167 = vlaneseq
      %v6168 = vshrl.u32 %v6167, 7
      %v6169 = vsub.s32 1, %v6168
      %v6170 = vrot.slane %v6161, %v6169
      %v6171 = vlaneseq
      %v6172 = vshrl.u32 %v6171, 7
      %v6173 = vsub.s32 2, %v6172
      %v6174 = vrot.slane %v6161, %v6173
      %v6175 = vlaneseq
      %v6176 = vshrl.u32 %v6175, 7
      %v6177 = vsub.s32 3, %v6176
      %v6178 = vrot.slane %v6161, %v6177
      %6179 = vrot.lane.b32.xlu0 %v6166, 9
      %v6180 = vpop.permute.xlu0 %6179
      %6181 = vrot.lane.b32.xlu0 %v6170, 9
      %v6182 = vpop.permute.xlu0 %6181
      %6183 = vrot.lane.b32.xlu0 %v6174, 9
      %v6184 = vpop.permute.xlu0 %6183
      %6185 = vrot.lane.b32.xlu0 %v6178, 9
      %v6186 = vpop.permute.xlu0 %6185
      %v6187 = vsel %vm651, %v6180, %v6182
      %v6188 = vsel %vm651, %v6182, %v6184
      %v6189 = vsel %vm651, %v6184, %v6186
      %v6195 = vmul.f32 %v5613, %v6180
      %v6196 = vmul.f32 %v5581, %v6187
      %v6197 = vmul.f32 %v5582, %v6188
      %v6198 = vmul.f32 %v5583, %v6189
      %v6199 = vmul.f32 %v5617, %v6186
      %v6200 = vmul.f32 %v5614, %v6180
      %v6201 = vmul.f32 %v5584, %v6187
      %v6202 = vmul.f32 %v5585, %v6188
      %v6203 = vmul.f32 %v5586, %v6189
      %v6204 = vmul.f32 %v5618, %v6186
      %v6205 = vmul.f32 %v5615, %v6180
      %v6206 = vmul.f32 %v5587, %v6187
      %v6207 = vmul.f32 %v5588, %v6188
      %v6208 = vmul.f32 %v5589, %v6189
      %v6209 = vmul.f32 %v5619, %v6186
      %v6210 = vmul.f32 %v5616, %v6180
      %v6211 = vmul.f32 %v5590, %v6187
      %v6212 = vmul.f32 %v5591, %v6188
      %v6213 = vmul.f32 %v5592, %v6189
      %v6214 = vmul.f32 %v5620, %v6186
      %6235 = vrot.lane.b32.xlu0 %v6195, 119
      %v6236 = vpop.permute.xlu0 %6235
      %6237 = vrot.lane.b32.xlu0 %v6196, 119
      %v6238 = vpop.permute.xlu0 %6237
      %6239 = vrot.lane.b32.xlu0 %v6197, 119
      %v6240 = vpop.permute.xlu0 %6239
      %6241 = vrot.lane.b32.xlu0 %v6198, 119
      %v6242 = vpop.permute.xlu0 %6241
      %6243 = vrot.lane.b32.xlu0 %v6199, 119
      %v6244 = vpop.permute.xlu0 %6243
      %6245 = vrot.lane.b32.xlu0 %v6200, 119
      %v6246 = vpop.permute.xlu0 %6245
      %6247 = vrot.lane.b32.xlu0 %v6201, 119
      %v6248 = vpop.permute.xlu0 %6247
      %6249 = vrot.lane.b32.xlu0 %v6202, 119
      %v6250 = vpop.permute.xlu0 %6249
      %6251 = vrot.lane.b32.xlu0 %v6203, 119
      %v6252 = vpop.permute.xlu0 %6251
      %6253 = vrot.lane.b32.xlu0 %v6204, 119
      %v6254 = vpop.permute.xlu0 %6253
      %6255 = vrot.lane.b32.xlu0 %v6205, 119
      %v6256 = vpop.permute.xlu0 %6255
      %6257 = vrot.lane.b32.xlu0 %v6206, 119
      %v6258 = vpop.permute.xlu0 %6257
      %6259 = vrot.lane.b32.xlu0 %v6207, 119
      %v6260 = vpop.permute.xlu0 %6259
      %6261 = vrot.lane.b32.xlu0 %v6208, 119
      %v6262 = vpop.permute.xlu0 %6261
      %6263 = vrot.lane.b32.xlu0 %v6209, 119
      %v6264 = vpop.permute.xlu0 %6263
      %6265 = vrot.lane.b32.xlu0 %v6210, 119
      %v6266 = vpop.permute.xlu0 %6265
      %6267 = vrot.lane.b32.xlu0 %v6211, 119
      %v6268 = vpop.permute.xlu0 %6267
      %6269 = vrot.lane.b32.xlu0 %v6212, 119
      %v6270 = vpop.permute.xlu0 %6269
      %6271 = vrot.lane.b32.xlu0 %v6213, 119
      %v6272 = vpop.permute.xlu0 %6271
      %6273 = vrot.lane.b32.xlu0 %v6214, 119
      %v6274 = vpop.permute.xlu0 %6273
      %v6275 = vsel %vm680, %v6236, %v6238
      %v6276 = vsel %vm680, %v6238, %v6240
      %v6277 = vsel %vm680, %v6240, %v6242
      %v6278 = vsel %vm680, %v6242, %v6244
      %v6279 = vsel %vm680, %v6246, %v6248
      %v6280 = vsel %vm680, %v6248, %v6250
      %v6281 = vsel %vm680, %v6250, %v6252
      %v6282 = vsel %vm680, %v6252, %v6254
      %v6283 = vsel %vm680, %v6256, %v6258
      %v6284 = vsel %vm680, %v6258, %v6260
      %v6285 = vsel %vm680, %v6260, %v6262
      %v6286 = vsel %vm680, %v6262, %v6264
      %v6287 = vsel %vm680, %v6266, %v6268
      %v6288 = vsel %vm680, %v6268, %v6270
      %v6289 = vsel %vm680, %v6270, %v6272
      %v6290 = vsel %vm680, %v6272, %v6274
      %6307 = vst [vmem:[#allocation2 + $0x200] sm:$0xff] %v6275
      %6308 = vst [vmem:[#allocation2 + $0x208] sm:$0xff] %v6276
      %6309 = vst [vmem:[#allocation2 + $0x210] sm:$0xff] %v6277
      %6310 = vst [vmem:[#allocation2 + $0x218] sm:$0xff] %v6278
      %6311 = vst [vmem:[#allocation2 + $0x220] sm:$0xff] %v6279
      %6312 = vst [vmem:[#allocation2 + $0x228] sm:$0xff] %v6280
      %6313 = vst [vmem:[#allocation2 + $0x230] sm:$0xff] %v6281
      %6314 = vst [vmem:[#allocation2 + $0x238] sm:$0xff] %v6282
      %6315 = vst [vmem:[#allocation2 + $0x240] sm:$0xff] %v6283
      %6316 = vst [vmem:[#allocation2 + $0x248] sm:$0xff] %v6284
      %6317 = vst [vmem:[#allocation2 + $0x250] sm:$0xff] %v6285
      %6318 = vst [vmem:[#allocation2 + $0x258] sm:$0xff] %v6286
      %6319 = vst [vmem:[#allocation2 + $0x260] sm:$0xff] %v6287
      %6320 = vst [vmem:[#allocation2 + $0x268] sm:$0xff] %v6288
      %6321 = vst [vmem:[#allocation2 + $0x270] sm:$0xff] %v6289
      %6322 = vst [vmem:[#allocation2 + $0x278] sm:$0xff] %v6290
      %v6323 = vld [vmem:[%s693] ss:$8 sm:$0xf]
      %v6325 = vlaneseq
      %v6326 = vshrl.u32 %v6325, 7
      %v6327 = vsub.s32 0, %v6326
      %v6328 = vrot.slane %v6323, %v6327
      %v6329 = vlaneseq
      %v6330 = vshrl.u32 %v6329, 7
      %v6331 = vsub.s32 1, %v6330
      %v6332 = vrot.slane %v6323, %v6331
      %v6333 = vlaneseq
      %v6334 = vshrl.u32 %v6333, 7
      %v6335 = vsub.s32 2, %v6334
      %v6336 = vrot.slane %v6323, %v6335
      %v6337 = vlaneseq
      %v6338 = vshrl.u32 %v6337, 7
      %v6339 = vsub.s32 3, %v6338
      %v6340 = vrot.slane %v6323, %v6339
      %6341 = vrot.lane.b32.xlu0 %v6328, 10
      %v6342 = vpop.permute.xlu0 %6341
      %6343 = vrot.lane.b32.xlu0 %v6332, 10
      %v6344 = vpop.permute.xlu0 %6343
      %6345 = vrot.lane.b32.xlu0 %v6336, 10
      %v6346 = vpop.permute.xlu0 %6345
      %6347 = vrot.lane.b32.xlu0 %v6340, 10
      %v6348 = vpop.permute.xlu0 %6347
      %v6349 = vsel %vm720, %v6342, %v6344
      %v6350 = vsel %vm720, %v6344, %v6346
      %v6351 = vsel %vm720, %v6346, %v6348
      %v6357 = vmul.f32 %v5613, %v6342
      %v6358 = vmul.f32 %v5581, %v6349
      %v6359 = vmul.f32 %v5582, %v6350
      %v6360 = vmul.f32 %v5583, %v6351
      %v6361 = vmul.f32 %v5617, %v6348
      %v6362 = vmul.f32 %v5614, %v6342
      %v6363 = vmul.f32 %v5584, %v6349
      %v6364 = vmul.f32 %v5585, %v6350
      %v6365 = vmul.f32 %v5586, %v6351
      %v6366 = vmul.f32 %v5618, %v6348
      %v6367 = vmul.f32 %v5615, %v6342
      %v6368 = vmul.f32 %v5587, %v6349
      %v6369 = vmul.f32 %v5588, %v6350
      %v6370 = vmul.f32 %v5589, %v6351
      %v6371 = vmul.f32 %v5619, %v6348
      %v6372 = vmul.f32 %v5616, %v6342
      %v6373 = vmul.f32 %v5590, %v6349
      %v6374 = vmul.f32 %v5591, %v6350
      %v6375 = vmul.f32 %v5592, %v6351
      %v6376 = vmul.f32 %v5620, %v6348
      %6397 = vrot.lane.b32.xlu0 %v6357, 118
      %v6398 = vpop.permute.xlu0 %6397
      %6399 = vrot.lane.b32.xlu0 %v6358, 118
      %v6400 = vpop.permute.xlu0 %6399
      %6401 = vrot.lane.b32.xlu0 %v6359, 118
      %v6402 = vpop.permute.xlu0 %6401
      %6403 = vrot.lane.b32.xlu0 %v6360, 118
      %v6404 = vpop.permute.xlu0 %6403
      %6405 = vrot.lane.b32.xlu0 %v6361, 118
      %v6406 = vpop.permute.xlu0 %6405
      %6407 = vrot.lane.b32.xlu0 %v6362, 118
      %v6408 = vpop.permute.xlu0 %6407
      %6409 = vrot.lane.b32.xlu0 %v6363, 118
      %v6410 = vpop.permute.xlu0 %6409
      %6411 = vrot.lane.b32.xlu0 %v6364, 118
      %v6412 = vpop.permute.xlu0 %6411
      %6413 = vrot.lane.b32.xlu0 %v6365, 118
      %v6414 = vpop.permute.xlu0 %6413
      %6415 = vrot.lane.b32.xlu0 %v6366, 118
      %v6416 = vpop.permute.xlu0 %6415
      %6417 = vrot.lane.b32.xlu0 %v6367, 118
      %v6418 = vpop.permute.xlu0 %6417
      %6419 = vrot.lane.b32.xlu0 %v6368, 118
      %v6420 = vpop.permute.xlu0 %6419
      %6421 = vrot.lane.b32.xlu0 %v6369, 118
      %v6422 = vpop.permute.xlu0 %6421
      %6423 = vrot.lane.b32.xlu0 %v6370, 118
      %v6424 = vpop.permute.xlu0 %6423
      %6425 = vrot.lane.b32.xlu0 %v6371, 118
      %v6426 = vpop.permute.xlu0 %6425
      %6427 = vrot.lane.b32.xlu0 %v6372, 118
      %v6428 = vpop.permute.xlu0 %6427
      %6429 = vrot.lane.b32.xlu0 %v6373, 118
      %v6430 = vpop.permute.xlu0 %6429
      %6431 = vrot.lane.b32.xlu0 %v6374, 118
      %v6432 = vpop.permute.xlu0 %6431
      %6433 = vrot.lane.b32.xlu0 %v6375, 118
      %v6434 = vpop.permute.xlu0 %6433
      %6435 = vrot.lane.b32.xlu0 %v6376, 118
      %v6436 = vpop.permute.xlu0 %6435
      %v6437 = vsel %vm749, %v6398, %v6400
      %v6438 = vsel %vm749, %v6400, %v6402
      %v6439 = vsel %vm749, %v6402, %v6404
      %v6440 = vsel %vm749, %v6404, %v6406
      %v6441 = vsel %vm749, %v6408, %v6410
      %v6442 = vsel %vm749, %v6410, %v6412
      %v6443 = vsel %vm749, %v6412, %v6414
      %v6444 = vsel %vm749, %v6414, %v6416
      %v6445 = vsel %vm749, %v6418, %v6420
      %v6446 = vsel %vm749, %v6420, %v6422
      %v6447 = vsel %vm749, %v6422, %v6424
      %v6448 = vsel %vm749, %v6424, %v6426
      %v6449 = vsel %vm749, %v6428, %v6430
      %v6450 = vsel %vm749, %v6430, %v6432
      %v6451 = vsel %vm749, %v6432, %v6434
      %v6452 = vsel %vm749, %v6434, %v6436
      %6469 = vst [vmem:[#allocation2 + $0x280] sm:$0xff] %v6437
      %6470 = vst [vmem:[#allocation2 + $0x288] sm:$0xff] %v6438
      %6471 = vst [vmem:[#allocation2 + $0x290] sm:$0xff] %v6439
      %6472 = vst [vmem:[#allocation2 + $0x298] sm:$0xff] %v6440
      %6473 = vst [vmem:[#allocation2 + $0x2a0] sm:$0xff] %v6441
      %6474 = vst [vmem:[#allocation2 + $0x2a8] sm:$0xff] %v6442
      %6475 = vst [vmem:[#allocation2 + $0x2b0] sm:$0xff] %v6443
      %6476 = vst [vmem:[#allocation2 + $0x2b8] sm:$0xff] %v6444
      %6477 = vst [vmem:[#allocation2 + $0x2c0] sm:$0xff] %v6445
      %6478 = vst [vmem:[#allocation2 + $0x2c8] sm:$0xff] %v6446
      %6479 = vst [vmem:[#allocation2 + $0x2d0] sm:$0xff] %v6447
      %6480 = vst [vmem:[#allocation2 + $0x2d8] sm:$0xff] %v6448
      %6481 = vst [vmem:[#allocation2 + $0x2e0] sm:$0xff] %v6449
      %6482 = vst [vmem:[#allocation2 + $0x2e8] sm:$0xff] %v6450
      %6483 = vst [vmem:[#allocation2 + $0x2f0] sm:$0xff] %v6451
      %6484 = vst [vmem:[#allocation2 + $0x2f8] sm:$0xff] %v6452
      %v6485 = vld [vmem:[%s762] ss:$8 sm:$0xf]
      %v6487 = vlaneseq
      %v6488 = vshrl.u32 %v6487, 7
      %v6489 = vsub.s32 0, %v6488
      %v6490 = vrot.slane %v6485, %v6489
      %v6491 = vlaneseq
      %v6492 = vshrl.u32 %v6491, 7
      %v6493 = vsub.s32 1, %v6492
      %v6494 = vrot.slane %v6485, %v6493
      %v6495 = vlaneseq
      %v6496 = vshrl.u32 %v6495, 7
      %v6497 = vsub.s32 2, %v6496
      %v6498 = vrot.slane %v6485, %v6497
      %v6499 = vlaneseq
      %v6500 = vshrl.u32 %v6499, 7
      %v6501 = vsub.s32 3, %v6500
      %v6502 = vrot.slane %v6485, %v6501
      %6503 = vrot.lane.b32.xlu0 %v6490, 16
      %v6504 = vpop.permute.xlu0 %6503
      %6505 = vrot.lane.b32.xlu0 %v6494, 16
      %v6506 = vpop.permute.xlu0 %6505
      %6507 = vrot.lane.b32.xlu0 %v6498, 16
      %v6508 = vpop.permute.xlu0 %6507
      %6509 = vrot.lane.b32.xlu0 %v6502, 16
      %v6510 = vpop.permute.xlu0 %6509
      %v6511 = vsel %vm789, %v6504, %v6506
      %v6512 = vsel %vm789, %v6506, %v6508
      %v6513 = vsel %vm789, %v6508, %v6510
      %v6519 = vmul.f32 %v5613, %v6504
      %v6520 = vmul.f32 %v5581, %v6511
      %v6521 = vmul.f32 %v5582, %v6512
      %v6522 = vmul.f32 %v5583, %v6513
      %v6523 = vmul.f32 %v5617, %v6510
      %v6524 = vmul.f32 %v5614, %v6504
      %v6525 = vmul.f32 %v5584, %v6511
      %v6526 = vmul.f32 %v5585, %v6512
      %v6527 = vmul.f32 %v5586, %v6513
      %v6528 = vmul.f32 %v5618, %v6510
      %v6529 = vmul.f32 %v5615, %v6504
      %v6530 = vmul.f32 %v5587, %v6511
      %v6531 = vmul.f32 %v5588, %v6512
      %v6532 = vmul.f32 %v5589, %v6513
      %v6533 = vmul.f32 %v5619, %v6510
      %v6534 = vmul.f32 %v5616, %v6504
      %v6535 = vmul.f32 %v5590, %v6511
      %v6536 = vmul.f32 %v5591, %v6512
      %v6537 = vmul.f32 %v5592, %v6513
      %v6538 = vmul.f32 %v5620, %v6510
      %6559 = vrot.lane.b32.xlu0 %v6519, 112
      %v6560 = vpop.permute.xlu0 %6559
      %6561 = vrot.lane.b32.xlu0 %v6520, 112
      %v6562 = vpop.permute.xlu0 %6561
      %6563 = vrot.lane.b32.xlu0 %v6521, 112
      %v6564 = vpop.permute.xlu0 %6563
      %6565 = vrot.lane.b32.xlu0 %v6522, 112
      %v6566 = vpop.permute.xlu0 %6565
      %6567 = vrot.lane.b32.xlu0 %v6523, 112
      %v6568 = vpop.permute.xlu0 %6567
      %6569 = vrot.lane.b32.xlu0 %v6524, 112
      %v6570 = vpop.permute.xlu0 %6569
      %6571 = vrot.lane.b32.xlu0 %v6525, 112
      %v6572 = vpop.permute.xlu0 %6571
      %6573 = vrot.lane.b32.xlu0 %v6526, 112
      %v6574 = vpop.permute.xlu0 %6573
      %6575 = vrot.lane.b32.xlu0 %v6527, 112
      %v6576 = vpop.permute.xlu0 %6575
      %6577 = vrot.lane.b32.xlu0 %v6528, 112
      %v6578 = vpop.permute.xlu0 %6577
      %6579 = vrot.lane.b32.xlu0 %v6529, 112
      %v6580 = vpop.permute.xlu0 %6579
      %6581 = vrot.lane.b32.xlu0 %v6530, 112
      %v6582 = vpop.permute.xlu0 %6581
      %6583 = vrot.lane.b32.xlu0 %v6531, 112
      %v6584 = vpop.permute.xlu0 %6583
      %6585 = vrot.lane.b32.xlu0 %v6532, 112
      %v6586 = vpop.permute.xlu0 %6585
      %6587 = vrot.lane.b32.xlu0 %v6533, 112
      %v6588 = vpop.permute.xlu0 %6587
      %6589 = vrot.lane.b32.xlu0 %v6534, 112
      %v6590 = vpop.permute.xlu0 %6589
      %6591 = vrot.lane.b32.xlu0 %v6535, 112
      %v6592 = vpop.permute.xlu0 %6591
      %6593 = vrot.lane.b32.xlu0 %v6536, 112
      %v6594 = vpop.permute.xlu0 %6593
      %6595 = vrot.lane.b32.xlu0 %v6537, 112
      %v6596 = vpop.permute.xlu0 %6595
      %6597 = vrot.lane.b32.xlu0 %v6538, 112
      %v6598 = vpop.permute.xlu0 %6597
      %v6599 = vsel %vm818, %v6560, %v6562
      %v6600 = vsel %vm818, %v6562, %v6564
      %v6601 = vsel %vm818, %v6564, %v6566
      %v6602 = vsel %vm818, %v6566, %v6568
      %v6603 = vsel %vm818, %v6570, %v6572
      %v6604 = vsel %vm818, %v6572, %v6574
      %v6605 = vsel %vm818, %v6574, %v6576
      %v6606 = vsel %vm818, %v6576, %v6578
      %v6607 = vsel %vm818, %v6580, %v6582
      %v6608 = vsel %vm818, %v6582, %v6584
      %v6609 = vsel %vm818, %v6584, %v6586
      %v6610 = vsel %vm818, %v6586, %v6588
      %v6611 = vsel %vm818, %v6590, %v6592
      %v6612 = vsel %vm818, %v6592, %v6594
      %v6613 = vsel %vm818, %v6594, %v6596
      %v6614 = vsel %vm818, %v6596, %v6598
      %6631 = vst [vmem:[#allocation2 + $0x300] sm:$0xff] %v6599
      %6632 = vst [vmem:[#allocation2 + $0x308] sm:$0xff] %v6600
      %6633 = vst [vmem:[#allocation2 + $0x310] sm:$0xff] %v6601
      %6634 = vst [vmem:[#allocation2 + $0x318] sm:$0xff] %v6602
      %6635 = vst [vmem:[#allocation2 + $0x320] sm:$0xff] %v6603
      %6636 = vst [vmem:[#allocation2 + $0x328] sm:$0xff] %v6604
      %6637 = vst [vmem:[#allocation2 + $0x330] sm:$0xff] %v6605
      %6638 = vst [vmem:[#allocation2 + $0x338] sm:$0xff] %v6606
      %6639 = vst [vmem:[#allocation2 + $0x340] sm:$0xff] %v6607
      %6640 = vst [vmem:[#allocation2 + $0x348] sm:$0xff] %v6608
      %6641 = vst [vmem:[#allocation2 + $0x350] sm:$0xff] %v6609
      %6642 = vst [vmem:[#allocation2 + $0x358] sm:$0xff] %v6610
      %6643 = vst [vmem:[#allocation2 + $0x360] sm:$0xff] %v6611
      %6644 = vst [vmem:[#allocation2 + $0x368] sm:$0xff] %v6612
      %6645 = vst [vmem:[#allocation2 + $0x370] sm:$0xff] %v6613
      %6646 = vst [vmem:[#allocation2 + $0x378] sm:$0xff] %v6614
      %v6647 = vld [vmem:[%s831] ss:$8 sm:$0xf]
      %v6649 = vlaneseq
      %v6650 = vshrl.u32 %v6649, 7
      %v6651 = vsub.s32 0, %v6650
      %v6652 = vrot.slane %v6647, %v6651
      %v6653 = vlaneseq
      %v6654 = vshrl.u32 %v6653, 7
      %v6655 = vsub.s32 1, %v6654
      %v6656 = vrot.slane %v6647, %v6655
      %v6657 = vlaneseq
      %v6658 = vshrl.u32 %v6657, 7
      %v6659 = vsub.s32 2, %v6658
      %v6660 = vrot.slane %v6647, %v6659
      %v6661 = vlaneseq
      %v6662 = vshrl.u32 %v6661, 7
      %v6663 = vsub.s32 3, %v6662
      %v6664 = vrot.slane %v6647, %v6663
      %6665 = vrot.lane.b32.xlu0 %v6652, 17
      %v6666 = vpop.permute.xlu0 %6665
      %6667 = vrot.lane.b32.xlu0 %v6656, 17
      %v6668 = vpop.permute.xlu0 %6667
      %6669 = vrot.lane.b32.xlu0 %v6660, 17
      %v6670 = vpop.permute.xlu0 %6669
      %6671 = vrot.lane.b32.xlu0 %v6664, 17
      %v6672 = vpop.permute.xlu0 %6671
      %v6673 = vsel %vm858, %v6666, %v6668
      %v6674 = vsel %vm858, %v6668, %v6670
      %v6675 = vsel %vm858, %v6670, %v6672
      %v6681 = vmul.f32 %v5613, %v6666
      %v6682 = vmul.f32 %v5581, %v6673
      %v6683 = vmul.f32 %v5582, %v6674
      %v6684 = vmul.f32 %v5583, %v6675
      %v6685 = vmul.f32 %v5617, %v6672
      %v6686 = vmul.f32 %v5614, %v6666
      %v6687 = vmul.f32 %v5584, %v6673
      %v6688 = vmul.f32 %v5585, %v6674
      %v6689 = vmul.f32 %v5586, %v6675
      %v6690 = vmul.f32 %v5618, %v6672
      %v6691 = vmul.f32 %v5615, %v6666
      %v6692 = vmul.f32 %v5587, %v6673
      %v6693 = vmul.f32 %v5588, %v6674
      %v6694 = vmul.f32 %v5589, %v6675
      %v6695 = vmul.f32 %v5619, %v6672
      %v6696 = vmul.f32 %v5616, %v6666
      %v6697 = vmul.f32 %v5590, %v6673
      %v6698 = vmul.f32 %v5591, %v6674
      %v6699 = vmul.f32 %v5592, %v6675
      %v6700 = vmul.f32 %v5620, %v6672
      %6721 = vrot.lane.b32.xlu0 %v6681, 111
      %v6722 = vpop.permute.xlu0 %6721
      %6723 = vrot.lane.b32.xlu0 %v6682, 111
      %v6724 = vpop.permute.xlu0 %6723
      %6725 = vrot.lane.b32.xlu0 %v6683, 111
      %v6726 = vpop.permute.xlu0 %6725
      %6727 = vrot.lane.b32.xlu0 %v6684, 111
      %v6728 = vpop.permute.xlu0 %6727
      %6729 = vrot.lane.b32.xlu0 %v6685, 111
      %v6730 = vpop.permute.xlu0 %6729
      %6731 = vrot.lane.b32.xlu0 %v6686, 111
      %v6732 = vpop.permute.xlu0 %6731
      %6733 = vrot.lane.b32.xlu0 %v6687, 111
      %v6734 = vpop.permute.xlu0 %6733
      %6735 = vrot.lane.b32.xlu0 %v6688, 111
      %v6736 = vpop.permute.xlu0 %6735
      %6737 = vrot.lane.b32.xlu0 %v6689, 111
      %v6738 = vpop.permute.xlu0 %6737
      %6739 = vrot.lane.b32.xlu0 %v6690, 111
      %v6740 = vpop.permute.xlu0 %6739
      %6741 = vrot.lane.b32.xlu0 %v6691, 111
      %v6742 = vpop.permute.xlu0 %6741
      %6743 = vrot.lane.b32.xlu0 %v6692, 111
      %v6744 = vpop.permute.xlu0 %6743
      %6745 = vrot.lane.b32.xlu0 %v6693, 111
      %v6746 = vpop.permute.xlu0 %6745
      %6747 = vrot.lane.b32.xlu0 %v6694, 111
      %v6748 = vpop.permute.xlu0 %6747
      %6749 = vrot.lane.b32.xlu0 %v6695, 111
      %v6750 = vpop.permute.xlu0 %6749
      %6751 = vrot.lane.b32.xlu0 %v6696, 111
      %v6752 = vpop.permute.xlu0 %6751
      %6753 = vrot.lane.b32.xlu0 %v6697, 111
      %v6754 = vpop.permute.xlu0 %6753
      %6755 = vrot.lane.b32.xlu0 %v6698, 111
      %v6756 = vpop.permute.xlu0 %6755
      %6757 = vrot.lane.b32.xlu0 %v6699, 111
      %v6758 = vpop.permute.xlu0 %6757
      %6759 = vrot.lane.b32.xlu0 %v6700, 111
      %v6760 = vpop.permute.xlu0 %6759
      %v6761 = vsel %vm887, %v6722, %v6724
      %v6762 = vsel %vm887, %v6724, %v6726
      %v6763 = vsel %vm887, %v6726, %v6728
      %v6764 = vsel %vm887, %v6728, %v6730
      %v6765 = vsel %vm887, %v6732, %v6734
      %v6766 = vsel %vm887, %v6734, %v6736
      %v6767 = vsel %vm887, %v6736, %v6738
      %v6768 = vsel %vm887, %v6738, %v6740
      %v6769 = vsel %vm887, %v6742, %v6744
      %v6770 = vsel %vm887, %v6744, %v6746
      %v6771 = vsel %vm887, %v6746, %v6748
      %v6772 = vsel %vm887, %v6748, %v6750
      %v6773 = vsel %vm887, %v6752, %v6754
      %v6774 = vsel %vm887, %v6754, %v6756
      %v6775 = vsel %vm887, %v6756, %v6758
      %v6776 = vsel %vm887, %v6758, %v6760
      %6793 = vst [vmem:[#allocation2 + $0x380] sm:$0xff] %v6761
      %6794 = vst [vmem:[#allocation2 + $0x388] sm:$0xff] %v6762
      %6795 = vst [vmem:[#allocation2 + $0x390] sm:$0xff] %v6763
      %6796 = vst [vmem:[#allocation2 + $0x398] sm:$0xff] %v6764
      %6797 = vst [vmem:[#allocation2 + $0x3a0] sm:$0xff] %v6765
      %6798 = vst [vmem:[#allocation2 + $0x3a8] sm:$0xff] %v6766
      %6799 = vst [vmem:[#allocation2 + $0x3b0] sm:$0xff] %v6767
      %6800 = vst [vmem:[#allocation2 + $0x3b8] sm:$0xff] %v6768
      %6801 = vst [vmem:[#allocation2 + $0x3c0] sm:$0xff] %v6769
      %6802 = vst [vmem:[#allocation2 + $0x3c8] sm:$0xff] %v6770
      %6803 = vst [vmem:[#allocation2 + $0x3d0] sm:$0xff] %v6771
      %6804 = vst [vmem:[#allocation2 + $0x3d8] sm:$0xff] %v6772
      %6805 = vst [vmem:[#allocation2 + $0x3e0] sm:$0xff] %v6773
      %6806 = vst [vmem:[#allocation2 + $0x3e8] sm:$0xff] %v6774
      %6807 = vst [vmem:[#allocation2 + $0x3f0] sm:$0xff] %v6775
      %6808 = vst [vmem:[#allocation2 + $0x3f8] sm:$0xff] %v6776
      %v6809 = vld [vmem:[%s900] ss:$8 sm:$0xf]
      %v6811 = vlaneseq
      %v6812 = vshrl.u32 %v6811, 7
      %v6813 = vsub.s32 0, %v6812
      %v6814 = vrot.slane %v6809, %v6813
      %v6815 = vlaneseq
      %v6816 = vshrl.u32 %v6815, 7
      %v6817 = vsub.s32 1, %v6816
      %v6818 = vrot.slane %v6809, %v6817
      %v6819 = vlaneseq
      %v6820 = vshrl.u32 %v6819, 7
      %v6821 = vsub.s32 2, %v6820
      %v6822 = vrot.slane %v6809, %v6821
      %v6823 = vlaneseq
      %v6824 = vshrl.u32 %v6823, 7
      %v6825 = vsub.s32 3, %v6824
      %v6826 = vrot.slane %v6809, %v6825
      %6827 = vrot.lane.b32.xlu0 %v6814, 18
      %v6828 = vpop.permute.xlu0 %6827
      %6829 = vrot.lane.b32.xlu0 %v6818, 18
      %v6830 = vpop.permute.xlu0 %6829
      %6831 = vrot.lane.b32.xlu0 %v6822, 18
      %v6832 = vpop.permute.xlu0 %6831
      %6833 = vrot.lane.b32.xlu0 %v6826, 18
      %v6834 = vpop.permute.xlu0 %6833
      %v6835 = vsel %vm927, %v6828, %v6830
      %v6836 = vsel %vm927, %v6830, %v6832
      %v6837 = vsel %vm927, %v6832, %v6834
      %v6843 = vmul.f32 %v5613, %v6828
      %v6844 = vmul.f32 %v5581, %v6835
      %v6845 = vmul.f32 %v5582, %v6836
      %v6846 = vmul.f32 %v5583, %v6837
      %v6847 = vmul.f32 %v5617, %v6834
      %v6848 = vmul.f32 %v5614, %v6828
      %v6849 = vmul.f32 %v5584, %v6835
      %v6850 = vmul.f32 %v5585, %v6836
      %v6851 = vmul.f32 %v5586, %v6837
      %v6852 = vmul.f32 %v5618, %v6834
      %v6853 = vmul.f32 %v5615, %v6828
      %v6854 = vmul.f32 %v5587, %v6835
      %v6855 = vmul.f32 %v5588, %v6836
      %v6856 = vmul.f32 %v5589, %v6837
      %v6857 = vmul.f32 %v5619, %v6834
      %v6858 = vmul.f32 %v5616, %v6828
      %v6859 = vmul.f32 %v5590, %v6835
      %v6860 = vmul.f32 %v5591, %v6836
      %v6861 = vmul.f32 %v5592, %v6837
      %v6862 = vmul.f32 %v5620, %v6834
      %6883 = vrot.lane.b32.xlu0 %v6843, 110
      %v6884 = vpop.permute.xlu0 %6883
      %6885 = vrot.lane.b32.xlu0 %v6844, 110
      %v6886 = vpop.permute.xlu0 %6885
      %6887 = vrot.lane.b32.xlu0 %v6845, 110
      %v6888 = vpop.permute.xlu0 %6887
      %6889 = vrot.lane.b32.xlu0 %v6846, 110
      %v6890 = vpop.permute.xlu0 %6889
      %6891 = vrot.lane.b32.xlu0 %v6847, 110
      %v6892 = vpop.permute.xlu0 %6891
      %6893 = vrot.lane.b32.xlu0 %v6848, 110
      %v6894 = vpop.permute.xlu0 %6893
      %6895 = vrot.lane.b32.xlu0 %v6849, 110
      %v6896 = vpop.permute.xlu0 %6895
      %6897 = vrot.lane.b32.xlu0 %v6850, 110
      %v6898 = vpop.permute.xlu0 %6897
      %6899 = vrot.lane.b32.xlu0 %v6851, 110
      %v6900 = vpop.permute.xlu0 %6899
      %6901 = vrot.lane.b32.xlu0 %v6852, 110
      %v6902 = vpop.permute.xlu0 %6901
      %6903 = vrot.lane.b32.xlu0 %v6853, 110
      %v6904 = vpop.permute.xlu0 %6903
      %6905 = vrot.lane.b32.xlu0 %v6854, 110
      %v6906 = vpop.permute.xlu0 %6905
      %6907 = vrot.lane.b32.xlu0 %v6855, 110
      %v6908 = vpop.permute.xlu0 %6907
      %6909 = vrot.lane.b32.xlu0 %v6856, 110
      %v6910 = vpop.permute.xlu0 %6909
      %6911 = vrot.lane.b32.xlu0 %v6857, 110
      %v6912 = vpop.permute.xlu0 %6911
      %6913 = vrot.lane.b32.xlu0 %v6858, 110
      %v6914 = vpop.permute.xlu0 %6913
      %6915 = vrot.lane.b32.xlu0 %v6859, 110
      %v6916 = vpop.permute.xlu0 %6915
      %6917 = vrot.lane.b32.xlu0 %v6860, 110
      %v6918 = vpop.permute.xlu0 %6917
      %6919 = vrot.lane.b32.xlu0 %v6861, 110
      %v6920 = vpop.permute.xlu0 %6919
      %6921 = vrot.lane.b32.xlu0 %v6862, 110
      %v6922 = vpop.permute.xlu0 %6921
      %v6923 = vsel %vm956, %v6884, %v6886
      %v6924 = vsel %vm956, %v6886, %v6888
      %v6925 = vsel %vm956, %v6888, %v6890
      %v6926 = vsel %vm956, %v6890, %v6892
      %v6927 = vsel %vm956, %v6894, %v6896
      %v6928 = vsel %vm956, %v6896, %v6898
      %v6929 = vsel %vm956, %v6898, %v6900
      %v6930 = vsel %vm956, %v6900, %v6902
      %v6931 = vsel %vm956, %v6904, %v6906
      %v6932 = vsel %vm956, %v6906, %v6908
      %v6933 = vsel %vm956, %v6908, %v6910
      %v6934 = vsel %vm956, %v6910, %v6912
      %v6935 = vsel %vm956, %v6914, %v6916
      %v6936 = vsel %vm956, %v6916, %v6918
      %v6937 = vsel %vm956, %v6918, %v6920
      %v6938 = vsel %vm956, %v6920, %v6922
      %6955 = vst [vmem:[#allocation2 + $0x400] sm:$0xff] %v6923
      %6956 = vst [vmem:[#allocation2 + $0x408] sm:$0xff] %v6924
      %6957 = vst [vmem:[#allocation2 + $0x410] sm:$0xff] %v6925
      %6958 = vst [vmem:[#allocation2 + $0x418] sm:$0xff] %v6926
      %6959 = vst [vmem:[#allocation2 + $0x420] sm:$0xff] %v6927
      %6960 = vst [vmem:[#allocation2 + $0x428] sm:$0xff] %v6928
      %6961 = vst [vmem:[#allocation2 + $0x430] sm:$0xff] %v6929
      %6962 = vst [vmem:[#allocation2 + $0x438] sm:$0xff] %v6930
      %6963 = vst [vmem:[#allocation2 + $0x440] sm:$0xff] %v6931
      %6964 = vst [vmem:[#allocation2 + $0x448] sm:$0xff] %v6932
      %6965 = vst [vmem:[#allocation2 + $0x450] sm:$0xff] %v6933
      %6966 = vst [vmem:[#allocation2 + $0x458] sm:$0xff] %v6934
      %6967 = vst [vmem:[#allocation2 + $0x460] sm:$0xff] %v6935
      %6968 = vst [vmem:[#allocation2 + $0x468] sm:$0xff] %v6936
      %6969 = vst [vmem:[#allocation2 + $0x470] sm:$0xff] %v6937
      %6970 = vst [vmem:[#allocation2 + $0x478] sm:$0xff] %v6938
      %v6971 = vld [vmem:[%s969] ss:$8 sm:$0xf]
      %v6973 = vlaneseq
      %v6974 = vshrl.u32 %v6973, 7
      %v6975 = vsub.s32 0, %v6974
      %v6976 = vrot.slane %v6971, %v6975
      %v6977 = vlaneseq
      %v6978 = vshrl.u32 %v6977, 7
      %v6979 = vsub.s32 1, %v6978
      %v6980 = vrot.slane %v6971, %v6979
      %v6981 = vlaneseq
      %v6982 = vshrl.u32 %v6981, 7
      %v6983 = vsub.s32 2, %v6982
      %v6984 = vrot.slane %v6971, %v6983
      %v6985 = vlaneseq
      %v6986 = vshrl.u32 %v6985, 7
      %v6987 = vsub.s32 3, %v6986
      %v6988 = vrot.slane %v6971, %v6987
      %6989 = vrot.lane.b32.xlu0 %v6976, 64
      %v6990 = vpop.permute.xlu0 %6989
      %6991 = vrot.lane.b32.xlu0 %v6980, 64
      %v6992 = vpop.permute.xlu0 %6991
      %6993 = vrot.lane.b32.xlu0 %v6984, 64
      %v6994 = vpop.permute.xlu0 %6993
      %6995 = vrot.lane.b32.xlu0 %v6988, 64
      %v6996 = vpop.permute.xlu0 %6995
      %v6997 = vsel %vm996, %v6990, %v6992
      %v6998 = vsel %vm996, %v6992, %v6994
      %v6999 = vsel %vm996, %v6994, %v6996
      %v7005 = vmul.f32 %v5613, %v6990
      %v7006 = vmul.f32 %v5581, %v6997
      %v7007 = vmul.f32 %v5582, %v6998
      %v7008 = vmul.f32 %v5583, %v6999
      %v7009 = vmul.f32 %v5617, %v6996
      %v7010 = vmul.f32 %v5614, %v6990
      %v7011 = vmul.f32 %v5584, %v6997
      %v7012 = vmul.f32 %v5585, %v6998
      %v7013 = vmul.f32 %v5586, %v6999
      %v7014 = vmul.f32 %v5618, %v6996
      %v7015 = vmul.f32 %v5615, %v6990
      %v7016 = vmul.f32 %v5587, %v6997
      %v7017 = vmul.f32 %v5588, %v6998
      %v7018 = vmul.f32 %v5589, %v6999
      %v7019 = vmul.f32 %v5619, %v6996
      %v7020 = vmul.f32 %v5616, %v6990
      %v7021 = vmul.f32 %v5590, %v6997
      %v7022 = vmul.f32 %v5591, %v6998
      %v7023 = vmul.f32 %v5592, %v6999
      %v7024 = vmul.f32 %v5620, %v6996
      %7045 = vrot.lane.b32.xlu0 %v7005, 64
      %v7046 = vpop.permute.xlu0 %7045
      %7047 = vrot.lane.b32.xlu0 %v7006, 64
      %v7048 = vpop.permute.xlu0 %7047
      %7049 = vrot.lane.b32.xlu0 %v7007, 64
      %v7050 = vpop.permute.xlu0 %7049
      %7051 = vrot.lane.b32.xlu0 %v7008, 64
      %v7052 = vpop.permute.xlu0 %7051
      %7053 = vrot.lane.b32.xlu0 %v7009, 64
      %v7054 = vpop.permute.xlu0 %7053
      %7055 = vrot.lane.b32.xlu0 %v7010, 64
      %v7056 = vpop.permute.xlu0 %7055
      %7057 = vrot.lane.b32.xlu0 %v7011, 64
      %v7058 = vpop.permute.xlu0 %7057
      %7059 = vrot.lane.b32.xlu0 %v7012, 64
      %v7060 = vpop.permute.xlu0 %7059
      %7061 = vrot.lane.b32.xlu0 %v7013, 64
      %v7062 = vpop.permute.xlu0 %7061
      %7063 = vrot.lane.b32.xlu0 %v7014, 64
      %v7064 = vpop.permute.xlu0 %7063
      %7065 = vrot.lane.b32.xlu0 %v7015, 64
      %v7066 = vpop.permute.xlu0 %7065
      %7067 = vrot.lane.b32.xlu0 %v7016, 64
      %v7068 = vpop.permute.xlu0 %7067
      %7069 = vrot.lane.b32.xlu0 %v7017, 64
      %v7070 = vpop.permute.xlu0 %7069
      %7071 = vrot.lane.b32.xlu0 %v7018, 64
      %v7072 = vpop.permute.xlu0 %7071
      %7073 = vrot.lane.b32.xlu0 %v7019, 64
      %v7074 = vpop.permute.xlu0 %7073
      %7075 = vrot.lane.b32.xlu0 %v7020, 64
      %v7076 = vpop.permute.xlu0 %7075
      %7077 = vrot.lane.b32.xlu0 %v7021, 64
      %v7078 = vpop.permute.xlu0 %7077
      %7079 = vrot.lane.b32.xlu0 %v7022, 64
      %v7080 = vpop.permute.xlu0 %7079
      %7081 = vrot.lane.b32.xlu0 %v7023, 64
      %v7082 = vpop.permute.xlu0 %7081
      %7083 = vrot.lane.b32.xlu0 %v7024, 64
      %v7084 = vpop.permute.xlu0 %7083
      %v7085 = vsel %vm996, %v7046, %v7048
      %v7086 = vsel %vm996, %v7048, %v7050
      %v7087 = vsel %vm996, %v7050, %v7052
      %v7088 = vsel %vm996, %v7052, %v7054
      %v7089 = vsel %vm996, %v7056, %v7058
      %v7090 = vsel %vm996, %v7058, %v7060
      %v7091 = vsel %vm996, %v7060, %v7062
      %v7092 = vsel %vm996, %v7062, %v7064
      %v7093 = vsel %vm996, %v7066, %v7068
      %v7094 = vsel %vm996, %v7068, %v7070
      %v7095 = vsel %vm996, %v7070, %v7072
      %v7096 = vsel %vm996, %v7072, %v7074
      %v7097 = vsel %vm996, %v7076, %v7078
      %v7098 = vsel %vm996, %v7078, %v7080
      %v7099 = vsel %vm996, %v7080, %v7082
      %v7100 = vsel %vm996, %v7082, %v7084
      %7117 = vst [vmem:[#allocation2 + $0x480] sm:$0xff] %v7085
      %7118 = vst [vmem:[#allocation2 + $0x488] sm:$0xff] %v7086
      %7119 = vst [vmem:[#allocation2 + $0x490] sm:$0xff] %v7087
      %7120 = vst [vmem:[#allocation2 + $0x498] sm:$0xff] %v7088
      %7121 = vst [vmem:[#allocation2 + $0x4a0] sm:$0xff] %v7089
      %7122 = vst [vmem:[#allocation2 + $0x4a8] sm:$0xff] %v7090
      %7123 = vst [vmem:[#allocation2 + $0x4b0] sm:$0xff] %v7091
      %7124 = vst [vmem:[#allocation2 + $0x4b8] sm:$0xff] %v7092
      %7125 = vst [vmem:[#allocation2 + $0x4c0] sm:$0xff] %v7093
      %7126 = vst [vmem:[#allocation2 + $0x4c8] sm:$0xff] %v7094
      %7127 = vst [vmem:[#allocation2 + $0x4d0] sm:$0xff] %v7095
      %7128 = vst [vmem:[#allocation2 + $0x4d8] sm:$0xff] %v7096
      %7129 = vst [vmem:[#allocation2 + $0x4e0] sm:$0xff] %v7097
      %7130 = vst [vmem:[#allocation2 + $0x4e8] sm:$0xff] %v7098
      %7131 = vst [vmem:[#allocation2 + $0x4f0] sm:$0xff] %v7099
      %7132 = vst [vmem:[#allocation2 + $0x4f8] sm:$0xff] %v7100
      %v7133 = vld [vmem:[%s1037] ss:$8 sm:$0xf]
      %v7135 = vlaneseq
      %v7136 = vshrl.u32 %v7135, 7
      %v7137 = vsub.s32 0, %v7136
      %v7138 = vrot.slane %v7133, %v7137
      %v7139 = vlaneseq
      %v7140 = vshrl.u32 %v7139, 7
      %v7141 = vsub.s32 1, %v7140
      %v7142 = vrot.slane %v7133, %v7141
      %v7143 = vlaneseq
      %v7144 = vshrl.u32 %v7143, 7
      %v7145 = vsub.s32 2, %v7144
      %v7146 = vrot.slane %v7133, %v7145
      %v7147 = vlaneseq
      %v7148 = vshrl.u32 %v7147, 7
      %v7149 = vsub.s32 3, %v7148
      %v7150 = vrot.slane %v7133, %v7149
      %7151 = vrot.lane.b32.xlu0 %v7138, 65
      %v7152 = vpop.permute.xlu0 %7151
      %7153 = vrot.lane.b32.xlu0 %v7142, 65
      %v7154 = vpop.permute.xlu0 %7153
      %7155 = vrot.lane.b32.xlu0 %v7146, 65
      %v7156 = vpop.permute.xlu0 %7155
      %7157 = vrot.lane.b32.xlu0 %v7150, 65
      %v7158 = vpop.permute.xlu0 %7157
      %v7159 = vsel %vm1064, %v7152, %v7154
      %v7160 = vsel %vm1064, %v7154, %v7156
      %v7161 = vsel %vm1064, %v7156, %v7158
      %v7167 = vmul.f32 %v5613, %v7152
      %v7168 = vmul.f32 %v5581, %v7159
      %v7169 = vmul.f32 %v5582, %v7160
      %v7170 = vmul.f32 %v5583, %v7161
      %v7171 = vmul.f32 %v5617, %v7158
      %v7172 = vmul.f32 %v5614, %v7152
      %v7173 = vmul.f32 %v5584, %v7159
      %v7174 = vmul.f32 %v5585, %v7160
      %v7175 = vmul.f32 %v5586, %v7161
      %v7176 = vmul.f32 %v5618, %v7158
      %v7177 = vmul.f32 %v5615, %v7152
      %v7178 = vmul.f32 %v5587, %v7159
      %v7179 = vmul.f32 %v5588, %v7160
      %v7180 = vmul.f32 %v5589, %v7161
      %v7181 = vmul.f32 %v5619, %v7158
      %v7182 = vmul.f32 %v5616, %v7152
      %v7183 = vmul.f32 %v5590, %v7159
      %v7184 = vmul.f32 %v5591, %v7160
      %v7185 = vmul.f32 %v5592, %v7161
      %v7186 = vmul.f32 %v5620, %v7158
      %7207 = vrot.lane.b32.xlu0 %v7167, 63
      %v7208 = vpop.permute.xlu0 %7207
      %7209 = vrot.lane.b32.xlu0 %v7168, 63
      %v7210 = vpop.permute.xlu0 %7209
      %7211 = vrot.lane.b32.xlu0 %v7169, 63
      %v7212 = vpop.permute.xlu0 %7211
      %7213 = vrot.lane.b32.xlu0 %v7170, 63
      %v7214 = vpop.permute.xlu0 %7213
      %7215 = vrot.lane.b32.xlu0 %v7171, 63
      %v7216 = vpop.permute.xlu0 %7215
      %7217 = vrot.lane.b32.xlu0 %v7172, 63
      %v7218 = vpop.permute.xlu0 %7217
      %7219 = vrot.lane.b32.xlu0 %v7173, 63
      %v7220 = vpop.permute.xlu0 %7219
      %7221 = vrot.lane.b32.xlu0 %v7174, 63
      %v7222 = vpop.permute.xlu0 %7221
      %7223 = vrot.lane.b32.xlu0 %v7175, 63
      %v7224 = vpop.permute.xlu0 %7223
      %7225 = vrot.lane.b32.xlu0 %v7176, 63
      %v7226 = vpop.permute.xlu0 %7225
      %7227 = vrot.lane.b32.xlu0 %v7177, 63
      %v7228 = vpop.permute.xlu0 %7227
      %7229 = vrot.lane.b32.xlu0 %v7178, 63
      %v7230 = vpop.permute.xlu0 %7229
      %7231 = vrot.lane.b32.xlu0 %v7179, 63
      %v7232 = vpop.permute.xlu0 %7231
      %7233 = vrot.lane.b32.xlu0 %v7180, 63
      %v7234 = vpop.permute.xlu0 %7233
      %7235 = vrot.lane.b32.xlu0 %v7181, 63
      %v7236 = vpop.permute.xlu0 %7235
      %7237 = vrot.lane.b32.xlu0 %v7182, 63
      %v7238 = vpop.permute.xlu0 %7237
      %7239 = vrot.lane.b32.xlu0 %v7183, 63
      %v7240 = vpop.permute.xlu0 %7239
      %7241 = vrot.lane.b32.xlu0 %v7184, 63
      %v7242 = vpop.permute.xlu0 %7241
      %7243 = vrot.lane.b32.xlu0 %v7185, 63
      %v7244 = vpop.permute.xlu0 %7243
      %7245 = vrot.lane.b32.xlu0 %v7186, 63
      %v7246 = vpop.permute.xlu0 %7245
      %v7247 = vsel %vm1093, %v7208, %v7210
      %v7248 = vsel %vm1093, %v7210, %v7212
      %v7249 = vsel %vm1093, %v7212, %v7214
      %v7250 = vsel %vm1093, %v7214, %v7216
      %v7251 = vsel %vm1093, %v7218, %v7220
      %v7252 = vsel %vm1093, %v7220, %v7222
      %v7253 = vsel %vm1093, %v7222, %v7224
      %v7254 = vsel %vm1093, %v7224, %v7226
      %v7255 = vsel %vm1093, %v7228, %v7230
      %v7256 = vsel %vm1093, %v7230, %v7232
      %v7257 = vsel %vm1093, %v7232, %v7234
      %v7258 = vsel %vm1093, %v7234, %v7236
      %v7259 = vsel %vm1093, %v7238, %v7240
      %v7260 = vsel %vm1093, %v7240, %v7242
      %v7261 = vsel %vm1093, %v7242, %v7244
      %v7262 = vsel %vm1093, %v7244, %v7246
      %7279 = vst [vmem:[#allocation2 + $0x500] sm:$0xff] %v7247
      %7280 = vst [vmem:[#allocation2 + $0x508] sm:$0xff] %v7248
      %7281 = vst [vmem:[#allocation2 + $0x510] sm:$0xff] %v7249
      %7282 = vst [vmem:[#allocation2 + $0x518] sm:$0xff] %v7250
      %7283 = vst [vmem:[#allocation2 + $0x520] sm:$0xff] %v7251
      %7284 = vst [vmem:[#allocation2 + $0x528] sm:$0xff] %v7252
      %7285 = vst [vmem:[#allocation2 + $0x530] sm:$0xff] %v7253
      %7286 = vst [vmem:[#allocation2 + $0x538] sm:$0xff] %v7254
      %7287 = vst [vmem:[#allocation2 + $0x540] sm:$0xff] %v7255
      %7288 = vst [vmem:[#allocation2 + $0x548] sm:$0xff] %v7256
      %7289 = vst [vmem:[#allocation2 + $0x550] sm:$0xff] %v7257
      %7290 = vst [vmem:[#allocation2 + $0x558] sm:$0xff] %v7258
      %7291 = vst [vmem:[#allocation2 + $0x560] sm:$0xff] %v7259
      %7292 = vst [vmem:[#allocation2 + $0x568] sm:$0xff] %v7260
      %7293 = vst [vmem:[#allocation2 + $0x570] sm:$0xff] %v7261
      %7294 = vst [vmem:[#allocation2 + $0x578] sm:$0xff] %v7262
      %v7295 = vld [vmem:[%s1106] ss:$8 sm:$0xf]
      %v7297 = vlaneseq
      %v7298 = vshrl.u32 %v7297, 7
      %v7299 = vsub.s32 0, %v7298
      %v7300 = vrot.slane %v7295, %v7299
      %v7301 = vlaneseq
      %v7302 = vshrl.u32 %v7301, 7
      %v7303 = vsub.s32 1, %v7302
      %v7304 = vrot.slane %v7295, %v7303
      %v7305 = vlaneseq
      %v7306 = vshrl.u32 %v7305, 7
      %v7307 = vsub.s32 2, %v7306
      %v7308 = vrot.slane %v7295, %v7307
      %v7309 = vlaneseq
      %v7310 = vshrl.u32 %v7309, 7
      %v7311 = vsub.s32 3, %v7310
      %v7312 = vrot.slane %v7295, %v7311
      %7313 = vrot.lane.b32.xlu0 %v7300, 66
      %v7314 = vpop.permute.xlu0 %7313
      %7315 = vrot.lane.b32.xlu0 %v7304, 66
      %v7316 = vpop.permute.xlu0 %7315
      %7317 = vrot.lane.b32.xlu0 %v7308, 66
      %v7318 = vpop.permute.xlu0 %7317
      %7319 = vrot.lane.b32.xlu0 %v7312, 66
      %v7320 = vpop.permute.xlu0 %7319
      %v7321 = vsel %vm1133, %v7314, %v7316
      %v7322 = vsel %vm1133, %v7316, %v7318
      %v7323 = vsel %vm1133, %v7318, %v7320
      %v7329 = vmul.f32 %v5613, %v7314
      %v7330 = vmul.f32 %v5581, %v7321
      %v7331 = vmul.f32 %v5582, %v7322
      %v7332 = vmul.f32 %v5583, %v7323
      %v7333 = vmul.f32 %v5617, %v7320
      %v7334 = vmul.f32 %v5614, %v7314
      %v7335 = vmul.f32 %v5584, %v7321
      %v7336 = vmul.f32 %v5585, %v7322
      %v7337 = vmul.f32 %v5586, %v7323
      %v7338 = vmul.f32 %v5618, %v7320
      %v7339 = vmul.f32 %v5615, %v7314
      %v7340 = vmul.f32 %v5587, %v7321
      %v7341 = vmul.f32 %v5588, %v7322
      %v7342 = vmul.f32 %v5589, %v7323
      %v7343 = vmul.f32 %v5619, %v7320
      %v7344 = vmul.f32 %v5616, %v7314
      %v7345 = vmul.f32 %v5590, %v7321
      %v7346 = vmul.f32 %v5591, %v7322
      %v7347 = vmul.f32 %v5592, %v7323
      %v7348 = vmul.f32 %v5620, %v7320
      %7369 = vrot.lane.b32.xlu0 %v7329, 62
      %v7370 = vpop.permute.xlu0 %7369
      %7371 = vrot.lane.b32.xlu0 %v7330, 62
      %v7372 = vpop.permute.xlu0 %7371
      %7373 = vrot.lane.b32.xlu0 %v7331, 62
      %v7374 = vpop.permute.xlu0 %7373
      %7375 = vrot.lane.b32.xlu0 %v7332, 62
      %v7376 = vpop.permute.xlu0 %7375
      %7377 = vrot.lane.b32.xlu0 %v7333, 62
      %v7378 = vpop.permute.xlu0 %7377
      %7379 = vrot.lane.b32.xlu0 %v7334, 62
      %v7380 = vpop.permute.xlu0 %7379
      %7381 = vrot.lane.b32.xlu0 %v7335, 62
      %v7382 = vpop.permute.xlu0 %7381
      %7383 = vrot.lane.b32.xlu0 %v7336, 62
      %v7384 = vpop.permute.xlu0 %7383
      %7385 = vrot.lane.b32.xlu0 %v7337, 62
      %v7386 = vpop.permute.xlu0 %7385
      %7387 = vrot.lane.b32.xlu0 %v7338, 62
      %v7388 = vpop.permute.xlu0 %7387
      %7389 = vrot.lane.b32.xlu0 %v7339, 62
      %v7390 = vpop.permute.xlu0 %7389
      %7391 = vrot.lane.b32.xlu0 %v7340, 62
      %v7392 = vpop.permute.xlu0 %7391
      %7393 = vrot.lane.b32.xlu0 %v7341, 62
      %v7394 = vpop.permute.xlu0 %7393
      %7395 = vrot.lane.b32.xlu0 %v7342, 62
      %v7396 = vpop.permute.xlu0 %7395
      %7397 = vrot.lane.b32.xlu0 %v7343, 62
      %v7398 = vpop.permute.xlu0 %7397
      %7399 = vrot.lane.b32.xlu0 %v7344, 62
      %v7400 = vpop.permute.xlu0 %7399
      %7401 = vrot.lane.b32.xlu0 %v7345, 62
      %v7402 = vpop.permute.xlu0 %7401
      %7403 = vrot.lane.b32.xlu0 %v7346, 62
      %v7404 = vpop.permute.xlu0 %7403
      %7405 = vrot.lane.b32.xlu0 %v7347, 62
      %v7406 = vpop.permute.xlu0 %7405
      %7407 = vrot.lane.b32.xlu0 %v7348, 62
      %v7408 = vpop.permute.xlu0 %7407
      %v7409 = vsel %vm1162, %v7370, %v7372
      %v7410 = vsel %vm1162, %v7372, %v7374
      %v7411 = vsel %vm1162, %v7374, %v7376
      %v7412 = vsel %vm1162, %v7376, %v7378
      %v7413 = vsel %vm1162, %v7380, %v7382
      %v7414 = vsel %vm1162, %v7382, %v7384
      %v7415 = vsel %vm1162, %v7384, %v7386
      %v7416 = vsel %vm1162, %v7386, %v7388
      %v7417 = vsel %vm1162, %v7390, %v7392
      %v7418 = vsel %vm1162, %v7392, %v7394
      %v7419 = vsel %vm1162, %v7394, %v7396
      %v7420 = vsel %vm1162, %v7396, %v7398
      %v7421 = vsel %vm1162, %v7400, %v7402
      %v7422 = vsel %vm1162, %v7402, %v7404
      %v7423 = vsel %vm1162, %v7404, %v7406
      %v7424 = vsel %vm1162, %v7406, %v7408
      %7441 = vst [vmem:[#allocation2 + $0x580] sm:$0xff] %v7409
      %7442 = vst [vmem:[#allocation2 + $0x588] sm:$0xff] %v7410
      %7443 = vst [vmem:[#allocation2 + $0x590] sm:$0xff] %v7411
      %7444 = vst [vmem:[#allocation2 + $0x598] sm:$0xff] %v7412
      %7445 = vst [vmem:[#allocation2 + $0x5a0] sm:$0xff] %v7413
      %7446 = vst [vmem:[#allocation2 + $0x5a8] sm:$0xff] %v7414
      %7447 = vst [vmem:[#allocation2 + $0x5b0] sm:$0xff] %v7415
      %7448 = vst [vmem:[#allocation2 + $0x5b8] sm:$0xff] %v7416
      %7449 = vst [vmem:[#allocation2 + $0x5c0] sm:$0xff] %v7417
      %7450 = vst [vmem:[#allocation2 + $0x5c8] sm:$0xff] %v7418
      %7451 = vst [vmem:[#allocation2 + $0x5d0] sm:$0xff] %v7419
      %7452 = vst [vmem:[#allocation2 + $0x5d8] sm:$0xff] %v7420
      %7453 = vst [vmem:[#allocation2 + $0x5e0] sm:$0xff] %v7421
      %7454 = vst [vmem:[#allocation2 + $0x5e8] sm:$0xff] %v7422
      %7455 = vst [vmem:[#allocation2 + $0x5f0] sm:$0xff] %v7423
      %7456 = vst [vmem:[#allocation2 + $0x5f8] sm:$0xff] %v7424
      %v7457 = vld [vmem:[%s1175] ss:$8 sm:$0xf]
      %v7459 = vlaneseq
      %v7460 = vshrl.u32 %v7459, 7
      %v7461 = vsub.s32 0, %v7460
      %v7462 = vrot.slane %v7457, %v7461
      %v7463 = vlaneseq
      %v7464 = vshrl.u32 %v7463, 7
      %v7465 = vsub.s32 1, %v7464
      %v7466 = vrot.slane %v7457, %v7465
      %v7467 = vlaneseq
      %v7468 = vshrl.u32 %v7467, 7
      %v7469 = vsub.s32 2, %v7468
      %v7470 = vrot.slane %v7457, %v7469
      %v7471 = vlaneseq
      %v7472 = vshrl.u32 %v7471, 7
      %v7473 = vsub.s32 3, %v7472
      %v7474 = vrot.slane %v7457, %v7473
      %7475 = vrot.lane.b32.xlu0 %v7462, 72
      %v7476 = vpop.permute.xlu0 %7475
      %7477 = vrot.lane.b32.xlu0 %v7466, 72
      %v7478 = vpop.permute.xlu0 %7477
      %7479 = vrot.lane.b32.xlu0 %v7470, 72
      %v7480 = vpop.permute.xlu0 %7479
      %7481 = vrot.lane.b32.xlu0 %v7474, 72
      %v7482 = vpop.permute.xlu0 %7481
      %v7483 = vsel %vm1202, %v7476, %v7478
      %v7484 = vsel %vm1202, %v7478, %v7480
      %v7485 = vsel %vm1202, %v7480, %v7482
      %v7491 = vmul.f32 %v5613, %v7476
      %v7492 = vmul.f32 %v5581, %v7483
      %v7493 = vmul.f32 %v5582, %v7484
      %v7494 = vmul.f32 %v5583, %v7485
      %v7495 = vmul.f32 %v5617, %v7482
      %v7496 = vmul.f32 %v5614, %v7476
      %v7497 = vmul.f32 %v5584, %v7483
      %v7498 = vmul.f32 %v5585, %v7484
      %v7499 = vmul.f32 %v5586, %v7485
      %v7500 = vmul.f32 %v5618, %v7482
      %v7501 = vmul.f32 %v5615, %v7476
      %v7502 = vmul.f32 %v5587, %v7483
      %v7503 = vmul.f32 %v5588, %v7484
      %v7504 = vmul.f32 %v5589, %v7485
      %v7505 = vmul.f32 %v5619, %v7482
      %v7506 = vmul.f32 %v5616, %v7476
      %v7507 = vmul.f32 %v5590, %v7483
      %v7508 = vmul.f32 %v5591, %v7484
      %v7509 = vmul.f32 %v5592, %v7485
      %v7510 = vmul.f32 %v5620, %v7482
      %7531 = vrot.lane.b32.xlu0 %v7491, 56
      %v7532 = vpop.permute.xlu0 %7531
      %7533 = vrot.lane.b32.xlu0 %v7492, 56
      %v7534 = vpop.permute.xlu0 %7533
      %7535 = vrot.lane.b32.xlu0 %v7493, 56
      %v7536 = vpop.permute.xlu0 %7535
      %7537 = vrot.lane.b32.xlu0 %v7494, 56
      %v7538 = vpop.permute.xlu0 %7537
      %7539 = vrot.lane.b32.xlu0 %v7495, 56
      %v7540 = vpop.permute.xlu0 %7539
      %7541 = vrot.lane.b32.xlu0 %v7496, 56
      %v7542 = vpop.permute.xlu0 %7541
      %7543 = vrot.lane.b32.xlu0 %v7497, 56
      %v7544 = vpop.permute.xlu0 %7543
      %7545 = vrot.lane.b32.xlu0 %v7498, 56
      %v7546 = vpop.permute.xlu0 %7545
      %7547 = vrot.lane.b32.xlu0 %v7499, 56
      %v7548 = vpop.permute.xlu0 %7547
      %7549 = vrot.lane.b32.xlu0 %v7500, 56
      %v7550 = vpop.permute.xlu0 %7549
      %7551 = vrot.lane.b32.xlu0 %v7501, 56
      %v7552 = vpop.permute.xlu0 %7551
      %7553 = vrot.lane.b32.xlu0 %v7502, 56
      %v7554 = vpop.permute.xlu0 %7553
      %7555 = vrot.lane.b32.xlu0 %v7503, 56
      %v7556 = vpop.permute.xlu0 %7555
      %7557 = vrot.lane.b32.xlu0 %v7504, 56
      %v7558 = vpop.permute.xlu0 %7557
      %7559 = vrot.lane.b32.xlu0 %v7505, 56
      %v7560 = vpop.permute.xlu0 %7559
      %7561 = vrot.lane.b32.xlu0 %v7506, 56
      %v7562 = vpop.permute.xlu0 %7561
      %7563 = vrot.lane.b32.xlu0 %v7507, 56
      %v7564 = vpop.permute.xlu0 %7563
      %7565 = vrot.lane.b32.xlu0 %v7508, 56
      %v7566 = vpop.permute.xlu0 %7565
      %7567 = vrot.lane.b32.xlu0 %v7509, 56
      %v7568 = vpop.permute.xlu0 %7567
      %7569 = vrot.lane.b32.xlu0 %v7510, 56
      %v7570 = vpop.permute.xlu0 %7569
      %v7571 = vsel %vm1231, %v7532, %v7534
      %v7572 = vsel %vm1231, %v7534, %v7536
      %v7573 = vsel %vm1231, %v7536, %v7538
      %v7574 = vsel %vm1231, %v7538, %v7540
      %v7575 = vsel %vm1231, %v7542, %v7544
      %v7576 = vsel %vm1231, %v7544, %v7546
      %v7577 = vsel %vm1231, %v7546, %v7548
      %v7578 = vsel %vm1231, %v7548, %v7550
      %v7579 = vsel %vm1231, %v7552, %v7554
      %v7580 = vsel %vm1231, %v7554, %v7556
      %v7581 = vsel %vm1231, %v7556, %v7558
      %v7582 = vsel %vm1231, %v7558, %v7560
      %v7583 = vsel %vm1231, %v7562, %v7564
      %v7584 = vsel %vm1231, %v7564, %v7566
      %v7585 = vsel %vm1231, %v7566, %v7568
      %v7586 = vsel %vm1231, %v7568, %v7570
      %7603 = vst [vmem:[#allocation2 + $0x600] sm:$0xff] %v7571
      %7604 = vst [vmem:[#allocation2 + $0x608] sm:$0xff] %v7572
      %7605 = vst [vmem:[#allocation2 + $0x610] sm:$0xff] %v7573
      %7606 = vst [vmem:[#allocation2 + $0x618] sm:$0xff] %v7574
      %7607 = vst [vmem:[#allocation2 + $0x620] sm:$0xff] %v7575
      %7608 = vst [vmem:[#allocation2 + $0x628] sm:$0xff] %v7576
      %7609 = vst [vmem:[#allocation2 + $0x630] sm:$0xff] %v7577
      %7610 = vst [vmem:[#allocation2 + $0x638] sm:$0xff] %v7578
      %7611 = vst [vmem:[#allocation2 + $0x640] sm:$0xff] %v7579
      %7612 = vst [vmem:[#allocation2 + $0x648] sm:$0xff] %v7580
      %7613 = vst [vmem:[#allocation2 + $0x650] sm:$0xff] %v7581
      %7614 = vst [vmem:[#allocation2 + $0x658] sm:$0xff] %v7582
      %7615 = vst [vmem:[#allocation2 + $0x660] sm:$0xff] %v7583
      %7616 = vst [vmem:[#allocation2 + $0x668] sm:$0xff] %v7584
      %7617 = vst [vmem:[#allocation2 + $0x670] sm:$0xff] %v7585
      %7618 = vst [vmem:[#allocation2 + $0x678] sm:$0xff] %v7586
      %7627 = vrot.lane.b32.xlu0 %v5613, 55
      %v7628 = vpop.permute.xlu0 %7627
      %7629 = vrot.lane.b32.xlu0 %v5581, 55
      %v7630 = vpop.permute.xlu0 %7629
      %7631 = vrot.lane.b32.xlu0 %v5582, 55
      %v7632 = vpop.permute.xlu0 %7631
      %7633 = vrot.lane.b32.xlu0 %v5583, 55
      %v7634 = vpop.permute.xlu0 %7633
      %7635 = vrot.lane.b32.xlu0 %v5617, 55
      %v7636 = vpop.permute.xlu0 %7635
      %7637 = vrot.lane.b32.xlu0 %v5614, 55
      %v7638 = vpop.permute.xlu0 %7637
      %7639 = vrot.lane.b32.xlu0 %v5584, 55
      %v7640 = vpop.permute.xlu0 %7639
      %7641 = vrot.lane.b32.xlu0 %v5585, 55
      %v7642 = vpop.permute.xlu0 %7641
      %7643 = vrot.lane.b32.xlu0 %v5586, 55
      %v7644 = vpop.permute.xlu0 %7643
      %7645 = vrot.lane.b32.xlu0 %v5618, 55
      %v7646 = vpop.permute.xlu0 %7645
      %7647 = vrot.lane.b32.xlu0 %v5615, 55
      %v7648 = vpop.permute.xlu0 %7647
      %7649 = vrot.lane.b32.xlu0 %v5587, 55
      %v7650 = vpop.permute.xlu0 %7649
      %7651 = vrot.lane.b32.xlu0 %v5588, 55
      %v7652 = vpop.permute.xlu0 %7651
      %7653 = vrot.lane.b32.xlu0 %v5589, 55
      %v7654 = vpop.permute.xlu0 %7653
      %7655 = vrot.lane.b32.xlu0 %v5619, 55
      %v7656 = vpop.permute.xlu0 %7655
      %7657 = vrot.lane.b32.xlu0 %v5616, 55
      %v7658 = vpop.permute.xlu0 %7657
      %7659 = vrot.lane.b32.xlu0 %v5590, 55
      %v7660 = vpop.permute.xlu0 %7659
      %7661 = vrot.lane.b32.xlu0 %v5591, 55
      %v7662 = vpop.permute.xlu0 %7661
      %7663 = vrot.lane.b32.xlu0 %v5592, 55
      %v7664 = vpop.permute.xlu0 %7663
      %7665 = vrot.lane.b32.xlu0 %v5620, 55
      %v7666 = vpop.permute.xlu0 %7665
      %v7667 = vsel %vm1256, %v7628, %v7630
      %v7668 = vsel %vm1256, %v7630, %v7632
      %v7669 = vsel %vm1256, %v7632, %v7634
      %v7670 = vsel %vm1256, %v7634, %v7636
      %v7671 = vsel %vm1256, %v7638, %v7640
      %v7672 = vsel %vm1256, %v7640, %v7642
      %v7673 = vsel %vm1256, %v7642, %v7644
      %v7674 = vsel %vm1256, %v7644, %v7646
      %v7675 = vsel %vm1256, %v7648, %v7650
      %v7676 = vsel %vm1256, %v7650, %v7652
      %v7677 = vsel %vm1256, %v7652, %v7654
      %v7678 = vsel %vm1256, %v7654, %v7656
      %v7679 = vsel %vm1256, %v7658, %v7660
      %v7680 = vsel %vm1256, %v7660, %v7662
      %v7681 = vsel %vm1256, %v7662, %v7664
      %v7682 = vsel %vm1256, %v7664, %v7666
      %7699 = vst [vmem:[#allocation2 + $0x680] sm:$0xff] %v7667
      %7700 = vst [vmem:[#allocation2 + $0x688] sm:$0xff] %v7668
      %7701 = vst [vmem:[#allocation2 + $0x690] sm:$0xff] %v7669
      %7702 = vst [vmem:[#allocation2 + $0x698] sm:$0xff] %v7670
      %7703 = vst [vmem:[#allocation2 + $0x6a0] sm:$0xff] %v7671
      %7704 = vst [vmem:[#allocation2 + $0x6a8] sm:$0xff] %v7672
      %7705 = vst [vmem:[#allocation2 + $0x6b0] sm:$0xff] %v7673
      %7706 = vst [vmem:[#allocation2 + $0x6b8] sm:$0xff] %v7674
      %7707 = vst [vmem:[#allocation2 + $0x6c0] sm:$0xff] %v7675
      %7708 = vst [vmem:[#allocation2 + $0x6c8] sm:$0xff] %v7676
      %7709 = vst [vmem:[#allocation2 + $0x6d0] sm:$0xff] %v7677
      %7710 = vst [vmem:[#allocation2 + $0x6d8] sm:$0xff] %v7678
      %7711 = vst [vmem:[#allocation2 + $0x6e0] sm:$0xff] %v7679
      %7712 = vst [vmem:[#allocation2 + $0x6e8] sm:$0xff] %v7680
      %7713 = vst [vmem:[#allocation2 + $0x6f0] sm:$0xff] %v7681
      %7714 = vst [vmem:[#allocation2 + $0x6f8] sm:$0xff] %v7682
      %v7715 = vld [vmem:[%s1269] ss:$8 sm:$0xf]
      %v7717 = vlaneseq
      %v7718 = vshrl.u32 %v7717, 7
      %v7719 = vsub.s32 0, %v7718
      %v7720 = vrot.slane %v7715, %v7719
      %v7721 = vlaneseq
      %v7722 = vshrl.u32 %v7721, 7
      %v7723 = vsub.s32 1, %v7722
      %v7724 = vrot.slane %v7715, %v7723
      %v7725 = vlaneseq
      %v7726 = vshrl.u32 %v7725, 7
      %v7727 = vsub.s32 2, %v7726
      %v7728 = vrot.slane %v7715, %v7727
      %v7729 = vlaneseq
      %v7730 = vshrl.u32 %v7729, 7
      %v7731 = vsub.s32 3, %v7730
      %v7732 = vrot.slane %v7715, %v7731
      %7733 = vrot.lane.b32.xlu0 %v7720, 74
      %v7734 = vpop.permute.xlu0 %7733
      %7735 = vrot.lane.b32.xlu0 %v7724, 74
      %v7736 = vpop.permute.xlu0 %7735
      %7737 = vrot.lane.b32.xlu0 %v7728, 74
      %v7738 = vpop.permute.xlu0 %7737
      %7739 = vrot.lane.b32.xlu0 %v7732, 74
      %v7740 = vpop.permute.xlu0 %7739
      %v7741 = vsel %vm1296, %v7734, %v7736
      %v7742 = vsel %vm1296, %v7736, %v7738
      %v7743 = vsel %vm1296, %v7738, %v7740
      %v7749 = vmul.f32 %v5613, %v7734
      %v7750 = vmul.f32 %v5581, %v7741
      %v7751 = vmul.f32 %v5582, %v7742
      %v7752 = vmul.f32 %v5583, %v7743
      %v7753 = vmul.f32 %v5617, %v7740
      %v7754 = vmul.f32 %v5614, %v7734
      %v7755 = vmul.f32 %v5584, %v7741
      %v7756 = vmul.f32 %v5585, %v7742
      %v7757 = vmul.f32 %v5586, %v7743
      %v7758 = vmul.f32 %v5618, %v7740
      %v7759 = vmul.f32 %v5615, %v7734
      %v7760 = vmul.f32 %v5587, %v7741
      %v7761 = vmul.f32 %v5588, %v7742
      %v7762 = vmul.f32 %v5589, %v7743
      %v7763 = vmul.f32 %v5619, %v7740
      %v7764 = vmul.f32 %v5616, %v7734
      %v7765 = vmul.f32 %v5590, %v7741
      %v7766 = vmul.f32 %v5591, %v7742
      %v7767 = vmul.f32 %v5592, %v7743
      %v7768 = vmul.f32 %v5620, %v7740
      %7789 = vrot.lane.b32.xlu0 %v7749, 54
      %v7790 = vpop.permute.xlu0 %7789
      %7791 = vrot.lane.b32.xlu0 %v7750, 54
      %v7792 = vpop.permute.xlu0 %7791
      %7793 = vrot.lane.b32.xlu0 %v7751, 54
      %v7794 = vpop.permute.xlu0 %7793
      %7795 = vrot.lane.b32.xlu0 %v7752, 54
      %v7796 = vpop.permute.xlu0 %7795
      %7797 = vrot.lane.b32.xlu0 %v7753, 54
      %v7798 = vpop.permute.xlu0 %7797
      %7799 = vrot.lane.b32.xlu0 %v7754, 54
      %v7800 = vpop.permute.xlu0 %7799
      %7801 = vrot.lane.b32.xlu0 %v7755, 54
      %v7802 = vpop.permute.xlu0 %7801
      %7803 = vrot.lane.b32.xlu0 %v7756, 54
      %v7804 = vpop.permute.xlu0 %7803
      %7805 = vrot.lane.b32.xlu0 %v7757, 54
      %v7806 = vpop.permute.xlu0 %7805
      %7807 = vrot.lane.b32.xlu0 %v7758, 54
      %v7808 = vpop.permute.xlu0 %7807
      %7809 = vrot.lane.b32.xlu0 %v7759, 54
      %v7810 = vpop.permute.xlu0 %7809
      %7811 = vrot.lane.b32.xlu0 %v7760, 54
      %v7812 = vpop.permute.xlu0 %7811
      %7813 = vrot.lane.b32.xlu0 %v7761, 54
      %v7814 = vpop.permute.xlu0 %7813
      %7815 = vrot.lane.b32.xlu0 %v7762, 54
      %v7816 = vpop.permute.xlu0 %7815
      %7817 = vrot.lane.b32.xlu0 %v7763, 54
      %v7818 = vpop.permute.xlu0 %7817
      %7819 = vrot.lane.b32.xlu0 %v7764, 54
      %v7820 = vpop.permute.xlu0 %7819
      %7821 = vrot.lane.b32.xlu0 %v7765, 54
      %v7822 = vpop.permute.xlu0 %7821
      %7823 = vrot.lane.b32.xlu0 %v7766, 54
      %v7824 = vpop.permute.xlu0 %7823
      %7825 = vrot.lane.b32.xlu0 %v7767, 54
      %v7826 = vpop.permute.xlu0 %7825
      %7827 = vrot.lane.b32.xlu0 %v7768, 54
      %v7828 = vpop.permute.xlu0 %7827
      %v7829 = vsel %vm1325, %v7790, %v7792
      %v7830 = vsel %vm1325, %v7792, %v7794
      %v7831 = vsel %vm1325, %v7794, %v7796
      %v7832 = vsel %vm1325, %v7796, %v7798
      %v7833 = vsel %vm1325, %v7800, %v7802
      %v7834 = vsel %vm1325, %v7802, %v7804
      %v7835 = vsel %vm1325, %v7804, %v7806
      %v7836 = vsel %vm1325, %v7806, %v7808
      %v7837 = vsel %vm1325, %v7810, %v7812
      %v7838 = vsel %vm1325, %v7812, %v7814
      %v7839 = vsel %vm1325, %v7814, %v7816
      %v7840 = vsel %vm1325, %v7816, %v7818
      %v7841 = vsel %vm1325, %v7820, %v7822
      %v7842 = vsel %vm1325, %v7822, %v7824
      %v7843 = vsel %vm1325, %v7824, %v7826
      %v7844 = vsel %vm1325, %v7826, %v7828
      %7861 = vst [vmem:[#allocation2 + $0x700] sm:$0xff] %v7829
      %7862 = vst [vmem:[#allocation2 + $0x708] sm:$0xff] %v7830
      %7863 = vst [vmem:[#allocation2 + $0x710] sm:$0xff] %v7831
      %7864 = vst [vmem:[#allocation2 + $0x718] sm:$0xff] %v7832
      %7865 = vst [vmem:[#allocation2 + $0x720] sm:$0xff] %v7833
      %7866 = vst [vmem:[#allocation2 + $0x728] sm:$0xff] %v7834
      %7867 = vst [vmem:[#allocation2 + $0x730] sm:$0xff] %v7835
      %7868 = vst [vmem:[#allocation2 + $0x738] sm:$0xff] %v7836
      %7869 = vst [vmem:[#allocation2 + $0x740] sm:$0xff] %v7837
      %7870 = vst [vmem:[#allocation2 + $0x748] sm:$0xff] %v7838
      %7871 = vst [vmem:[#allocation2 + $0x750] sm:$0xff] %v7839
      %7872 = vst [vmem:[#allocation2 + $0x758] sm:$0xff] %v7840
      %7873 = vst [vmem:[#allocation2 + $0x760] sm:$0xff] %v7841
      %7874 = vst [vmem:[#allocation2 + $0x768] sm:$0xff] %v7842
      %7875 = vst [vmem:[#allocation2 + $0x770] sm:$0xff] %v7843
      %7876 = vst [vmem:[#allocation2 + $0x778] sm:$0xff] %v7844
      %v7877 = vld [vmem:[%s1338] ss:$8 sm:$0xf]
      %v7879 = vlaneseq
      %v7880 = vshrl.u32 %v7879, 7
      %v7881 = vsub.s32 0, %v7880
      %v7882 = vrot.slane %v7877, %v7881
      %v7883 = vlaneseq
      %v7884 = vshrl.u32 %v7883, 7
      %v7885 = vsub.s32 1, %v7884
      %v7886 = vrot.slane %v7877, %v7885
      %v7887 = vlaneseq
      %v7888 = vshrl.u32 %v7887, 7
      %v7889 = vsub.s32 2, %v7888
      %v7890 = vrot.slane %v7877, %v7889
      %v7891 = vlaneseq
      %v7892 = vshrl.u32 %v7891, 7
      %v7893 = vsub.s32 3, %v7892
      %v7894 = vrot.slane %v7877, %v7893
      %7895 = vrot.lane.b32.xlu0 %v7882, 80
      %v7896 = vpop.permute.xlu0 %7895
      %7897 = vrot.lane.b32.xlu0 %v7886, 80
      %v7898 = vpop.permute.xlu0 %7897
      %7899 = vrot.lane.b32.xlu0 %v7890, 80
      %v7900 = vpop.permute.xlu0 %7899
      %7901 = vrot.lane.b32.xlu0 %v7894, 80
      %v7902 = vpop.permute.xlu0 %7901
      %v7903 = vsel %vm1365, %v7896, %v7898
      %v7904 = vsel %vm1365, %v7898, %v7900
      %v7905 = vsel %vm1365, %v7900, %v7902
      %v7911 = vmul.f32 %v5613, %v7896
      %v7912 = vmul.f32 %v5581, %v7903
      %v7913 = vmul.f32 %v5582, %v7904
      %v7914 = vmul.f32 %v5583, %v7905
      %v7915 = vmul.f32 %v5617, %v7902
      %v7916 = vmul.f32 %v5614, %v7896
      %v7917 = vmul.f32 %v5584, %v7903
      %v7918 = vmul.f32 %v5585, %v7904
      %v7919 = vmul.f32 %v5586, %v7905
      %v7920 = vmul.f32 %v5618, %v7902
      %v7921 = vmul.f32 %v5615, %v7896
      %v7922 = vmul.f32 %v5587, %v7903
      %v7923 = vmul.f32 %v5588, %v7904
      %v7924 = vmul.f32 %v5589, %v7905
      %v7925 = vmul.f32 %v5619, %v7902
      %v7926 = vmul.f32 %v5616, %v7896
      %v7927 = vmul.f32 %v5590, %v7903
      %v7928 = vmul.f32 %v5591, %v7904
      %v7929 = vmul.f32 %v5592, %v7905
      %v7930 = vmul.f32 %v5620, %v7902
      %7951 = vrot.lane.b32.xlu0 %v7911, 48
      %v7952 = vpop.permute.xlu0 %7951
      %7953 = vrot.lane.b32.xlu0 %v7912, 48
      %v7954 = vpop.permute.xlu0 %7953
      %7955 = vrot.lane.b32.xlu0 %v7913, 48
      %v7956 = vpop.permute.xlu0 %7955
      %7957 = vrot.lane.b32.xlu0 %v7914, 48
      %v7958 = vpop.permute.xlu0 %7957
      %7959 = vrot.lane.b32.xlu0 %v7915, 48
      %v7960 = vpop.permute.xlu0 %7959
      %7961 = vrot.lane.b32.xlu0 %v7916, 48
      %v7962 = vpop.permute.xlu0 %7961
      %7963 = vrot.lane.b32.xlu0 %v7917, 48
      %v7964 = vpop.permute.xlu0 %7963
      %7965 = vrot.lane.b32.xlu0 %v7918, 48
      %v7966 = vpop.permute.xlu0 %7965
      %7967 = vrot.lane.b32.xlu0 %v7919, 48
      %v7968 = vpop.permute.xlu0 %7967
      %7969 = vrot.lane.b32.xlu0 %v7920, 48
      %v7970 = vpop.permute.xlu0 %7969
      %7971 = vrot.lane.b32.xlu0 %v7921, 48
      %v7972 = vpop.permute.xlu0 %7971
      %7973 = vrot.lane.b32.xlu0 %v7922, 48
      %v7974 = vpop.permute.xlu0 %7973
      %7975 = vrot.lane.b32.xlu0 %v7923, 48
      %v7976 = vpop.permute.xlu0 %7975
      %7977 = vrot.lane.b32.xlu0 %v7924, 48
      %v7978 = vpop.permute.xlu0 %7977
      %7979 = vrot.lane.b32.xlu0 %v7925, 48
      %v7980 = vpop.permute.xlu0 %7979
      %7981 = vrot.lane.b32.xlu0 %v7926, 48
      %v7982 = vpop.permute.xlu0 %7981
      %7983 = vrot.lane.b32.xlu0 %v7927, 48
      %v7984 = vpop.permute.xlu0 %7983
      %7985 = vrot.lane.b32.xlu0 %v7928, 48
      %v7986 = vpop.permute.xlu0 %7985
      %7987 = vrot.lane.b32.xlu0 %v7929, 48
      %v7988 = vpop.permute.xlu0 %7987
      %7989 = vrot.lane.b32.xlu0 %v7930, 48
      %v7990 = vpop.permute.xlu0 %7989
      %v7991 = vsel %vm1394, %v7952, %v7954
      %v7992 = vsel %vm1394, %v7954, %v7956
      %v7993 = vsel %vm1394, %v7956, %v7958
      %v7994 = vsel %vm1394, %v7958, %v7960
      %v7995 = vsel %vm1394, %v7962, %v7964
      %v7996 = vsel %vm1394, %v7964, %v7966
      %v7997 = vsel %vm1394, %v7966, %v7968
      %v7998 = vsel %vm1394, %v7968, %v7970
      %v7999 = vsel %vm1394, %v7972, %v7974
      %v8000 = vsel %vm1394, %v7974, %v7976
      %v8001 = vsel %vm1394, %v7976, %v7978
      %v8002 = vsel %vm1394, %v7978, %v7980
      %v8003 = vsel %vm1394, %v7982, %v7984
      %v8004 = vsel %vm1394, %v7984, %v7986
      %v8005 = vsel %vm1394, %v7986, %v7988
      %v8006 = vsel %vm1394, %v7988, %v7990
      %8023 = vst [vmem:[#allocation2 + $0x780] sm:$0xff] %v7991
      %8024 = vst [vmem:[#allocation2 + $0x788] sm:$0xff] %v7992
      %8025 = vst [vmem:[#allocation2 + $0x790] sm:$0xff] %v7993
      %8026 = vst [vmem:[#allocation2 + $0x798] sm:$0xff] %v7994
      %8027 = vst [vmem:[#allocation2 + $0x7a0] sm:$0xff] %v7995
      %8028 = vst [vmem:[#allocation2 + $0x7a8] sm:$0xff] %v7996
      %8029 = vst [vmem:[#allocation2 + $0x7b0] sm:$0xff] %v7997
      %8030 = vst [vmem:[#allocation2 + $0x7b8] sm:$0xff] %v7998
      %8031 = vst [vmem:[#allocation2 + $0x7c0] sm:$0xff] %v7999
      %8032 = vst [vmem:[#allocation2 + $0x7c8] sm:$0xff] %v8000
      %8033 = vst [vmem:[#allocation2 + $0x7d0] sm:$0xff] %v8001
      %8034 = vst [vmem:[#allocation2 + $0x7d8] sm:$0xff] %v8002
      %8035 = vst [vmem:[#allocation2 + $0x7e0] sm:$0xff] %v8003
      %8036 = vst [vmem:[#allocation2 + $0x7e8] sm:$0xff] %v8004
      %8037 = vst [vmem:[#allocation2 + $0x7f0] sm:$0xff] %v8005
      %8038 = vst [vmem:[#allocation2 + $0x7f8] sm:$0xff] %v8006
      %v8039 = vld [vmem:[%s1407] ss:$8 sm:$0xf]
      %v8041 = vlaneseq
      %v8042 = vshrl.u32 %v8041, 7
      %v8043 = vsub.s32 0, %v8042
      %v8044 = vrot.slane %v8039, %v8043
      %v8045 = vlaneseq
      %v8046 = vshrl.u32 %v8045, 7
      %v8047 = vsub.s32 1, %v8046
      %v8048 = vrot.slane %v8039, %v8047
      %v8049 = vlaneseq
      %v8050 = vshrl.u32 %v8049, 7
      %v8051 = vsub.s32 2, %v8050
      %v8052 = vrot.slane %v8039, %v8051
      %v8053 = vlaneseq
      %v8054 = vshrl.u32 %v8053, 7
      %v8055 = vsub.s32 3, %v8054
      %v8056 = vrot.slane %v8039, %v8055
      %8057 = vrot.lane.b32.xlu0 %v8044, 81
      %v8058 = vpop.permute.xlu0 %8057
      %8059 = vrot.lane.b32.xlu0 %v8048, 81
      %v8060 = vpop.permute.xlu0 %8059
      %8061 = vrot.lane.b32.xlu0 %v8052, 81
      %v8062 = vpop.permute.xlu0 %8061
      %8063 = vrot.lane.b32.xlu0 %v8056, 81
      %v8064 = vpop.permute.xlu0 %8063
      %v8065 = vsel %vm1434, %v8058, %v8060
      %v8066 = vsel %vm1434, %v8060, %v8062
      %v8067 = vsel %vm1434, %v8062, %v8064
      %v8073 = vmul.f32 %v5613, %v8058
      %v8074 = vmul.f32 %v5581, %v8065
      %v8075 = vmul.f32 %v5582, %v8066
      %v8076 = vmul.f32 %v5583, %v8067
      %v8077 = vmul.f32 %v5617, %v8064
      %v8078 = vmul.f32 %v5614, %v8058
      %v8079 = vmul.f32 %v5584, %v8065
      %v8080 = vmul.f32 %v5585, %v8066
      %v8081 = vmul.f32 %v5586, %v8067
      %v8082 = vmul.f32 %v5618, %v8064
      %v8083 = vmul.f32 %v5615, %v8058
      %v8084 = vmul.f32 %v5587, %v8065
      %v8085 = vmul.f32 %v5588, %v8066
      %v8086 = vmul.f32 %v5589, %v8067
      %v8087 = vmul.f32 %v5619, %v8064
      %v8088 = vmul.f32 %v5616, %v8058
      %v8089 = vmul.f32 %v5590, %v8065
      %v8090 = vmul.f32 %v5591, %v8066
      %v8091 = vmul.f32 %v5592, %v8067
      %v8092 = vmul.f32 %v5620, %v8064
      %8113 = vrot.lane.b32.xlu0 %v8073, 47
      %v8114 = vpop.permute.xlu0 %8113
      %8115 = vrot.lane.b32.xlu0 %v8074, 47
      %v8116 = vpop.permute.xlu0 %8115
      %8117 = vrot.lane.b32.xlu0 %v8075, 47
      %v8118 = vpop.permute.xlu0 %8117
      %8119 = vrot.lane.b32.xlu0 %v8076, 47
      %v8120 = vpop.permute.xlu0 %8119
      %8121 = vrot.lane.b32.xlu0 %v8077, 47
      %v8122 = vpop.permute.xlu0 %8121
      %8123 = vrot.lane.b32.xlu0 %v8078, 47
      %v8124 = vpop.permute.xlu0 %8123
      %8125 = vrot.lane.b32.xlu0 %v8079, 47
      %v8126 = vpop.permute.xlu0 %8125
      %8127 = vrot.lane.b32.xlu0 %v8080, 47
      %v8128 = vpop.permute.xlu0 %8127
      %8129 = vrot.lane.b32.xlu0 %v8081, 47
      %v8130 = vpop.permute.xlu0 %8129
      %8131 = vrot.lane.b32.xlu0 %v8082, 47
      %v8132 = vpop.permute.xlu0 %8131
      %8133 = vrot.lane.b32.xlu0 %v8083, 47
      %v8134 = vpop.permute.xlu0 %8133
      %8135 = vrot.lane.b32.xlu0 %v8084, 47
      %v8136 = vpop.permute.xlu0 %8135
      %8137 = vrot.lane.b32.xlu0 %v8085, 47
      %v8138 = vpop.permute.xlu0 %8137
      %8139 = vrot.lane.b32.xlu0 %v8086, 47
      %v8140 = vpop.permute.xlu0 %8139
      %8141 = vrot.lane.b32.xlu0 %v8087, 47
      %v8142 = vpop.permute.xlu0 %8141
      %8143 = vrot.lane.b32.xlu0 %v8088, 47
      %v8144 = vpop.permute.xlu0 %8143
      %8145 = vrot.lane.b32.xlu0 %v8089, 47
      %v8146 = vpop.permute.xlu0 %8145
      %8147 = vrot.lane.b32.xlu0 %v8090, 47
      %v8148 = vpop.permute.xlu0 %8147
      %8149 = vrot.lane.b32.xlu0 %v8091, 47
      %v8150 = vpop.permute.xlu0 %8149
      %8151 = vrot.lane.b32.xlu0 %v8092, 47
      %v8152 = vpop.permute.xlu0 %8151
      %v8153 = vsel %vm1463, %v8114, %v8116
      %v8154 = vsel %vm1463, %v8116, %v8118
      %v8155 = vsel %vm1463, %v8118, %v8120
      %v8156 = vsel %vm1463, %v8120, %v8122
      %v8157 = vsel %vm1463, %v8124, %v8126
      %v8158 = vsel %vm1463, %v8126, %v8128
      %v8159 = vsel %vm1463, %v8128, %v8130
      %v8160 = vsel %vm1463, %v8130, %v8132
      %v8161 = vsel %vm1463, %v8134, %v8136
      %v8162 = vsel %vm1463, %v8136, %v8138
      %v8163 = vsel %vm1463, %v8138, %v8140
      %v8164 = vsel %vm1463, %v8140, %v8142
      %v8165 = vsel %vm1463, %v8144, %v8146
      %v8166 = vsel %vm1463, %v8146, %v8148
      %v8167 = vsel %vm1463, %v8148, %v8150
      %v8168 = vsel %vm1463, %v8150, %v8152
      %8185 = vst [vmem:[#allocation2 + $0x800] sm:$0xff] %v8153
      %8186 = vst [vmem:[#allocation2 + $0x808] sm:$0xff] %v8154
      %8187 = vst [vmem:[#allocation2 + $0x810] sm:$0xff] %v8155
      %8188 = vst [vmem:[#allocation2 + $0x818] sm:$0xff] %v8156
      %8189 = vst [vmem:[#allocation2 + $0x820] sm:$0xff] %v8157
      %8190 = vst [vmem:[#allocation2 + $0x828] sm:$0xff] %v8158
      %8191 = vst [vmem:[#allocation2 + $0x830] sm:$0xff] %v8159
      %8192 = vst [vmem:[#allocation2 + $0x838] sm:$0xff] %v8160
      %8193 = vst [vmem:[#allocation2 + $0x840] sm:$0xff] %v8161
      %8194 = vst [vmem:[#allocation2 + $0x848] sm:$0xff] %v8162
      %8195 = vst [vmem:[#allocation2 + $0x850] sm:$0xff] %v8163
      %8196 = vst [vmem:[#allocation2 + $0x858] sm:$0xff] %v8164
      %8197 = vst [vmem:[#allocation2 + $0x860] sm:$0xff] %v8165
      %8198 = vst [vmem:[#allocation2 + $0x868] sm:$0xff] %v8166
      %8199 = vst [vmem:[#allocation2 + $0x870] sm:$0xff] %v8167
      %8200 = vst [vmem:[#allocation2 + $0x878] sm:$0xff] %v8168
      %v8201 = vld [vmem:[%s1476] ss:$8 sm:$0xf]
      %v8203 = vlaneseq
      %v8204 = vshrl.u32 %v8203, 7
      %v8205 = vsub.s32 0, %v8204
      %v8206 = vrot.slane %v8201, %v8205
      %v8207 = vlaneseq
      %v8208 = vshrl.u32 %v8207, 7
      %v8209 = vsub.s32 1, %v8208
      %v8210 = vrot.slane %v8201, %v8209
      %v8211 = vlaneseq
      %v8212 = vshrl.u32 %v8211, 7
      %v8213 = vsub.s32 2, %v8212
      %v8214 = vrot.slane %v8201, %v8213
      %v8215 = vlaneseq
      %v8216 = vshrl.u32 %v8215, 7
      %v8217 = vsub.s32 3, %v8216
      %v8218 = vrot.slane %v8201, %v8217
      %8219 = vrot.lane.b32.xlu0 %v8206, 82
      %v8220 = vpop.permute.xlu0 %8219
      %8221 = vrot.lane.b32.xlu0 %v8210, 82
      %v8222 = vpop.permute.xlu0 %8221
      %8223 = vrot.lane.b32.xlu0 %v8214, 82
      %v8224 = vpop.permute.xlu0 %8223
      %8225 = vrot.lane.b32.xlu0 %v8218, 82
      %v8226 = vpop.permute.xlu0 %8225
      %v8227 = vsel %vm1503, %v8220, %v8222
      %v8228 = vsel %vm1503, %v8222, %v8224
      %v8229 = vsel %vm1503, %v8224, %v8226
      %v8235 = vmul.f32 %v5613, %v8220
      %v8236 = vmul.f32 %v5581, %v8227
      %v8237 = vmul.f32 %v5582, %v8228
      %v8238 = vmul.f32 %v5583, %v8229
      %v8239 = vmul.f32 %v5617, %v8226
      %v8240 = vmul.f32 %v5614, %v8220
      %v8241 = vmul.f32 %v5584, %v8227
      %v8242 = vmul.f32 %v5585, %v8228
      %v8243 = vmul.f32 %v5586, %v8229
      %v8244 = vmul.f32 %v5618, %v8226
      %v8245 = vmul.f32 %v5615, %v8220
      %v8246 = vmul.f32 %v5587, %v8227
      %v8247 = vmul.f32 %v5588, %v8228
      %v8248 = vmul.f32 %v5589, %v8229
      %v8249 = vmul.f32 %v5619, %v8226
      %v8250 = vmul.f32 %v5616, %v8220
      %v8251 = vmul.f32 %v5590, %v8227
      %v8252 = vmul.f32 %v5591, %v8228
      %v8253 = vmul.f32 %v5592, %v8229
      %v8254 = vmul.f32 %v5620, %v8226
      %8275 = vrot.lane.b32.xlu0 %v8235, 46
      %v8276 = vpop.permute.xlu0 %8275
      %8277 = vrot.lane.b32.xlu0 %v8236, 46
      %v8278 = vpop.permute.xlu0 %8277
      %8279 = vrot.lane.b32.xlu0 %v8237, 46
      %v8280 = vpop.permute.xlu0 %8279
      %8281 = vrot.lane.b32.xlu0 %v8238, 46
      %v8282 = vpop.permute.xlu0 %8281
      %8283 = vrot.lane.b32.xlu0 %v8239, 46
      %v8284 = vpop.permute.xlu0 %8283
      %8285 = vrot.lane.b32.xlu0 %v8240, 46
      %v8286 = vpop.permute.xlu0 %8285
      %8287 = vrot.lane.b32.xlu0 %v8241, 46
      %v8288 = vpop.permute.xlu0 %8287
      %8289 = vrot.lane.b32.xlu0 %v8242, 46
      %v8290 = vpop.permute.xlu0 %8289
      %8291 = vrot.lane.b32.xlu0 %v8243, 46
      %v8292 = vpop.permute.xlu0 %8291
      %8293 = vrot.lane.b32.xlu0 %v8244, 46
      %v8294 = vpop.permute.xlu0 %8293
      %8295 = vrot.lane.b32.xlu0 %v8245, 46
      %v8296 = vpop.permute.xlu0 %8295
      %8297 = vrot.lane.b32.xlu0 %v8246, 46
      %v8298 = vpop.permute.xlu0 %8297
      %8299 = vrot.lane.b32.xlu0 %v8247, 46
      %v8300 = vpop.permute.xlu0 %8299
      %8301 = vrot.lane.b32.xlu0 %v8248, 46
      %v8302 = vpop.permute.xlu0 %8301
      %8303 = vrot.lane.b32.xlu0 %v8249, 46
      %v8304 = vpop.permute.xlu0 %8303
      %8305 = vrot.lane.b32.xlu0 %v8250, 46
      %v8306 = vpop.permute.xlu0 %8305
      %8307 = vrot.lane.b32.xlu0 %v8251, 46
      %v8308 = vpop.permute.xlu0 %8307
      %8309 = vrot.lane.b32.xlu0 %v8252, 46
      %v8310 = vpop.permute.xlu0 %8309
      %8311 = vrot.lane.b32.xlu0 %v8253, 46
      %v8312 = vpop.permute.xlu0 %8311
      %8313 = vrot.lane.b32.xlu0 %v8254, 46
      %v8314 = vpop.permute.xlu0 %8313
      %v8315 = vsel %vm1532, %v8276, %v8278
      %v8316 = vsel %vm1532, %v8278, %v8280
      %v8317 = vsel %vm1532, %v8280, %v8282
      %v8318 = vsel %vm1532, %v8282, %v8284
      %v8319 = vsel %vm1532, %v8286, %v8288
      %v8320 = vsel %vm1532, %v8288, %v8290
      %v8321 = vsel %vm1532, %v8290, %v8292
      %v8322 = vsel %vm1532, %v8292, %v8294
      %v8323 = vsel %vm1532, %v8296, %v8298
      %v8324 = vsel %vm1532, %v8298, %v8300
      %v8325 = vsel %vm1532, %v8300, %v8302
      %v8326 = vsel %vm1532, %v8302, %v8304
      %v8327 = vsel %vm1532, %v8306, %v8308
      %v8328 = vsel %vm1532, %v8308, %v8310
      %v8329 = vsel %vm1532, %v8310, %v8312
      %v8330 = vsel %vm1532, %v8312, %v8314
      %8347 = vst [vmem:[#allocation2 + $0x880] sm:$0xff] %v8315
      %8348 = vst [vmem:[#allocation2 + $0x888] sm:$0xff] %v8316
      %8349 = vst [vmem:[#allocation2 + $0x890] sm:$0xff] %v8317
      %8350 = vst [vmem:[#allocation2 + $0x898] sm:$0xff] %v8318
      %8351 = vst [vmem:[#allocation2 + $0x8a0] sm:$0xff] %v8319
      %8352 = vst [vmem:[#allocation2 + $0x8a8] sm:$0xff] %v8320
      %8353 = vst [vmem:[#allocation2 + $0x8b0] sm:$0xff] %v8321
      %8354 = vst [vmem:[#allocation2 + $0x8b8] sm:$0xff] %v8322
      %8355 = vst [vmem:[#allocation2 + $0x8c0] sm:$0xff] %v8323
      %8356 = vst [vmem:[#allocation2 + $0x8c8] sm:$0xff] %v8324
      %8357 = vst [vmem:[#allocation2 + $0x8d0] sm:$0xff] %v8325
      %8358 = vst [vmem:[#allocation2 + $0x8d8] sm:$0xff] %v8326
      %8359 = vst [vmem:[#allocation2 + $0x8e0] sm:$0xff] %v8327
      %8360 = vst [vmem:[#allocation2 + $0x8e8] sm:$0xff] %v8328
      %8361 = vst [vmem:[#allocation2 + $0x8f0] sm:$0xff] %v8329
      %8362 = vst [vmem:[#allocation2 + $0x8f8] sm:$0xff] %v8330
      %v8363 = vld [vmem:[%s1545] ss:$8 sm:$0xf]
      %v8365 = vlaneseq
      %v8366 = vshrl.u32 %v8365, 7
      %v8367 = vsub.s32 0, %v8366
      %v8368 = vrot.slane %v8363, %v8367
      %v8369 = vlaneseq
      %v8370 = vshrl.u32 %v8369, 7
      %v8371 = vsub.s32 1, %v8370
      %v8372 = vrot.slane %v8363, %v8371
      %v8373 = vlaneseq
      %v8374 = vshrl.u32 %v8373, 7
      %v8375 = vsub.s32 2, %v8374
      %v8376 = vrot.slane %v8363, %v8375
      %v8377 = vlaneseq
      %v8378 = vshrl.u32 %v8377, 7
      %v8379 = vsub.s32 3, %v8378
      %v8380 = vrot.slane %v8363, %v8379
      %v8385 = vmul.f32 %v5581, %v8368
      %v8386 = vmul.f32 %v5582, %v8372
      %v8387 = vmul.f32 %v5583, %v8376
      %v8388 = vmul.f32 %v5617, %v8380
      %v8389 = vmul.f32 %v5584, %v8368
      %v8390 = vmul.f32 %v5585, %v8372
      %v8391 = vmul.f32 %v5586, %v8376
      %v8392 = vmul.f32 %v5618, %v8380
      %v8393 = vmul.f32 %v5587, %v8368
      %v8394 = vmul.f32 %v5588, %v8372
      %v8395 = vmul.f32 %v5589, %v8376
      %v8396 = vmul.f32 %v5619, %v8380
      %v8397 = vmul.f32 %v5590, %v8368
      %v8398 = vmul.f32 %v5591, %v8372
      %v8399 = vmul.f32 %v5592, %v8376
      %v8400 = vmul.f32 %v5620, %v8380
      %8401 = vst [vmem:[#allocation2 + $0x900] sm:$0xff] %v8385
      %8402 = vst [vmem:[#allocation2 + $0x908] sm:$0xff] %v8386
      %8403 = vst [vmem:[#allocation2 + $0x910] sm:$0xff] %v8387
      %8404 = vst [vmem:[#allocation2 + $0x918] sm:$0xff] %v8388
      %8405 = vst [vmem:[#allocation2 + $0x920] sm:$0xff] %v8389
      %8406 = vst [vmem:[#allocation2 + $0x928] sm:$0xff] %v8390
      %8407 = vst [vmem:[#allocation2 + $0x930] sm:$0xff] %v8391
      %8408 = vst [vmem:[#allocation2 + $0x938] sm:$0xff] %v8392
      %8409 = vst [vmem:[#allocation2 + $0x940] sm:$0xff] %v8393
      %8410 = vst [vmem:[#allocation2 + $0x948] sm:$0xff] %v8394
      %8411 = vst [vmem:[#allocation2 + $0x950] sm:$0xff] %v8395
      %8412 = vst [vmem:[#allocation2 + $0x958] sm:$0xff] %v8396
      %8413 = vst [vmem:[#allocation2 + $0x960] sm:$0xff] %v8397
      %8414 = vst [vmem:[#allocation2 + $0x968] sm:$0xff] %v8398
      %8415 = vst [vmem:[#allocation2 + $0x970] sm:$0xff] %v8399
      %8416 = vst [vmem:[#allocation2 + $0x978] sm:$0xff] %v8400
      %v8417 = vld [vmem:[%s1576] ss:$8 sm:$0xf]
      %v8419 = vlaneseq
      %v8420 = vshrl.u32 %v8419, 7
      %v8421 = vsub.s32 0, %v8420
      %v8422 = vrot.slane %v8417, %v8421
      %v8423 = vlaneseq
      %v8424 = vshrl.u32 %v8423, 7
      %v8425 = vsub.s32 1, %v8424
      %v8426 = vrot.slane %v8417, %v8425
      %v8427 = vlaneseq
      %v8428 = vshrl.u32 %v8427, 7
      %v8429 = vsub.s32 2, %v8428
      %v8430 = vrot.slane %v8417, %v8429
      %v8431 = vlaneseq
      %v8432 = vshrl.u32 %v8431, 7
      %v8433 = vsub.s32 3, %v8432
      %v8434 = vrot.slane %v8417, %v8433
      %8435 = vrot.lane.b32.xlu0 %v8422, 1
      %v8436 = vpop.permute.xlu0 %8435
      %8437 = vrot.lane.b32.xlu0 %v8426, 1
      %v8438 = vpop.permute.xlu0 %8437
      %8439 = vrot.lane.b32.xlu0 %v8430, 1
      %v8440 = vpop.permute.xlu0 %8439
      %8441 = vrot.lane.b32.xlu0 %v8434, 1
      %v8442 = vpop.permute.xlu0 %8441
      %v8443 = vsel %vm444, %v8436, %v8438
      %v8444 = vsel %vm444, %v8438, %v8440
      %v8445 = vsel %vm444, %v8440, %v8442
      %v8451 = vmul.f32 %v5581, %v8436
      %v8452 = vmul.f32 %v5582, %v8443
      %v8453 = vmul.f32 %v5583, %v8444
      %v8454 = vmul.f32 %v5617, %v8445
      %v8455 = vmul.f32 %v8442, 0.0
      %v8456 = vmul.f32 %v5584, %v8436
      %v8457 = vmul.f32 %v5585, %v8443
      %v8458 = vmul.f32 %v5586, %v8444
      %v8459 = vmul.f32 %v5618, %v8445
      %v8460 = vmul.f32 %v5587, %v8436
      %v8461 = vmul.f32 %v5588, %v8443
      %v8462 = vmul.f32 %v5589, %v8444
      %v8463 = vmul.f32 %v5619, %v8445
      %v8464 = vmul.f32 %v5590, %v8436
      %v8465 = vmul.f32 %v5591, %v8443
      %v8466 = vmul.f32 %v5592, %v8444
      %v8467 = vmul.f32 %v5620, %v8445
      %8485 = vrot.lane.b32.xlu0 %v8451, 127
      %v8486 = vpop.permute.xlu0 %8485
      %8487 = vrot.lane.b32.xlu0 %v8452, 127
      %v8488 = vpop.permute.xlu0 %8487
      %8489 = vrot.lane.b32.xlu0 %v8453, 127
      %v8490 = vpop.permute.xlu0 %8489
      %8491 = vrot.lane.b32.xlu0 %v8454, 127
      %v8492 = vpop.permute.xlu0 %8491
      %8493 = vrot.lane.b32.xlu0 %v8455, 127
      %v8494 = vpop.permute.xlu0 %8493
      %8495 = vrot.lane.b32.xlu0 %v8456, 127
      %v8496 = vpop.permute.xlu0 %8495
      %8497 = vrot.lane.b32.xlu0 %v8457, 127
      %v8498 = vpop.permute.xlu0 %8497
      %8499 = vrot.lane.b32.xlu0 %v8458, 127
      %v8500 = vpop.permute.xlu0 %8499
      %8501 = vrot.lane.b32.xlu0 %v8459, 127
      %v8502 = vpop.permute.xlu0 %8501
      %8503 = vrot.lane.b32.xlu0 %v8460, 127
      %v8504 = vpop.permute.xlu0 %8503
      %8505 = vrot.lane.b32.xlu0 %v8461, 127
      %v8506 = vpop.permute.xlu0 %8505
      %8507 = vrot.lane.b32.xlu0 %v8462, 127
      %v8508 = vpop.permute.xlu0 %8507
      %8509 = vrot.lane.b32.xlu0 %v8463, 127
      %v8510 = vpop.permute.xlu0 %8509
      %8511 = vrot.lane.b32.xlu0 %v8464, 127
      %v8512 = vpop.permute.xlu0 %8511
      %8513 = vrot.lane.b32.xlu0 %v8465, 127
      %v8514 = vpop.permute.xlu0 %8513
      %8515 = vrot.lane.b32.xlu0 %v8466, 127
      %v8516 = vpop.permute.xlu0 %8515
      %8517 = vrot.lane.b32.xlu0 %v8467, 127
      %v8518 = vpop.permute.xlu0 %8517
      %v8519 = vsel %vm473, %v8486, %v8488
      %v8520 = vsel %vm473, %v8488, %v8490
      %v8521 = vsel %vm473, %v8490, %v8492
      %v8522 = vsel %vm473, %v8492, %v8494
      %v8523 = vsel %vm473, %v8496, %v8498
      %v8524 = vsel %vm473, %v8498, %v8500
      %v8525 = vsel %vm473, %v8500, %v8502
      %v8526 = vsel %vm473, %v8502, %v8494
      %v8527 = vsel %vm473, %v8504, %v8506
      %v8528 = vsel %vm473, %v8506, %v8508
      %v8529 = vsel %vm473, %v8508, %v8510
      %v8530 = vsel %vm473, %v8510, %v8494
      %v8531 = vsel %vm473, %v8512, %v8514
      %v8532 = vsel %vm473, %v8514, %v8516
      %v8533 = vsel %vm473, %v8516, %v8518
      %v8534 = vsel %vm473, %v8518, %v8494
      %8551 = vst [vmem:[#allocation2 + $0x980] sm:$0xff] %v8519
      %8552 = vst [vmem:[#allocation2 + $0x988] sm:$0xff] %v8520
      %8553 = vst [vmem:[#allocation2 + $0x990] sm:$0xff] %v8521
      %8554 = vst [vmem:[#allocation2 + $0x998] sm:$0xff] %v8522
      %8555 = vst [vmem:[#allocation2 + $0x9a0] sm:$0xff] %v8523
      %8556 = vst [vmem:[#allocation2 + $0x9a8] sm:$0xff] %v8524
      %8557 = vst [vmem:[#allocation2 + $0x9b0] sm:$0xff] %v8525
      %8558 = vst [vmem:[#allocation2 + $0x9b8] sm:$0xff] %v8526
      %8559 = vst [vmem:[#allocation2 + $0x9c0] sm:$0xff] %v8527
      %8560 = vst [vmem:[#allocation2 + $0x9c8] sm:$0xff] %v8528
      %8561 = vst [vmem:[#allocation2 + $0x9d0] sm:$0xff] %v8529
      %8562 = vst [vmem:[#allocation2 + $0x9d8] sm:$0xff] %v8530
      %8563 = vst [vmem:[#allocation2 + $0x9e0] sm:$0xff] %v8531
      %8564 = vst [vmem:[#allocation2 + $0x9e8] sm:$0xff] %v8532
      %8565 = vst [vmem:[#allocation2 + $0x9f0] sm:$0xff] %v8533
      %8566 = vst [vmem:[#allocation2 + $0x9f8] sm:$0xff] %v8534
      %v8567 = vld [vmem:[%s1643] ss:$8 sm:$0xf]
      %v8569 = vlaneseq
      %v8570 = vshrl.u32 %v8569, 7
      %v8571 = vsub.s32 0, %v8570
      %v8572 = vrot.slane %v8567, %v8571
      %v8573 = vlaneseq
      %v8574 = vshrl.u32 %v8573, 7
      %v8575 = vsub.s32 1, %v8574
      %v8576 = vrot.slane %v8567, %v8575
      %v8577 = vlaneseq
      %v8578 = vshrl.u32 %v8577, 7
      %v8579 = vsub.s32 2, %v8578
      %v8580 = vrot.slane %v8567, %v8579
      %v8581 = vlaneseq
      %v8582 = vshrl.u32 %v8581, 7
      %v8583 = vsub.s32 3, %v8582
      %v8584 = vrot.slane %v8567, %v8583
      %8585 = vrot.lane.b32.xlu0 %v8572, 2
      %v8586 = vpop.permute.xlu0 %8585
      %8587 = vrot.lane.b32.xlu0 %v8576, 2
      %v8588 = vpop.permute.xlu0 %8587
      %8589 = vrot.lane.b32.xlu0 %v8580, 2
      %v8590 = vpop.permute.xlu0 %8589
      %8591 = vrot.lane.b32.xlu0 %v8584, 2
      %v8592 = vpop.permute.xlu0 %8591
      %v8593 = vsel %vm513, %v8586, %v8588
      %v8594 = vsel %vm513, %v8588, %v8590
      %v8595 = vsel %vm513, %v8590, %v8592
      %v8601 = vmul.f32 %v5581, %v8586
      %v8602 = vmul.f32 %v5582, %v8593
      %v8603 = vmul.f32 %v5583, %v8594
      %v8604 = vmul.f32 %v5617, %v8595
      %v8605 = vmul.f32 %v8592, 0.0
      %v8606 = vmul.f32 %v5584, %v8586
      %v8607 = vmul.f32 %v5585, %v8593
      %v8608 = vmul.f32 %v5586, %v8594
      %v8609 = vmul.f32 %v5618, %v8595
      %v8610 = vmul.f32 %v5587, %v8586
      %v8611 = vmul.f32 %v5588, %v8593
      %v8612 = vmul.f32 %v5589, %v8594
      %v8613 = vmul.f32 %v5619, %v8595
      %v8614 = vmul.f32 %v5590, %v8586
      %v8615 = vmul.f32 %v5591, %v8593
      %v8616 = vmul.f32 %v5592, %v8594
      %v8617 = vmul.f32 %v5620, %v8595
      %8635 = vrot.lane.b32.xlu0 %v8601, 126
      %v8636 = vpop.permute.xlu0 %8635
      %8637 = vrot.lane.b32.xlu0 %v8602, 126
      %v8638 = vpop.permute.xlu0 %8637
      %8639 = vrot.lane.b32.xlu0 %v8603, 126
      %v8640 = vpop.permute.xlu0 %8639
      %8641 = vrot.lane.b32.xlu0 %v8604, 126
      %v8642 = vpop.permute.xlu0 %8641
      %8643 = vrot.lane.b32.xlu0 %v8605, 126
      %v8644 = vpop.permute.xlu0 %8643
      %8645 = vrot.lane.b32.xlu0 %v8606, 126
      %v8646 = vpop.permute.xlu0 %8645
      %8647 = vrot.lane.b32.xlu0 %v8607, 126
      %v8648 = vpop.permute.xlu0 %8647
      %8649 = vrot.lane.b32.xlu0 %v8608, 126
      %v8650 = vpop.permute.xlu0 %8649
      %8651 = vrot.lane.b32.xlu0 %v8609, 126
      %v8652 = vpop.permute.xlu0 %8651
      %8653 = vrot.lane.b32.xlu0 %v8610, 126
      %v8654 = vpop.permute.xlu0 %8653
      %8655 = vrot.lane.b32.xlu0 %v8611, 126
      %v8656 = vpop.permute.xlu0 %8655
      %8657 = vrot.lane.b32.xlu0 %v8612, 126
      %v8658 = vpop.permute.xlu0 %8657
      %8659 = vrot.lane.b32.xlu0 %v8613, 126
      %v8660 = vpop.permute.xlu0 %8659
      %8661 = vrot.lane.b32.xlu0 %v8614, 126
      %v8662 = vpop.permute.xlu0 %8661
      %8663 = vrot.lane.b32.xlu0 %v8615, 126
      %v8664 = vpop.permute.xlu0 %8663
      %8665 = vrot.lane.b32.xlu0 %v8616, 126
      %v8666 = vpop.permute.xlu0 %8665
      %8667 = vrot.lane.b32.xlu0 %v8617, 126
      %v8668 = vpop.permute.xlu0 %8667
      %v8669 = vsel %vm542, %v8636, %v8638
      %v8670 = vsel %vm542, %v8638, %v8640
      %v8671 = vsel %vm542, %v8640, %v8642
      %v8672 = vsel %vm542, %v8642, %v8644
      %v8673 = vsel %vm542, %v8646, %v8648
      %v8674 = vsel %vm542, %v8648, %v8650
      %v8675 = vsel %vm542, %v8650, %v8652
      %v8676 = vsel %vm542, %v8652, %v8644
      %v8677 = vsel %vm542, %v8654, %v8656
      %v8678 = vsel %vm542, %v8656, %v8658
      %v8679 = vsel %vm542, %v8658, %v8660
      %v8680 = vsel %vm542, %v8660, %v8644
      %v8681 = vsel %vm542, %v8662, %v8664
      %v8682 = vsel %vm542, %v8664, %v8666
      %v8683 = vsel %vm542, %v8666, %v8668
      %v8684 = vsel %vm542, %v8668, %v8644
      %8701 = vst [vmem:[#allocation2 + $0xa00] sm:$0xff] %v8669
      %8702 = vst [vmem:[#allocation2 + $0xa08] sm:$0xff] %v8670
      %8703 = vst [vmem:[#allocation2 + $0xa10] sm:$0xff] %v8671
      %8704 = vst [vmem:[#allocation2 + $0xa18] sm:$0xff] %v8672
      %8705 = vst [vmem:[#allocation2 + $0xa20] sm:$0xff] %v8673
      %8706 = vst [vmem:[#allocation2 + $0xa28] sm:$0xff] %v8674
      %8707 = vst [vmem:[#allocation2 + $0xa30] sm:$0xff] %v8675
      %8708 = vst [vmem:[#allocation2 + $0xa38] sm:$0xff] %v8676
      %8709 = vst [vmem:[#allocation2 + $0xa40] sm:$0xff] %v8677
      %8710 = vst [vmem:[#allocation2 + $0xa48] sm:$0xff] %v8678
      %8711 = vst [vmem:[#allocation2 + $0xa50] sm:$0xff] %v8679
      %8712 = vst [vmem:[#allocation2 + $0xa58] sm:$0xff] %v8680
      %8713 = vst [vmem:[#allocation2 + $0xa60] sm:$0xff] %v8681
      %8714 = vst [vmem:[#allocation2 + $0xa68] sm:$0xff] %v8682
      %8715 = vst [vmem:[#allocation2 + $0xa70] sm:$0xff] %v8683
      %8716 = vst [vmem:[#allocation2 + $0xa78] sm:$0xff] %v8684
      %v8717 = vld [vmem:[%s1710] ss:$8 sm:$0xf]
      %v8719 = vlaneseq
      %v8720 = vshrl.u32 %v8719, 7
      %v8721 = vsub.s32 0, %v8720
      %v8722 = vrot.slane %v8717, %v8721
      %v8723 = vlaneseq
      %v8724 = vshrl.u32 %v8723, 7
      %v8725 = vsub.s32 1, %v8724
      %v8726 = vrot.slane %v8717, %v8725
      %v8727 = vlaneseq
      %v8728 = vshrl.u32 %v8727, 7
      %v8729 = vsub.s32 2, %v8728
      %v8730 = vrot.slane %v8717, %v8729
      %v8731 = vlaneseq
      %v8732 = vshrl.u32 %v8731, 7
      %v8733 = vsub.s32 3, %v8732
      %v8734 = vrot.slane %v8717, %v8733
      %8735 = vrot.lane.b32.xlu0 %v8722, 8
      %v8736 = vpop.permute.xlu0 %8735
      %8737 = vrot.lane.b32.xlu0 %v8726, 8
      %v8738 = vpop.permute.xlu0 %8737
      %8739 = vrot.lane.b32.xlu0 %v8730, 8
      %v8740 = vpop.permute.xlu0 %8739
      %8741 = vrot.lane.b32.xlu0 %v8734, 8
      %v8742 = vpop.permute.xlu0 %8741
      %v8743 = vsel %vm582, %v8736, %v8738
      %v8744 = vsel %vm582, %v8738, %v8740
      %v8745 = vsel %vm582, %v8740, %v8742
      %v8751 = vmul.f32 %v5581, %v8736
      %v8752 = vmul.f32 %v5582, %v8743
      %v8753 = vmul.f32 %v5583, %v8744
      %v8754 = vmul.f32 %v5617, %v8745
      %v8755 = vmul.f32 %v8742, 0.0
      %v8756 = vmul.f32 %v5584, %v8736
      %v8757 = vmul.f32 %v5585, %v8743
      %v8758 = vmul.f32 %v5586, %v8744
      %v8759 = vmul.f32 %v5618, %v8745
      %v8760 = vmul.f32 %v5587, %v8736
      %v8761 = vmul.f32 %v5588, %v8743
      %v8762 = vmul.f32 %v5589, %v8744
      %v8763 = vmul.f32 %v5619, %v8745
      %v8764 = vmul.f32 %v5590, %v8736
      %v8765 = vmul.f32 %v5591, %v8743
      %v8766 = vmul.f32 %v5592, %v8744
      %v8767 = vmul.f32 %v5620, %v8745
      %8785 = vrot.lane.b32.xlu0 %v8751, 120
      %v8786 = vpop.permute.xlu0 %8785
      %8787 = vrot.lane.b32.xlu0 %v8752, 120
      %v8788 = vpop.permute.xlu0 %8787
      %8789 = vrot.lane.b32.xlu0 %v8753, 120
      %v8790 = vpop.permute.xlu0 %8789
      %8791 = vrot.lane.b32.xlu0 %v8754, 120
      %v8792 = vpop.permute.xlu0 %8791
      %8793 = vrot.lane.b32.xlu0 %v8755, 120
      %v8794 = vpop.permute.xlu0 %8793
      %8795 = vrot.lane.b32.xlu0 %v8756, 120
      %v8796 = vpop.permute.xlu0 %8795
      %8797 = vrot.lane.b32.xlu0 %v8757, 120
      %v8798 = vpop.permute.xlu0 %8797
      %8799 = vrot.lane.b32.xlu0 %v8758, 120
      %v8800 = vpop.permute.xlu0 %8799
      %8801 = vrot.lane.b32.xlu0 %v8759, 120
      %v8802 = vpop.permute.xlu0 %8801
      %8803 = vrot.lane.b32.xlu0 %v8760, 120
      %v8804 = vpop.permute.xlu0 %8803
      %8805 = vrot.lane.b32.xlu0 %v8761, 120
      %v8806 = vpop.permute.xlu0 %8805
      %8807 = vrot.lane.b32.xlu0 %v8762, 120
      %v8808 = vpop.permute.xlu0 %8807
      %8809 = vrot.lane.b32.xlu0 %v8763, 120
      %v8810 = vpop.permute.xlu0 %8809
      %8811 = vrot.lane.b32.xlu0 %v8764, 120
      %v8812 = vpop.permute.xlu0 %8811
      %8813 = vrot.lane.b32.xlu0 %v8765, 120
      %v8814 = vpop.permute.xlu0 %8813
      %8815 = vrot.lane.b32.xlu0 %v8766, 120
      %v8816 = vpop.permute.xlu0 %8815
      %8817 = vrot.lane.b32.xlu0 %v8767, 120
      %v8818 = vpop.permute.xlu0 %8817
      %v8819 = vsel %vm611, %v8786, %v8788
      %v8820 = vsel %vm611, %v8788, %v8790
      %v8821 = vsel %vm611, %v8790, %v8792
      %v8822 = vsel %vm611, %v8792, %v8794
      %v8823 = vsel %vm611, %v8796, %v8798
      %v8824 = vsel %vm611, %v8798, %v8800
      %v8825 = vsel %vm611, %v8800, %v8802
      %v8826 = vsel %vm611, %v8802, %v8794
      %v8827 = vsel %vm611, %v8804, %v8806
      %v8828 = vsel %vm611, %v8806, %v8808
      %v8829 = vsel %vm611, %v8808, %v8810
      %v8830 = vsel %vm611, %v8810, %v8794
      %v8831 = vsel %vm611, %v8812, %v8814
      %v8832 = vsel %vm611, %v8814, %v8816
      %v8833 = vsel %vm611, %v8816, %v8818
      %v8834 = vsel %vm611, %v8818, %v8794
      %8851 = vst [vmem:[#allocation2 + $0xa80] sm:$0xff] %v8819
      %8852 = vst [vmem:[#allocation2 + $0xa88] sm:$0xff] %v8820
      %8853 = vst [vmem:[#allocation2 + $0xa90] sm:$0xff] %v8821
      %8854 = vst [vmem:[#allocation2 + $0xa98] sm:$0xff] %v8822
      %8855 = vst [vmem:[#allocation2 + $0xaa0] sm:$0xff] %v8823
      %8856 = vst [vmem:[#allocation2 + $0xaa8] sm:$0xff] %v8824
      %8857 = vst [vmem:[#allocation2 + $0xab0] sm:$0xff] %v8825
      %8858 = vst [vmem:[#allocation2 + $0xab8] sm:$0xff] %v8826
      %8859 = vst [vmem:[#allocation2 + $0xac0] sm:$0xff] %v8827
      %8860 = vst [vmem:[#allocation2 + $0xac8] sm:$0xff] %v8828
      %8861 = vst [vmem:[#allocation2 + $0xad0] sm:$0xff] %v8829
      %8862 = vst [vmem:[#allocation2 + $0xad8] sm:$0xff] %v8830
      %8863 = vst [vmem:[#allocation2 + $0xae0] sm:$0xff] %v8831
      %8864 = vst [vmem:[#allocation2 + $0xae8] sm:$0xff] %v8832
      %8865 = vst [vmem:[#allocation2 + $0xaf0] sm:$0xff] %v8833
      %8866 = vst [vmem:[#allocation2 + $0xaf8] sm:$0xff] %v8834
      %v8867 = vld [vmem:[%s1777] ss:$8 sm:$0xf]
      %v8869 = vlaneseq
      %v8870 = vshrl.u32 %v8869, 7
      %v8871 = vsub.s32 0, %v8870
      %v8872 = vrot.slane %v8867, %v8871
      %v8873 = vlaneseq
      %v8874 = vshrl.u32 %v8873, 7
      %v8875 = vsub.s32 1, %v8874
      %v8876 = vrot.slane %v8867, %v8875
      %v8877 = vlaneseq
      %v8878 = vshrl.u32 %v8877, 7
      %v8879 = vsub.s32 2, %v8878
      %v8880 = vrot.slane %v8867, %v8879
      %v8881 = vlaneseq
      %v8882 = vshrl.u32 %v8881, 7
      %v8883 = vsub.s32 3, %v8882
      %v8884 = vrot.slane %v8867, %v8883
      %8885 = vrot.lane.b32.xlu0 %v8872, 9
      %v8886 = vpop.permute.xlu0 %8885
      %8887 = vrot.lane.b32.xlu0 %v8876, 9
      %v8888 = vpop.permute.xlu0 %8887
      %8889 = vrot.lane.b32.xlu0 %v8880, 9
      %v8890 = vpop.permute.xlu0 %8889
      %8891 = vrot.lane.b32.xlu0 %v8884, 9
      %v8892 = vpop.permute.xlu0 %8891
      %v8893 = vsel %vm651, %v8886, %v8888
      %v8894 = vsel %vm651, %v8888, %v8890
      %v8895 = vsel %vm651, %v8890, %v8892
      %v8901 = vmul.f32 %v5581, %v8886
      %v8902 = vmul.f32 %v5582, %v8893
      %v8903 = vmul.f32 %v5583, %v8894
      %v8904 = vmul.f32 %v5617, %v8895
      %v8905 = vmul.f32 %v8892, 0.0
      %v8906 = vmul.f32 %v5584, %v8886
      %v8907 = vmul.f32 %v5585, %v8893
      %v8908 = vmul.f32 %v5586, %v8894
      %v8909 = vmul.f32 %v5618, %v8895
      %v8910 = vmul.f32 %v5587, %v8886
      %v8911 = vmul.f32 %v5588, %v8893
      %v8912 = vmul.f32 %v5589, %v8894
      %v8913 = vmul.f32 %v5619, %v8895
      %v8914 = vmul.f32 %v5590, %v8886
      %v8915 = vmul.f32 %v5591, %v8893
      %v8916 = vmul.f32 %v5592, %v8894
      %v8917 = vmul.f32 %v5620, %v8895
      %8935 = vrot.lane.b32.xlu0 %v8901, 119
      %v8936 = vpop.permute.xlu0 %8935
      %8937 = vrot.lane.b32.xlu0 %v8902, 119
      %v8938 = vpop.permute.xlu0 %8937
      %8939 = vrot.lane.b32.xlu0 %v8903, 119
      %v8940 = vpop.permute.xlu0 %8939
      %8941 = vrot.lane.b32.xlu0 %v8904, 119
      %v8942 = vpop.permute.xlu0 %8941
      %8943 = vrot.lane.b32.xlu0 %v8905, 119
      %v8944 = vpop.permute.xlu0 %8943
      %8945 = vrot.lane.b32.xlu0 %v8906, 119
      %v8946 = vpop.permute.xlu0 %8945
      %8947 = vrot.lane.b32.xlu0 %v8907, 119
      %v8948 = vpop.permute.xlu0 %8947
      %8949 = vrot.lane.b32.xlu0 %v8908, 119
      %v8950 = vpop.permute.xlu0 %8949
      %8951 = vrot.lane.b32.xlu0 %v8909, 119
      %v8952 = vpop.permute.xlu0 %8951
      %8953 = vrot.lane.b32.xlu0 %v8910, 119
      %v8954 = vpop.permute.xlu0 %8953
      %8955 = vrot.lane.b32.xlu0 %v8911, 119
      %v8956 = vpop.permute.xlu0 %8955
      %8957 = vrot.lane.b32.xlu0 %v8912, 119
      %v8958 = vpop.permute.xlu0 %8957
      %8959 = vrot.lane.b32.xlu0 %v8913, 119
      %v8960 = vpop.permute.xlu0 %8959
      %8961 = vrot.lane.b32.xlu0 %v8914, 119
      %v8962 = vpop.permute.xlu0 %8961
      %8963 = vrot.lane.b32.xlu0 %v8915, 119
      %v8964 = vpop.permute.xlu0 %8963
      %8965 = vrot.lane.b32.xlu0 %v8916, 119
      %v8966 = vpop.permute.xlu0 %8965
      %8967 = vrot.lane.b32.xlu0 %v8917, 119
      %v8968 = vpop.permute.xlu0 %8967
      %v8969 = vsel %vm680, %v8936, %v8938
      %v8970 = vsel %vm680, %v8938, %v8940
      %v8971 = vsel %vm680, %v8940, %v8942
      %v8972 = vsel %vm680, %v8942, %v8944
      %v8973 = vsel %vm680, %v8946, %v8948
      %v8974 = vsel %vm680, %v8948, %v8950
      %v8975 = vsel %vm680, %v8950, %v8952
      %v8976 = vsel %vm680, %v8952, %v8944
      %v8977 = vsel %vm680, %v8954, %v8956
      %v8978 = vsel %vm680, %v8956, %v8958
      %v8979 = vsel %vm680, %v8958, %v8960
      %v8980 = vsel %vm680, %v8960, %v8944
      %v8981 = vsel %vm680, %v8962, %v8964
      %v8982 = vsel %vm680, %v8964, %v8966
      %v8983 = vsel %vm680, %v8966, %v8968
      %v8984 = vsel %vm680, %v8968, %v8944
      %9001 = vst [vmem:[#allocation2 + $0xb00] sm:$0xff] %v8969
      %9002 = vst [vmem:[#allocation2 + $0xb08] sm:$0xff] %v8970
      %9003 = vst [vmem:[#allocation2 + $0xb10] sm:$0xff] %v8971
      %9004 = vst [vmem:[#allocation2 + $0xb18] sm:$0xff] %v8972
      %9005 = vst [vmem:[#allocation2 + $0xb20] sm:$0xff] %v8973
      %9006 = vst [vmem:[#allocation2 + $0xb28] sm:$0xff] %v8974
      %9007 = vst [vmem:[#allocation2 + $0xb30] sm:$0xff] %v8975
      %9008 = vst [vmem:[#allocation2 + $0xb38] sm:$0xff] %v8976
      %9009 = vst [vmem:[#allocation2 + $0xb40] sm:$0xff] %v8977
      %9010 = vst [vmem:[#allocation2 + $0xb48] sm:$0xff] %v8978
      %9011 = vst [vmem:[#allocation2 + $0xb50] sm:$0xff] %v8979
      %9012 = vst [vmem:[#allocation2 + $0xb58] sm:$0xff] %v8980
      %9013 = vst [vmem:[#allocation2 + $0xb60] sm:$0xff] %v8981
      %9014 = vst [vmem:[#allocation2 + $0xb68] sm:$0xff] %v8982
      %9015 = vst [vmem:[#allocation2 + $0xb70] sm:$0xff] %v8983
      %9016 = vst [vmem:[#allocation2 + $0xb78] sm:$0xff] %v8984
      %v9017 = vld [vmem:[%s1844] ss:$8 sm:$0xf]
      %v9019 = vlaneseq
      %v9020 = vshrl.u32 %v9019, 7
      %v9021 = vsub.s32 0, %v9020
      %v9022 = vrot.slane %v9017, %v9021
      %v9023 = vlaneseq
      %v9024 = vshrl.u32 %v9023, 7
      %v9025 = vsub.s32 1, %v9024
      %v9026 = vrot.slane %v9017, %v9025
      %v9027 = vlaneseq
      %v9028 = vshrl.u32 %v9027, 7
      %v9029 = vsub.s32 2, %v9028
      %v9030 = vrot.slane %v9017, %v9029
      %v9031 = vlaneseq
      %v9032 = vshrl.u32 %v9031, 7
      %v9033 = vsub.s32 3, %v9032
      %v9034 = vrot.slane %v9017, %v9033
      %9035 = vrot.lane.b32.xlu0 %v9022, 10
      %v9036 = vpop.permute.xlu0 %9035
      %9037 = vrot.lane.b32.xlu0 %v9026, 10
      %v9038 = vpop.permute.xlu0 %9037
      %9039 = vrot.lane.b32.xlu0 %v9030, 10
      %v9040 = vpop.permute.xlu0 %9039
      %9041 = vrot.lane.b32.xlu0 %v9034, 10
      %v9042 = vpop.permute.xlu0 %9041
      %v9043 = vsel %vm720, %v9036, %v9038
      %v9044 = vsel %vm720, %v9038, %v9040
      %v9045 = vsel %vm720, %v9040, %v9042
      %v9051 = vmul.f32 %v5581, %v9036
      %v9052 = vmul.f32 %v5582, %v9043
      %v9053 = vmul.f32 %v5583, %v9044
      %v9054 = vmul.f32 %v5617, %v9045
      %v9055 = vmul.f32 %v9042, 0.0
      %v9056 = vmul.f32 %v5584, %v9036
      %v9057 = vmul.f32 %v5585, %v9043
      %v9058 = vmul.f32 %v5586, %v9044
      %v9059 = vmul.f32 %v5618, %v9045
      %v9060 = vmul.f32 %v5587, %v9036
      %v9061 = vmul.f32 %v5588, %v9043
      %v9062 = vmul.f32 %v5589, %v9044
      %v9063 = vmul.f32 %v5619, %v9045
      %v9064 = vmul.f32 %v5590, %v9036
      %v9065 = vmul.f32 %v5591, %v9043
      %v9066 = vmul.f32 %v5592, %v9044
      %v9067 = vmul.f32 %v5620, %v9045
      %9085 = vrot.lane.b32.xlu0 %v9051, 118
      %v9086 = vpop.permute.xlu0 %9085
      %9087 = vrot.lane.b32.xlu0 %v9052, 118
      %v9088 = vpop.permute.xlu0 %9087
      %9089 = vrot.lane.b32.xlu0 %v9053, 118
      %v9090 = vpop.permute.xlu0 %9089
      %9091 = vrot.lane.b32.xlu0 %v9054, 118
      %v9092 = vpop.permute.xlu0 %9091
      %9093 = vrot.lane.b32.xlu0 %v9055, 118
      %v9094 = vpop.permute.xlu0 %9093
      %9095 = vrot.lane.b32.xlu0 %v9056, 118
      %v9096 = vpop.permute.xlu0 %9095
      %9097 = vrot.lane.b32.xlu0 %v9057, 118
      %v9098 = vpop.permute.xlu0 %9097
      %9099 = vrot.lane.b32.xlu0 %v9058, 118
      %v9100 = vpop.permute.xlu0 %9099
      %9101 = vrot.lane.b32.xlu0 %v9059, 118
      %v9102 = vpop.permute.xlu0 %9101
      %9103 = vrot.lane.b32.xlu0 %v9060, 118
      %v9104 = vpop.permute.xlu0 %9103
      %9105 = vrot.lane.b32.xlu0 %v9061, 118
      %v9106 = vpop.permute.xlu0 %9105
      %9107 = vrot.lane.b32.xlu0 %v9062, 118
      %v9108 = vpop.permute.xlu0 %9107
      %9109 = vrot.lane.b32.xlu0 %v9063, 118
      %v9110 = vpop.permute.xlu0 %9109
      %9111 = vrot.lane.b32.xlu0 %v9064, 118
      %v9112 = vpop.permute.xlu0 %9111
      %9113 = vrot.lane.b32.xlu0 %v9065, 118
      %v9114 = vpop.permute.xlu0 %9113
      %9115 = vrot.lane.b32.xlu0 %v9066, 118
      %v9116 = vpop.permute.xlu0 %9115
      %9117 = vrot.lane.b32.xlu0 %v9067, 118
      %v9118 = vpop.permute.xlu0 %9117
      %v9119 = vsel %vm749, %v9086, %v9088
      %v9120 = vsel %vm749, %v9088, %v9090
      %v9121 = vsel %vm749, %v9090, %v9092
      %v9122 = vsel %vm749, %v9092, %v9094
      %v9123 = vsel %vm749, %v9096, %v9098
      %v9124 = vsel %vm749, %v9098, %v9100
      %v9125 = vsel %vm749, %v9100, %v9102
      %v9126 = vsel %vm749, %v9102, %v9094
      %v9127 = vsel %vm749, %v9104, %v9106
      %v9128 = vsel %vm749, %v9106, %v9108
      %v9129 = vsel %vm749, %v9108, %v9110
      %v9130 = vsel %vm749, %v9110, %v9094
      %v9131 = vsel %vm749, %v9112, %v9114
      %v9132 = vsel %vm749, %v9114, %v9116
      %v9133 = vsel %vm749, %v9116, %v9118
      %v9134 = vsel %vm749, %v9118, %v9094
      %9151 = vst [vmem:[#allocation2 + $0xb80] sm:$0xff] %v9119
      %9152 = vst [vmem:[#allocation2 + $0xb88] sm:$0xff] %v9120
      %9153 = vst [vmem:[#allocation2 + $0xb90] sm:$0xff] %v9121
      %9154 = vst [vmem:[#allocation2 + $0xb98] sm:$0xff] %v9122
      %9155 = vst [vmem:[#allocation2 + $0xba0] sm:$0xff] %v9123
      %9156 = vst [vmem:[#allocation2 + $0xba8] sm:$0xff] %v9124
      %9157 = vst [vmem:[#allocation2 + $0xbb0] sm:$0xff] %v9125
      %9158 = vst [vmem:[#allocation2 + $0xbb8] sm:$0xff] %v9126
      %9159 = vst [vmem:[#allocation2 + $0xbc0] sm:$0xff] %v9127
      %9160 = vst [vmem:[#allocation2 + $0xbc8] sm:$0xff] %v9128
      %9161 = vst [vmem:[#allocation2 + $0xbd0] sm:$0xff] %v9129
      %9162 = vst [vmem:[#allocation2 + $0xbd8] sm:$0xff] %v9130
      %9163 = vst [vmem:[#allocation2 + $0xbe0] sm:$0xff] %v9131
      %9164 = vst [vmem:[#allocation2 + $0xbe8] sm:$0xff] %v9132
      %9165 = vst [vmem:[#allocation2 + $0xbf0] sm:$0xff] %v9133
      %9166 = vst [vmem:[#allocation2 + $0xbf8] sm:$0xff] %v9134
      %v9167 = vld [vmem:[%s1911] ss:$8 sm:$0xf]
      %v9169 = vlaneseq
      %v9170 = vshrl.u32 %v9169, 7
      %v9171 = vsub.s32 0, %v9170
      %v9172 = vrot.slane %v9167, %v9171
      %v9173 = vlaneseq
      %v9174 = vshrl.u32 %v9173, 7
      %v9175 = vsub.s32 1, %v9174
      %v9176 = vrot.slane %v9167, %v9175
      %v9177 = vlaneseq
      %v9178 = vshrl.u32 %v9177, 7
      %v9179 = vsub.s32 2, %v9178
      %v9180 = vrot.slane %v9167, %v9179
      %v9181 = vlaneseq
      %v9182 = vshrl.u32 %v9181, 7
      %v9183 = vsub.s32 3, %v9182
      %v9184 = vrot.slane %v9167, %v9183
      %9185 = vrot.lane.b32.xlu0 %v9172, 16
      %v9186 = vpop.permute.xlu0 %9185
      %9187 = vrot.lane.b32.xlu0 %v9176, 16
      %v9188 = vpop.permute.xlu0 %9187
      %9189 = vrot.lane.b32.xlu0 %v9180, 16
      %v9190 = vpop.permute.xlu0 %9189
      %9191 = vrot.lane.b32.xlu0 %v9184, 16
      %v9192 = vpop.permute.xlu0 %9191
      %v9193 = vsel %vm789, %v9186, %v9188
      %v9194 = vsel %vm789, %v9188, %v9190
      %v9195 = vsel %vm789, %v9190, %v9192
      %v9201 = vmul.f32 %v5581, %v9186
      %v9202 = vmul.f32 %v5582, %v9193
      %v9203 = vmul.f32 %v5583, %v9194
      %v9204 = vmul.f32 %v5617, %v9195
      %v9205 = vmul.f32 %v9192, 0.0
      %v9206 = vmul.f32 %v5584, %v9186
      %v9207 = vmul.f32 %v5585, %v9193
      %v9208 = vmul.f32 %v5586, %v9194
      %v9209 = vmul.f32 %v5618, %v9195
      %v9210 = vmul.f32 %v5587, %v9186
      %v9211 = vmul.f32 %v5588, %v9193
      %v9212 = vmul.f32 %v5589, %v9194
      %v9213 = vmul.f32 %v5619, %v9195
      %v9214 = vmul.f32 %v5590, %v9186
      %v9215 = vmul.f32 %v5591, %v9193
      %v9216 = vmul.f32 %v5592, %v9194
      %v9217 = vmul.f32 %v5620, %v9195
      %9235 = vrot.lane.b32.xlu0 %v9201, 112
      %v9236 = vpop.permute.xlu0 %9235
      %9237 = vrot.lane.b32.xlu0 %v9202, 112
      %v9238 = vpop.permute.xlu0 %9237
      %9239 = vrot.lane.b32.xlu0 %v9203, 112
      %v9240 = vpop.permute.xlu0 %9239
      %9241 = vrot.lane.b32.xlu0 %v9204, 112
      %v9242 = vpop.permute.xlu0 %9241
      %9243 = vrot.lane.b32.xlu0 %v9205, 112
      %v9244 = vpop.permute.xlu0 %9243
      %9245 = vrot.lane.b32.xlu0 %v9206, 112
      %v9246 = vpop.permute.xlu0 %9245
      %9247 = vrot.lane.b32.xlu0 %v9207, 112
      %v9248 = vpop.permute.xlu0 %9247
      %9249 = vrot.lane.b32.xlu0 %v9208, 112
      %v9250 = vpop.permute.xlu0 %9249
      %9251 = vrot.lane.b32.xlu0 %v9209, 112
      %v9252 = vpop.permute.xlu0 %9251
      %9253 = vrot.lane.b32.xlu0 %v9210, 112
      %v9254 = vpop.permute.xlu0 %9253
      %9255 = vrot.lane.b32.xlu0 %v9211, 112
      %v9256 = vpop.permute.xlu0 %9255
      %9257 = vrot.lane.b32.xlu0 %v9212, 112
      %v9258 = vpop.permute.xlu0 %9257
      %9259 = vrot.lane.b32.xlu0 %v9213, 112
      %v9260 = vpop.permute.xlu0 %9259
      %9261 = vrot.lane.b32.xlu0 %v9214, 112
      %v9262 = vpop.permute.xlu0 %9261
      %9263 = vrot.lane.b32.xlu0 %v9215, 112
      %v9264 = vpop.permute.xlu0 %9263
      %9265 = vrot.lane.b32.xlu0 %v9216, 112
      %v9266 = vpop.permute.xlu0 %9265
      %9267 = vrot.lane.b32.xlu0 %v9217, 112
      %v9268 = vpop.permute.xlu0 %9267
      %v9269 = vsel %vm818, %v9236, %v9238
      %v9270 = vsel %vm818, %v9238, %v9240
      %v9271 = vsel %vm818, %v9240, %v9242
      %v9272 = vsel %vm818, %v9242, %v9244
      %v9273 = vsel %vm818, %v9246, %v9248
      %v9274 = vsel %vm818, %v9248, %v9250
      %v9275 = vsel %vm818, %v9250, %v9252
      %v9276 = vsel %vm818, %v9252, %v9244
      %v9277 = vsel %vm818, %v9254, %v9256
      %v9278 = vsel %vm818, %v9256, %v9258
      %v9279 = vsel %vm818, %v9258, %v9260
      %v9280 = vsel %vm818, %v9260, %v9244
      %v9281 = vsel %vm818, %v9262, %v9264
      %v9282 = vsel %vm818, %v9264, %v9266
      %v9283 = vsel %vm818, %v9266, %v9268
      %v9284 = vsel %vm818, %v9268, %v9244
      %9301 = vst [vmem:[#allocation2 + $0xc00] sm:$0xff] %v9269
      %9302 = vst [vmem:[#allocation2 + $0xc08] sm:$0xff] %v9270
      %9303 = vst [vmem:[#allocation2 + $0xc10] sm:$0xff] %v9271
      %9304 = vst [vmem:[#allocation2 + $0xc18] sm:$0xff] %v9272
      %9305 = vst [vmem:[#allocation2 + $0xc20] sm:$0xff] %v9273
      %9306 = vst [vmem:[#allocation2 + $0xc28] sm:$0xff] %v9274
      %9307 = vst [vmem:[#allocation2 + $0xc30] sm:$0xff] %v9275
      %9308 = vst [vmem:[#allocation2 + $0xc38] sm:$0xff] %v9276
      %9309 = vst [vmem:[#allocation2 + $0xc40] sm:$0xff] %v9277
      %9310 = vst [vmem:[#allocation2 + $0xc48] sm:$0xff] %v9278
      %9311 = vst [vmem:[#allocation2 + $0xc50] sm:$0xff] %v9279
      %9312 = vst [vmem:[#allocation2 + $0xc58] sm:$0xff] %v9280
      %9313 = vst [vmem:[#allocation2 + $0xc60] sm:$0xff] %v9281
      %9314 = vst [vmem:[#allocation2 + $0xc68] sm:$0xff] %v9282
      %9315 = vst [vmem:[#allocation2 + $0xc70] sm:$0xff] %v9283
      %9316 = vst [vmem:[#allocation2 + $0xc78] sm:$0xff] %v9284
      %v9317 = vld [vmem:[%s1978] ss:$8 sm:$0xf]
      %v9319 = vlaneseq
      %v9320 = vshrl.u32 %v9319, 7
      %v9321 = vsub.s32 0, %v9320
      %v9322 = vrot.slane %v9317, %v9321
      %v9323 = vlaneseq
      %v9324 = vshrl.u32 %v9323, 7
      %v9325 = vsub.s32 1, %v9324
      %v9326 = vrot.slane %v9317, %v9325
      %v9327 = vlaneseq
      %v9328 = vshrl.u32 %v9327, 7
      %v9329 = vsub.s32 2, %v9328
      %v9330 = vrot.slane %v9317, %v9329
      %v9331 = vlaneseq
      %v9332 = vshrl.u32 %v9331, 7
      %v9333 = vsub.s32 3, %v9332
      %v9334 = vrot.slane %v9317, %v9333
      %9335 = vrot.lane.b32.xlu0 %v9322, 17
      %v9336 = vpop.permute.xlu0 %9335
      %9337 = vrot.lane.b32.xlu0 %v9326, 17
      %v9338 = vpop.permute.xlu0 %9337
      %9339 = vrot.lane.b32.xlu0 %v9330, 17
      %v9340 = vpop.permute.xlu0 %9339
      %9341 = vrot.lane.b32.xlu0 %v9334, 17
      %v9342 = vpop.permute.xlu0 %9341
      %v9343 = vsel %vm858, %v9336, %v9338
      %v9344 = vsel %vm858, %v9338, %v9340
      %v9345 = vsel %vm858, %v9340, %v9342
      %v9351 = vmul.f32 %v5581, %v9336
      %v9352 = vmul.f32 %v5582, %v9343
      %v9353 = vmul.f32 %v5583, %v9344
      %v9354 = vmul.f32 %v5617, %v9345
      %v9355 = vmul.f32 %v9342, 0.0
      %v9356 = vmul.f32 %v5584, %v9336
      %v9357 = vmul.f32 %v5585, %v9343
      %v9358 = vmul.f32 %v5586, %v9344
      %v9359 = vmul.f32 %v5618, %v9345
      %v9360 = vmul.f32 %v5587, %v9336
      %v9361 = vmul.f32 %v5588, %v9343
      %v9362 = vmul.f32 %v5589, %v9344
      %v9363 = vmul.f32 %v5619, %v9345
      %v9364 = vmul.f32 %v5590, %v9336
      %v9365 = vmul.f32 %v5591, %v9343
      %v9366 = vmul.f32 %v5592, %v9344
      %v9367 = vmul.f32 %v5620, %v9345
      %9385 = vrot.lane.b32.xlu0 %v9351, 111
      %v9386 = vpop.permute.xlu0 %9385
      %9387 = vrot.lane.b32.xlu0 %v9352, 111
      %v9388 = vpop.permute.xlu0 %9387
      %9389 = vrot.lane.b32.xlu0 %v9353, 111
      %v9390 = vpop.permute.xlu0 %9389
      %9391 = vrot.lane.b32.xlu0 %v9354, 111
      %v9392 = vpop.permute.xlu0 %9391
      %9393 = vrot.lane.b32.xlu0 %v9355, 111
      %v9394 = vpop.permute.xlu0 %9393
      %9395 = vrot.lane.b32.xlu0 %v9356, 111
      %v9396 = vpop.permute.xlu0 %9395
      %9397 = vrot.lane.b32.xlu0 %v9357, 111
      %v9398 = vpop.permute.xlu0 %9397
      %9399 = vrot.lane.b32.xlu0 %v9358, 111
      %v9400 = vpop.permute.xlu0 %9399
      %9401 = vrot.lane.b32.xlu0 %v9359, 111
      %v9402 = vpop.permute.xlu0 %9401
      %9403 = vrot.lane.b32.xlu0 %v9360, 111
      %v9404 = vpop.permute.xlu0 %9403
      %9405 = vrot.lane.b32.xlu0 %v9361, 111
      %v9406 = vpop.permute.xlu0 %9405
      %9407 = vrot.lane.b32.xlu0 %v9362, 111
      %v9408 = vpop.permute.xlu0 %9407
      %9409 = vrot.lane.b32.xlu0 %v9363, 111
      %v9410 = vpop.permute.xlu0 %9409
      %9411 = vrot.lane.b32.xlu0 %v9364, 111
      %v9412 = vpop.permute.xlu0 %9411
      %9413 = vrot.lane.b32.xlu0 %v9365, 111
      %v9414 = vpop.permute.xlu0 %9413
      %9415 = vrot.lane.b32.xlu0 %v9366, 111
      %v9416 = vpop.permute.xlu0 %9415
      %9417 = vrot.lane.b32.xlu0 %v9367, 111
      %v9418 = vpop.permute.xlu0 %9417
      %v9419 = vsel %vm887, %v9386, %v9388
      %v9420 = vsel %vm887, %v9388, %v9390
      %v9421 = vsel %vm887, %v9390, %v9392
      %v9422 = vsel %vm887, %v9392, %v9394
      %v9423 = vsel %vm887, %v9396, %v9398
      %v9424 = vsel %vm887, %v9398, %v9400
      %v9425 = vsel %vm887, %v9400, %v9402
      %v9426 = vsel %vm887, %v9402, %v9394
      %v9427 = vsel %vm887, %v9404, %v9406
      %v9428 = vsel %vm887, %v9406, %v9408
      %v9429 = vsel %vm887, %v9408, %v9410
      %v9430 = vsel %vm887, %v9410, %v9394
      %v9431 = vsel %vm887, %v9412, %v9414
      %v9432 = vsel %vm887, %v9414, %v9416
      %v9433 = vsel %vm887, %v9416, %v9418
      %v9434 = vsel %vm887, %v9418, %v9394
      %9451 = vst [vmem:[#allocation2 + $0xc80] sm:$0xff] %v9419
      %9452 = vst [vmem:[#allocation2 + $0xc88] sm:$0xff] %v9420
      %9453 = vst [vmem:[#allocation2 + $0xc90] sm:$0xff] %v9421
      %9454 = vst [vmem:[#allocation2 + $0xc98] sm:$0xff] %v9422
      %9455 = vst [vmem:[#allocation2 + $0xca0] sm:$0xff] %v9423
      %9456 = vst [vmem:[#allocation2 + $0xca8] sm:$0xff] %v9424
      %9457 = vst [vmem:[#allocation2 + $0xcb0] sm:$0xff] %v9425
      %9458 = vst [vmem:[#allocation2 + $0xcb8] sm:$0xff] %v9426
      %9459 = vst [vmem:[#allocation2 + $0xcc0] sm:$0xff] %v9427
      %9460 = vst [vmem:[#allocation2 + $0xcc8] sm:$0xff] %v9428
      %9461 = vst [vmem:[#allocation2 + $0xcd0] sm:$0xff] %v9429
      %9462 = vst [vmem:[#allocation2 + $0xcd8] sm:$0xff] %v9430
      %9463 = vst [vmem:[#allocation2 + $0xce0] sm:$0xff] %v9431
      %9464 = vst [vmem:[#allocation2 + $0xce8] sm:$0xff] %v9432
      %9465 = vst [vmem:[#allocation2 + $0xcf0] sm:$0xff] %v9433
      %9466 = vst [vmem:[#allocation2 + $0xcf8] sm:$0xff] %v9434
      %v9467 = vld [vmem:[%s2045] ss:$8 sm:$0xf]
      %v9469 = vlaneseq
      %v9470 = vshrl.u32 %v9469, 7
      %v9471 = vsub.s32 0, %v9470
      %v9472 = vrot.slane %v9467, %v9471
      %v9473 = vlaneseq
      %v9474 = vshrl.u32 %v9473, 7
      %v9475 = vsub.s32 1, %v9474
      %v9476 = vrot.slane %v9467, %v9475
      %v9477 = vlaneseq
      %v9478 = vshrl.u32 %v9477, 7
      %v9479 = vsub.s32 2, %v9478
      %v9480 = vrot.slane %v9467, %v9479
      %v9481 = vlaneseq
      %v9482 = vshrl.u32 %v9481, 7
      %v9483 = vsub.s32 3, %v9482
      %v9484 = vrot.slane %v9467, %v9483
      %9485 = vrot.lane.b32.xlu0 %v9472, 18
      %v9486 = vpop.permute.xlu0 %9485
      %9487 = vrot.lane.b32.xlu0 %v9476, 18
      %v9488 = vpop.permute.xlu0 %9487
      %9489 = vrot.lane.b32.xlu0 %v9480, 18
      %v9490 = vpop.permute.xlu0 %9489
      %9491 = vrot.lane.b32.xlu0 %v9484, 18
      %v9492 = vpop.permute.xlu0 %9491
      %v9493 = vsel %vm927, %v9486, %v9488
      %v9494 = vsel %vm927, %v9488, %v9490
      %v9495 = vsel %vm927, %v9490, %v9492
      %v9501 = vmul.f32 %v5581, %v9486
      %v9502 = vmul.f32 %v5582, %v9493
      %v9503 = vmul.f32 %v5583, %v9494
      %v9504 = vmul.f32 %v5617, %v9495
      %v9505 = vmul.f32 %v9492, 0.0
      %v9506 = vmul.f32 %v5584, %v9486
      %v9507 = vmul.f32 %v5585, %v9493
      %v9508 = vmul.f32 %v5586, %v9494
      %v9509 = vmul.f32 %v5618, %v9495
      %v9510 = vmul.f32 %v5587, %v9486
      %v9511 = vmul.f32 %v5588, %v9493
      %v9512 = vmul.f32 %v5589, %v9494
      %v9513 = vmul.f32 %v5619, %v9495
      %v9514 = vmul.f32 %v5590, %v9486
      %v9515 = vmul.f32 %v5591, %v9493
      %v9516 = vmul.f32 %v5592, %v9494
      %v9517 = vmul.f32 %v5620, %v9495
      %9535 = vrot.lane.b32.xlu0 %v9501, 110
      %v9536 = vpop.permute.xlu0 %9535
      %9537 = vrot.lane.b32.xlu0 %v9502, 110
      %v9538 = vpop.permute.xlu0 %9537
      %9539 = vrot.lane.b32.xlu0 %v9503, 110
      %v9540 = vpop.permute.xlu0 %9539
      %9541 = vrot.lane.b32.xlu0 %v9504, 110
      %v9542 = vpop.permute.xlu0 %9541
      %9543 = vrot.lane.b32.xlu0 %v9505, 110
      %v9544 = vpop.permute.xlu0 %9543
      %9545 = vrot.lane.b32.xlu0 %v9506, 110
      %v9546 = vpop.permute.xlu0 %9545
      %9547 = vrot.lane.b32.xlu0 %v9507, 110
      %v9548 = vpop.permute.xlu0 %9547
      %9549 = vrot.lane.b32.xlu0 %v9508, 110
      %v9550 = vpop.permute.xlu0 %9549
      %9551 = vrot.lane.b32.xlu0 %v9509, 110
      %v9552 = vpop.permute.xlu0 %9551
      %9553 = vrot.lane.b32.xlu0 %v9510, 110
      %v9554 = vpop.permute.xlu0 %9553
      %9555 = vrot.lane.b32.xlu0 %v9511, 110
      %v9556 = vpop.permute.xlu0 %9555
      %9557 = vrot.lane.b32.xlu0 %v9512, 110
      %v9558 = vpop.permute.xlu0 %9557
      %9559 = vrot.lane.b32.xlu0 %v9513, 110
      %v9560 = vpop.permute.xlu0 %9559
      %9561 = vrot.lane.b32.xlu0 %v9514, 110
      %v9562 = vpop.permute.xlu0 %9561
      %9563 = vrot.lane.b32.xlu0 %v9515, 110
      %v9564 = vpop.permute.xlu0 %9563
      %9565 = vrot.lane.b32.xlu0 %v9516, 110
      %v9566 = vpop.permute.xlu0 %9565
      %9567 = vrot.lane.b32.xlu0 %v9517, 110
      %v9568 = vpop.permute.xlu0 %9567
      %v9569 = vsel %vm956, %v9536, %v9538
      %v9570 = vsel %vm956, %v9538, %v9540
      %v9571 = vsel %vm956, %v9540, %v9542
      %v9572 = vsel %vm956, %v9542, %v9544
      %v9573 = vsel %vm956, %v9546, %v9548
      %v9574 = vsel %vm956, %v9548, %v9550
      %v9575 = vsel %vm956, %v9550, %v9552
      %v9576 = vsel %vm956, %v9552, %v9544
      %v9577 = vsel %vm956, %v9554, %v9556
      %v9578 = vsel %vm956, %v9556, %v9558
      %v9579 = vsel %vm956, %v9558, %v9560
      %v9580 = vsel %vm956, %v9560, %v9544
      %v9581 = vsel %vm956, %v9562, %v9564
      %v9582 = vsel %vm956, %v9564, %v9566
      %v9583 = vsel %vm956, %v9566, %v9568
      %v9584 = vsel %vm956, %v9568, %v9544
      %9601 = vst [vmem:[#allocation2 + $0xd00] sm:$0xff] %v9569
      %9602 = vst [vmem:[#allocation2 + $0xd08] sm:$0xff] %v9570
      %9603 = vst [vmem:[#allocation2 + $0xd10] sm:$0xff] %v9571
      %9604 = vst [vmem:[#allocation2 + $0xd18] sm:$0xff] %v9572
      %9605 = vst [vmem:[#allocation2 + $0xd20] sm:$0xff] %v9573
      %9606 = vst [vmem:[#allocation2 + $0xd28] sm:$0xff] %v9574
      %9607 = vst [vmem:[#allocation2 + $0xd30] sm:$0xff] %v9575
      %9608 = vst [vmem:[#allocation2 + $0xd38] sm:$0xff] %v9576
      %9609 = vst [vmem:[#allocation2 + $0xd40] sm:$0xff] %v9577
      %9610 = vst [vmem:[#allocation2 + $0xd48] sm:$0xff] %v9578
      %9611 = vst [vmem:[#allocation2 + $0xd50] sm:$0xff] %v9579
      %9612 = vst [vmem:[#allocation2 + $0xd58] sm:$0xff] %v9580
      %9613 = vst [vmem:[#allocation2 + $0xd60] sm:$0xff] %v9581
      %9614 = vst [vmem:[#allocation2 + $0xd68] sm:$0xff] %v9582
      %9615 = vst [vmem:[#allocation2 + $0xd70] sm:$0xff] %v9583
      %9616 = vst [vmem:[#allocation2 + $0xd78] sm:$0xff] %v9584
      %v9617 = vld [vmem:[#allocation2] sm:$0xff]
      %v9618 = vld [vmem:[#allocation2 + $0x8] sm:$0xff]
      %v9619 = vld [vmem:[#allocation2 + $0x10] sm:$0xff]
      %v9620 = vld [vmem:[#allocation2 + $0x18] sm:$0xff]
      %v9621 = vld [vmem:[#allocation2 + $0x20] sm:$0xff]
      %v9622 = vld [vmem:[#allocation2 + $0x28] sm:$0xff]
      %v9623 = vld [vmem:[#allocation2 + $0x30] sm:$0xff]
      %v9624 = vld [vmem:[#allocation2 + $0x38] sm:$0xff]
      %v9625 = vld [vmem:[#allocation2 + $0x40] sm:$0xff]
      %v9626 = vld [vmem:[#allocation2 + $0x48] sm:$0xff]
      %v9627 = vld [vmem:[#allocation2 + $0x50] sm:$0xff]
      %v9628 = vld [vmem:[#allocation2 + $0x58] sm:$0xff]
      %v9629 = vld [vmem:[#allocation2 + $0x60] sm:$0xff]
      %v9630 = vld [vmem:[#allocation2 + $0x68] sm:$0xff]
      %v9631 = vld [vmem:[#allocation2 + $0x70] sm:$0xff]
      %v9632 = vld [vmem:[#allocation2 + $0x78] sm:$0xff]
      %v9633 = vld [vmem:[#allocation2 + $0x80] sm:$0xff]
      %v9634 = vld [vmem:[#allocation2 + $0x88] sm:$0xff]
      %v9635 = vld [vmem:[#allocation2 + $0x90] sm:$0xff]
      %v9636 = vld [vmem:[#allocation2 + $0x98] sm:$0xff]
      %v9637 = vld [vmem:[#allocation2 + $0xa0] sm:$0xff]
      %v9638 = vld [vmem:[#allocation2 + $0xa8] sm:$0xff]
      %v9639 = vld [vmem:[#allocation2 + $0xb0] sm:$0xff]
      %v9640 = vld [vmem:[#allocation2 + $0xb8] sm:$0xff]
      %v9641 = vld [vmem:[#allocation2 + $0xc0] sm:$0xff]
      %v9642 = vld [vmem:[#allocation2 + $0xc8] sm:$0xff]
      %v9643 = vld [vmem:[#allocation2 + $0xd0] sm:$0xff]
      %v9644 = vld [vmem:[#allocation2 + $0xd8] sm:$0xff]
      %v9645 = vld [vmem:[#allocation2 + $0xe0] sm:$0xff]
      %v9646 = vld [vmem:[#allocation2 + $0xe8] sm:$0xff]
      %v9647 = vld [vmem:[#allocation2 + $0xf0] sm:$0xff]
      %v9648 = vld [vmem:[#allocation2 + $0xf8] sm:$0xff]
      %v9649 = vld [vmem:[#allocation2 + $0x100] sm:$0xff]
      %v9650 = vld [vmem:[#allocation2 + $0x108] sm:$0xff]
      %v9651 = vld [vmem:[#allocation2 + $0x110] sm:$0xff]
      %v9652 = vld [vmem:[#allocation2 + $0x118] sm:$0xff]
      %v9653 = vld [vmem:[#allocation2 + $0x120] sm:$0xff]
      %v9654 = vld [vmem:[#allocation2 + $0x128] sm:$0xff]
      %v9655 = vld [vmem:[#allocation2 + $0x130] sm:$0xff]
      %v9656 = vld [vmem:[#allocation2 + $0x138] sm:$0xff]
      %v9657 = vld [vmem:[#allocation2 + $0x140] sm:$0xff]
      %v9658 = vld [vmem:[#allocation2 + $0x148] sm:$0xff]
      %v9659 = vld [vmem:[#allocation2 + $0x150] sm:$0xff]
      %v9660 = vld [vmem:[#allocation2 + $0x158] sm:$0xff]
      %v9661 = vld [vmem:[#allocation2 + $0x160] sm:$0xff]
      %v9662 = vld [vmem:[#allocation2 + $0x168] sm:$0xff]
      %v9663 = vld [vmem:[#allocation2 + $0x170] sm:$0xff]
      %v9664 = vld [vmem:[#allocation2 + $0x178] sm:$0xff]
      %v9665 = vld [vmem:[#allocation2 + $0x180] sm:$0xff]
      %v9666 = vld [vmem:[#allocation2 + $0x188] sm:$0xff]
      %v9667 = vld [vmem:[#allocation2 + $0x190] sm:$0xff]
      %v9668 = vld [vmem:[#allocation2 + $0x198] sm:$0xff]
      %v9669 = vld [vmem:[#allocation2 + $0x1a0] sm:$0xff]
      %v9670 = vld [vmem:[#allocation2 + $0x1a8] sm:$0xff]
      %v9671 = vld [vmem:[#allocation2 + $0x1b0] sm:$0xff]
      %v9672 = vld [vmem:[#allocation2 + $0x1b8] sm:$0xff]
      %v9673 = vld [vmem:[#allocation2 + $0x1c0] sm:$0xff]
      %v9674 = vld [vmem:[#allocation2 + $0x1c8] sm:$0xff]
      %v9675 = vld [vmem:[#allocation2 + $0x1d0] sm:$0xff]
      %v9676 = vld [vmem:[#allocation2 + $0x1d8] sm:$0xff]
      %v9677 = vld [vmem:[#allocation2 + $0x1e0] sm:$0xff]
      %v9678 = vld [vmem:[#allocation2 + $0x1e8] sm:$0xff]
      %v9679 = vld [vmem:[#allocation2 + $0x1f0] sm:$0xff]
      %v9680 = vld [vmem:[#allocation2 + $0x1f8] sm:$0xff]
      %v9681 = vld [vmem:[#allocation2 + $0x200] sm:$0xff]
      %v9682 = vld [vmem:[#allocation2 + $0x208] sm:$0xff]
      %v9683 = vld [vmem:[#allocation2 + $0x210] sm:$0xff]
      %v9684 = vld [vmem:[#allocation2 + $0x218] sm:$0xff]
      %v9685 = vld [vmem:[#allocation2 + $0x220] sm:$0xff]
      %v9686 = vld [vmem:[#allocation2 + $0x228] sm:$0xff]
      %v9687 = vld [vmem:[#allocation2 + $0x230] sm:$0xff]
      %v9688 = vld [vmem:[#allocation2 + $0x238] sm:$0xff]
      %v9689 = vld [vmem:[#allocation2 + $0x240] sm:$0xff]
      %v9690 = vld [vmem:[#allocation2 + $0x248] sm:$0xff]
      %v9691 = vld [vmem:[#allocation2 + $0x250] sm:$0xff]
      %v9692 = vld [vmem:[#allocation2 + $0x258] sm:$0xff]
      %v9693 = vld [vmem:[#allocation2 + $0x260] sm:$0xff]
      %v9694 = vld [vmem:[#allocation2 + $0x268] sm:$0xff]
      %v9695 = vld [vmem:[#allocation2 + $0x270] sm:$0xff]
      %v9696 = vld [vmem:[#allocation2 + $0x278] sm:$0xff]
      %v9697 = vld [vmem:[#allocation2 + $0x280] sm:$0xff]
      %v9698 = vld [vmem:[#allocation2 + $0x288] sm:$0xff]
      %v9699 = vld [vmem:[#allocation2 + $0x290] sm:$0xff]
      %v9700 = vld [vmem:[#allocation2 + $0x298] sm:$0xff]
      %v9701 = vld [vmem:[#allocation2 + $0x2a0] sm:$0xff]
      %v9702 = vld [vmem:[#allocation2 + $0x2a8] sm:$0xff]
      %v9703 = vld [vmem:[#allocation2 + $0x2b0] sm:$0xff]
      %v9704 = vld [vmem:[#allocation2 + $0x2b8] sm:$0xff]
      %v9705 = vld [vmem:[#allocation2 + $0x2c0] sm:$0xff]
      %v9706 = vld [vmem:[#allocation2 + $0x2c8] sm:$0xff]
      %v9707 = vld [vmem:[#allocation2 + $0x2d0] sm:$0xff]
      %v9708 = vld [vmem:[#allocation2 + $0x2d8] sm:$0xff]
      %v9709 = vld [vmem:[#allocation2 + $0x2e0] sm:$0xff]
      %v9710 = vld [vmem:[#allocation2 + $0x2e8] sm:$0xff]
      %v9711 = vld [vmem:[#allocation2 + $0x2f0] sm:$0xff]
      %v9712 = vld [vmem:[#allocation2 + $0x2f8] sm:$0xff]
      %v9713 = vld [vmem:[#allocation2 + $0x300] sm:$0xff]
      %v9714 = vld [vmem:[#allocation2 + $0x308] sm:$0xff]
      %v9715 = vld [vmem:[#allocation2 + $0x310] sm:$0xff]
      %v9716 = vld [vmem:[#allocation2 + $0x318] sm:$0xff]
      %v9717 = vld [vmem:[#allocation2 + $0x320] sm:$0xff]
      %v9718 = vld [vmem:[#allocation2 + $0x328] sm:$0xff]
      %v9719 = vld [vmem:[#allocation2 + $0x330] sm:$0xff]
      %v9720 = vld [vmem:[#allocation2 + $0x338] sm:$0xff]
      %v9721 = vld [vmem:[#allocation2 + $0x340] sm:$0xff]
      %v9722 = vld [vmem:[#allocation2 + $0x348] sm:$0xff]
      %v9723 = vld [vmem:[#allocation2 + $0x350] sm:$0xff]
      %v9724 = vld [vmem:[#allocation2 + $0x358] sm:$0xff]
      %v9725 = vld [vmem:[#allocation2 + $0x360] sm:$0xff]
      %v9726 = vld [vmem:[#allocation2 + $0x368] sm:$0xff]
      %v9727 = vld [vmem:[#allocation2 + $0x370] sm:$0xff]
      %v9728 = vld [vmem:[#allocation2 + $0x378] sm:$0xff]
      %v9729 = vld [vmem:[#allocation2 + $0x380] sm:$0xff]
      %v9730 = vld [vmem:[#allocation2 + $0x388] sm:$0xff]
      %v9731 = vld [vmem:[#allocation2 + $0x390] sm:$0xff]
      %v9732 = vld [vmem:[#allocation2 + $0x398] sm:$0xff]
      %v9733 = vld [vmem:[#allocation2 + $0x3a0] sm:$0xff]
      %v9734 = vld [vmem:[#allocation2 + $0x3a8] sm:$0xff]
      %v9735 = vld [vmem:[#allocation2 + $0x3b0] sm:$0xff]
      %v9736 = vld [vmem:[#allocation2 + $0x3b8] sm:$0xff]
      %v9737 = vld [vmem:[#allocation2 + $0x3c0] sm:$0xff]
      %v9738 = vld [vmem:[#allocation2 + $0x3c8] sm:$0xff]
      %v9739 = vld [vmem:[#allocation2 + $0x3d0] sm:$0xff]
      %v9740 = vld [vmem:[#allocation2 + $0x3d8] sm:$0xff]
      %v9741 = vld [vmem:[#allocation2 + $0x3e0] sm:$0xff]
      %v9742 = vld [vmem:[#allocation2 + $0x3e8] sm:$0xff]
      %v9743 = vld [vmem:[#allocation2 + $0x3f0] sm:$0xff]
      %v9744 = vld [vmem:[#allocation2 + $0x3f8] sm:$0xff]
      %v9745 = vld [vmem:[#allocation2 + $0x400] sm:$0xff]
      %v9746 = vld [vmem:[#allocation2 + $0x408] sm:$0xff]
      %v9747 = vld [vmem:[#allocation2 + $0x410] sm:$0xff]
      %v9748 = vld [vmem:[#allocation2 + $0x418] sm:$0xff]
      %v9749 = vld [vmem:[#allocation2 + $0x420] sm:$0xff]
      %v9750 = vld [vmem:[#allocation2 + $0x428] sm:$0xff]
      %v9751 = vld [vmem:[#allocation2 + $0x430] sm:$0xff]
      %v9752 = vld [vmem:[#allocation2 + $0x438] sm:$0xff]
      %v9753 = vld [vmem:[#allocation2 + $0x440] sm:$0xff]
      %v9754 = vld [vmem:[#allocation2 + $0x448] sm:$0xff]
      %v9755 = vld [vmem:[#allocation2 + $0x450] sm:$0xff]
      %v9756 = vld [vmem:[#allocation2 + $0x458] sm:$0xff]
      %v9757 = vld [vmem:[#allocation2 + $0x460] sm:$0xff]
      %v9758 = vld [vmem:[#allocation2 + $0x468] sm:$0xff]
      %v9759 = vld [vmem:[#allocation2 + $0x470] sm:$0xff]
      %v9760 = vld [vmem:[#allocation2 + $0x478] sm:$0xff]
      %v9761 = vld [vmem:[#allocation2 + $0x480] sm:$0xff]
      %v9762 = vld [vmem:[#allocation2 + $0x488] sm:$0xff]
      %v9763 = vld [vmem:[#allocation2 + $0x490] sm:$0xff]
      %v9764 = vld [vmem:[#allocation2 + $0x498] sm:$0xff]
      %v9765 = vld [vmem:[#allocation2 + $0x4a0] sm:$0xff]
      %v9766 = vld [vmem:[#allocation2 + $0x4a8] sm:$0xff]
      %v9767 = vld [vmem:[#allocation2 + $0x4b0] sm:$0xff]
      %v9768 = vld [vmem:[#allocation2 + $0x4b8] sm:$0xff]
      %v9769 = vld [vmem:[#allocation2 + $0x4c0] sm:$0xff]
      %v9770 = vld [vmem:[#allocation2 + $0x4c8] sm:$0xff]
      %v9771 = vld [vmem:[#allocation2 + $0x4d0] sm:$0xff]
      %v9772 = vld [vmem:[#allocation2 + $0x4d8] sm:$0xff]
      %v9773 = vld [vmem:[#allocation2 + $0x4e0] sm:$0xff]
      %v9774 = vld [vmem:[#allocation2 + $0x4e8] sm:$0xff]
      %v9775 = vld [vmem:[#allocation2 + $0x4f0] sm:$0xff]
      %v9776 = vld [vmem:[#allocation2 + $0x4f8] sm:$0xff]
      %v9777 = vld [vmem:[#allocation2 + $0x500] sm:$0xff]
      %v9778 = vld [vmem:[#allocation2 + $0x508] sm:$0xff]
      %v9779 = vld [vmem:[#allocation2 + $0x510] sm:$0xff]
      %v9780 = vld [vmem:[#allocation2 + $0x518] sm:$0xff]
      %v9781 = vld [vmem:[#allocation2 + $0x520] sm:$0xff]
      %v9782 = vld [vmem:[#allocation2 + $0x528] sm:$0xff]
      %v9783 = vld [vmem:[#allocation2 + $0x530] sm:$0xff]
      %v9784 = vld [vmem:[#allocation2 + $0x538] sm:$0xff]
      %v9785 = vld [vmem:[#allocation2 + $0x540] sm:$0xff]
      %v9786 = vld [vmem:[#allocation2 + $0x548] sm:$0xff]
      %v9787 = vld [vmem:[#allocation2 + $0x550] sm:$0xff]
      %v9788 = vld [vmem:[#allocation2 + $0x558] sm:$0xff]
      %v9789 = vld [vmem:[#allocation2 + $0x560] sm:$0xff]
      %v9790 = vld [vmem:[#allocation2 + $0x568] sm:$0xff]
      %v9791 = vld [vmem:[#allocation2 + $0x570] sm:$0xff]
      %v9792 = vld [vmem:[#allocation2 + $0x578] sm:$0xff]
      %v9793 = vld [vmem:[#allocation2 + $0x580] sm:$0xff]
      %v9794 = vld [vmem:[#allocation2 + $0x588] sm:$0xff]
      %v9795 = vld [vmem:[#allocation2 + $0x590] sm:$0xff]
      %v9796 = vld [vmem:[#allocation2 + $0x598] sm:$0xff]
      %v9797 = vld [vmem:[#allocation2 + $0x5a0] sm:$0xff]
      %v9798 = vld [vmem:[#allocation2 + $0x5a8] sm:$0xff]
      %v9799 = vld [vmem:[#allocation2 + $0x5b0] sm:$0xff]
      %v9800 = vld [vmem:[#allocation2 + $0x5b8] sm:$0xff]
      %v9801 = vld [vmem:[#allocation2 + $0x5c0] sm:$0xff]
      %v9802 = vld [vmem:[#allocation2 + $0x5c8] sm:$0xff]
      %v9803 = vld [vmem:[#allocation2 + $0x5d0] sm:$0xff]
      %v9804 = vld [vmem:[#allocation2 + $0x5d8] sm:$0xff]
      %v9805 = vld [vmem:[#allocation2 + $0x5e0] sm:$0xff]
      %v9806 = vld [vmem:[#allocation2 + $0x5e8] sm:$0xff]
      %v9807 = vld [vmem:[#allocation2 + $0x5f0] sm:$0xff]
      %v9808 = vld [vmem:[#allocation2 + $0x5f8] sm:$0xff]
      %v9809 = vld [vmem:[#allocation2 + $0x600] sm:$0xff]
      %v9810 = vld [vmem:[#allocation2 + $0x608] sm:$0xff]
      %v9811 = vld [vmem:[#allocation2 + $0x610] sm:$0xff]
      %v9812 = vld [vmem:[#allocation2 + $0x618] sm:$0xff]
      %v9813 = vld [vmem:[#allocation2 + $0x620] sm:$0xff]
      %v9814 = vld [vmem:[#allocation2 + $0x628] sm:$0xff]
      %v9815 = vld [vmem:[#allocation2 + $0x630] sm:$0xff]
      %v9816 = vld [vmem:[#allocation2 + $0x638] sm:$0xff]
      %v9817 = vld [vmem:[#allocation2 + $0x640] sm:$0xff]
      %v9818 = vld [vmem:[#allocation2 + $0x648] sm:$0xff]
      %v9819 = vld [vmem:[#allocation2 + $0x650] sm:$0xff]
      %v9820 = vld [vmem:[#allocation2 + $0x658] sm:$0xff]
      %v9821 = vld [vmem:[#allocation2 + $0x660] sm:$0xff]
      %v9822 = vld [vmem:[#allocation2 + $0x668] sm:$0xff]
      %v9823 = vld [vmem:[#allocation2 + $0x670] sm:$0xff]
      %v9824 = vld [vmem:[#allocation2 + $0x678] sm:$0xff]
      %v9825 = vld [vmem:[#allocation2 + $0x680] sm:$0xff]
      %v9826 = vld [vmem:[#allocation2 + $0x688] sm:$0xff]
      %v9827 = vld [vmem:[#allocation2 + $0x690] sm:$0xff]
      %v9828 = vld [vmem:[#allocation2 + $0x698] sm:$0xff]
      %v9829 = vld [vmem:[#allocation2 + $0x6a0] sm:$0xff]
      %v9830 = vld [vmem:[#allocation2 + $0x6a8] sm:$0xff]
      %v9831 = vld [vmem:[#allocation2 + $0x6b0] sm:$0xff]
      %v9832 = vld [vmem:[#allocation2 + $0x6b8] sm:$0xff]
      %v9833 = vld [vmem:[#allocation2 + $0x6c0] sm:$0xff]
      %v9834 = vld [vmem:[#allocation2 + $0x6c8] sm:$0xff]
      %v9835 = vld [vmem:[#allocation2 + $0x6d0] sm:$0xff]
      %v9836 = vld [vmem:[#allocation2 + $0x6d8] sm:$0xff]
      %v9837 = vld [vmem:[#allocation2 + $0x6e0] sm:$0xff]
      %v9838 = vld [vmem:[#allocation2 + $0x6e8] sm:$0xff]
      %v9839 = vld [vmem:[#allocation2 + $0x6f0] sm:$0xff]
      %v9840 = vld [vmem:[#allocation2 + $0x6f8] sm:$0xff]
      %v9841 = vld [vmem:[#allocation2 + $0x700] sm:$0xff]
      %v9842 = vld [vmem:[#allocation2 + $0x708] sm:$0xff]
      %v9843 = vld [vmem:[#allocation2 + $0x710] sm:$0xff]
      %v9844 = vld [vmem:[#allocation2 + $0x718] sm:$0xff]
      %v9845 = vld [vmem:[#allocation2 + $0x720] sm:$0xff]
      %v9846 = vld [vmem:[#allocation2 + $0x728] sm:$0xff]
      %v9847 = vld [vmem:[#allocation2 + $0x730] sm:$0xff]
      %v9848 = vld [vmem:[#allocation2 + $0x738] sm:$0xff]
      %v9849 = vld [vmem:[#allocation2 + $0x740] sm:$0xff]
      %v9850 = vld [vmem:[#allocation2 + $0x748] sm:$0xff]
      %v9851 = vld [vmem:[#allocation2 + $0x750] sm:$0xff]
      %v9852 = vld [vmem:[#allocation2 + $0x758] sm:$0xff]
      %v9853 = vld [vmem:[#allocation2 + $0x760] sm:$0xff]
      %v9854 = vld [vmem:[#allocation2 + $0x768] sm:$0xff]
      %v9855 = vld [vmem:[#allocation2 + $0x770] sm:$0xff]
      %v9856 = vld [vmem:[#allocation2 + $0x778] sm:$0xff]
      %v9857 = vld [vmem:[#allocation2 + $0x780] sm:$0xff]
      %v9858 = vld [vmem:[#allocation2 + $0x788] sm:$0xff]
      %v9859 = vld [vmem:[#allocation2 + $0x790] sm:$0xff]
      %v9860 = vld [vmem:[#allocation2 + $0x798] sm:$0xff]
      %v9861 = vld [vmem:[#allocation2 + $0x7a0] sm:$0xff]
      %v9862 = vld [vmem:[#allocation2 + $0x7a8] sm:$0xff]
      %v9863 = vld [vmem:[#allocation2 + $0x7b0] sm:$0xff]
      %v9864 = vld [vmem:[#allocation2 + $0x7b8] sm:$0xff]
      %v9865 = vld [vmem:[#allocation2 + $0x7c0] sm:$0xff]
      %v9866 = vld [vmem:[#allocation2 + $0x7c8] sm:$0xff]
      %v9867 = vld [vmem:[#allocation2 + $0x7d0] sm:$0xff]
      %v9868 = vld [vmem:[#allocation2 + $0x7d8] sm:$0xff]
      %v9869 = vld [vmem:[#allocation2 + $0x7e0] sm:$0xff]
      %v9870 = vld [vmem:[#allocation2 + $0x7e8] sm:$0xff]
      %v9871 = vld [vmem:[#allocation2 + $0x7f0] sm:$0xff]
      %v9872 = vld [vmem:[#allocation2 + $0x7f8] sm:$0xff]
      %v9873 = vld [vmem:[#allocation2 + $0x800] sm:$0xff]
      %v9874 = vld [vmem:[#allocation2 + $0x808] sm:$0xff]
      %v9875 = vld [vmem:[#allocation2 + $0x810] sm:$0xff]
      %v9876 = vld [vmem:[#allocation2 + $0x818] sm:$0xff]
      %v9877 = vld [vmem:[#allocation2 + $0x820] sm:$0xff]
      %v9878 = vld [vmem:[#allocation2 + $0x828] sm:$0xff]
      %v9879 = vld [vmem:[#allocation2 + $0x830] sm:$0xff]
      %v9880 = vld [vmem:[#allocation2 + $0x838] sm:$0xff]
      %v9881 = vld [vmem:[#allocation2 + $0x840] sm:$0xff]
      %v9882 = vld [vmem:[#allocation2 + $0x848] sm:$0xff]
      %v9883 = vld [vmem:[#allocation2 + $0x850] sm:$0xff]
      %v9884 = vld [vmem:[#allocation2 + $0x858] sm:$0xff]
      %v9885 = vld [vmem:[#allocation2 + $0x860] sm:$0xff]
      %v9886 = vld [vmem:[#allocation2 + $0x868] sm:$0xff]
      %v9887 = vld [vmem:[#allocation2 + $0x870] sm:$0xff]
      %v9888 = vld [vmem:[#allocation2 + $0x878] sm:$0xff]
      %v9889 = vld [vmem:[#allocation2 + $0x880] sm:$0xff]
      %v9890 = vld [vmem:[#allocation2 + $0x888] sm:$0xff]
      %v9891 = vld [vmem:[#allocation2 + $0x890] sm:$0xff]
      %v9892 = vld [vmem:[#allocation2 + $0x898] sm:$0xff]
      %v9893 = vld [vmem:[#allocation2 + $0x8a0] sm:$0xff]
      %v9894 = vld [vmem:[#allocation2 + $0x8a8] sm:$0xff]
      %v9895 = vld [vmem:[#allocation2 + $0x8b0] sm:$0xff]
      %v9896 = vld [vmem:[#allocation2 + $0x8b8] sm:$0xff]
      %v9897 = vld [vmem:[#allocation2 + $0x8c0] sm:$0xff]
      %v9898 = vld [vmem:[#allocation2 + $0x8c8] sm:$0xff]
      %v9899 = vld [vmem:[#allocation2 + $0x8d0] sm:$0xff]
      %v9900 = vld [vmem:[#allocation2 + $0x8d8] sm:$0xff]
      %v9901 = vld [vmem:[#allocation2 + $0x8e0] sm:$0xff]
      %v9902 = vld [vmem:[#allocation2 + $0x8e8] sm:$0xff]
      %v9903 = vld [vmem:[#allocation2 + $0x8f0] sm:$0xff]
      %v9904 = vld [vmem:[#allocation2 + $0x8f8] sm:$0xff]
      %v9905 = vld [vmem:[#allocation2 + $0x900] sm:$0xff]
      %v9906 = vld [vmem:[#allocation2 + $0x908] sm:$0xff]
      %v9907 = vld [vmem:[#allocation2 + $0x910] sm:$0xff]
      %v9908 = vld [vmem:[#allocation2 + $0x918] sm:$0xff]
      %v9909 = vld [vmem:[#allocation2 + $0x920] sm:$0xff]
      %v9910 = vld [vmem:[#allocation2 + $0x928] sm:$0xff]
      %v9911 = vld [vmem:[#allocation2 + $0x930] sm:$0xff]
      %v9912 = vld [vmem:[#allocation2 + $0x938] sm:$0xff]
      %v9913 = vld [vmem:[#allocation2 + $0x940] sm:$0xff]
      %v9914 = vld [vmem:[#allocation2 + $0x948] sm:$0xff]
      %v9915 = vld [vmem:[#allocation2 + $0x950] sm:$0xff]
      %v9916 = vld [vmem:[#allocation2 + $0x958] sm:$0xff]
      %v9917 = vld [vmem:[#allocation2 + $0x960] sm:$0xff]
      %v9918 = vld [vmem:[#allocation2 + $0x968] sm:$0xff]
      %v9919 = vld [vmem:[#allocation2 + $0x970] sm:$0xff]
      %v9920 = vld [vmem:[#allocation2 + $0x978] sm:$0xff]
      %v9921 = vld [vmem:[#allocation2 + $0x980] sm:$0xff]
      %v9922 = vld [vmem:[#allocation2 + $0x988] sm:$0xff]
      %v9923 = vld [vmem:[#allocation2 + $0x990] sm:$0xff]
      %v9924 = vld [vmem:[#allocation2 + $0x998] sm:$0xff]
      %v9925 = vld [vmem:[#allocation2 + $0x9a0] sm:$0xff]
      %v9926 = vld [vmem:[#allocation2 + $0x9a8] sm:$0xff]
      %v9927 = vld [vmem:[#allocation2 + $0x9b0] sm:$0xff]
      %v9928 = vld [vmem:[#allocation2 + $0x9b8] sm:$0xff]
      %v9929 = vld [vmem:[#allocation2 + $0x9c0] sm:$0xff]
      %v9930 = vld [vmem:[#allocation2 + $0x9c8] sm:$0xff]
      %v9931 = vld [vmem:[#allocation2 + $0x9d0] sm:$0xff]
      %v9932 = vld [vmem:[#allocation2 + $0x9d8] sm:$0xff]
      %v9933 = vld [vmem:[#allocation2 + $0x9e0] sm:$0xff]
      %v9934 = vld [vmem:[#allocation2 + $0x9e8] sm:$0xff]
      %v9935 = vld [vmem:[#allocation2 + $0x9f0] sm:$0xff]
      %v9936 = vld [vmem:[#allocation2 + $0x9f8] sm:$0xff]
      %v9937 = vld [vmem:[#allocation2 + $0xa00] sm:$0xff]
      %v9938 = vld [vmem:[#allocation2 + $0xa08] sm:$0xff]
      %v9939 = vld [vmem:[#allocation2 + $0xa10] sm:$0xff]
      %v9940 = vld [vmem:[#allocation2 + $0xa18] sm:$0xff]
      %v9941 = vld [vmem:[#allocation2 + $0xa20] sm:$0xff]
      %v9942 = vld [vmem:[#allocation2 + $0xa28] sm:$0xff]
      %v9943 = vld [vmem:[#allocation2 + $0xa30] sm:$0xff]
      %v9944 = vld [vmem:[#allocation2 + $0xa38] sm:$0xff]
      %v9945 = vld [vmem:[#allocation2 + $0xa40] sm:$0xff]
      %v9946 = vld [vmem:[#allocation2 + $0xa48] sm:$0xff]
      %v9947 = vld [vmem:[#allocation2 + $0xa50] sm:$0xff]
      %v9948 = vld [vmem:[#allocation2 + $0xa58] sm:$0xff]
      %v9949 = vld [vmem:[#allocation2 + $0xa60] sm:$0xff]
      %v9950 = vld [vmem:[#allocation2 + $0xa68] sm:$0xff]
      %v9951 = vld [vmem:[#allocation2 + $0xa70] sm:$0xff]
      %v9952 = vld [vmem:[#allocation2 + $0xa78] sm:$0xff]
      %v9953 = vld [vmem:[#allocation2 + $0xa80] sm:$0xff]
      %v9954 = vld [vmem:[#allocation2 + $0xa88] sm:$0xff]
      %v9955 = vld [vmem:[#allocation2 + $0xa90] sm:$0xff]
      %v9956 = vld [vmem:[#allocation2 + $0xa98] sm:$0xff]
      %v9957 = vld [vmem:[#allocation2 + $0xaa0] sm:$0xff]
      %v9958 = vld [vmem:[#allocation2 + $0xaa8] sm:$0xff]
      %v9959 = vld [vmem:[#allocation2 + $0xab0] sm:$0xff]
      %v9960 = vld [vmem:[#allocation2 + $0xab8] sm:$0xff]
      %v9961 = vld [vmem:[#allocation2 + $0xac0] sm:$0xff]
      %v9962 = vld [vmem:[#allocation2 + $0xac8] sm:$0xff]
      %v9963 = vld [vmem:[#allocation2 + $0xad0] sm:$0xff]
      %v9964 = vld [vmem:[#allocation2 + $0xad8] sm:$0xff]
      %v9965 = vld [vmem:[#allocation2 + $0xae0] sm:$0xff]
      %v9966 = vld [vmem:[#allocation2 + $0xae8] sm:$0xff]
      %v9967 = vld [vmem:[#allocation2 + $0xaf0] sm:$0xff]
      %v9968 = vld [vmem:[#allocation2 + $0xaf8] sm:$0xff]
      %v9969 = vld [vmem:[#allocation2 + $0xb00] sm:$0xff]
      %v9970 = vld [vmem:[#allocation2 + $0xb08] sm:$0xff]
      %v9971 = vld [vmem:[#allocation2 + $0xb10] sm:$0xff]
      %v9972 = vld [vmem:[#allocation2 + $0xb18] sm:$0xff]
      %v9973 = vld [vmem:[#allocation2 + $0xb20] sm:$0xff]
      %v9974 = vld [vmem:[#allocation2 + $0xb28] sm:$0xff]
      %v9975 = vld [vmem:[#allocation2 + $0xb30] sm:$0xff]
      %v9976 = vld [vmem:[#allocation2 + $0xb38] sm:$0xff]
      %v9977 = vld [vmem:[#allocation2 + $0xb40] sm:$0xff]
      %v9978 = vld [vmem:[#allocation2 + $0xb48] sm:$0xff]
      %v9979 = vld [vmem:[#allocation2 + $0xb50] sm:$0xff]
      %v9980 = vld [vmem:[#allocation2 + $0xb58] sm:$0xff]
      %v9981 = vld [vmem:[#allocation2 + $0xb60] sm:$0xff]
      %v9982 = vld [vmem:[#allocation2 + $0xb68] sm:$0xff]
      %v9983 = vld [vmem:[#allocation2 + $0xb70] sm:$0xff]
      %v9984 = vld [vmem:[#allocation2 + $0xb78] sm:$0xff]
      %v9985 = vld [vmem:[#allocation2 + $0xb80] sm:$0xff]
      %v9986 = vld [vmem:[#allocation2 + $0xb88] sm:$0xff]
      %v9987 = vld [vmem:[#allocation2 + $0xb90] sm:$0xff]
      %v9988 = vld [vmem:[#allocation2 + $0xb98] sm:$0xff]
      %v9989 = vld [vmem:[#allocation2 + $0xba0] sm:$0xff]
      %v9990 = vld [vmem:[#allocation2 + $0xba8] sm:$0xff]
      %v9991 = vld [vmem:[#allocation2 + $0xbb0] sm:$0xff]
      %v9992 = vld [vmem:[#allocation2 + $0xbb8] sm:$0xff]
      %v9993 = vld [vmem:[#allocation2 + $0xbc0] sm:$0xff]
      %v9994 = vld [vmem:[#allocation2 + $0xbc8] sm:$0xff]
      %v9995 = vld [vmem:[#allocation2 + $0xbd0] sm:$0xff]
      %v9996 = vld [vmem:[#allocation2 + $0xbd8] sm:$0xff]
      %v9997 = vld [vmem:[#allocation2 + $0xbe0] sm:$0xff]
      %v9998 = vld [vmem:[#allocation2 + $0xbe8] sm:$0xff]
      %v9999 = vld [vmem:[#allocation2 + $0xbf0] sm:$0xff]
      %v10000 = vld [vmem:[#allocation2 + $0xbf8] sm:$0xff]
      %v10001 = vld [vmem:[#allocation2 + $0xc00] sm:$0xff]
      %v10002 = vld [vmem:[#allocation2 + $0xc08] sm:$0xff]
      %v10003 = vld [vmem:[#allocation2 + $0xc10] sm:$0xff]
      %v10004 = vld [vmem:[#allocation2 + $0xc18] sm:$0xff]
      %v10005 = vld [vmem:[#allocation2 + $0xc20] sm:$0xff]
      %v10006 = vld [vmem:[#allocation2 + $0xc28] sm:$0xff]
      %v10007 = vld [vmem:[#allocation2 + $0xc30] sm:$0xff]
      %v10008 = vld [vmem:[#allocation2 + $0xc38] sm:$0xff]
      %v10009 = vld [vmem:[#allocation2 + $0xc40] sm:$0xff]
      %v10010 = vld [vmem:[#allocation2 + $0xc48] sm:$0xff]
      %v10011 = vld [vmem:[#allocation2 + $0xc50] sm:$0xff]
      %v10012 = vld [vmem:[#allocation2 + $0xc58] sm:$0xff]
      %v10013 = vld [vmem:[#allocation2 + $0xc60] sm:$0xff]
      %v10014 = vld [vmem:[#allocation2 + $0xc68] sm:$0xff]
      %v10015 = vld [vmem:[#allocation2 + $0xc70] sm:$0xff]
      %v10016 = vld [vmem:[#allocation2 + $0xc78] sm:$0xff]
      %v10017 = vld [vmem:[#allocation2 + $0xc80] sm:$0xff]
      %v10018 = vld [vmem:[#allocation2 + $0xc88] sm:$0xff]
      %v10019 = vld [vmem:[#allocation2 + $0xc90] sm:$0xff]
      %v10020 = vld [vmem:[#allocation2 + $0xc98] sm:$0xff]
      %v10021 = vld [vmem:[#allocation2 + $0xca0] sm:$0xff]
      %v10022 = vld [vmem:[#allocation2 + $0xca8] sm:$0xff]
      %v10023 = vld [vmem:[#allocation2 + $0xcb0] sm:$0xff]
      %v10024 = vld [vmem:[#allocation2 + $0xcb8] sm:$0xff]
      %v10025 = vld [vmem:[#allocation2 + $0xcc0] sm:$0xff]
      %v10026 = vld [vmem:[#allocation2 + $0xcc8] sm:$0xff]
      %v10027 = vld [vmem:[#allocation2 + $0xcd0] sm:$0xff]
      %v10028 = vld [vmem:[#allocation2 + $0xcd8] sm:$0xff]
      %v10029 = vld [vmem:[#allocation2 + $0xce0] sm:$0xff]
      %v10030 = vld [vmem:[#allocation2 + $0xce8] sm:$0xff]
      %v10031 = vld [vmem:[#allocation2 + $0xcf0] sm:$0xff]
      %v10032 = vld [vmem:[#allocation2 + $0xcf8] sm:$0xff]
      %v10033 = vld [vmem:[#allocation2 + $0xd00] sm:$0xff]
      %v10034 = vld [vmem:[#allocation2 + $0xd08] sm:$0xff]
      %v10035 = vld [vmem:[#allocation2 + $0xd10] sm:$0xff]
      %v10036 = vld [vmem:[#allocation2 + $0xd18] sm:$0xff]
      %v10037 = vld [vmem:[#allocation2 + $0xd20] sm:$0xff]
      %v10038 = vld [vmem:[#allocation2 + $0xd28] sm:$0xff]
      %v10039 = vld [vmem:[#allocation2 + $0xd30] sm:$0xff]
      %v10040 = vld [vmem:[#allocation2 + $0xd38] sm:$0xff]
      %v10041 = vld [vmem:[#allocation2 + $0xd40] sm:$0xff]
      %v10042 = vld [vmem:[#allocation2 + $0xd48] sm:$0xff]
      %v10043 = vld [vmem:[#allocation2 + $0xd50] sm:$0xff]
      %v10044 = vld [vmem:[#allocation2 + $0xd58] sm:$0xff]
      %v10045 = vld [vmem:[#allocation2 + $0xd60] sm:$0xff]
      %v10046 = vld [vmem:[#allocation2 + $0xd68] sm:$0xff]
      %v10047 = vld [vmem:[#allocation2 + $0xd70] sm:$0xff]
      %v10048 = vld [vmem:[#allocation2 + $0xd78] sm:$0xff]
      %v10049 = vld [vmem:[%s6] sm:$0xff]
      %v10050 = vld [vmem:[%s6 + $0x8] sm:$0xff]
      %v10051 = vld [vmem:[%s6 + $0x10] sm:$0xff]
      %v10052 = vld [vmem:[%s6 + $0x18] sm:$0xff]
      %v10053 = vld [vmem:[%s6 + $0x20] sm:$0xff]
      %v10054 = vld [vmem:[%s6 + $0x28] sm:$0xff]
      %v10055 = vld [vmem:[%s6 + $0x30] sm:$0xff]
      %v10056 = vld [vmem:[%s6 + $0x38] sm:$0xff]
      %v10057 = vld [vmem:[%s6 + $0x40] sm:$0xff]
      %v10058 = vld [vmem:[%s6 + $0x48] sm:$0xff]
      %v10059 = vld [vmem:[%s6 + $0x50] sm:$0xff]
      %v10060 = vld [vmem:[%s6 + $0x58] sm:$0xff]
      %v10061 = vld [vmem:[%s6 + $0x60] sm:$0xff]
      %v10062 = vld [vmem:[%s6 + $0x68] sm:$0xff]
      %v10063 = vld [vmem:[%s7] sm:$0xff]
      %v10064 = vld [vmem:[%s7 + $0x8] sm:$0xff]
      %10066 = vset.pattern.permute.xlu0 0
      %10067 = vperm.xlu0 %10066, %v10063
      %v10068 = vpop.permute.xlu0 %10067
      %10071 = vset.pattern.permute.xlu0 0
      %10072 = vperm.xlu0 %10071, %v10064
      %v10073 = vpop.permute.xlu0 %10072
      %vm10075 = vcmask 785408
      %v10077 = vsel %vm10075, %v10055, 0
      %v10080 = vsel %vm10075, %v10062, 0
      %10082 = vmatprep.subr.mxu0 %v9618
      %10083 = vmatpush1.msra.mxu0 %v9617
      %10084 = vmatprep.subr.mxu0 %v9622
      %10085 = vmatpush1.msra.mxu0 %v9621
      %10086 = vmatprep.subr.mxu0 %v9626
      %10087 = vmatpush1.msra.mxu0 %v9625
      %10088 = vmatprep.subr.mxu0 %v9630
      %10089 = vmatpush1.msra.mxu0 %v9629
      %10090 = vmatprep.subr.mxu0 %v9634
      %10091 = vmatpush1.msra.mxu0 %v9633
      %10092 = vmatprep.subr.mxu0 %v9638
      %10093 = vmatpush1.msra.mxu0 %v9637
      %10094 = vmatprep.subr.mxu0 %v9642
      %10095 = vmatpush1.msra.mxu0 %v9641
      %10096 = vmatprep.subr.mxu0 %v9646
      %10097 = vmatpush1.msra.mxu0 %v9645
      %10098 = vmatprep.subr.mxu0 %v9650
      %10099 = vmatpush1.msra.mxu0 %v9649
      %10100 = vmatprep.subr.mxu0 %v9654
      %10101 = vmatpush1.msra.mxu0 %v9653
      %10102 = vmatprep.subr.mxu0 %v9658
      %10103 = vmatpush1.msra.mxu0 %v9657
      %10104 = vmatprep.subr.mxu0 %v9662
      %10105 = vmatpush1.msra.mxu0 %v9661
      %10106 = vmatprep.subr.mxu0 %v9666
      %10107 = vmatpush1.msra.mxu0 %v9665
      %10108 = vmatprep.subr.mxu0 %v9670
      %10109 = vmatpush1.msra.mxu0 %v9669
      %10110 = vmatprep.subr.mxu0 %v9674
      %10111 = vmatpush1.msra.mxu0 %v9673
      %10112 = vmatprep.subr.mxu0 %v9678
      %10113 = vmatpush1.msra.mxu0 %v9677
      %10114 = vmatprep.subr.mxu0 %v9682
      %10115 = vmatpush1.msra.mxu0 %v9681
      %10116 = vmatprep.subr.mxu0 %v9686
      %10117 = vmatpush1.msra.mxu0 %v9685
      %10118 = vmatprep.subr.mxu0 %v9690
      %10119 = vmatpush1.msra.mxu0 %v9689
      %10120 = vmatprep.subr.mxu0 %v9694
      %10121 = vmatpush1.msra.mxu0 %v9693
      %10122 = vmatprep.subr.mxu0 %v9698
      %10123 = vmatpush1.msra.mxu0 %v9697
      %10124 = vmatprep.subr.mxu0 %v9702
      %10125 = vmatpush1.msra.mxu0 %v9701
      %10126 = vmatprep.subr.mxu0 %v9706
      %10127 = vmatpush1.msra.mxu0 %v9705
      %10128 = vmatprep.subr.mxu0 %v9710
      %10129 = vmatpush1.msra.mxu0 %v9709
      %10130 = vmatprep.subr.mxu0 %v9714
      %10131 = vmatpush1.msra.mxu0 %v9713
      %10132 = vmatprep.subr.mxu0 %v9718
      %10133 = vmatpush1.msra.mxu0 %v9717
      %10134 = vmatprep.subr.mxu0 %v9722
      %10135 = vmatpush1.msra.mxu0 %v9721
      %10136 = vmatprep.subr.mxu0 %v9726
      %10137 = vmatpush1.msra.mxu0 %v9725
      %10138 = vmatprep.subr.mxu0 %v9730
      %10139 = vmatpush1.msra.mxu0 %v9729
      %10140 = vmatprep.subr.mxu0 %v9734
      %10141 = vmatpush1.msra.mxu0 %v9733
      %10142 = vmatprep.subr.mxu0 %v9738
      %10143 = vmatpush1.msra.mxu0 %v9737
      %10144 = vmatprep.subr.mxu0 %v9742
      %10145 = vmatpush1.msra.mxu0 %v9741
      %10146 = vmatprep.mubr.f32.mxu0 %v10050
      %10147 = vmatmul.mubr.f32.gmra.mrb[0].mxu0 %v10049
      %v10148 = vpop.f32.mrb[0].mxu0
      %v10149 = vadd.f32 %v10068, %v10148
      %v10150 = vpop.f32.mrb[0].mxu0
      %v10151 = vadd.f32 %v10068, %v10150
      %10152 = vmatprep.mubr.f32.mxu0 %v10057
      %10153 = vmatmul.mubr.f32.gmra.mrb[0].mxu0 %v10056
      %v10154 = vpop.f32.mrb[0].mxu0
      %v10155 = vadd.f32 %v10073, %v10154
      %v10156 = vpop.f32.mrb[0].mxu0
      %v10157 = vadd.f32 %v10073, %v10156
      %10158 = vdwg.mxu0
      %10159 = vmatprep.subr.mxu0 %v9746
      %10160 = vmatpush1.msra.mxu0 %v9745
      %10161 = vmatprep.subr.mxu0 %v9750
      %10162 = vmatpush1.msra.mxu0 %v9749
      %10163 = vmatprep.subr.mxu0 %v9754
      %10164 = vmatpush1.msra.mxu0 %v9753
      %10165 = vmatprep.subr.mxu0 %v9758
      %10166 = vmatpush1.msra.mxu0 %v9757
      %10167 = vmatprep.subr.mxu0 %v9762
      %10168 = vmatpush1.msra.mxu0 %v9761
      %10169 = vmatprep.subr.mxu0 %v9766
      %10170 = vmatpush1.msra.mxu0 %v9765
      %10171 = vmatprep.subr.mxu0 %v9770
      %10172 = vmatpush1.msra.mxu0 %v9769
      %10173 = vmatprep.subr.mxu0 %v9774
      %10174 = vmatpush1.msra.mxu0 %v9773
      %10175 = vmatprep.subr.mxu0 %v9778
      %10176 = vmatpush1.msra.mxu0 %v9777
      %10177 = vmatprep.subr.mxu0 %v9782
      %10178 = vmatpush1.msra.mxu0 %v9781
      %10179 = vmatprep.subr.mxu0 %v9786
      %10180 = vmatpush1.msra.mxu0 %v9785
      %10181 = vmatprep.subr.mxu0 %v9790
      %10182 = vmatpush1.msra.mxu0 %v9789
      %10183 = vmatprep.subr.mxu0 %v9794
      %10184 = vmatpush1.msra.mxu0 %v9793
      %10185 = vmatprep.subr.mxu0 %v9798
      %10186 = vmatpush1.msra.mxu0 %v9797
      %10187 = vmatprep.subr.mxu0 %v9802
      %10188 = vmatpush1.msra.mxu0 %v9801
      %10189 = vmatprep.subr.mxu0 %v9806
      %10190 = vmatpush1.msra.mxu0 %v9805
      %10191 = vmatprep.subr.mxu0 %v9810
      %10192 = vmatpush1.msra.mxu0 %v9809
      %10193 = vmatprep.subr.mxu0 %v9814
      %10194 = vmatpush1.msra.mxu0 %v9813
      %10195 = vmatprep.subr.mxu0 %v9818
      %10196 = vmatpush1.msra.mxu0 %v9817
      %10197 = vmatprep.subr.mxu0 %v9822
      %10198 = vmatpush1.msra.mxu0 %v9821
      %10199 = vmatprep.subr.mxu0 %v9826
      %10200 = vmatpush1.msra.mxu0 %v9825
      %10201 = vmatprep.subr.mxu0 %v9830
      %10202 = vmatpush1.msra.mxu0 %v9829
      %10203 = vmatprep.subr.mxu0 %v9834
      %10204 = vmatpush1.msra.mxu0 %v9833
      %10205 = vmatprep.subr.mxu0 %v9838
      %10206 = vmatpush1.msra.mxu0 %v9837
      %10207 = vmatprep.subr.mxu0 %v9842
      %10208 = vmatpush1.msra.mxu0 %v9841
      %10209 = vmatprep.subr.mxu0 %v9846
      %10210 = vmatpush1.msra.mxu0 %v9845
      %10211 = vmatprep.subr.mxu0 %v9850
      %10212 = vmatpush1.msra.mxu0 %v9849
      %10213 = vmatprep.subr.mxu0 %v9854
      %10214 = vmatpush1.msra.mxu0 %v9853
      %10215 = vmatprep.subr.mxu0 %v9858
      %10216 = vmatpush1.msra.mxu0 %v9857
      %10217 = vmatprep.subr.mxu0 %v9862
      %10218 = vmatpush1.msra.mxu0 %v9861
      %10219 = vmatprep.subr.mxu0 %v9866
      %10220 = vmatpush1.msra.mxu0 %v9865
      %10221 = vmatprep.subr.mxu0 %v9870
      %10222 = vmatpush1.msra.mxu0 %v9869
      %10223 = vmatprep.mubr.f32.mxu0 %v10052
      %10224 = vmatmul.mubr.f32.gmra.mrb[0].mxu0 %v10051
      %v10225 = vpop.f32.mrb[0].mxu0
      %v10226 = vadd.f32 %v10149, %v10225
      %v10227 = vpop.f32.mrb[0].mxu0
      %v10228 = vadd.f32 %v10151, %v10227
      %10229 = vmatprep.mubr.f32.mxu0 %v10059
      %10230 = vmatmul.mubr.f32.gmra.mrb[0].mxu0 %v10058
      %v10231 = vpop.f32.mrb[0].mxu0
      %v10232 = vadd.f32 %v10155, %v10231
      %v10233 = vpop.f32.mrb[0].mxu0
      %v10234 = vadd.f32 %v10157, %v10233
      %10235 = vdwg.mxu0
      %10236 = vmatprep.subr.mxu0 %v9874
      %10237 = vmatpush1.msra.mxu0 %v9873
      %10238 = vmatprep.subr.mxu0 %v9878
      %10239 = vmatpush1.msra.mxu0 %v9877
      %10240 = vmatprep.subr.mxu0 %v9882
      %10241 = vmatpush1.msra.mxu0 %v9881
      %10242 = vmatprep.subr.mxu0 %v9886
      %10243 = vmatpush1.msra.mxu0 %v9885
      %10244 = vmatprep.subr.mxu0 %v9890
      %10245 = vmatpush1.msra.mxu0 %v9889
      %10246 = vmatprep.subr.mxu0 %v9894
      %10247 = vmatpush1.msra.mxu0 %v9893
      %10248 = vmatprep.subr.mxu0 %v9898
      %10249 = vmatpush1.msra.mxu0 %v9897
      %10250 = vmatprep.subr.mxu0 %v9902
      %10251 = vmatpush1.msra.mxu0 %v9901
      %10252 = vmatprep.subr.mxu0 %v9906
      %10253 = vmatpush1.msra.mxu0 %v9905
      %10254 = vmatprep.subr.mxu0 %v9910
      %10255 = vmatpush1.msra.mxu0 %v9909
      %10256 = vmatprep.subr.mxu0 %v9914
      %10257 = vmatpush1.msra.mxu0 %v9913
      %10258 = vmatprep.subr.mxu0 %v9918
      %10259 = vmatpush1.msra.mxu0 %v9917
      %10260 = vmatprep.subr.mxu0 %v9922
      %10261 = vmatpush1.msra.mxu0 %v9921
      %10262 = vmatprep.subr.mxu0 %v9926
      %10263 = vmatpush1.msra.mxu0 %v9925
      %10264 = vmatprep.subr.mxu0 %v9930
      %10265 = vmatpush1.msra.mxu0 %v9929
      %10266 = vmatprep.subr.mxu0 %v9934
      %10267 = vmatpush1.msra.mxu0 %v9933
      %10268 = vmatprep.subr.mxu0 %v9938
      %10269 = vmatpush1.msra.mxu0 %v9937
      %10270 = vmatprep.subr.mxu0 %v9942
      %10271 = vmatpush1.msra.mxu0 %v9941
      %10272 = vmatprep.subr.mxu0 %v9946
      %10273 = vmatpush1.msra.mxu0 %v9945
      %10274 = vmatprep.subr.mxu0 %v9950
      %10275 = vmatpush1.msra.mxu0 %v9949
      %10276 = vmatprep.subr.mxu0 %v9954
      %10277 = vmatpush1.msra.mxu0 %v9953
      %10278 = vmatprep.subr.mxu0 %v9958
      %10279 = vmatpush1.msra.mxu0 %v9957
      %10280 = vmatprep.subr.mxu0 %v9962
      %10281 = vmatpush1.msra.mxu0 %v9961
      %10282 = vmatprep.subr.mxu0 %v9966
      %10283 = vmatpush1.msra.mxu0 %v9965
      %10284 = vmatprep.subr.mxu0 %v9970
      %10285 = vmatpush1.msra.mxu0 %v9969
      %10286 = vmatprep.subr.mxu0 %v9974
      %10287 = vmatpush1.msra.mxu0 %v9973
      %10288 = vmatprep.subr.mxu0 %v9978
      %10289 = vmatpush1.msra.mxu0 %v9977
      %10290 = vmatprep.subr.mxu0 %v9982
      %10291 = vmatpush1.msra.mxu0 %v9981
      %10292 = vmatprep.subr.mxu0 %v9986
      %10293 = vmatpush1.msra.mxu0 %v9985
      %10294 = vmatprep.subr.mxu0 %v9990
      %10295 = vmatpush1.msra.mxu0 %v9989
      %10296 = vmatprep.subr.mxu0 %v9994
      %10297 = vmatpush1.msra.mxu0 %v9993
      %10298 = vmatprep.subr.mxu0 %v9998
      %10299 = vmatpush1.msra.mxu0 %v9997
      %10300 = vmatprep.mubr.f32.mxu0 %v10054
      %10301 = vmatmul.mubr.f32.gmra.mrb[0].mxu0 %v10053
      %v10302 = vpop.f32.mrb[0].mxu0
      %v10303 = vadd.f32 %v10226, %v10302
      %v10304 = vpop.f32.mrb[0].mxu0
      %v10305 = vadd.f32 %v10228, %v10304
      %10306 = vmatprep.mubr.f32.mxu0 %v10061
      %10307 = vmatmul.mubr.f32.gmra.mrb[0].mxu0 %v10060
      %v10308 = vpop.f32.mrb[0].mxu0
      %v10309 = vadd.f32 %v10232, %v10308
      %v10310 = vpop.f32.mrb[0].mxu0
      %v10311 = vadd.f32 %v10234, %v10310
      %10312 = vdwg.mxu0
      %10313 = vmatprep.subr.mxu0 %v10002
      %10314 = vmatpush1.msra.mxu0 %v10001
      %10315 = vmatprep.subr.mxu0 %v10006
      %10316 = vmatpush1.msra.mxu0 %v10005
      %10317 = vmatprep.subr.mxu0 %v10010
      %10318 = vmatpush1.msra.mxu0 %v10009
      %10319 = vmatprep.subr.mxu0 %v10014
      %10320 = vmatpush1.msra.mxu0 %v10013
      %10321 = vmatprep.subr.mxu0 %v10018
      %10322 = vmatpush1.msra.mxu0 %v10017
      %10323 = vmatprep.subr.mxu0 %v10022
      %10324 = vmatpush1.msra.mxu0 %v10021
      %10325 = vmatprep.subr.mxu0 %v10026
      %10326 = vmatpush1.msra.mxu0 %v10025
      %10327 = vmatprep.subr.mxu0 %v10030
      %10328 = vmatpush1.msra.mxu0 %v10029
      %10329 = vmatprep.subr.mxu0 %v10034
      %10330 = vmatpush1.msra.mxu0 %v10033
      %10331 = vmatprep.subr.mxu0 %v10038
      %10332 = vmatpush1.msra.mxu0 %v10037
      %10333 = vmatprep.subr.mxu0 %v10042
      %10334 = vmatpush1.msra.mxu0 %v10041
      %10335 = vmatprep.subr.mxu0 %v10046
      %10336 = vmatpush1.msra.mxu0 %v10045
      %10337 = vmatprep.subr.mxu0 0.0
      %10338 = vmatpush1.msra.mxu0 0.0
      %10339 = vmatprep.subr.mxu0 0.0
      %10340 = vmatpush1.msra.mxu0 0.0
      %10341 = vmatprep.subr.mxu0 0.0
      %10342 = vmatpush1.msra.mxu0 0.0
      %10343 = vmatprep.subr.mxu0 0.0
      %10344 = vmatpush1.msra.mxu0 0.0
      %10345 = vmatprep.subr.mxu0 0.0
      %10346 = vmatpush1.msra.mxu0 0.0
      %10347 = vmatprep.subr.mxu0 0.0
      %10348 = vmatpush1.msra.mxu0 0.0
      %10349 = vmatprep.subr.mxu0 0.0
      %10350 = vmatpush1.msra.mxu0 0.0
      %10351 = vmatprep.subr.mxu0 0.0
      %10352 = vmatpush1.msra.mxu0 0.0
      %10353 = vmatprep.subr.mxu0 0.0
      %10354 = vmatpush1.msra.mxu0 0.0
      %10355 = vmatprep.subr.mxu0 0.0
      %10356 = vmatpush1.msra.mxu0 0.0
      %10357 = vmatprep.subr.mxu0 0.0
      %10358 = vmatpush1.msra.mxu0 0.0
      %10359 = vmatprep.subr.mxu0 0.0
      %10360 = vmatpush1.msra.mxu0 0.0
      %10361 = vmatprep.subr.mxu0 0.0
      %10362 = vmatpush1.msra.mxu0 0.0
      %10363 = vmatprep.subr.mxu0 0.0
      %10364 = vmatpush1.msra.mxu0 0.0
      %10365 = vmatprep.subr.mxu0 0.0
      %10366 = vmatpush1.msra.mxu0 0.0
      %10367 = vmatprep.subr.mxu0 0.0
      %10368 = vmatpush1.msra.mxu0 0.0
      %10369 = vmatprep.subr.mxu0 0.0
      %10370 = vmatpush1.msra.mxu0 0.0
      %10371 = vmatprep.subr.mxu0 0.0
      %10372 = vmatpush1.msra.mxu0 0.0
      %10373 = vmatprep.subr.mxu0 0.0
      %10374 = vmatpush1.msra.mxu0 0.0
      %10375 = vmatprep.subr.mxu0 0.0
      %10376 = vmatpush1.msra.mxu0 0.0
      %10377 = vmatprep.mubr.f32.mxu0 0.0
      %10378 = vmatmul.mubr.f32.gmra.mrb[0].mxu0 %v10077
      %v10379 = vpop.f32.mrb[0].mxu0
      %v10380 = vadd.f32 %v10303, %v10379
      %v10381 = vpop.f32.mrb[0].mxu0
      %v10382 = vadd.f32 %v10305, %v10381
      %10383 = vmatprep.mubr.f32.mxu0 0.0
      %10384 = vmatmul.mubr.f32.gmra.mrb[0].mxu0 %v10080
      %v10385 = vpop.f32.mrb[0].mxu0
      %v10386 = vadd.f32 %v10309, %v10385
      %v10387 = vpop.f32.mrb[0].mxu0
      %v10388 = vadd.f32 %v10311, %v10387
      %10389 = vdwg.mxu0
      %10390 = vmatprep.subr.mxu0 %v9620
      %10391 = vmatpush1.msra.mxu0 %v9619
      %10392 = vmatprep.subr.mxu0 %v9624
      %10393 = vmatpush1.msra.mxu0 %v9623
      %10394 = vmatprep.subr.mxu0 %v9628
      %10395 = vmatpush1.msra.mxu0 %v9627
      %10396 = vmatprep.subr.mxu0 %v9632
      %10397 = vmatpush1.msra.mxu0 %v9631
      %10398 = vmatprep.subr.mxu0 %v9636
      %10399 = vmatpush1.msra.mxu0 %v9635
      %10400 = vmatprep.subr.mxu0 %v9640
      %10401 = vmatpush1.msra.mxu0 %v9639
      %10402 = vmatprep.subr.mxu0 %v9644
      %10403 = vmatpush1.msra.mxu0 %v9643
      %10404 = vmatprep.subr.mxu0 %v9648
      %10405 = vmatpush1.msra.mxu0 %v9647
      %10406 = vmatprep.subr.mxu0 %v9652
      %10407 = vmatpush1.msra.mxu0 %v9651
      %10408 = vmatprep.subr.mxu0 %v9656
      %10409 = vmatpush1.msra.mxu0 %v9655
      %10410 = vmatprep.subr.mxu0 %v9660
      %10411 = vmatpush1.msra.mxu0 %v9659
      %10412 = vmatprep.subr.mxu0 %v9664
      %10413 = vmatpush1.msra.mxu0 %v9663
      %10414 = vmatprep.subr.mxu0 %v9668
      %10415 = vmatpush1.msra.mxu0 %v9667
      %10416 = vmatprep.subr.mxu0 %v9672
      %10417 = vmatpush1.msra.mxu0 %v9671
      %10418 = vmatprep.subr.mxu0 %v9676
      %10419 = vmatpush1.msra.mxu0 %v9675
      %10420 = vmatprep.subr.mxu0 %v9680
      %10421 = vmatpush1.msra.mxu0 %v9679
      %10422 = vmatprep.subr.mxu0 %v9684
      %10423 = vmatpush1.msra.mxu0 %v9683
      %10424 = vmatprep.subr.mxu0 %v9688
      %10425 = vmatpush1.msra.mxu0 %v9687
      %10426 = vmatprep.subr.mxu0 %v9692
      %10427 = vmatpush1.msra.mxu0 %v9691
      %10428 = vmatprep.subr.mxu0 %v9696
      %10429 = vmatpush1.msra.mxu0 %v9695
      %10430 = vmatprep.subr.mxu0 %v9700
      %10431 = vmatpush1.msra.mxu0 %v9699
      %10432 = vmatprep.subr.mxu0 %v9704
      %10433 = vmatpush1.msra.mxu0 %v9703
      %10434 = vmatprep.subr.mxu0 %v9708
      %10435 = vmatpush1.msra.mxu0 %v9707
      %10436 = vmatprep.subr.mxu0 %v9712
      %10437 = vmatpush1.msra.mxu0 %v9711
      %10438 = vmatprep.subr.mxu0 %v9716
      %10439 = vmatpush1.msra.mxu0 %v9715
      %10440 = vmatprep.subr.mxu0 %v9720
      %10441 = vmatpush1.msra.mxu0 %v9719
      %10442 = vmatprep.subr.mxu0 %v9724
      %10443 = vmatpush1.msra.mxu0 %v9723
      %10444 = vmatprep.subr.mxu0 %v9728
      %10445 = vmatpush1.msra.mxu0 %v9727
      %10446 = vmatprep.subr.mxu0 %v9732
      %10447 = vmatpush1.msra.mxu0 %v9731
      %10448 = vmatprep.subr.mxu0 %v9736
      %10449 = vmatpush1.msra.mxu0 %v9735
      %10450 = vmatprep.subr.mxu0 %v9740
      %10451 = vmatpush1.msra.mxu0 %v9739
      %10452 = vmatprep.subr.mxu0 %v9744
      %10453 = vmatpush1.msra.mxu0 %v9743
      %10454 = vmatprep.mubr.f32.mxu0 %v10050
      %10455 = vmatmul.mubr.f32.gmra.mrb[0].mxu0 %v10049
      %v10456 = vpop.f32.mrb[0].mxu0
      %v10457 = vadd.f32 %v10068, %v10456
      %v10458 = vpop.f32.mrb[0].mxu0
      %v10459 = vadd.f32 %v10068, %v10458
      %10460 = vmatprep.mubr.f32.mxu0 %v10057
      %10461 = vmatmul.mubr.f32.gmra.mrb[0].mxu0 %v10056
      %v10462 = vpop.f32.mrb[0].mxu0
      %v10463 = vadd.f32 %v10073, %v10462
      %v10464 = vpop.f32.mrb[0].mxu0
      %v10465 = vadd.f32 %v10073, %v10464
      %10466 = vdwg.mxu0
      %10467 = vmatprep.subr.mxu0 %v9748
      %10468 = vmatpush1.msra.mxu0 %v9747
      %10469 = vmatprep.subr.mxu0 %v9752
      %10470 = vmatpush1.msra.mxu0 %v9751
      %10471 = vmatprep.subr.mxu0 %v9756
      %10472 = vmatpush1.msra.mxu0 %v9755
      %10473 = vmatprep.subr.mxu0 %v9760
      %10474 = vmatpush1.msra.mxu0 %v9759
      %10475 = vmatprep.subr.mxu0 %v9764
      %10476 = vmatpush1.msra.mxu0 %v9763
      %10477 = vmatprep.subr.mxu0 %v9768
      %10478 = vmatpush1.msra.mxu0 %v9767
      %10479 = vmatprep.subr.mxu0 %v9772
      %10480 = vmatpush1.msra.mxu0 %v9771
      %10481 = vmatprep.subr.mxu0 %v9776
      %10482 = vmatpush1.msra.mxu0 %v9775
      %10483 = vmatprep.subr.mxu0 %v9780
      %10484 = vmatpush1.msra.mxu0 %v9779
      %10485 = vmatprep.subr.mxu0 %v9784
      %10486 = vmatpush1.msra.mxu0 %v9783
      %10487 = vmatprep.subr.mxu0 %v9788
      %10488 = vmatpush1.msra.mxu0 %v9787
      %10489 = vmatprep.subr.mxu0 %v9792
      %10490 = vmatpush1.msra.mxu0 %v9791
      %10491 = vmatprep.subr.mxu0 %v9796
      %10492 = vmatpush1.msra.mxu0 %v9795
      %10493 = vmatprep.subr.mxu0 %v9800
      %10494 = vmatpush1.msra.mxu0 %v9799
      %10495 = vmatprep.subr.mxu0 %v9804
      %10496 = vmatpush1.msra.mxu0 %v9803
      %10497 = vmatprep.subr.mxu0 %v9808
      %10498 = vmatpush1.msra.mxu0 %v9807
      %10499 = vmatprep.subr.mxu0 %v9812
      %10500 = vmatpush1.msra.mxu0 %v9811
      %10501 = vmatprep.subr.mxu0 %v9816
      %10502 = vmatpush1.msra.mxu0 %v9815
      %10503 = vmatprep.subr.mxu0 %v9820
      %10504 = vmatpush1.msra.mxu0 %v9819
      %10505 = vmatprep.subr.mxu0 %v9824
      %10506 = vmatpush1.msra.mxu0 %v9823
      %10507 = vmatprep.subr.mxu0 %v9828
      %10508 = vmatpush1.msra.mxu0 %v9827
      %10509 = vmatprep.subr.mxu0 %v9832
      %10510 = vmatpush1.msra.mxu0 %v9831
      %10511 = vmatprep.subr.mxu0 %v9836
      %10512 = vmatpush1.msra.mxu0 %v9835
      %10513 = vmatprep.subr.mxu0 %v9840
      %10514 = vmatpush1.msra.mxu0 %v9839
      %10515 = vmatprep.subr.mxu0 %v9844
      %10516 = vmatpush1.msra.mxu0 %v9843
      %10517 = vmatprep.subr.mxu0 %v9848
      %10518 = vmatpush1.msra.mxu0 %v9847
      %10519 = vmatprep.subr.mxu0 %v9852
      %10520 = vmatpush1.msra.mxu0 %v9851
      %10521 = vmatprep.subr.mxu0 %v9856
      %10522 = vmatpush1.msra.mxu0 %v9855
      %10523 = vmatprep.subr.mxu0 %v9860
      %10524 = vmatpush1.msra.mxu0 %v9859
      %10525 = vmatprep.subr.mxu0 %v9864
      %10526 = vmatpush1.msra.mxu0 %v9863
      %10527 = vmatprep.subr.mxu0 %v9868
      %10528 = vmatpush1.msra.mxu0 %v9867
      %10529 = vmatprep.subr.mxu0 %v9872
      %10530 = vmatpush1.msra.mxu0 %v9871
      %10531 = vmatprep.mubr.f32.mxu0 %v10052
      %10532 = vmatmul.mubr.f32.gmra.mrb[0].mxu0 %v10051
      %v10533 = vpop.f32.mrb[0].mxu0
      %v10534 = vadd.f32 %v10457, %v10533
      %v10535 = vpop.f32.mrb[0].mxu0
      %v10536 = vadd.f32 %v10459, %v10535
      %10537 = vmatprep.mubr.f32.mxu0 %v10059
      %10538 = vmatmul.mubr.f32.gmra.mrb[0].mxu0 %v10058
      %v10539 = vpop.f32.mrb[0].mxu0
      %v10540 = vadd.f32 %v10463, %v10539
      %v10541 = vpop.f32.mrb[0].mxu0
      %v10542 = vadd.f32 %v10465, %v10541
      %10543 = vdwg.mxu0
      %10544 = vmatprep.subr.mxu0 %v9876
      %10545 = vmatpush1.msra.mxu0 %v9875
      %10546 = vmatprep.subr.mxu0 %v9880
      %10547 = vmatpush1.msra.mxu0 %v9879
      %10548 = vmatprep.subr.mxu0 %v9884
      %10549 = vmatpush1.msra.mxu0 %v9883
      %10550 = vmatprep.subr.mxu0 %v9888
      %10551 = vmatpush1.msra.mxu0 %v9887
      %10552 = vmatprep.subr.mxu0 %v9892
      %10553 = vmatpush1.msra.mxu0 %v9891
      %10554 = vmatprep.subr.mxu0 %v9896
      %10555 = vmatpush1.msra.mxu0 %v9895
      %10556 = vmatprep.subr.mxu0 %v9900
      %10557 = vmatpush1.msra.mxu0 %v9899
      %10558 = vmatprep.subr.mxu0 %v9904
      %10559 = vmatpush1.msra.mxu0 %v9903
      %10560 = vmatprep.subr.mxu0 %v9908
      %10561 = vmatpush1.msra.mxu0 %v9907
      %10562 = vmatprep.subr.mxu0 %v9912
      %10563 = vmatpush1.msra.mxu0 %v9911
      %10564 = vmatprep.subr.mxu0 %v9916
      %10565 = vmatpush1.msra.mxu0 %v9915
      %10566 = vmatprep.subr.mxu0 %v9920
      %10567 = vmatpush1.msra.mxu0 %v9919
      %10568 = vmatprep.subr.mxu0 %v9924
      %10569 = vmatpush1.msra.mxu0 %v9923
      %10570 = vmatprep.subr.mxu0 %v9928
      %10571 = vmatpush1.msra.mxu0 %v9927
      %10572 = vmatprep.subr.mxu0 %v9932
      %10573 = vmatpush1.msra.mxu0 %v9931
      %10574 = vmatprep.subr.mxu0 %v9936
      %10575 = vmatpush1.msra.mxu0 %v9935
      %10576 = vmatprep.subr.mxu0 %v9940
      %10577 = vmatpush1.msra.mxu0 %v9939
      %10578 = vmatprep.subr.mxu0 %v9944
      %10579 = vmatpush1.msra.mxu0 %v9943
      %10580 = vmatprep.subr.mxu0 %v9948
      %10581 = vmatpush1.msra.mxu0 %v9947
      %10582 = vmatprep.subr.mxu0 %v9952
      %10583 = vmatpush1.msra.mxu0 %v9951
      %10584 = vmatprep.subr.mxu0 %v9956
      %10585 = vmatpush1.msra.mxu0 %v9955
      %10586 = vmatprep.subr.mxu0 %v9960
      %10587 = vmatpush1.msra.mxu0 %v9959
      %10588 = vmatprep.subr.mxu0 %v9964
      %10589 = vmatpush1.msra.mxu0 %v9963
      %10590 = vmatprep.subr.mxu0 %v9968
      %10591 = vmatpush1.msra.mxu0 %v9967
      %10592 = vmatprep.subr.mxu0 %v9972
      %10593 = vmatpush1.msra.mxu0 %v9971
      %10594 = vmatprep.subr.mxu0 %v9976
      %10595 = vmatpush1.msra.mxu0 %v9975
      %10596 = vmatprep.subr.mxu0 %v9980
      %10597 = vmatpush1.msra.mxu0 %v9979
      %10598 = vmatprep.subr.mxu0 %v9984
      %10599 = vmatpush1.msra.mxu0 %v9983
      %10600 = vmatprep.subr.mxu0 %v9988
      %10601 = vmatpush1.msra.mxu0 %v9987
      %10602 = vmatprep.subr.mxu0 %v9992
      %10603 = vmatpush1.msra.mxu0 %v9991
      %10604 = vmatprep.subr.mxu0 %v9996
      %10605 = vmatpush1.msra.mxu0 %v9995
      %10606 = vmatprep.subr.mxu0 %v10000
      %10607 = vmatpush1.msra.mxu0 %v9999
      %10608 = vmatprep.mubr.f32.mxu0 %v10054
      %10609 = vmatmul.mubr.f32.gmra.mrb[0].mxu0 %v10053
      %v10610 = vpop.f32.mrb[0].mxu0
      %v10611 = vadd.f32 %v10534, %v10610
      %v10612 = vpop.f32.mrb[0].mxu0
      %v10613 = vadd.f32 %v10536, %v10612
      %10614 = vmatprep.mubr.f32.mxu0 %v10061
      %10615 = vmatmul.mubr.f32.gmra.mrb[0].mxu0 %v10060
      %v10616 = vpop.f32.mrb[0].mxu0
      %v10617 = vadd.f32 %v10540, %v10616
      %v10618 = vpop.f32.mrb[0].mxu0
      %v10619 = vadd.f32 %v10542, %v10618
      %10620 = vdwg.mxu0
      %10621 = vmatprep.subr.mxu0 %v10004
      %10622 = vmatpush1.msra.mxu0 %v10003
      %10623 = vmatprep.subr.mxu0 %v10008
      %10624 = vmatpush1.msra.mxu0 %v10007
      %10625 = vmatprep.subr.mxu0 %v10012
      %10626 = vmatpush1.msra.mxu0 %v10011
      %10627 = vmatprep.subr.mxu0 %v10016
      %10628 = vmatpush1.msra.mxu0 %v10015
      %10629 = vmatprep.subr.mxu0 %v10020
      %10630 = vmatpush1.msra.mxu0 %v10019
      %10631 = vmatprep.subr.mxu0 %v10024
      %10632 = vmatpush1.msra.mxu0 %v10023
      %10633 = vmatprep.subr.mxu0 %v10028
      %10634 = vmatpush1.msra.mxu0 %v10027
      %10635 = vmatprep.subr.mxu0 %v10032
      %10636 = vmatpush1.msra.mxu0 %v10031
      %10637 = vmatprep.subr.mxu0 %v10036
      %10638 = vmatpush1.msra.mxu0 %v10035
      %10639 = vmatprep.subr.mxu0 %v10040
      %10640 = vmatpush1.msra.mxu0 %v10039
      %10641 = vmatprep.subr.mxu0 %v10044
      %10642 = vmatpush1.msra.mxu0 %v10043
      %10643 = vmatprep.subr.mxu0 %v10048
      %10644 = vmatpush1.msra.mxu0 %v10047
      %10645 = vmatprep.subr.mxu0 0.0
      %10646 = vmatpush1.msra.mxu0 0.0
      %10647 = vmatprep.subr.mxu0 0.0
      %10648 = vmatpush1.msra.mxu0 0.0
      %10649 = vmatprep.subr.mxu0 0.0
      %10650 = vmatpush1.msra.mxu0 0.0
      %10651 = vmatprep.subr.mxu0 0.0
      %10652 = vmatpush1.msra.mxu0 0.0
      %10653 = vmatprep.subr.mxu0 0.0
      %10654 = vmatpush1.msra.mxu0 0.0
      %10655 = vmatprep.subr.mxu0 0.0
      %10656 = vmatpush1.msra.mxu0 0.0
      %10657 = vmatprep.subr.mxu0 0.0
      %10658 = vmatpush1.msra.mxu0 0.0
      %10659 = vmatprep.subr.mxu0 0.0
      %10660 = vmatpush1.msra.mxu0 0.0
      %10661 = vmatprep.subr.mxu0 0.0
      %10662 = vmatpush1.msra.mxu0 0.0
      %10663 = vmatprep.subr.mxu0 0.0
      %10664 = vmatpush1.msra.mxu0 0.0
      %10665 = vmatprep.subr.mxu0 0.0
      %10666 = vmatpush1.msra.mxu0 0.0
      %10667 = vmatprep.subr.mxu0 0.0
      %10668 = vmatpush1.msra.mxu0 0.0
      %10669 = vmatprep.subr.mxu0 0.0
      %10670 = vmatpush1.msra.mxu0 0.0
      %10671 = vmatprep.subr.mxu0 0.0
      %10672 = vmatpush1.msra.mxu0 0.0
      %10673 = vmatprep.subr.mxu0 0.0
      %10674 = vmatpush1.msra.mxu0 0.0
      %10675 = vmatprep.subr.mxu0 0.0
      %10676 = vmatpush1.msra.mxu0 0.0
      %10677 = vmatprep.subr.mxu0 0.0
      %10678 = vmatpush1.msra.mxu0 0.0
      %10679 = vmatprep.subr.mxu0 0.0
      %10680 = vmatpush1.msra.mxu0 0.0
      %10681 = vmatprep.subr.mxu0 0.0
      %10682 = vmatpush1.msra.mxu0 0.0
      %10683 = vmatprep.subr.mxu0 0.0
      %10684 = vmatpush1.msra.mxu0 0.0
      %10685 = vmatprep.mubr.f32.mxu0 0.0
      %10686 = vmatmul.mubr.f32.gmra.mrb[0].mxu0 %v10077
      %v10687 = vpop.f32.mrb[0].mxu0
      %v10688 = vadd.f32 %v10611, %v10687
      %v10689 = vpop.f32.mrb[0].mxu0
      %v10690 = vadd.f32 %v10613, %v10689
      %10691 = vmatprep.mubr.f32.mxu0 0.0
      %10692 = vmatmul.mubr.f32.gmra.mrb[0].mxu0 %v10080
      %v10693 = vpop.f32.mrb[0].mxu0
      %v10694 = vadd.f32 %v10617, %v10693
      %v10695 = vpop.f32.mrb[0].mxu0
      %v10696 = vadd.f32 %v10619, %v10695
      %10697 = vdwg.mxu0
      %v10698 = vmax.f32 %v10380, 0.0
      %v10699 = vmax.f32 %v10382, 0.0
      %v10700 = vmax.f32 %v10688, 0.0
      %v10701 = vmax.f32 %v10690, 0.0
      %v10702 = vmax.f32 %v10386, 0.0
      %v10703 = vmax.f32 %v10388, 0.0
      %v10704 = vmax.f32 %v10694, 0.0
      %v10705 = vmax.f32 %v10696, 0.0
      %v10706 = vld [vmem:[%s8] sm:$0xff]
      %v10707 = vld [vmem:[%s9] sm:$0xff]
      %10709 = vset.pattern.permute.xlu0 0
      %10710 = vperm.xlu0 %10709, %v10707
      %v10711 = vpop.permute.xlu0 %10710
      %v10714 = vsel %vm789, %v10706, 0
      %10716 = vmatprep.subr.mxu0 %v10699
      %10717 = vmatpush1.msra.mxu0 %v10698
      %10718 = vmatprep.subr.mxu0 %v10703
      %10719 = vmatpush1.msra.mxu0 %v10702
      %10720 = vmatprep.subr.mxu0 0.0
      %10721 = vmatpush1.msra.mxu0 0.0
      %10722 = vmatprep.subr.mxu0 0.0
      %10723 = vmatpush1.msra.mxu0 0.0
      %10724 = vmatprep.subr.mxu0 0.0
      %10725 = vmatpush1.msra.mxu0 0.0
      %10726 = vmatprep.subr.mxu0 0.0
      %10727 = vmatpush1.msra.mxu0 0.0
      %10728 = vmatprep.subr.mxu0 0.0
      %10729 = vmatpush1.msra.mxu0 0.0
      %10730 = vmatprep.subr.mxu0 0.0
      %10731 = vmatpush1.msra.mxu0 0.0
      %10732 = vmatprep.subr.mxu0 0.0
      %10733 = vmatpush1.msra.mxu0 0.0
      %10734 = vmatprep.subr.mxu0 0.0
      %10735 = vmatpush1.msra.mxu0 0.0
      %10736 = vmatprep.subr.mxu0 0.0
      %10737 = vmatpush1.msra.mxu0 0.0
      %10738 = vmatprep.subr.mxu0 0.0
      %10739 = vmatpush1.msra.mxu0 0.0
      %10740 = vmatprep.subr.mxu0 0.0
      %10741 = vmatpush1.msra.mxu0 0.0
      %10742 = vmatprep.subr.mxu0 0.0
      %10743 = vmatpush1.msra.mxu0 0.0
      %10744 = vmatprep.subr.mxu0 0.0
      %10745 = vmatpush1.msra.mxu0 0.0
      %10746 = vmatprep.subr.mxu0 0.0
      %10747 = vmatpush1.msra.mxu0 0.0
      %10748 = vmatprep.subr.mxu0 0.0
      %10749 = vmatpush1.msra.mxu0 0.0
      %10750 = vmatprep.subr.mxu0 0.0
      %10751 = vmatpush1.msra.mxu0 0.0
      %10752 = vmatprep.subr.mxu0 0.0
      %10753 = vmatpush1.msra.mxu0 0.0
      %10754 = vmatprep.subr.mxu0 0.0
      %10755 = vmatpush1.msra.mxu0 0.0
      %10756 = vmatprep.subr.mxu0 0.0
      %10757 = vmatpush1.msra.mxu0 0.0
      %10758 = vmatprep.subr.mxu0 0.0
      %10759 = vmatpush1.msra.mxu0 0.0
      %10760 = vmatprep.subr.mxu0 0.0
      %10761 = vmatpush1.msra.mxu0 0.0
      %10762 = vmatprep.subr.mxu0 0.0
      %10763 = vmatpush1.msra.mxu0 0.0
      %10764 = vmatprep.subr.mxu0 0.0
      %10765 = vmatpush1.msra.mxu0 0.0
      %10766 = vmatprep.subr.mxu0 0.0
      %10767 = vmatpush1.msra.mxu0 0.0
      %10768 = vmatprep.subr.mxu0 0.0
      %10769 = vmatpush1.msra.mxu0 0.0
      %10770 = vmatprep.subr.mxu0 0.0
      %10771 = vmatpush1.msra.mxu0 0.0
      %10772 = vmatprep.subr.mxu0 0.0
      %10773 = vmatpush1.msra.mxu0 0.0
      %10774 = vmatprep.subr.mxu0 0.0
      %10775 = vmatpush1.msra.mxu0 0.0
      %10776 = vmatprep.subr.mxu0 0.0
      %10777 = vmatpush1.msra.mxu0 0.0
      %10778 = vmatprep.subr.mxu0 0.0
      %10779 = vmatpush1.msra.mxu0 0.0
      %10780 = vmatprep.mubr.f32.mxu0 0.0
      %10781 = vmatmul.mubr.f32.gmra.mrb[0].mxu0 %v10714
      %v10782 = vpop.f32.mrb[0].mxu0
      %v10783 = vadd.f32 %v10711, %v10782
      %v10784 = vpop.f32.mrb[0].mxu0
      %v10785 = vadd.f32 %v10711, %v10784
      %10786 = vdwg.mxu0
      %10787 = vmatprep.subr.mxu0 %v10701
      %10788 = vmatpush1.msra.mxu0 %v10700
      %10789 = vmatprep.subr.mxu0 %v10705
      %10790 = vmatpush1.msra.mxu0 %v10704
      %10791 = vmatprep.subr.mxu0 0.0
      %10792 = vmatpush1.msra.mxu0 0.0
      %10793 = vmatprep.subr.mxu0 0.0
      %10794 = vmatpush1.msra.mxu0 0.0
      %10795 = vmatprep.subr.mxu0 0.0
      %10796 = vmatpush1.msra.mxu0 0.0
      %10797 = vmatprep.subr.mxu0 0.0
      %10798 = vmatpush1.msra.mxu0 0.0
      %10799 = vmatprep.subr.mxu0 0.0
      %10800 = vmatpush1.msra.mxu0 0.0
      %10801 = vmatprep.subr.mxu0 0.0
      %10802 = vmatpush1.msra.mxu0 0.0
      %10803 = vmatprep.subr.mxu0 0.0
      %10804 = vmatpush1.msra.mxu0 0.0
      %10805 = vmatprep.subr.mxu0 0.0
      %10806 = vmatpush1.msra.mxu0 0.0
      %10807 = vmatprep.subr.mxu0 0.0
      %10808 = vmatpush1.msra.mxu0 0.0
      %10809 = vmatprep.subr.mxu0 0.0
      %10810 = vmatpush1.msra.mxu0 0.0
      %10811 = vmatprep.subr.mxu0 0.0
      %10812 = vmatpush1.msra.mxu0 0.0
      %10813 = vmatprep.subr.mxu0 0.0
      %10814 = vmatpush1.msra.mxu0 0.0
      %10815 = vmatprep.subr.mxu0 0.0
      %10816 = vmatpush1.msra.mxu0 0.0
      %10817 = vmatprep.subr.mxu0 0.0
      %10818 = vmatpush1.msra.mxu0 0.0
      %10819 = vmatprep.subr.mxu0 0.0
      %10820 = vmatpush1.msra.mxu0 0.0
      %10821 = vmatprep.subr.mxu0 0.0
      %10822 = vmatpush1.msra.mxu0 0.0
      %10823 = vmatprep.subr.mxu0 0.0
      %10824 = vmatpush1.msra.mxu0 0.0
      %10825 = vmatprep.subr.mxu0 0.0
      %10826 = vmatpush1.msra.mxu0 0.0
      %10827 = vmatprep.subr.mxu0 0.0
      %10828 = vmatpush1.msra.mxu0 0.0
      %10829 = vmatprep.subr.mxu0 0.0
      %10830 = vmatpush1.msra.mxu0 0.0
      %10831 = vmatprep.subr.mxu0 0.0
      %10832 = vmatpush1.msra.mxu0 0.0
      %10833 = vmatprep.subr.mxu0 0.0
      %10834 = vmatpush1.msra.mxu0 0.0
      %10835 = vmatprep.subr.mxu0 0.0
      %10836 = vmatpush1.msra.mxu0 0.0
      %10837 = vmatprep.subr.mxu0 0.0
      %10838 = vmatpush1.msra.mxu0 0.0
      %10839 = vmatprep.subr.mxu0 0.0
      %10840 = vmatpush1.msra.mxu0 0.0
      %10841 = vmatprep.subr.mxu0 0.0
      %10842 = vmatpush1.msra.mxu0 0.0
      %10843 = vmatprep.subr.mxu0 0.0
      %10844 = vmatpush1.msra.mxu0 0.0
      %10845 = vmatprep.subr.mxu0 0.0
      %10846 = vmatpush1.msra.mxu0 0.0
      %10847 = vmatprep.subr.mxu0 0.0
      %10848 = vmatpush1.msra.mxu0 0.0
      %10849 = vmatprep.subr.mxu0 0.0
      %10850 = vmatpush1.msra.mxu0 0.0
      %10851 = vmatprep.mubr.f32.mxu0 0.0
      %10852 = vmatmul.mubr.f32.gmra.mrb[0].mxu0 %v10714
      %v10853 = vpop.f32.mrb[0].mxu0
      %v10854 = vadd.f32 %v10711, %v10853
      %v10855 = vpop.f32.mrb[0].mxu0
      %v10856 = vadd.f32 %v10711, %v10855
      %10857 = vdwg.mxu0
      %v10858 = vrot.slane %v10783, 4
      %v10859 = vmax.f32 %v10783, %v10858
      %v10860 = vrot.slane %v10859, 2
      %v10861 = vmax.f32 %v10859, %v10860
      %v10862 = vrot.slane %v10861, 1
      %v10863 = vmax.f32 %v10861, %v10862
      %v10864 = vrot.slane %v10785, 4
      %v10865 = vmax.f32 %v10785, %v10864
      %v10866 = vrot.slane %v10865, 2
      %v10867 = vmax.f32 %v10865, %v10866
      %v10868 = vrot.slane %v10867, 1
      %v10869 = vmax.f32 %v10867, %v10868
      %v10870 = vrot.slane %v10854, 4
      %v10871 = vmax.f32 %v10854, %v10870
      %v10872 = vrot.slane %v10871, 2
      %v10873 = vmax.f32 %v10871, %v10872
      %v10874 = vrot.slane %v10873, 1
      %v10875 = vmax.f32 %v10873, %v10874
      %v10876 = vrot.slane %v10856, 4
      %v10877 = vmax.f32 %v10856, %v10876
      %v10878 = vrot.slane %v10877, 2
      %v10879 = vmax.f32 %v10877, %v10878
      %v10880 = vrot.slane %v10879, 1
      %v10881 = vmax.f32 %v10879, %v10880
      %v10882 = vsub.f32 %v10783, %v10863
      %v10883 = vsub.f32 %v10785, %v10869
      %v10884 = vsub.f32 %v10854, %v10875
      %v10885 = vsub.f32 %v10856, %v10881
      %v10886 = vmul.f32 %v10882, 1.442695
      %v10887 = vpow.pop %v10886
      %v10888 = vmul.f32 %v10883, 1.442695
      %v10889 = vpow.pop %v10888
      %v10890 = vmul.f32 %v10884, 1.442695
      %v10891 = vpow.pop %v10890
      %v10892 = vmul.f32 %v10885, 1.442695
      %v10893 = vpow.pop %v10892
      %v10894 = vrot.slane %v10887, 4
      %v10895 = vadd.f32 %v10887, %v10894
      %v10896 = vrot.slane %v10895, 2
      %v10897 = vadd.f32 %v10895, %v10896
      %v10898 = vrot.slane %v10897, 1
      %v10899 = vadd.f32 %v10897, %v10898
      %v10900 = vrot.slane %v10889, 4
      %v10901 = vadd.f32 %v10889, %v10900
      %v10902 = vrot.slane %v10901, 2
      %v10903 = vadd.f32 %v10901, %v10902
      %v10904 = vrot.slane %v10903, 1
      %v10905 = vadd.f32 %v10903, %v10904
      %v10906 = vrot.slane %v10891, 4
      %v10907 = vadd.f32 %v10891, %v10906
      %v10908 = vrot.slane %v10907, 2
      %v10909 = vadd.f32 %v10907, %v10908
      %v10910 = vrot.slane %v10909, 1
      %v10911 = vadd.f32 %v10909, %v10910
      %v10912 = vrot.slane %v10893, 4
      %v10913 = vadd.f32 %v10893, %v10912
      %v10914 = vrot.slane %v10913, 2
      %v10915 = vadd.f32 %v10913, %v10914
      %v10916 = vrot.slane %v10915, 1
      %v10917 = vadd.f32 %v10915, %v10916
      %v10918 = vrcp.pop %v10899
      %v10919 = vrcp.pop %v10905
      %v10920 = vrcp.pop %v10911
      %v10921 = vrcp.pop %v10917
      %v10922 = vmul.f32 %v10887, %v10918
      %v10923 = vmul.f32 %v10889, %v10919
      %v10924 = vmul.f32 %v10891, %v10920
      %v10925 = vmul.f32 %v10893, %v10921
      %10926 = vst [vmem:[%s359] sm:$0xff] %v10922
      %10927 = vst [vmem:[%s359 + $0x8] sm:$0xff] %v10923
      %10928 = vst [vmem:[%s359 + $0x10] sm:$0xff] %v10924
      %10929 = vst [vmem:[%s359 + $0x18] sm:$0xff] %v10925
      %p10930 = scmp.lt.s32.totalorder %s21, 1
      %s10931 = scalar_select %p10930, %s21, 1
      %s10932 = smul.addr %s10931, 4
      %s10933 = smul.addr %s10932, 8
      %s10934 = scalar_lea.vmem %s10, %s10933
      // Predicated region
      $region61: #{vnet_forward.1} parent=59 // pred_check
        %p10935 = pneg %p254
      $region62: #{vnet_forward.1} parent=59 // pred_check_branch
        %10937 = sbr.rel (%p10935) target = $region64
      $region63: #{vnet_forward.1} parent=59 // pred_region
        _
      $region64: #{vnet_forward.1} parent=59 // pred_fallthru
        _
    $region60: #{vnet_forward.1} parent=5 // pred_fallthru
      _
    %p10938 = scmp.le.s32.totalorder 2, %s16
    // Predicated region
    $region65: #{vnet_forward.1} parent=5 // pred_check
      %p10939 = pneg %p10938
    $region66: #{vnet_forward.1} parent=5 // pred_check_branch
      %10941 = sbr.rel (%p10939) target = $region68
    $region67: #{vnet_forward.1} parent=5 // pred_region
      %s10942 = ssub.s32 %s16, 2
      // Predicated region
      $region69: #{vnet_forward.1} parent=67 // pred_check
        %p10943 = pneg %p260
      $region70: #{vnet_forward.1} parent=67 // pred_check_branch
        %10945 = sbr.rel (%p10943) target = $region72
      $region71: #{vnet_forward.1} parent=67 // pred_region
        %p10946 = scmp.lt.s32.totalorder %s22, 1
        %s10947 = scalar_select %p10946, %s22, 1
        %s10948 = smul.addr %s10947, 4
        %s10949 = smul.addr %s10948, 8
        %s10950 = scalar_lea.vmem %s10, %s10949
      $region72: #{vnet_forward.1} parent=67 // pred_fallthru
        _
    $region68: #{vnet_forward.1} parent=5 // pred_fallthru
      _
  $region6: #{vnet_forward.1} parent=0 // loop_footer
    %s20 = sadd.s32 1, %s16
  $region7: #{vnet_forward.1} parent=0 // loop_footer_branch
    %15 = sbr.rel target = $region3
  $region8: #{vnet_forward.1} parent=0 // loop_exit
    _

</llo_original>
